<compile_context>
chip_gen: v7x
topology: tpu7x:2x2x1
jax: 0.10.0
libtpu: 0.0.40
codegen_flags: <defaults>
</compile_context>

<pallas_src>
import functools

import numpy as np
import jax
import jax.numpy as jnp
from jax import lax
from jax.experimental import pallas as pl
from jax.experimental.pallas import tpu as pltpu


# Lane-padded feature widths for the two conv stages.
_C1_COLS = 896    # 12*12*6 = 864 pooled conv1 features, padded to 7*128 lanes
_C2_COLS = 1024   # 4 pool offsets * (4*4*16 = 256) conv2 features, 256 = 2*128


# ----------------------------------------------------------------------------
# The single fused kernel: conv1+pool1 + conv2+pool2 + fc1..fc3 + layer3.
# ----------------------------------------------------------------------------
def _lenet_kernel(x4_ref, w1_ref, b1_ref, w2_ref, b2_ref,
                  fc1w_ref, fc1b_ref, fc2w_ref, fc2b_ref, fc3w_ref, fc3b_ref,
                  l3aw_ref, l3ab_ref, l3bw_ref, l3bb_ref, l3cw_ref, l3cb_ref,
                  o_ref):
    n_off, bt, k1 = x4_ref.shape            # (4 pool offsets, batch tile, 729)

    # --- conv1 + bias + ReLU + 2x2 max-pool: ONE MXU matmul ------------------
    # Rows are (pool-offset d, image b); a 4-plane max implements the pool.
    xs = x4_ref[...].reshape(n_off * bt, k1)                         # bf16
    h1 = jnp.dot(xs, w1_ref[...], preferred_element_type=jnp.float32)
    h1 = h1.reshape(n_off, bt, _C1_COLS)
    r1 = jnp.maximum(jnp.max(h1, axis=0) + b1_ref[...], 0.0)        # [bt, 896]

    # --- conv2 + bias + ReLU + 2x2 max-pool: ONE MXU matmul ------------------
    # Pool-offset groups occupy 256-lane column chunks, so the pool is a VPU
    # max over four 128-aligned lane slices; the surviving 256 columns are
    # already in fc1's (h, w, c) flatten order.
    h2 = jnp.dot(r1.astype(jnp.bfloat16), w2_ref[...],
                 preferred_element_type=jnp.float32)                 # [bt, 1024]
    pooled = jnp.maximum(jnp.maximum(h2[:, 0:256], h2[:, 256:512]),
                         jnp.maximum(h2[:, 512:768], h2[:, 768:1024]))
    z = jnp.maximum(pooled + b2_ref[...], 0.0)                       # [bt, 256]

    # --- FC tail (all weights VMEM-resident; single K=256 fc1 dot) -----------
    z = jnp.maximum(jnp.dot(z, fc1w_ref[...], preferred_element_type=jnp.float32)
                    + fc1b_ref[...], 0.0)                            # [bt, 120]
    z = jnp.maximum(jnp.dot(z, fc2w_ref[...], preferred_element_type=jnp.float32)
                    + fc2b_ref[...], 0.0)                            # [bt, 84]
    z = jnp.dot(z, fc3w_ref[...], preferred_element_type=jnp.float32) + fc3b_ref[...]  # [bt, 10]
    # layer3: Flatten is a no-op on [bt, 10]
    z = jnp.maximum(jnp.dot(z, l3aw_ref[...], preferred_element_type=jnp.float32)
                    + l3ab_ref[...], 0.0)                            # [bt, 64]
    z = jnp.maximum(jnp.dot(z, l3bw_ref[...], preferred_element_type=jnp.float32)
                    + l3bb_ref[...], 0.0)                            # [bt, 32]
    z = jnp.dot(z, l3cw_ref[...], preferred_element_type=jnp.float32) + l3cb_ref[...]  # [bt, 10]
    o_ref[...] = z.astype(o_ref.dtype)


# ----------------------------------------------------------------------------
# Weight-side prep: fold conv structure + pooling layout into dense matrices.
# (Trace-time constants; activations are never transposed XLA-side.)
# ----------------------------------------------------------------------------
def _densify_conv1(w1, b1):
    """conv1 [6,1,5,5] -> [729, 896] bf16 matmul weight + tiled bias [1, 896].

    Row r*27+c indexes a (di,dj)-shifted 27x27 view of the image; column
    (ph*12+pw)*6+oc is the pooled conv1 feature (position-major, channel-minor).
    The weight is identical for all 4 pool offsets (the shift lives in the
    input), columns 864..895 are zero padding."""
    ph, pw, oc, i, j = np.meshgrid(np.arange(12), np.arange(12), np.arange(6),
                                   np.arange(5), np.arange(5), indexing="ij")
    rows = (2 * ph + i) * 27 + (2 * pw + j)
    cols = (ph * 12 + pw) * 6 + oc
    vals = w1[oc, 0, i, j]
    wd = jnp.zeros((729, _C1_COLS), jnp.float32).at[rows, cols].set(vals)
    bt = jnp.zeros((1, _C1_COLS), jnp.float32).at[0, :864].set(jnp.tile(b1, 144))
    return wd.astype(jnp.bfloat16), bt


def _densify_conv2(w2, b2):
    """conv2 [16,6,5,5] -> [896, 1024] bf16 matmul weight + tiled bias [1, 256].

    Row (ih*12+iw)*6+ic matches the pool1 output layout produced by conv1;
    column d*256 + ph*64 + pw*16 + oc groups the 4 pool offsets d into aligned
    256-lane chunks whose within-chunk order is fc1's (h, w, c) flatten order."""
    d, ph, pw, oc, ic, i, j = np.meshgrid(
        np.arange(4), np.arange(4), np.arange(4), np.arange(16),
        np.arange(6), np.arange(5), np.arange(5), indexing="ij")
    di, dj = d // 2, d % 2
    rows = ((2 * ph + di + i) * 12 + (2 * pw + dj + j)) * 6 + ic
    cols = d * 256 + ph * 64 + pw * 16 + oc
    vals = w2[oc, ic, i, j]
    wd = jnp.zeros((_C1_COLS, _C2_COLS), jnp.float32).at[rows, cols].set(vals)
    bt = jnp.tile(b2, 16).reshape(1, 256)
    return wd.astype(jnp.bfloat16), bt


# ----------------------------------------------------------------------------
# Forward pass (mirrors LeNet.forward exactly).
# ----------------------------------------------------------------------------
def lenet_forward(p, x, *, block_batch=16):
    """x: [B, 1, 28, 28] float32 -> logits [B, 10] float32.

    block_batch: images per grid step.  16 amortizes per-step overhead, keeps
    the per-step working set ~8 MiB (fits v7x's 64 MiB VMEM with big margin)
    and still gives multiple 'parallel' steps for v7x's two TensorCores; on
    v5e/v6e it can be raised freely."""
    B = x.shape[0]

    # Weight-side prep (tiny, one-time under jit; all permutations live here).
    w1d, b1t = _densify_conv1(p["conv1_w"], p["conv1_b"])
    w2d, b2t = _densify_conv2(p["conv2_w"], p["conv2_b"])
    fc1w = jnp.transpose(p["fc1_w"].reshape(16, 4, 4, 120),
                         (1, 2, 0, 3)).reshape(256, 120)   # (c,h,w) -> (h,w,c) rows
    weights = (
        w1d, b1t, w2d, b2t,
        fc1w, p["fc1_b"].reshape(1, 120),
        p["fc2_w"], p["fc2_b"].reshape(1, 84),
        p["fc3_w"], p["fc3_b"].reshape(1, 10),
        p["l3a_w"], p["l3a_b"].reshape(1, 64),
        p["l3b_w"], p["l3b_b"].reshape(1, 32),
        p["l3c_w"], p["l3c_b"].reshape(1, 10),
    )

    # Activation-side prep: four (di,dj)-shifted 27x27 views of the raw image,
    # flattened and cast to bf16.  Plain contiguous slices -- no transposes,
    # no im2col inflation (~6 KB/image streamed into the kernel).
    x2 = x.reshape(B, 28, 28).astype(jnp.bfloat16)
    views = [x2[:, di:di + 27, dj:dj + 27].reshape(B, 729)
             for di in range(2) for dj in range(2)]
    x4 = jnp.stack(views, axis=0)                                   # [4, B, 729]

    # Batch tiling (pad B up to a multiple of the tile; padded logits sliced off).
    if B <= block_batch:
        bt, b_pad = B, B
    else:
        bt = max(8, (block_batch // 8) * 8)
        b_pad = ((B + bt - 1) // bt) * bt
    if b_pad != B:
        x4 = jnp.pad(x4, ((0, 0), (0, b_pad - B), (0, 0)))

    const = lambda i: (0, 0)   # weights: fetched once, VMEM-resident across steps
    out = pl.pallas_call(
        _lenet_kernel,
        out_shape=jax.ShapeDtypeStruct((b_pad, 10), jnp.float32),
        grid=(b_pad // bt,),
        in_specs=[pl.BlockSpec((4, bt, 729), lambda i: (0, i, 0))]
                 + [pl.BlockSpec(w.shape, const) for w in weights],
        out_specs=pl.BlockSpec((bt, 10), lambda i: (i, 0)),
        compiler_params=pltpu.CompilerParams(
            dimension_semantics=("parallel",),
            vmem_limit_bytes=32 * 1024 * 1024),
    )(x4, *weights)
    return out[:B]


# ----------------------------------------------------------------------------
# Pure-XLA f32 reference (mirrors the PyTorch module) for a tolerance check.
# ----------------------------------------------------------------------------
def lenet_reference(p, x):
    y = lax.conv_general_dilated(x, p["conv1_w"], (1, 1), "VALID",
                                 dimension_numbers=("NCHW", "OIHW", "NCHW"))
    y = jax.nn.relu(y + p["conv1_b"].reshape(1, 6, 1, 1))
    y = lax.reduce_window(y, -jnp.inf, lax.max, (1, 1, 2, 2), (1, 1, 2, 2), "VALID")
    y = lax.conv_general_dilated(y, p["conv2_w"], (1, 1), "VALID",
                                 dimension_numbers=("NCHW", "OIHW", "NCHW"))
    y = jax.nn.relu(y + p["conv2_b"].reshape(1, 16, 1, 1))
    y = lax.reduce_window(y, -jnp.inf, lax.max, (1, 1, 2, 2), (1, 1, 2, 2), "VALID")
    y = y.reshape(y.shape[0], 256)                   # PyTorch (c, h, w) flatten
    y = jax.nn.relu(y @ p["fc1_w"] + p["fc1_b"])
    y = jax.nn.relu(y @ p["fc2_w"] + p["fc2_b"])
    y = y @ p["fc3_w"] + p["fc3_b"]
    y = jax.nn.relu(y @ p["l3a_w"] + p["l3a_b"])
    y = jax.nn.relu(y @ p["l3b_w"] + p["l3b_b"])
    return y @ p["l3c_w"] + p["l3c_b"]


# ----------------------------------------------------------------------------
# LeNet parameters (deterministic init, PyTorch-default-style uniform)
# ----------------------------------------------------------------------------
def _uniform(key, shape, fan_in):
    bound = 1.0 / jnp.sqrt(jnp.float32(fan_in))
    return jax.random.uniform(key, shape, jnp.float32, -bound, bound)


def init_lenet_params(key):
    ks = jax.random.split(key, 18)
    p = {}
    p["conv1_w"] = _uniform(ks[0], (6, 1, 5, 5), 1 * 5 * 5)
    p["conv1_b"] = _uniform(ks[1], (6,), 1 * 5 * 5)
    p["conv2_w"] = _uniform(ks[2], (16, 6, 5, 5), 6 * 5 * 5)
    p["conv2_b"] = _uniform(ks[3], (16,), 6 * 5 * 5)
    p["fc1_w"] = _uniform(ks[4], (256, 120), 256)
    p["fc1_b"] = _uniform(ks[5], (120,), 256)
    p["fc2_w"] = _uniform(ks[6], (120, 84), 120)
    p["fc2_b"] = _uniform(ks[7], (84,), 120)
    p["fc3_w"] = _uniform(ks[8], (84, 10), 84)
    p["fc3_b"] = _uniform(ks[9], (10,), 84)
    p["l3a_w"] = _uniform(ks[10], (10, 64), 10)
    p["l3a_b"] = _uniform(ks[11], (64,), 10)
    p["l3b_w"] = _uniform(ks[12], (64, 32), 64)
    p["l3b_b"] = _uniform(ks[13], (32,), 64)
    p["l3c_w"] = _uniform(ks[14], (32, 10), 32)
    p["l3c_b"] = _uniform(ks[15], (10,), 32)
    return p


if __name__ == "__main__":
    key = jax.random.PRNGKey(0)
    pkey, xkey = jax.random.split(key)
    params = init_lenet_params(pkey)
    # Input shape implied by fc1 (in_features=256 -> 16*4*4 -> 28x28 input).
    # B=24 with block_batch=16 exercises the 2-step parallel grid AND padding.
    x = jax.random.normal(xkey, (24, 1, 28, 28), dtype=jnp.float32)

    fwd = jax.jit(functools.partial(lenet_forward, block_batch=16))
    out = fwd(params, x)
    jax.block_until_ready(out)

    assert out.shape == (24, 10), out.shape
    assert out.dtype == jnp.float32
    assert bool(jnp.all(jnp.isfinite(out)))

    # bf16 MXU operands in the kernel -> relaxed tolerance vs the f32 reference.
    ref = jax.jit(lenet_reference)(params, x)
    max_err = float(jnp.max(jnp.abs(out - ref)))
    assert bool(jnp.allclose(out, ref, atol=5e-2, rtol=5e-2)), max_err

    print("KERNEL_OK")
</pallas_src>

<mosaic_0001>
module attributes {stable_mosaic.version = 11 : i64} {
  func.func @_lenet_kernel(%arg0: i32, %arg1: memref<4x16x729xbf16, #tpu.memory_space<vmem>>, %arg2: memref<729x896xbf16, #tpu.memory_space<vmem>>, %arg3: memref<1x896xf32, #tpu.memory_space<vmem>>, %arg4: memref<896x1024xbf16, #tpu.memory_space<vmem>>, %arg5: memref<1x256xf32, #tpu.memory_space<vmem>>, %arg6: memref<256x120xf32, #tpu.memory_space<vmem>>, %arg7: memref<1x120xf32, #tpu.memory_space<vmem>>, %arg8: memref<120x84xf32, #tpu.memory_space<vmem>>, %arg9: memref<1x84xf32, #tpu.memory_space<vmem>>, %arg10: memref<84x10xf32, #tpu.memory_space<vmem>>, %arg11: memref<1x10xf32, #tpu.memory_space<vmem>>, %arg12: memref<10x64xf32, #tpu.memory_space<vmem>>, %arg13: memref<1x64xf32, #tpu.memory_space<vmem>>, %arg14: memref<64x32xf32, #tpu.memory_space<vmem>>, %arg15: memref<1x32xf32, #tpu.memory_space<vmem>>, %arg16: memref<32x10xf32, #tpu.memory_space<vmem>>, %arg17: memref<1x10xf32, #tpu.memory_space<vmem>>, %arg18: memref<16x10xf32, #tpu.memory_space<vmem>>) attributes {dimension_semantics = [#tpu.dimension_semantics<parallel>], iteration_bounds = array<i64: 2>, scalar_prefetch = 0 : i64, scratch_operands = 0 : i64, tpu.core_type = #tpu.core_type<tc>, window_params = [{transform_indices = @transform_0, window_bounds = array<i64: 4, 16, 729>}, {pipeline_mode = #tpu.pipeline_mode<synchronous>, transform_indices = @transform_1, window_bounds = array<i64: 729, 896>}, {pipeline_mode = #tpu.pipeline_mode<synchronous>, transform_indices = @transform_2, window_bounds = array<i64: 1, 896>}, {pipeline_mode = #tpu.pipeline_mode<synchronous>, transform_indices = @transform_3, window_bounds = array<i64: 896, 1024>}, {pipeline_mode = #tpu.pipeline_mode<synchronous>, transform_indices = @transform_4, window_bounds = array<i64: 1, 256>}, {pipeline_mode = #tpu.pipeline_mode<synchronous>, transform_indices = @transform_5, window_bounds = array<i64: 256, 120>}, {pipeline_mode = #tpu.pipeline_mode<synchronous>, transform_indices = @transform_6, window_bounds = array<i64: 1, 120>}, {pipeline_mode = #tpu.pipeline_mode<synchronous>, transform_indices = @transform_7, window_bounds = array<i64: 120, 84>}, {pipeline_mode = #tpu.pipeline_mode<synchronous>, transform_indices = @transform_8, window_bounds = array<i64: 1, 84>}, {pipeline_mode = #tpu.pipeline_mode<synchronous>, transform_indices = @transform_9, window_bounds = array<i64: 84, 10>}, {pipeline_mode = #tpu.pipeline_mode<synchronous>, transform_indices = @transform_10, window_bounds = array<i64: 1, 10>}, {pipeline_mode = #tpu.pipeline_mode<synchronous>, transform_indices = @transform_11, window_bounds = array<i64: 10, 64>}, {pipeline_mode = #tpu.pipeline_mode<synchronous>, transform_indices = @transform_12, window_bounds = array<i64: 1, 64>}, {pipeline_mode = #tpu.pipeline_mode<synchronous>, transform_indices = @transform_13, window_bounds = array<i64: 64, 32>}, {pipeline_mode = #tpu.pipeline_mode<synchronous>, transform_indices = @transform_14, window_bounds = array<i64: 1, 32>}, {pipeline_mode = #tpu.pipeline_mode<synchronous>, transform_indices = @transform_15, window_bounds = array<i64: 32, 10>}, {pipeline_mode = #tpu.pipeline_mode<synchronous>, transform_indices = @transform_16, window_bounds = array<i64: 1, 10>}, {transform_indices = @transform_17, window_bounds = array<i64: 16, 10>}]} {
    %c0 = arith.constant 0 : index
    %c0_0 = arith.constant 0 : index
    %c0_1 = arith.constant 0 : index
    %0 = vector.load %arg1[%c0, %c0_0, %c0_1] : memref<4x16x729xbf16, #tpu.memory_space<vmem>>, vector<4x16x729xbf16>
    %1 = vector.shape_cast %0 : vector<4x16x729xbf16> to vector<64x729xbf16>
    %c0_2 = arith.constant 0 : index
    %c0_3 = arith.constant 0 : index
    %2 = vector.load %arg2[%c0_2, %c0_3] : memref<729x896xbf16, #tpu.memory_space<vmem>>, vector<729x896xbf16>
    %cst = arith.constant dense<0.000000e+00> : vector<64x896xf32>
    %3 = tpu.matmul %1, %2, %cst {dimension_numbers = #tpu.dot_dimension_numbers<[1], [0], [0], [1], [0, 0, 1, 1], [], []>} : vector<64x729xbf16>, vector<729x896xbf16>, vector<64x896xf32> -> vector<64x896xf32>
    %4 = vector.shape_cast %3 : vector<64x896xf32> to vector<4x16x896xf32>
    %cst_4 = arith.constant dense<0xFF800000> : vector<16x896xf32>
    %5 = vector.multi_reduction <maximumf>, %4, %cst_4 [0] : vector<4x16x896xf32> to vector<16x896xf32>
    %c0_5 = arith.constant 0 : index
    %c0_6 = arith.constant 0 : index
    %6 = vector.load %arg3[%c0_5, %c0_6] : memref<1x896xf32, #tpu.memory_space<vmem>>, vector<1x896xf32>
    %7 = vector.broadcast %6 : vector<1x896xf32> to vector<16x896xf32>
    %8 = arith.addf %5, %7 : vector<16x896xf32>
    %cst_7 = arith.constant 0.000000e+00 : f32
    %9 = vector.broadcast %cst_7 : f32 to vector<16x896xf32>
    %10 = arith.maximumf %8, %9 : vector<16x896xf32>
    %11 = arith.truncf %10 : vector<16x896xf32> to vector<16x896xbf16>
    %c0_8 = arith.constant 0 : index
    %c0_9 = arith.constant 0 : index
    %12 = vector.load %arg4[%c0_8, %c0_9] : memref<896x1024xbf16, #tpu.memory_space<vmem>>, vector<896x1024xbf16>
    %cst_10 = arith.constant dense<0.000000e+00> : vector<16x1024xf32>
    %13 = tpu.matmul %11, %12, %cst_10 {dimension_numbers = #tpu.dot_dimension_numbers<[1], [0], [0], [1], [0, 0, 1, 1], [], []>} : vector<16x896xbf16>, vector<896x1024xbf16>, vector<16x1024xf32> -> vector<16x1024xf32>
    %14 = vector.extract_strided_slice %13 {offsets = [0, 0], sizes = [16, 256], strides = [1, 1]} : vector<16x1024xf32> to vector<16x256xf32>
    %15 = vector.extract_strided_slice %13 {offsets = [0, 256], sizes = [16, 256], strides = [1, 1]} : vector<16x1024xf32> to vector<16x256xf32>
    %16 = arith.maximumf %14, %15 : vector<16x256xf32>
    %17 = vector.extract_strided_slice %13 {offsets = [0, 512], sizes = [16, 256], strides = [1, 1]} : vector<16x1024xf32> to vector<16x256xf32>
    %18 = vector.extract_strided_slice %13 {offsets = [0, 768], sizes = [16, 256], strides = [1, 1]} : vector<16x1024xf32> to vector<16x256xf32>
    %19 = arith.maximumf %17, %18 : vector<16x256xf32>
    %20 = arith.maximumf %16, %19 : vector<16x256xf32>
    %c0_11 = arith.constant 0 : index
    %c0_12 = arith.constant 0 : index
    %21 = vector.load %arg5[%c0_11, %c0_12] : memref<1x256xf32, #tpu.memory_space<vmem>>, vector<1x256xf32>
    %22 = vector.broadcast %21 : vector<1x256xf32> to vector<16x256xf32>
    %23 = arith.addf %20, %22 : vector<16x256xf32>
    %cst_13 = arith.constant 0.000000e+00 : f32
    %24 = vector.broadcast %cst_13 : f32 to vector<16x256xf32>
    %25 = arith.maximumf %23, %24 : vector<16x256xf32>
    %c0_14 = arith.constant 0 : index
    %c0_15 = arith.constant 0 : index
    %26 = vector.load %arg6[%c0_14, %c0_15] : memref<256x120xf32, #tpu.memory_space<vmem>>, vector<256x120xf32>
    %cst_16 = arith.constant dense<0.000000e+00> : vector<16x120xf32>
    %27 = tpu.matmul %25, %26, %cst_16 {dimension_numbers = #tpu.dot_dimension_numbers<[1], [0], [0], [1], [0, 0, 1, 1], [], []>} : vector<16x256xf32>, vector<256x120xf32>, vector<16x120xf32> -> vector<16x120xf32>
    %c0_17 = arith.constant 0 : index
    %c0_18 = arith.constant 0 : index
    %28 = vector.load %arg7[%c0_17, %c0_18] : memref<1x120xf32, #tpu.memory_space<vmem>>, vector<1x120xf32>
    %29 = vector.broadcast %28 : vector<1x120xf32> to vector<16x120xf32>
    %30 = arith.addf %27, %29 : vector<16x120xf32>
    %cst_19 = arith.constant 0.000000e+00 : f32
    %31 = vector.broadcast %cst_19 : f32 to vector<16x120xf32>
    %32 = arith.maximumf %30, %31 : vector<16x120xf32>
    %c0_20 = arith.constant 0 : index
    %c0_21 = arith.constant 0 : index
    %33 = vector.load %arg8[%c0_20, %c0_21] : memref<120x84xf32, #tpu.memory_space<vmem>>, vector<120x84xf32>
    %cst_22 = arith.constant dense<0.000000e+00> : vector<16x84xf32>
    %34 = tpu.matmul %32, %33, %cst_22 {dimension_numbers = #tpu.dot_dimension_numbers<[1], [0], [0], [1], [0, 0, 1, 1], [], []>} : vector<16x120xf32>, vector<120x84xf32>, vector<16x84xf32> -> vector<16x84xf32>
    %c0_23 = arith.constant 0 : index
    %c0_24 = arith.constant 0 : index
    %35 = vector.load %arg9[%c0_23, %c0_24] : memref<1x84xf32, #tpu.memory_space<vmem>>, vector<1x84xf32>
    %36 = vector.broadcast %35 : vector<1x84xf32> to vector<16x84xf32>
    %37 = arith.addf %34, %36 : vector<16x84xf32>
    %cst_25 = arith.constant 0.000000e+00 : f32
    %38 = vector.broadcast %cst_25 : f32 to vector<16x84xf32>
    %39 = arith.maximumf %37, %38 : vector<16x84xf32>
    %c0_26 = arith.constant 0 : index
    %c0_27 = arith.constant 0 : index
    %40 = vector.load %arg10[%c0_26, %c0_27] : memref<84x10xf32, #tpu.memory_space<vmem>>, vector<84x10xf32>
    %cst_28 = arith.constant dense<0.000000e+00> : vector<16x10xf32>
    %41 = tpu.matmul %39, %40, %cst_28 {dimension_numbers = #tpu.dot_dimension_numbers<[1], [0], [0], [1], [0, 0, 1, 1], [], []>} : vector<16x84xf32>, vector<84x10xf32>, vector<16x10xf32> -> vector<16x10xf32>
    %c0_29 = arith.constant 0 : index
    %c0_30 = arith.constant 0 : index
    %42 = vector.load %arg11[%c0_29, %c0_30] : memref<1x10xf32, #tpu.memory_space<vmem>>, vector<1x10xf32>
    %43 = vector.broadcast %42 : vector<1x10xf32> to vector<16x10xf32>
    %44 = arith.addf %41, %43 : vector<16x10xf32>
    %c0_31 = arith.constant 0 : index
    %c0_32 = arith.constant 0 : index
    %45 = vector.load %arg12[%c0_31, %c0_32] : memref<10x64xf32, #tpu.memory_space<vmem>>, vector<10x64xf32>
    %cst_33 = arith.constant dense<0.000000e+00> : vector<16x64xf32>
    %46 = tpu.matmul %44, %45, %cst_33 {dimension_numbers = #tpu.dot_dimension_numbers<[1], [0], [0], [1], [0, 0, 1, 1], [], []>} : vector<16x10xf32>, vector<10x64xf32>, vector<16x64xf32> -> vector<16x64xf32>
    %c0_34 = arith.constant 0 : index
    %c0_35 = arith.constant 0 : index
    %47 = vector.load %arg13[%c0_34, %c0_35] : memref<1x64xf32, #tpu.memory_space<vmem>>, vector<1x64xf32>
    %48 = vector.broadcast %47 : vector<1x64xf32> to vector<16x64xf32>
    %49 = arith.addf %46, %48 : vector<16x64xf32>
    %cst_36 = arith.constant 0.000000e+00 : f32
    %50 = vector.broadcast %cst_36 : f32 to vector<16x64xf32>
    %51 = arith.maximumf %49, %50 : vector<16x64xf32>
    %c0_37 = arith.constant 0 : index
    %c0_38 = arith.constant 0 : index
    %52 = vector.load %arg14[%c0_37, %c0_38] : memref<64x32xf32, #tpu.memory_space<vmem>>, vector<64x32xf32>
    %cst_39 = arith.constant dense<0.000000e+00> : vector<16x32xf32>
    %53 = tpu.matmul %51, %52, %cst_39 {dimension_numbers = #tpu.dot_dimension_numbers<[1], [0], [0], [1], [0, 0, 1, 1], [], []>} : vector<16x64xf32>, vector<64x32xf32>, vector<16x32xf32> -> vector<16x32xf32>
    %c0_40 = arith.constant 0 : index
    %c0_41 = arith.constant 0 : index
    %54 = vector.load %arg15[%c0_40, %c0_41] : memref<1x32xf32, #tpu.memory_space<vmem>>, vector<1x32xf32>
    %55 = vector.broadcast %54 : vector<1x32xf32> to vector<16x32xf32>
    %56 = arith.addf %53, %55 : vector<16x32xf32>
    %cst_42 = arith.constant 0.000000e+00 : f32
    %57 = vector.broadcast %cst_42 : f32 to vector<16x32xf32>
    %58 = arith.maximumf %56, %57 : vector<16x32xf32>
    %c0_43 = arith.constant 0 : index
    %c0_44 = arith.constant 0 : index
    %59 = vector.load %arg16[%c0_43, %c0_44] : memref<32x10xf32, #tpu.memory_space<vmem>>, vector<32x10xf32>
    %cst_45 = arith.constant dense<0.000000e+00> : vector<16x10xf32>
    %60 = tpu.matmul %58, %59, %cst_45 {dimension_numbers = #tpu.dot_dimension_numbers<[1], [0], [0], [1], [0, 0, 1, 1], [], []>} : vector<16x32xf32>, vector<32x10xf32>, vector<16x10xf32> -> vector<16x10xf32>
    %c0_46 = arith.constant 0 : index
    %c0_47 = arith.constant 0 : index
    %61 = vector.load %arg17[%c0_46, %c0_47] : memref<1x10xf32, #tpu.memory_space<vmem>>, vector<1x10xf32>
    %62 = vector.broadcast %61 : vector<1x10xf32> to vector<16x10xf32>
    %63 = arith.addf %60, %62 : vector<16x10xf32>
    %c0_48 = arith.constant 0 : index
    %c0_49 = arith.constant 0 : index
    %64 = vector.load %arg18[%c0_48, %c0_49] : memref<16x10xf32, #tpu.memory_space<vmem>>, vector<16x10xf32>
    tpu.vector_store %arg18[%c0_48, %c0_49], %63 {strides = array<i32>} : memref<16x10xf32, #tpu.memory_space<vmem>>, vector<16x10xf32>,
    return
  }
  func.func @transform_0(%arg0: i32) -> (i32, i32, i32) {
    %c0_i32 = arith.constant 0 : i32
    %c0_i32_0 = arith.constant 0 : i32
    %c0_i32_1 = arith.constant 0 : i32
    return %c0_i32, %arg0, %c0_i32_0 : i32, i32, i32
  }
  func.func @transform_1(%arg0: i32) -> (i32, i32) {
    %c0_i32 = arith.constant 0 : i32
    %c0_i32_0 = arith.constant 0 : i32
    %c0_i32_1 = arith.constant 0 : i32
    return %c0_i32, %c0_i32_0 : i32, i32
  }
  func.func @transform_2(%arg0: i32) -> (i32, i32) {
    %c0_i32 = arith.constant 0 : i32
    %c0_i32_0 = arith.constant 0 : i32
    %c0_i32_1 = arith.constant 0 : i32
    return %c0_i32, %c0_i32_0 : i32, i32
  }
  func.func @transform_3(%arg0: i32) -> (i32, i32) {
    %c0_i32 = arith.constant 0 : i32
    %c0_i32_0 = arith.constant 0 : i32
    %c0_i32_1 = arith.constant 0 : i32
    return %c0_i32, %c0_i32_0 : i32, i32
  }
  func.func @transform_4(%arg0: i32) -> (i32, i32) {
    %c0_i32 = arith.constant 0 : i32
    %c0_i32_0 = arith.constant 0 : i32
    %c0_i32_1 = arith.constant 0 : i32
    return %c0_i32, %c0_i32_0 : i32, i32
  }
  func.func @transform_5(%arg0: i32) -> (i32, i32) {
    %c0_i32 = arith.constant 0 : i32
    %c0_i32_0 = arith.constant 0 : i32
    %c0_i32_1 = arith.constant 0 : i32
    return %c0_i32, %c0_i32_0 : i32, i32
  }
  func.func @transform_6(%arg0: i32) -> (i32, i32) {
    %c0_i32 = arith.constant 0 : i32
    %c0_i32_0 = arith.constant 0 : i32
    %c0_i32_1 = arith.constant 0 : i32
    return %c0_i32, %c0_i32_0 : i32, i32
  }
  func.func @transform_7(%arg0: i32) -> (i32, i32) {
    %c0_i32 = arith.constant 0 : i32
    %c0_i32_0 = arith.constant 0 : i32
    %c0_i32_1 = arith.constant 0 : i32
    return %c0_i32, %c0_i32_0 : i32, i32
  }
  func.func @transform_8(%arg0: i32) -> (i32, i32) {
    %c0_i32 = arith.constant 0 : i32
    %c0_i32_0 = arith.constant 0 : i32
    %c0_i32_1 = arith.constant 0 : i32
    return %c0_i32, %c0_i32_0 : i32, i32
  }
  func.func @transform_9(%arg0: i32) -> (i32, i32) {
    %c0_i32 = arith.constant 0 : i32
    %c0_i32_0 = arith.constant 0 : i32
    %c0_i32_1 = arith.constant 0 : i32
    return %c0_i32, %c0_i32_0 : i32, i32
  }
  func.func @transform_10(%arg0: i32) -> (i32, i32) {
    %c0_i32 = arith.constant 0 : i32
    %c0_i32_0 = arith.constant 0 : i32
    %c0_i32_1 = arith.constant 0 : i32
    return %c0_i32, %c0_i32_0 : i32, i32
  }
  func.func @transform_11(%arg0: i32) -> (i32, i32) {
    %c0_i32 = arith.constant 0 : i32
    %c0_i32_0 = arith.constant 0 : i32
    %c0_i32_1 = arith.constant 0 : i32
    return %c0_i32, %c0_i32_0 : i32, i32
  }
  func.func @transform_12(%arg0: i32) -> (i32, i32) {
    %c0_i32 = arith.constant 0 : i32
    %c0_i32_0 = arith.constant 0 : i32
    %c0_i32_1 = arith.constant 0 : i32
    return %c0_i32, %c0_i32_0 : i32, i32
  }
  func.func @transform_13(%arg0: i32) -> (i32, i32) {
    %c0_i32 = arith.constant 0 : i32
    %c0_i32_0 = arith.constant 0 : i32
    %c0_i32_1 = arith.constant 0 : i32
    return %c0_i32, %c0_i32_0 : i32, i32
  }
  func.func @transform_14(%arg0: i32) -> (i32, i32) {
    %c0_i32 = arith.constant 0 : i32
    %c0_i32_0 = arith.constant 0 : i32
    %c0_i32_1 = arith.constant 0 : i32
    return %c0_i32, %c0_i32_0 : i32, i32
  }
  func.func @transform_15(%arg0: i32) -> (i32, i32) {
    %c0_i32 = arith.constant 0 : i32
    %c0_i32_0 = arith.constant 0 : i32
    %c0_i32_1 = arith.constant 0 : i32
    return %c0_i32, %c0_i32_0 : i32, i32
  }
  func.func @transform_16(%arg0: i32) -> (i32, i32) {
    %c0_i32 = arith.constant 0 : i32
    %c0_i32_0 = arith.constant 0 : i32
    %c0_i32_1 = arith.constant 0 : i32
    return %c0_i32, %c0_i32_0 : i32, i32
  }
  func.func @transform_17(%arg0: i32) -> (i32, i32) {
    %c0_i32 = arith.constant 0 : i32
    %c0_i32_0 = arith.constant 0 : i32
    return %arg0, %c0_i32 : i32, i32
  }
}

</mosaic_0001>

<llo_original>
// kernel: tile.18
$region0: #{tile.18}
  #allocation0 [shape = 's32[1]{0}', space=sflag, size = 0x4, scoped, tag = 'scoped memory for tile.18']
  %s0 = inlined_call_operand.vmem [shape: f32[16], index: 0, kind: input, shape index: {}]
  %s1 = inlined_call_operand.vmem [shape: f32[16,16], index: 1, kind: output, shape index: {}]
  // Predicated region
  $region2: #{tile.18} parent=0 // pred_check
    _
  $region3: #{tile.18} parent=0 // pred_check_branch
    %3 = sbr.rel (0) target = $region5
  $region4: #{tile.18} parent=0 // pred_region
    _
  $region5: #{tile.18} parent=0 // pred_fallthru
    _
  %v4 = vld [vmem:[%s0] ss:$0 sm:$0xff]
  %5 = vst [vmem:[%s1] sm:$0xff] %v4
  %s6 = scalar_lea.vmem %s1, 8
  %7 = vst [vmem:[%s6] sm:$0xff] %v4

// kernel: tile.19
$region0: #{tile.19}
  %s0 = inlined_call_operand.vmem [shape: f32[16,16], index: 0, kind: input, shape index: {}]
  %s1 = inlined_call_operand.vmem [shape: f32[1,256], index: 1, kind: output, shape index: {}]
  $region1: #{tile.19} parent=0
    #allocation0 [shape = 'u8[8192]{0}', space=vmem, size = 0x2000, scoped, tag = 'scoped mem for output reshape']
    %s2 = smov 3
    %v3 = vld [vmem:[%s0] ss:$8 sm:%s2]
    %vm4 = vcmask 130048
    %5 = vst.msk [vmem:[#allocation0] ss:$8 sm:$0x3] %vm4, %v3
    %s6 = scalar_lea.vmem %s0, 7
    %s7 = smov 3
    %v8 = vld [vmem:[%s6] ss:$8 sm:%s7]
    %9 = vrot.lane.b32.xlu0 %v8, 112
    %v10 = vpop.permute.xlu0 %9
    %vm11 = vcmask 1048448
    %12 = vst.msk [vmem:[#allocation0] ss:$8 sm:$0x3] %vm11, %v10
    %s13 = scalar_lea.vmem %s0, 6
    %s14 = smov 3
    %v15 = vld [vmem:[%s13] ss:$8 sm:%s14]
    %16 = vrot.lane.b32.xlu0 %v15, 96
    %v17 = vpop.permute.xlu0 %16
    %vm18 = vcmask 917248
    %19 = vst.msk [vmem:[#allocation0] ss:$8 sm:$0x3] %vm18, %v17
    %s20 = scalar_lea.vmem %s0, 5
    %s21 = smov 3
    %v22 = vld [vmem:[%s20] ss:$8 sm:%s21]
    %23 = vrot.lane.b32.xlu0 %v22, 80
    %v24 = vpop.permute.xlu0 %23
    %vm25 = vcmask 786048
    %26 = vst.msk [vmem:[#allocation0] ss:$8 sm:$0x3] %vm25, %v24
    %s27 = scalar_lea.vmem %s0, 4
    %s28 = smov 3
    %v29 = vld [vmem:[%s27] ss:$8 sm:%s28]
    %30 = vrot.lane.b32.xlu0 %v29, 64
    %v31 = vpop.permute.xlu0 %30
    %vm32 = vcmask 654848
    %33 = vst.msk [vmem:[#allocation0] ss:$8 sm:$0x3] %vm32, %v31
    %s34 = scalar_lea.vmem %s0, 3
    %s35 = smov 3
    %v36 = vld [vmem:[%s34] ss:$8 sm:%s35]
    %37 = vrot.lane.b32.xlu0 %v36, 48
    %v38 = vpop.permute.xlu0 %37
    %vm39 = vcmask 523648
    %40 = vst.msk [vmem:[#allocation0] ss:$8 sm:$0x3] %vm39, %v38
    %s41 = scalar_lea.vmem %s0, 2
    %s42 = smov 3
    %v43 = vld [vmem:[%s41] ss:$8 sm:%s42]
    %44 = vrot.lane.b32.xlu0 %v43, 32
    %v45 = vpop.permute.xlu0 %44
    %vm46 = vcmask 392448
    %47 = vst.msk [vmem:[#allocation0] ss:$8 sm:$0x3] %vm46, %v45
    %s48 = scalar_lea.vmem %s0, 1
    %s49 = smov 3
    %v50 = vld [vmem:[%s48] ss:$8 sm:%s49]
    %51 = vrot.lane.b32.xlu0 %v50, 16
    %v52 = vpop.permute.xlu0 %51
    %vm53 = vcmask 261248
    %54 = vst.msk [vmem:[#allocation0] ss:$8 sm:$0x3] %vm53, %v52
    %s56 = sshllo.u32 0, 1
    %v58 = vld [vmem:[#allocation0] sm:%s56]
    %s59 = sshllo.u32 0, 1
    %60 = vst [vmem:[%s1] sm:%s59] %v58
    %s61 = scalar_lea.vmem [#allocation0], 8
    %v62 = vld [vmem:[%s61] sm:%s56]
    %s63 = sshllo.u32 0, 1
    %s64 = scalar_lea.vmem %s1, 1
    %65 = vst [vmem:[%s64] sm:%s63] %v62

// kernel: lenet_forward.1
$region0: #{lenet_forward.1}
  #allocation0 [shape = 'u32[]', space=smem, size = 0x4, offset = 0x4, fixed_abs, tag = 'smem constant byte address 0x4 - core index']
  #allocation1 [shape = 'u32[144,128]{1,0:T(1,128)}', space=vmem, size = 0x12000, scoped, tag = 'internal scratch']
  %s0 = inlined_call_operand.vmem [shape: bf16[4,32,729], index: 0, kind: input, shape index: {}]
  %s1 = inlined_call_operand.vmem [shape: bf16[729,896], index: 1, kind: input, shape index: {}]
  %s2 = inlined_call_operand.vmem [shape: f32[1,896], index: 2, kind: input, shape index: {}]
  %s3 = inlined_call_operand.vmem [shape: bf16[896,1024], index: 3, kind: input, shape index: {}]
  %s4 = inlined_call_operand.vmem [shape: f32[1,256], index: 4, kind: input, shape index: {}]
  %s5 = inlined_call_operand.vmem [shape: f32[256,120], index: 5, kind: input, shape index: {}]
  %s6 = inlined_call_operand.vmem [shape: f32[1,120], index: 6, kind: input, shape index: {}]
  %s7 = inlined_call_operand.vmem [shape: f32[120,84], index: 7, kind: input, shape index: {}]
  %s8 = inlined_call_operand.vmem [shape: f32[1,84], index: 8, kind: input, shape index: {}]
  %s9 = inlined_call_operand.vmem [shape: f32[84,10], index: 9, kind: input, shape index: {}]
  %s10 = inlined_call_operand.vmem [shape: f32[1,10], index: 10, kind: input, shape index: {}]
  %s11 = inlined_call_operand.vmem [shape: f32[10,64], index: 11, kind: input, shape index: {}]
  %s12 = inlined_call_operand.vmem [shape: f32[1,64], index: 12, kind: input, shape index: {}]
  %s13 = inlined_call_operand.vmem [shape: f32[64,32], index: 13, kind: input, shape index: {}]
  %s14 = inlined_call_operand.vmem [shape: f32[1,32], index: 14, kind: input, shape index: {}]
  %s15 = inlined_call_operand.vmem [shape: f32[32,10], index: 15, kind: input, shape index: {}]
  %s16 = inlined_call_operand.vmem [shape: f32[1,10], index: 16, kind: input, shape index: {}]
  %s17 = inlined_call_operand.vmem [shape: f32[32,10], index: 17, kind: output, shape index: {}]
  %s18 = sld [smem:[#allocation0]]
  $region124: #{lenet_forward.1} parent=0
    _
  %s20 = ssub.s32 1, %s18
  %s21 = scalar_select 0, %s20, %s18
  $region1: #{lenet_forward.1} parent=0
    #allocation2 [shape = 'u8[196608]{0}', space=vmem, size = 0x30000, scoped, tag = 'input window, operand 0']
    loop: start=0, step=1, limit=4
    $region2: #{lenet_forward.1} parent=1 // loop_pre_header
      _
    $region3: #{lenet_forward.1} parent=1 // loop_header
      %s23 = sphi 0, %s27
      %p24 = scmp.ge.s32.totalorder %s23, 4
      %s33 = sphi 0, %s35
      %s36 = sphi 0, %s33
      %s37 = sphi 0, %s36
      %s53 = sphi 0, %s37
      %s57 = sphi 0, %s57
      %s59 = sphi 0, %s57
      %s60 = sphi 0, %s59
      %s74 = sphi 0, %s60
      %s78 = sphi 0, %s78
      %s80 = sphi 0, %s78
      %s81 = sphi 0, %s80
      %s95 = sphi 0, %s81
      %s99 = sphi 0, %s99
      %s101 = sphi 0, %s99
      %s102 = sphi 0, %s101
      %s116 = sphi 0, %s102
      %s120 = sphi 0, %s120
      %s122 = sphi 0, %s120
      %s123 = sphi 0, %s122
      %s137 = sphi 0, %s123
      %s141 = sphi 0, %s141
      %s143 = sphi 0, %s141
      %s144 = sphi 0, %s143
      %s158 = sphi 0, %s144
      %s162 = sphi 0, %s162
      %s164 = sphi 0, %s162
      %s165 = sphi 0, %s164
      %s179 = sphi 0, %s165
      %s183 = sphi 0, %s183
      %s185 = sphi 0, %s183
      %s186 = sphi 0, %s185
      %s200 = sphi 0, %s186
      %s204 = sphi 0, %s204
      %s206 = sphi 0, %s204
      %s207 = sphi 0, %s206
      %s221 = sphi 0, %s207
      %s225 = sphi 0, %s225
      %s227 = sphi 0, %s225
      %s228 = sphi 0, %s227
      %s242 = sphi 0, %s228
      %s246 = sphi 0, %s246
      %s248 = sphi 0, %s246
      %s249 = sphi 0, %s248
      %s263 = sphi 0, %s249
      %s267 = sphi 0, %s267
      %s269 = sphi 0, %s267
      %s270 = sphi 0, %s269
      %s284 = sphi 0, %s270
      %s288 = sphi 0, %s288
      %s290 = sphi 0, %s288
      %s291 = sphi 0, %s290
      %s305 = sphi 0, %s291
      %s309 = sphi 0, %s309
      %s311 = sphi 0, %s309
      %s312 = sphi 0, %s311
      %s326 = sphi 0, %s312
      %s330 = sphi 0, %s330
      %s332 = sphi 0, %s330
      %s333 = sphi 0, %s332
      %s347 = sphi 0, %s333
      %s351 = sphi 0, %s351
      %s353 = sphi 0, %s351
      %s354 = sphi 0, %s353
      %s368 = sphi 0, %s354
      %s372 = sphi 0, %s372
      %s374 = sphi 0, %s372
      %s375 = sphi 0, %s374
      %s389 = sphi 0, %s375
      %s395 = sphi 0, %s397
      %s398 = sphi 0, %s395
      %s399 = sphi 0, %s398
      %s415 = sphi 0, %s399
    $region4: #{lenet_forward.1} parent=1 // loop_header_branch
      %26 = sbr.rel (%p24) target = $region8
    $region5: #{lenet_forward.1} parent=1 // loop_body
      %s28 = ssub.s32 %s23, 1
      %s29 = ssub.s32 %s23, 2
      %s30 = sadd.s32 %s23, 1
      %s31 = ssub.s32 %s23, %s30
      %p32 = scmp.eq.s32.totalorder %s31, 0
      %s34 = sadd.s32 %s33, 1
      %s35 = scalar_select %p32, %s33, %s34
      %p38 = pneg %p32
      %p39 = scmp.eq.s32.totalorder %s23, 1
      %p40 = por %p38, %p39
      %p41 = scmp.ne.s32.totalorder %s33, %s36
      %p42 = scmp.eq.s32.totalorder %s23, 0
      %p43 = por %p41, %p42
      %p44 = scmp.ne.s32.totalorder %s33, %s36
      %p45 = scmp.eq.s32.totalorder %s28, 1
      %p46 = por %p44, %p45
      %p47 = scmp.ne.s32.totalorder %s36, %s37
      %p48 = scmp.eq.s32.totalorder %s28, 0
      %p49 = por %p47, %p48
      %p50 = scmp.ne.s32.totalorder %s36, %s37
      %p51 = scmp.eq.s32.totalorder %s29, 1
      %p52 = por %p50, %p51
      %p54 = scmp.ne.s32.totalorder %s37, %s53
      %p55 = scmp.eq.s32.totalorder %s29, 0
      %p56 = por %p54, %p55
      %s58 = sadd.s32 %s57, 1
      %p61 = scmp.eq.s32.totalorder %s23, 1
      %p62 = scmp.ne.s32.totalorder %s57, %s59
      %p63 = scmp.eq.s32.totalorder %s23, 0
      %p64 = por %p62, %p63
      %p65 = scmp.ne.s32.totalorder %s57, %s59
      %p66 = scmp.eq.s32.totalorder %s28, 1
      %p67 = por %p65, %p66
      %p68 = scmp.ne.s32.totalorder %s59, %s60
      %p69 = scmp.eq.s32.totalorder %s28, 0
      %p70 = por %p68, %p69
      %p71 = scmp.ne.s32.totalorder %s59, %s60
      %p72 = scmp.eq.s32.totalorder %s29, 1
      %p73 = por %p71, %p72
      %p75 = scmp.ne.s32.totalorder %s60, %s74
      %p76 = scmp.eq.s32.totalorder %s29, 0
      %p77 = por %p75, %p76
      %s79 = sadd.s32 %s78, 1
      %p82 = scmp.eq.s32.totalorder %s23, 1
      %p83 = scmp.ne.s32.totalorder %s78, %s80
      %p84 = scmp.eq.s32.totalorder %s23, 0
      %p85 = por %p83, %p84
      %p86 = scmp.ne.s32.totalorder %s78, %s80
      %p87 = scmp.eq.s32.totalorder %s28, 1
      %p88 = por %p86, %p87
      %p89 = scmp.ne.s32.totalorder %s80, %s81
      %p90 = scmp.eq.s32.totalorder %s28, 0
      %p91 = por %p89, %p90
      %p92 = scmp.ne.s32.totalorder %s80, %s81
      %p93 = scmp.eq.s32.totalorder %s29, 1
      %p94 = por %p92, %p93
      %p96 = scmp.ne.s32.totalorder %s81, %s95
      %p97 = scmp.eq.s32.totalorder %s29, 0
      %p98 = por %p96, %p97
      %s100 = sadd.s32 %s99, 1
      %p103 = scmp.eq.s32.totalorder %s23, 1
      %p104 = scmp.ne.s32.totalorder %s99, %s101
      %p105 = scmp.eq.s32.totalorder %s23, 0
      %p106 = por %p104, %p105
      %p107 = scmp.ne.s32.totalorder %s99, %s101
      %p108 = scmp.eq.s32.totalorder %s28, 1
      %p109 = por %p107, %p108
      %p110 = scmp.ne.s32.totalorder %s101, %s102
      %p111 = scmp.eq.s32.totalorder %s28, 0
      %p112 = por %p110, %p111
      %p113 = scmp.ne.s32.totalorder %s101, %s102
      %p114 = scmp.eq.s32.totalorder %s29, 1
      %p115 = por %p113, %p114
      %p117 = scmp.ne.s32.totalorder %s102, %s116
      %p118 = scmp.eq.s32.totalorder %s29, 0
      %p119 = por %p117, %p118
      %s121 = sadd.s32 %s120, 1
      %p124 = scmp.eq.s32.totalorder %s23, 1
      %p125 = scmp.ne.s32.totalorder %s120, %s122
      %p126 = scmp.eq.s32.totalorder %s23, 0
      %p127 = por %p125, %p126
      %p128 = scmp.ne.s32.totalorder %s120, %s122
      %p129 = scmp.eq.s32.totalorder %s28, 1
      %p130 = por %p128, %p129
      %p131 = scmp.ne.s32.totalorder %s122, %s123
      %p132 = scmp.eq.s32.totalorder %s28, 0
      %p133 = por %p131, %p132
      %p134 = scmp.ne.s32.totalorder %s122, %s123
      %p135 = scmp.eq.s32.totalorder %s29, 1
      %p136 = por %p134, %p135
      %p138 = scmp.ne.s32.totalorder %s123, %s137
      %p139 = scmp.eq.s32.totalorder %s29, 0
      %p140 = por %p138, %p139
      %s142 = sadd.s32 %s141, 1
      %p145 = scmp.eq.s32.totalorder %s23, 1
      %p146 = scmp.ne.s32.totalorder %s141, %s143
      %p147 = scmp.eq.s32.totalorder %s23, 0
      %p148 = por %p146, %p147
      %p149 = scmp.ne.s32.totalorder %s141, %s143
      %p150 = scmp.eq.s32.totalorder %s28, 1
      %p151 = por %p149, %p150
      %p152 = scmp.ne.s32.totalorder %s143, %s144
      %p153 = scmp.eq.s32.totalorder %s28, 0
      %p154 = por %p152, %p153
      %p155 = scmp.ne.s32.totalorder %s143, %s144
      %p156 = scmp.eq.s32.totalorder %s29, 1
      %p157 = por %p155, %p156
      %p159 = scmp.ne.s32.totalorder %s144, %s158
      %p160 = scmp.eq.s32.totalorder %s29, 0
      %p161 = por %p159, %p160
      %s163 = sadd.s32 %s162, 1
      %p166 = scmp.eq.s32.totalorder %s23, 1
      %p167 = scmp.ne.s32.totalorder %s162, %s164
      %p168 = scmp.eq.s32.totalorder %s23, 0
      %p169 = por %p167, %p168
      %p170 = scmp.ne.s32.totalorder %s162, %s164
      %p171 = scmp.eq.s32.totalorder %s28, 1
      %p172 = por %p170, %p171
      %p173 = scmp.ne.s32.totalorder %s164, %s165
      %p174 = scmp.eq.s32.totalorder %s28, 0
      %p175 = por %p173, %p174
      %p176 = scmp.ne.s32.totalorder %s164, %s165
      %p177 = scmp.eq.s32.totalorder %s29, 1
      %p178 = por %p176, %p177
      %p180 = scmp.ne.s32.totalorder %s165, %s179
      %p181 = scmp.eq.s32.totalorder %s29, 0
      %p182 = por %p180, %p181
      %s184 = sadd.s32 %s183, 1
      %p187 = scmp.eq.s32.totalorder %s23, 1
      %p188 = scmp.ne.s32.totalorder %s183, %s185
      %p189 = scmp.eq.s32.totalorder %s23, 0
      %p190 = por %p188, %p189
      %p191 = scmp.ne.s32.totalorder %s183, %s185
      %p192 = scmp.eq.s32.totalorder %s28, 1
      %p193 = por %p191, %p192
      %p194 = scmp.ne.s32.totalorder %s185, %s186
      %p195 = scmp.eq.s32.totalorder %s28, 0
      %p196 = por %p194, %p195
      %p197 = scmp.ne.s32.totalorder %s185, %s186
      %p198 = scmp.eq.s32.totalorder %s29, 1
      %p199 = por %p197, %p198
      %p201 = scmp.ne.s32.totalorder %s186, %s200
      %p202 = scmp.eq.s32.totalorder %s29, 0
      %p203 = por %p201, %p202
      %s205 = sadd.s32 %s204, 1
      %p208 = scmp.eq.s32.totalorder %s23, 1
      %p209 = scmp.ne.s32.totalorder %s204, %s206
      %p210 = scmp.eq.s32.totalorder %s23, 0
      %p211 = por %p209, %p210
      %p212 = scmp.ne.s32.totalorder %s204, %s206
      %p213 = scmp.eq.s32.totalorder %s28, 1
      %p214 = por %p212, %p213
      %p215 = scmp.ne.s32.totalorder %s206, %s207
      %p216 = scmp.eq.s32.totalorder %s28, 0
      %p217 = por %p215, %p216
      %p218 = scmp.ne.s32.totalorder %s206, %s207
      %p219 = scmp.eq.s32.totalorder %s29, 1
      %p220 = por %p218, %p219
      %p222 = scmp.ne.s32.totalorder %s207, %s221
      %p223 = scmp.eq.s32.totalorder %s29, 0
      %p224 = por %p222, %p223
      %s226 = sadd.s32 %s225, 1
      %p229 = scmp.eq.s32.totalorder %s23, 1
      %p230 = scmp.ne.s32.totalorder %s225, %s227
      %p231 = scmp.eq.s32.totalorder %s23, 0
      %p232 = por %p230, %p231
      %p233 = scmp.ne.s32.totalorder %s225, %s227
      %p234 = scmp.eq.s32.totalorder %s28, 1
      %p235 = por %p233, %p234
      %p236 = scmp.ne.s32.totalorder %s227, %s228
      %p237 = scmp.eq.s32.totalorder %s28, 0
      %p238 = por %p236, %p237
      %p239 = scmp.ne.s32.totalorder %s227, %s228
      %p240 = scmp.eq.s32.totalorder %s29, 1
      %p241 = por %p239, %p240
      %p243 = scmp.ne.s32.totalorder %s228, %s242
      %p244 = scmp.eq.s32.totalorder %s29, 0
      %p245 = por %p243, %p244
      %s247 = sadd.s32 %s246, 1
      %p250 = scmp.eq.s32.totalorder %s23, 1
      %p251 = scmp.ne.s32.totalorder %s246, %s248
      %p252 = scmp.eq.s32.totalorder %s23, 0
      %p253 = por %p251, %p252
      %p254 = scmp.ne.s32.totalorder %s246, %s248
      %p255 = scmp.eq.s32.totalorder %s28, 1
      %p256 = por %p254, %p255
      %p257 = scmp.ne.s32.totalorder %s248, %s249
      %p258 = scmp.eq.s32.totalorder %s28, 0
      %p259 = por %p257, %p258
      %p260 = scmp.ne.s32.totalorder %s248, %s249
      %p261 = scmp.eq.s32.totalorder %s29, 1
      %p262 = por %p260, %p261
      %p264 = scmp.ne.s32.totalorder %s249, %s263
      %p265 = scmp.eq.s32.totalorder %s29, 0
      %p266 = por %p264, %p265
      %s268 = sadd.s32 %s267, 1
      %p271 = scmp.eq.s32.totalorder %s23, 1
      %p272 = scmp.ne.s32.totalorder %s267, %s269
      %p273 = scmp.eq.s32.totalorder %s23, 0
      %p274 = por %p272, %p273
      %p275 = scmp.ne.s32.totalorder %s267, %s269
      %p276 = scmp.eq.s32.totalorder %s28, 1
      %p277 = por %p275, %p276
      %p278 = scmp.ne.s32.totalorder %s269, %s270
      %p279 = scmp.eq.s32.totalorder %s28, 0
      %p280 = por %p278, %p279
      %p281 = scmp.ne.s32.totalorder %s269, %s270
      %p282 = scmp.eq.s32.totalorder %s29, 1
      %p283 = por %p281, %p282
      %p285 = scmp.ne.s32.totalorder %s270, %s284
      %p286 = scmp.eq.s32.totalorder %s29, 0
      %p287 = por %p285, %p286
      %s289 = sadd.s32 %s288, 1
      %p292 = scmp.eq.s32.totalorder %s23, 1
      %p293 = scmp.ne.s32.totalorder %s288, %s290
      %p294 = scmp.eq.s32.totalorder %s23, 0
      %p295 = por %p293, %p294
      %p296 = scmp.ne.s32.totalorder %s288, %s290
      %p297 = scmp.eq.s32.totalorder %s28, 1
      %p298 = por %p296, %p297
      %p299 = scmp.ne.s32.totalorder %s290, %s291
      %p300 = scmp.eq.s32.totalorder %s28, 0
      %p301 = por %p299, %p300
      %p302 = scmp.ne.s32.totalorder %s290, %s291
      %p303 = scmp.eq.s32.totalorder %s29, 1
      %p304 = por %p302, %p303
      %p306 = scmp.ne.s32.totalorder %s291, %s305
      %p307 = scmp.eq.s32.totalorder %s29, 0
      %p308 = por %p306, %p307
      %s310 = sadd.s32 %s309, 1
      %p313 = scmp.eq.s32.totalorder %s23, 1
      %p314 = scmp.ne.s32.totalorder %s309, %s311
      %p315 = scmp.eq.s32.totalorder %s23, 0
      %p316 = por %p314, %p315
      %p317 = scmp.ne.s32.totalorder %s309, %s311
      %p318 = scmp.eq.s32.totalorder %s28, 1
      %p319 = por %p317, %p318
      %p320 = scmp.ne.s32.totalorder %s311, %s312
      %p321 = scmp.eq.s32.totalorder %s28, 0
      %p322 = por %p320, %p321
      %p323 = scmp.ne.s32.totalorder %s311, %s312
      %p324 = scmp.eq.s32.totalorder %s29, 1
      %p325 = por %p323, %p324
      %p327 = scmp.ne.s32.totalorder %s312, %s326
      %p328 = scmp.eq.s32.totalorder %s29, 0
      %p329 = por %p327, %p328
      %s331 = sadd.s32 %s330, 1
      %p334 = scmp.eq.s32.totalorder %s23, 1
      %p335 = scmp.ne.s32.totalorder %s330, %s332
      %p336 = scmp.eq.s32.totalorder %s23, 0
      %p337 = por %p335, %p336
      %p338 = scmp.ne.s32.totalorder %s330, %s332
      %p339 = scmp.eq.s32.totalorder %s28, 1
      %p340 = por %p338, %p339
      %p341 = scmp.ne.s32.totalorder %s332, %s333
      %p342 = scmp.eq.s32.totalorder %s28, 0
      %p343 = por %p341, %p342
      %p344 = scmp.ne.s32.totalorder %s332, %s333
      %p345 = scmp.eq.s32.totalorder %s29, 1
      %p346 = por %p344, %p345
      %p348 = scmp.ne.s32.totalorder %s333, %s347
      %p349 = scmp.eq.s32.totalorder %s29, 0
      %p350 = por %p348, %p349
      %s352 = sadd.s32 %s351, 1
      %p355 = scmp.eq.s32.totalorder %s23, 1
      %p356 = scmp.ne.s32.totalorder %s351, %s353
      %p357 = scmp.eq.s32.totalorder %s23, 0
      %p358 = por %p356, %p357
      %p359 = scmp.ne.s32.totalorder %s351, %s353
      %p360 = scmp.eq.s32.totalorder %s28, 1
      %p361 = por %p359, %p360
      %p362 = scmp.ne.s32.totalorder %s353, %s354
      %p363 = scmp.eq.s32.totalorder %s28, 0
      %p364 = por %p362, %p363
      %p365 = scmp.ne.s32.totalorder %s353, %s354
      %p366 = scmp.eq.s32.totalorder %s29, 1
      %p367 = por %p365, %p366
      %p369 = scmp.ne.s32.totalorder %s354, %s368
      %p370 = scmp.eq.s32.totalorder %s29, 0
      %p371 = por %p369, %p370
      %s373 = sadd.s32 %s372, 1
      %p376 = scmp.eq.s32.totalorder %s23, 1
      %p377 = scmp.ne.s32.totalorder %s372, %s374
      %p378 = scmp.eq.s32.totalorder %s23, 0
      %p379 = por %p377, %p378
      %p380 = scmp.ne.s32.totalorder %s372, %s374
      %p381 = scmp.eq.s32.totalorder %s28, 1
      %p382 = por %p380, %p381
      %p383 = scmp.ne.s32.totalorder %s374, %s375
      %p384 = scmp.eq.s32.totalorder %s28, 0
      %p385 = por %p383, %p384
      %p386 = scmp.ne.s32.totalorder %s374, %s375
      %p387 = scmp.eq.s32.totalorder %s29, 1
      %p388 = por %p386, %p387
      %p390 = scmp.ne.s32.totalorder %s375, %s389
      %p391 = scmp.eq.s32.totalorder %s29, 0
      %p392 = por %p390, %p391
      %s393 = ssub.s32 %s23, %s30
      %p394 = scmp.eq.s32.totalorder %s393, 0
      %s396 = sadd.s32 %s395, 1
      %s397 = scalar_select %p394, %s395, %s396
      %p400 = pneg %p394
      %p401 = scmp.eq.s32.totalorder %s23, 1
      %p402 = por %p400, %p401
      %p403 = scmp.ne.s32.totalorder %s395, %s398
      %p404 = scmp.eq.s32.totalorder %s23, 0
      %p405 = por %p403, %p404
      %p406 = scmp.ne.s32.totalorder %s395, %s398
      %p407 = scmp.eq.s32.totalorder %s28, 1
      %p408 = por %p406, %p407
      %p409 = scmp.ne.s32.totalorder %s398, %s399
      %p410 = scmp.eq.s32.totalorder %s28, 0
      %p411 = por %p409, %p410
      %p412 = scmp.ne.s32.totalorder %s398, %s399
      %p413 = scmp.eq.s32.totalorder %s29, 1
      %p414 = por %p412, %p413
      %p416 = scmp.ne.s32.totalorder %s399, %s415
      %p417 = scmp.eq.s32.totalorder %s29, 0
      %p418 = por %p416, %p417
      %p419 = scmp.le.s32.totalorder 1, %s23
      %p420 = scmp.lt.s32.totalorder %s23, 3
      %p421 = pnand %p419, %p420
      %p422 = pneg %p421
      // Predicated region
      $region9: #{lenet_forward.1} parent=5 // pred_check
        _
      $region10: #{lenet_forward.1} parent=5 // pred_check_branch
        %424 = sbr.rel (%p421) target = $region12
      $region11: #{lenet_forward.1} parent=5 // pred_region
        %s425 = ssub.s32 %s23, 1
        // Predicated region
        $region13: #{lenet_forward.1} parent=11 // pred_check
          %p426 = pneg %p70
        $region14: #{lenet_forward.1} parent=11 // pred_check_branch
          %428 = sbr.rel (%p426) target = $region16
        $region15: #{lenet_forward.1} parent=11 // pred_region
          _
        $region16: #{lenet_forward.1} parent=11 // pred_fallthru
          _
        // Predicated region
        $region17: #{lenet_forward.1} parent=11 // pred_check
          %p429 = pneg %p91
        $region18: #{lenet_forward.1} parent=11 // pred_check_branch
          %431 = sbr.rel (%p429) target = $region20
        $region19: #{lenet_forward.1} parent=11 // pred_region
          _
        $region20: #{lenet_forward.1} parent=11 // pred_fallthru
          _
        // Predicated region
        $region21: #{lenet_forward.1} parent=11 // pred_check
          %p432 = pneg %p112
        $region22: #{lenet_forward.1} parent=11 // pred_check_branch
          %434 = sbr.rel (%p432) target = $region24
        $region23: #{lenet_forward.1} parent=11 // pred_region
          _
        $region24: #{lenet_forward.1} parent=11 // pred_fallthru
          _
        // Predicated region
        $region25: #{lenet_forward.1} parent=11 // pred_check
          %p435 = pneg %p133
        $region26: #{lenet_forward.1} parent=11 // pred_check_branch
          %437 = sbr.rel (%p435) target = $region28
        $region27: #{lenet_forward.1} parent=11 // pred_region
          _
        $region28: #{lenet_forward.1} parent=11 // pred_fallthru
          _
        // Predicated region
        $region29: #{lenet_forward.1} parent=11 // pred_check
          %p438 = pneg %p154
        $region30: #{lenet_forward.1} parent=11 // pred_check_branch
          %440 = sbr.rel (%p438) target = $region32
        $region31: #{lenet_forward.1} parent=11 // pred_region
          _
        $region32: #{lenet_forward.1} parent=11 // pred_fallthru
          _
        // Predicated region
        $region33: #{lenet_forward.1} parent=11 // pred_check
          %p441 = pneg %p175
        $region34: #{lenet_forward.1} parent=11 // pred_check_branch
          %443 = sbr.rel (%p441) target = $region36
        $region35: #{lenet_forward.1} parent=11 // pred_region
          _
        $region36: #{lenet_forward.1} parent=11 // pred_fallthru
          _
        // Predicated region
        $region37: #{lenet_forward.1} parent=11 // pred_check
          %p444 = pneg %p196
        $region38: #{lenet_forward.1} parent=11 // pred_check_branch
          %446 = sbr.rel (%p444) target = $region40
        $region39: #{lenet_forward.1} parent=11 // pred_region
          _
        $region40: #{lenet_forward.1} parent=11 // pred_fallthru
          _
        // Predicated region
        $region41: #{lenet_forward.1} parent=11 // pred_check
          %p447 = pneg %p217
        $region42: #{lenet_forward.1} parent=11 // pred_check_branch
          %449 = sbr.rel (%p447) target = $region44
        $region43: #{lenet_forward.1} parent=11 // pred_region
          _
        $region44: #{lenet_forward.1} parent=11 // pred_fallthru
          _
        // Predicated region
        $region45: #{lenet_forward.1} parent=11 // pred_check
          %p450 = pneg %p238
        $region46: #{lenet_forward.1} parent=11 // pred_check_branch
          %452 = sbr.rel (%p450) target = $region48
        $region47: #{lenet_forward.1} parent=11 // pred_region
          _
        $region48: #{lenet_forward.1} parent=11 // pred_fallthru
          _
        // Predicated region
        $region49: #{lenet_forward.1} parent=11 // pred_check
          %p453 = pneg %p259
        $region50: #{lenet_forward.1} parent=11 // pred_check_branch
          %455 = sbr.rel (%p453) target = $region52
        $region51: #{lenet_forward.1} parent=11 // pred_region
          _
        $region52: #{lenet_forward.1} parent=11 // pred_fallthru
          _
        // Predicated region
        $region53: #{lenet_forward.1} parent=11 // pred_check
          %p456 = pneg %p280
        $region54: #{lenet_forward.1} parent=11 // pred_check_branch
          %458 = sbr.rel (%p456) target = $region56
        $region55: #{lenet_forward.1} parent=11 // pred_region
          _
        $region56: #{lenet_forward.1} parent=11 // pred_fallthru
          _
        // Predicated region
        $region57: #{lenet_forward.1} parent=11 // pred_check
          %p459 = pneg %p301
        $region58: #{lenet_forward.1} parent=11 // pred_check_branch
          %461 = sbr.rel (%p459) target = $region60
        $region59: #{lenet_forward.1} parent=11 // pred_region
          _
        $region60: #{lenet_forward.1} parent=11 // pred_fallthru
          _
        // Predicated region
        $region61: #{lenet_forward.1} parent=11 // pred_check
          %p462 = pneg %p322
        $region62: #{lenet_forward.1} parent=11 // pred_check_branch
          %464 = sbr.rel (%p462) target = $region64
        $region63: #{lenet_forward.1} parent=11 // pred_region
          _
        $region64: #{lenet_forward.1} parent=11 // pred_fallthru
          _
        // Predicated region
        $region65: #{lenet_forward.1} parent=11 // pred_check
          %p465 = pneg %p343
        $region66: #{lenet_forward.1} parent=11 // pred_check_branch
          %467 = sbr.rel (%p465) target = $region68
        $region67: #{lenet_forward.1} parent=11 // pred_region
          _
        $region68: #{lenet_forward.1} parent=11 // pred_fallthru
          _
        // Predicated region
        $region69: #{lenet_forward.1} parent=11 // pred_check
          %p468 = pneg %p364
        $region70: #{lenet_forward.1} parent=11 // pred_check_branch
          %470 = sbr.rel (%p468) target = $region72
        $region71: #{lenet_forward.1} parent=11 // pred_region
          _
        $region72: #{lenet_forward.1} parent=11 // pred_fallthru
          _
        // Predicated region
        $region73: #{lenet_forward.1} parent=11 // pred_check
          %p471 = pneg %p385
        $region74: #{lenet_forward.1} parent=11 // pred_check_branch
          %473 = sbr.rel (%p471) target = $region76
        $region75: #{lenet_forward.1} parent=11 // pred_region
          _
        $region76: #{lenet_forward.1} parent=11 // pred_fallthru
          _
      $region12: #{lenet_forward.1} parent=5 // pred_fallthru
        _
      %p474 = scmp.lt.s32.totalorder %s23, 2
      // Predicated region
      $region77: #{lenet_forward.1} parent=5 // pred_check
        %p475 = pneg %p474
      $region78: #{lenet_forward.1} parent=5 // pred_check_branch
        %477 = sbr.rel (%p475) target = $region80
      $region79: #{lenet_forward.1} parent=5 // pred_region
        // Predicated region
        $region81: #{lenet_forward.1} parent=79 // pred_check
          %p478 = pneg %p43
        $region82: #{lenet_forward.1} parent=79 // pred_check_branch
          %480 = sbr.rel (%p478) target = $region84
        $region83: #{lenet_forward.1} parent=79 // pred_region
          %s481 = sand.u32 %s33, 1
          %s482 = sand.u32 %s33, 1
          %s483 = smul.addr %s482, 192
          %s484 = scalar_lea.vmem [#allocation2], %s483
          %s485 = smul.u32 2, %s23
          %s486 = smul.addr %s485, 6
          %s487 = smul.addr %s486, 4
          %s488 = scalar_lea.vmem %s0, %s487
          // Predicated region
          $region85: #{lenet_forward.1} parent=83 // pred_check
            _
          $region86: #{lenet_forward.1} parent=83 // pred_check_branch
            %490 = sbr.rel (0) target = $region88
          $region87: #{lenet_forward.1} parent=83 // pred_region
            // Predicated region
            $region89: #{lenet_forward.1} parent=87 // pred_check
              _
            $region90: #{lenet_forward.1} parent=87 // pred_check_branch
              %492 = sbr.rel (0) target = $region92
            $region91: #{lenet_forward.1} parent=87 // pred_region
              loop: start=0, step=1, limit=1
              $region93: #{lenet_forward.1} parent=91 // loop_pre_header
                _
              $region94: #{lenet_forward.1} parent=91 // loop_header
                %s494 = sphi 0, %s498
                %p495 = scmp.ge.s32.totalorder %s494, 1
                %s499 = sphi %s488, %s488
                %s500 = sphi %s484, %s484
              $region95: #{lenet_forward.1} parent=91 // loop_header_branch
                %497 = sbr.rel (%p495) target = $region99
              $region96: #{lenet_forward.1} parent=91 // loop_body
                %v501 = vld [vmem:[%s499] sm:$0xff]
                %502 = vst [vmem:[%s500] sm:$0xff] %v501
                %v503 = vld [vmem:[%s499 + $0x8] sm:$0xff]
                %504 = vst [vmem:[%s500 + $0x8] sm:$0xff] %v503
                %v505 = vld [vmem:[%s499 + $0x10] sm:$0xff]
                %506 = vst [vmem:[%s500 + $0x10] sm:$0xff] %v505
                %v507 = vld [vmem:[%s499 + $0x18] sm:$0xff]
                %508 = vst [vmem:[%s500 + $0x18] sm:$0xff] %v507
                %v509 = vld [vmem:[%s499 + $0x20] sm:$0xff]
                %510 = vst [vmem:[%s500 + $0x20] sm:$0xff] %v509
                %v511 = vld [vmem:[%s499 + $0x28] sm:$0xff]
                %512 = vst [vmem:[%s500 + $0x28] sm:$0xff] %v511
                %v513 = vld [vmem:[%s499 + $0x60] sm:$0xff]
                %514 = vst [vmem:[%s500 + $0x30] sm:$0xff] %v513
                %v515 = vld [vmem:[%s499 + $0x68] sm:$0xff]
                %516 = vst [vmem:[%s500 + $0x38] sm:$0xff] %v515
                %v517 = vld [vmem:[%s499 + $0x70] sm:$0xff]
                %518 = vst [vmem:[%s500 + $0x40] sm:$0xff] %v517
                %v519 = vld [vmem:[%s499 + $0x78] sm:$0xff]
                %520 = vst [vmem:[%s500 + $0x48] sm:$0xff] %v519
                %v521 = vld [vmem:[%s499 + $0x80] sm:$0xff]
                %522 = vst [vmem:[%s500 + $0x50] sm:$0xff] %v521
                %v523 = vld [vmem:[%s499 + $0x88] sm:$0xff]
                %524 = vst [vmem:[%s500 + $0x58] sm:$0xff] %v523
                %v525 = vld [vmem:[%s499 + $0xc0] sm:$0xff]
                %526 = vst [vmem:[%s500 + $0x60] sm:$0xff] %v525
                %v527 = vld [vmem:[%s499 + $0xc8] sm:$0xff]
                %528 = vst [vmem:[%s500 + $0x68] sm:$0xff] %v527
                %v529 = vld [vmem:[%s499 + $0xd0] sm:$0xff]
                %530 = vst [vmem:[%s500 + $0x70] sm:$0xff] %v529
                %v531 = vld [vmem:[%s499 + $0xd8] sm:$0xff]
                %532 = vst [vmem:[%s500 + $0x78] sm:$0xff] %v531
                %v533 = vld [vmem:[%s499 + $0xe0] sm:$0xff]
                %534 = vst [vmem:[%s500 + $0x80] sm:$0xff] %v533
                %v535 = vld [vmem:[%s499 + $0xe8] sm:$0xff]
                %536 = vst [vmem:[%s500 + $0x88] sm:$0xff] %v535
                %v537 = vld [vmem:[%s499 + $0x120] sm:$0xff]
                %538 = vst [vmem:[%s500 + $0x90] sm:$0xff] %v537
                %v539 = vld [vmem:[%s499 + $0x128] sm:$0xff]
                %540 = vst [vmem:[%s500 + $0x98] sm:$0xff] %v539
                %v541 = vld [vmem:[%s499 + $0x130] sm:$0xff]
                %542 = vst [vmem:[%s500 + $0xa0] sm:$0xff] %v541
                %v543 = vld [vmem:[%s499 + $0x138] sm:$0xff]
                %544 = vst [vmem:[%s500 + $0xa8] sm:$0xff] %v543
                %v545 = vld [vmem:[%s499 + $0x140] sm:$0xff]
                %546 = vst [vmem:[%s500 + $0xb0] sm:$0xff] %v545
                %v547 = vld [vmem:[%s499 + $0x148] sm:$0xff]
                %548 = vst [vmem:[%s500 + $0xb8] sm:$0xff] %v547
              $region97: #{lenet_forward.1} parent=91 // loop_footer
                %s498 = sadd.s32 1, %s494
              $region98: #{lenet_forward.1} parent=91 // loop_footer_branch
                %493 = sbr.rel target = $region94
              $region99: #{lenet_forward.1} parent=91 // loop_exit
                _
            $region92: #{lenet_forward.1} parent=87 // pred_fallthru
              _
            // Predicated region
            $region100: #{lenet_forward.1} parent=87 // pred_check
              _
            $region101: #{lenet_forward.1} parent=87 // pred_check_branch
              %550 = sbr.rel target = $region103
            $region102: #{lenet_forward.1} parent=87 // pred_region
              _
            $region103: #{lenet_forward.1} parent=87 // pred_fallthru
              _
          $region88: #{lenet_forward.1} parent=83 // pred_fallthru
            _
          %551 = vnop
        $region84: #{lenet_forward.1} parent=79 // pred_fallthru
          _
      $region80: #{lenet_forward.1} parent=5 // pred_fallthru
        _
      %p552 = scmp.le.s32.totalorder 1, %s23
      %p553 = scmp.lt.s32.totalorder %s23, 3
      %p554 = pnand %p552, %p553
      %p555 = pneg %p554
      // Predicated region
      $region104: #{lenet_forward.1} parent=5 // pred_check
        _
      $region105: #{lenet_forward.1} parent=5 // pred_check_branch
        %557 = sbr.rel (%p554) target = $region107
      $region106: #{lenet_forward.1} parent=5 // pred_region
        %s558 = ssub.s32 %s23, 1
        %s559 = sand.u32 %s36, 1
        %s560 = sand.u32 %s36, 1
        %s561 = smul.addr %s560, 192
        %s562 = scalar_lea.vmem [#allocation2], %s561
        // Predicated region
        $region108: #{lenet_forward.1} parent=106 // pred_check
          %p563 = pneg %p49
        $region109: #{lenet_forward.1} parent=106 // pred_check_branch
          %565 = sbr.rel (%p563) target = $region111
        $region110: #{lenet_forward.1} parent=106 // pred_region
          _
        $region111: #{lenet_forward.1} parent=106 // pred_fallthru
          _
        %s566 = sand.u32 %s36, 1
        %s567 = sand.u32 %s36, 1
        %s568 = smul.addr %s567, 192
        %s569 = scalar_lea.vmem [#allocation2], %s568
        %p570 = pneg %p49
        %p571 = pneg %p46
        %p572 = pneg %p70
        %p573 = pneg %p67
        %p574 = pneg %p91
        %p575 = pneg %p88
        %p576 = pneg %p112
        %p577 = pneg %p109
        %p578 = pneg %p133
        %p579 = pneg %p130
        %p580 = pneg %p154
        %p581 = pneg %p151
        %p582 = pneg %p175
        %p583 = pneg %p172
        %p584 = pneg %p196
        %p585 = pneg %p193
        %p586 = pneg %p217
        %p587 = pneg %p214
        %p588 = pneg %p238
        %p589 = pneg %p235
        %p590 = pneg %p259
        %p591 = pneg %p256
        %p592 = pneg %p280
        %p593 = pneg %p277
        %p594 = pneg %p301
        %p595 = pneg %p298
        %p596 = pneg %p322
        %p597 = pneg %p319
        %p598 = pneg %p343
        %p599 = pneg %p340
        %p600 = pneg %p364
        %p601 = pneg %p361
        %p602 = pneg %p385
        %p603 = pneg %p382
        %p604 = pneg %p411
        %p605 = pneg %p408
        %s606 = smul.u32 2, %s28
        %p607 = scmp.lt.s32.totalorder %s606, 3
        %s608 = scalar_select %p607, %s606, 3
        %s609 = smul.addr %s608, 8
        %s610 = scalar_lea.vmem %s17, %s609
        %s611 = smul.u32 2, %s28
        %s612 = smul.u32 2, %s28
        %p613 = scmp.lt.s32.totalorder %s612, 3
        %s614 = scalar_select %p613, %s612, 3
        %s615 = smul.addr %s614, 8
        %s616 = scalar_lea.vmem %s17, %s615
        %s617 = smul.u32 2, %s28
        %v619 = vld [vmem:[%s562] sm:$0xff]
        %v620 = vld [vmem:[%s562 + $0x8] sm:$0xff]
        %v621 = vld [vmem:[%s562 + $0x10] sm:$0xff]
        %v622 = vld [vmem:[%s562 + $0x18] sm:$0xff]
        %v623 = vld [vmem:[%s562 + $0x20] sm:$0xff]
        %v624 = vld [vmem:[%s562 + $0x28] sm:$0xff]
        %v625 = vld [vmem:[%s562 + $0x30] sm:$0xff]
        %v626 = vld [vmem:[%s562 + $0x38] sm:$0xff]
        %v627 = vld [vmem:[%s562 + $0x40] sm:$0xff]
        %v628 = vld [vmem:[%s562 + $0x48] sm:$0xff]
        %v629 = vld [vmem:[%s562 + $0x50] sm:$0xff]
        %v630 = vld [vmem:[%s562 + $0x58] sm:$0xff]
        %v631 = vld [vmem:[%s562 + $0x60] sm:$0xff]
        %v632 = vld [vmem:[%s562 + $0x68] sm:$0xff]
        %v633 = vld [vmem:[%s562 + $0x70] sm:$0xff]
        %v634 = vld [vmem:[%s562 + $0x78] sm:$0xff]
        %v635 = vld [vmem:[%s562 + $0x80] sm:$0xff]
        %v636 = vld [vmem:[%s562 + $0x88] sm:$0xff]
        %v637 = vld [vmem:[%s562 + $0x90] sm:$0xff]
        %v638 = vld [vmem:[%s562 + $0x98] sm:$0xff]
        %v639 = vld [vmem:[%s562 + $0xa0] sm:$0xff]
        %v640 = vld [vmem:[%s562 + $0xa8] sm:$0xff]
        %v641 = vld [vmem:[%s562 + $0xb0] sm:$0xff]
        %v642 = vld [vmem:[%s562 + $0xb8] sm:$0xff]
        %v643 = vld [vmem:[%s1] sm:$0xff]
        %v644 = vld [vmem:[%s1 + $0x8] sm:$0xff]
        %v645 = vld [vmem:[%s1 + $0x10] sm:$0xff]
        %v646 = vld [vmem:[%s1 + $0x18] sm:$0xf]
        %v647 = vld [vmem:[%s1 + $0x1c] sm:$0xff]
        %v648 = vld [vmem:[%s1 + $0x24] sm:$0xff]
        %v649 = vld [vmem:[%s1 + $0x2c] sm:$0xff]
        %v650 = vld [vmem:[%s1 + $0x34] sm:$0xf]
        %v651 = vld [vmem:[%s1 + $0x38] sm:$0xff]
        %v652 = vld [vmem:[%s1 + $0x40] sm:$0xff]
        %v653 = vld [vmem:[%s1 + $0x48] sm:$0xff]
        %v654 = vld [vmem:[%s1 + $0x50] sm:$0xf]
        %v655 = vld [vmem:[%s1 + $0x54] sm:$0xff]
        %v656 = vld [vmem:[%s1 + $0x5c] sm:$0xff]
        %v657 = vld [vmem:[%s1 + $0x64] sm:$0xff]
        %v658 = vld [vmem:[%s1 + $0x6c] sm:$0xf]
        %v659 = vld [vmem:[%s1 + $0x70] sm:$0xff]
        %v660 = vld [vmem:[%s1 + $0x78] sm:$0xff]
        %v661 = vld [vmem:[%s1 + $0x80] sm:$0xff]
        %v662 = vld [vmem:[%s1 + $0x88] sm:$0xf]
        %v663 = vld [vmem:[%s1 + $0x8c] sm:$0xff]
        %v664 = vld [vmem:[%s1 + $0x94] sm:$0xff]
        %v665 = vld [vmem:[%s1 + $0x9c] sm:$0xff]
        %v666 = vld [vmem:[%s1 + $0xa4] sm:$0xf]
        %v667 = vld [vmem:[%s1 + $0xa8] sm:$0xff]
        %v668 = vld [vmem:[%s1 + $0xb0] sm:$0xff]
        %v669 = vld [vmem:[%s1 + $0xb8] sm:$0xff]
        %v670 = vld [vmem:[%s1 + $0xc0] sm:$0xf]
        %v671 = vld [vmem:[%s1 + $0xc4] sm:$0xff]
        %v672 = vld [vmem:[%s1 + $0xcc] sm:$0xff]
        %v673 = vld [vmem:[%s1 + $0xd4] sm:$0xff]
        %v674 = vld [vmem:[%s1 + $0xdc] sm:$0xf]
        %v675 = vld [vmem:[%s1 + $0xe0] sm:$0xff]
        %v676 = vld [vmem:[%s1 + $0xe8] sm:$0xff]
        %v677 = vld [vmem:[%s1 + $0xf0] sm:$0xff]
        %v678 = vld [vmem:[%s1 + $0xf8] sm:$0xf]
        %v679 = vld [vmem:[%s1 + $0xfc] sm:$0xff]
        %v680 = vld [vmem:[%s1 + $0x104] sm:$0xff]
        %v681 = vld [vmem:[%s1 + $0x10c] sm:$0xff]
        %v682 = vld [vmem:[%s1 + $0x114] sm:$0xf]
        %v683 = vld [vmem:[%s1 + $0x118] sm:$0xff]
        %v684 = vld [vmem:[%s1 + $0x120] sm:$0xff]
        %v685 = vld [vmem:[%s1 + $0x128] sm:$0xff]
        %v686 = vld [vmem:[%s1 + $0x130] sm:$0xf]
        %v687 = vld [vmem:[%s1 + $0x134] sm:$0xff]
        %v688 = vld [vmem:[%s1 + $0x13c] sm:$0xff]
        %v689 = vld [vmem:[%s1 + $0x144] sm:$0xff]
        %v690 = vld [vmem:[%s1 + $0x14c] sm:$0xf]
        %v691 = vld [vmem:[%s1 + $0x150] sm:$0xff]
        %v692 = vld [vmem:[%s1 + $0x158] sm:$0xff]
        %v693 = vld [vmem:[%s1 + $0x160] sm:$0xff]
        %v694 = vld [vmem:[%s1 + $0x168] sm:$0xf]
        %v695 = vld [vmem:[%s1 + $0x16c] sm:$0xff]
        %v696 = vld [vmem:[%s1 + $0x174] sm:$0xff]
        %v697 = vld [vmem:[%s1 + $0x17c] sm:$0xff]
        %v698 = vld [vmem:[%s1 + $0x184] sm:$0xf]
        %v699 = vld [vmem:[%s1 + $0x188] sm:$0xff]
        %v700 = vld [vmem:[%s1 + $0x190] sm:$0xff]
        %v701 = vld [vmem:[%s1 + $0x198] sm:$0xff]
        %v702 = vld [vmem:[%s1 + $0x1a0] sm:$0xf]
        %v703 = vld [vmem:[%s1 + $0x1a4] sm:$0xff]
        %v704 = vld [vmem:[%s1 + $0x1ac] sm:$0xff]
        %v705 = vld [vmem:[%s1 + $0x1b4] sm:$0xff]
        %v706 = vld [vmem:[%s1 + $0x1bc] sm:$0xf]
        %v707 = vld [vmem:[%s1 + $0x1c0] sm:$0xff]
        %v708 = vld [vmem:[%s1 + $0x1c8] sm:$0xff]
        %v709 = vld [vmem:[%s1 + $0x1d0] sm:$0xff]
        %v710 = vld [vmem:[%s1 + $0x1d8] sm:$0xf]
        %v711 = vld [vmem:[%s1 + $0x1dc] sm:$0xff]
        %v712 = vld [vmem:[%s1 + $0x1e4] sm:$0xff]
        %v713 = vld [vmem:[%s1 + $0x1ec] sm:$0xff]
        %v714 = vld [vmem:[%s1 + $0x1f4] sm:$0xf]
        %v715 = vld [vmem:[%s1 + $0x1f8] sm:$0xff]
        %v716 = vld [vmem:[%s1 + $0x200] sm:$0xff]
        %v717 = vld [vmem:[%s1 + $0x208] sm:$0xff]
        %v718 = vld [vmem:[%s1 + $0x210] sm:$0xf]
        %v719 = vld [vmem:[%s1 + $0x214] sm:$0xff]
        %v720 = vld [vmem:[%s1 + $0x21c] sm:$0xff]
        %v721 = vld [vmem:[%s1 + $0x224] sm:$0xff]
        %v722 = vld [vmem:[%s1 + $0x22c] sm:$0xf]
        %v723 = vld [vmem:[%s1 + $0x230] sm:$0xff]
        %v724 = vld [vmem:[%s1 + $0x238] sm:$0xff]
        %v725 = vld [vmem:[%s1 + $0x240] sm:$0xff]
        %v726 = vld [vmem:[%s1 + $0x248] sm:$0xf]
        %v727 = vld [vmem:[%s1 + $0x24c] sm:$0xff]
        %v728 = vld [vmem:[%s1 + $0x254] sm:$0xff]
        %v729 = vld [vmem:[%s1 + $0x25c] sm:$0xff]
        %v730 = vld [vmem:[%s1 + $0x264] sm:$0xf]
        %v731 = vld [vmem:[%s1 + $0x268] sm:$0xff]
        %v732 = vld [vmem:[%s1 + $0x270] sm:$0xff]
        %v733 = vld [vmem:[%s1 + $0x278] sm:$0xff]
        %v734 = vld [vmem:[%s1 + $0x280] sm:$0xf]
        %v735 = vld [vmem:[%s1 + $0x284] sm:$0xff]
        %v736 = vld [vmem:[%s1 + $0x28c] sm:$0xff]
        %v737 = vld [vmem:[%s1 + $0x294] sm:$0xff]
        %v738 = vld [vmem:[%s1 + $0x29c] sm:$0xf]
        %v739 = vld [vmem:[%s1 + $0x2a0] sm:$0xff]
        %v740 = vld [vmem:[%s1 + $0x2a8] sm:$0xff]
        %v741 = vld [vmem:[%s1 + $0x2b0] sm:$0xff]
        %v742 = vld [vmem:[%s1 + $0x2b8] sm:$0xf]
        %v743 = vld [vmem:[%s1 + $0x2bc] sm:$0xff]
        %v744 = vld [vmem:[%s1 + $0x2c4] sm:$0xff]
        %v745 = vld [vmem:[%s1 + $0x2cc] sm:$0xff]
        %v746 = vld [vmem:[%s1 + $0x2d4] sm:$0xf]
        %v747 = vld [vmem:[%s1 + $0x2d8] sm:$0xff]
        %v748 = vld [vmem:[%s1 + $0x2e0] sm:$0xff]
        %v749 = vld [vmem:[%s1 + $0x2e8] sm:$0xff]
        %v750 = vld [vmem:[%s1 + $0x2f0] sm:$0xf]
        %v751 = vld [vmem:[%s1 + $0x2f4] sm:$0xff]
        %v752 = vld [vmem:[%s1 + $0x2fc] sm:$0xff]
        %v753 = vld [vmem:[%s1 + $0x304] sm:$0xff]
        %v754 = vld [vmem:[%s1 + $0x30c] sm:$0xf]
        %v755 = vld [vmem:[%s1 + $0x310] sm:$0xff]
        %v756 = vld [vmem:[%s1 + $0x318] sm:$0xff]
        %v757 = vld [vmem:[%s1 + $0x320] sm:$0xff]
        %v758 = vld [vmem:[%s1 + $0x328] sm:$0xf]
        %v759 = vld [vmem:[%s1 + $0x32c] sm:$0xff]
        %v760 = vld [vmem:[%s1 + $0x334] sm:$0xff]
        %v761 = vld [vmem:[%s1 + $0x33c] sm:$0xff]
        %v762 = vld [vmem:[%s1 + $0x344] sm:$0xf]
        %v763 = vld [vmem:[%s1 + $0x348] sm:$0xff]
        %v764 = vld [vmem:[%s1 + $0x350] sm:$0xff]
        %v765 = vld [vmem:[%s1 + $0x358] sm:$0xff]
        %v766 = vld [vmem:[%s1 + $0x360] sm:$0xf]
        %v767 = vld [vmem:[%s1 + $0x364] sm:$0xff]
        %v768 = vld [vmem:[%s1 + $0x36c] sm:$0xff]
        %v769 = vld [vmem:[%s1 + $0x374] sm:$0xff]
        %v770 = vld [vmem:[%s1 + $0x37c] sm:$0xf]
        %v771 = vld [vmem:[%s1 + $0x380] sm:$0xff]
        %v772 = vld [vmem:[%s1 + $0x388] sm:$0xff]
        %v773 = vld [vmem:[%s1 + $0x390] sm:$0xff]
        %v774 = vld [vmem:[%s1 + $0x398] sm:$0xf]
        %v775 = vld [vmem:[%s1 + $0x39c] sm:$0xff]
        %v776 = vld [vmem:[%s1 + $0x3a4] sm:$0xff]
        %v777 = vld [vmem:[%s1 + $0x3ac] sm:$0xff]
        %v778 = vld [vmem:[%s1 + $0x3b4] sm:$0xf]
        %v779 = vld [vmem:[%s1 + $0x3b8] sm:$0xff]
        %v780 = vld [vmem:[%s1 + $0x3c0] sm:$0xff]
        %v781 = vld [vmem:[%s1 + $0x3c8] sm:$0xff]
        %v782 = vld [vmem:[%s1 + $0x3d0] sm:$0xf]
        %v783 = vld [vmem:[%s1 + $0x3d4] sm:$0xff]
        %v784 = vld [vmem:[%s1 + $0x3dc] sm:$0xff]
        %v785 = vld [vmem:[%s1 + $0x3e4] sm:$0xff]
        %v786 = vld [vmem:[%s1 + $0x3ec] sm:$0xf]
        %v787 = vld [vmem:[%s1 + $0x3f0] sm:$0xff]
        %v788 = vld [vmem:[%s1 + $0x3f8] sm:$0xff]
        %v789 = vld [vmem:[%s1 + $0x400] sm:$0xff]
        %v790 = vld [vmem:[%s1 + $0x408] sm:$0xf]
        %v791 = vld [vmem:[%s1 + $0x40c] sm:$0xff]
        %v792 = vld [vmem:[%s1 + $0x414] sm:$0xff]
        %v793 = vld [vmem:[%s1 + $0x41c] sm:$0xff]
        %v794 = vld [vmem:[%s1 + $0x424] sm:$0xf]
        %v795 = vld [vmem:[%s1 + $0x428] sm:$0xff]
        %v796 = vld [vmem:[%s1 + $0x430] sm:$0xff]
        %v797 = vld [vmem:[%s1 + $0x438] sm:$0xff]
        %v798 = vld [vmem:[%s1 + $0x440] sm:$0xf]
        %v799 = vld [vmem:[%s1 + $0x444] sm:$0xff]
        %v800 = vld [vmem:[%s1 + $0x44c] sm:$0xff]
        %v801 = vld [vmem:[%s1 + $0x454] sm:$0xff]
        %v802 = vld [vmem:[%s1 + $0x45c] sm:$0xf]
        %v803 = vld [vmem:[%s1 + $0x460] sm:$0xff]
        %v804 = vld [vmem:[%s1 + $0x468] sm:$0xff]
        %v805 = vld [vmem:[%s1 + $0x470] sm:$0xff]
        %v806 = vld [vmem:[%s1 + $0x478] sm:$0xf]
        %v807 = vld [vmem:[%s1 + $0x47c] sm:$0xff]
        %v808 = vld [vmem:[%s1 + $0x484] sm:$0xff]
        %v809 = vld [vmem:[%s1 + $0x48c] sm:$0xff]
        %v810 = vld [vmem:[%s1 + $0x494] sm:$0xf]
        %v811 = vld [vmem:[%s1 + $0x498] sm:$0xff]
        %v812 = vld [vmem:[%s1 + $0x4a0] sm:$0xff]
        %v813 = vld [vmem:[%s1 + $0x4a8] sm:$0xff]
        %v814 = vld [vmem:[%s1 + $0x4b0] sm:$0xf]
        %v815 = vld [vmem:[%s1 + $0x4b4] sm:$0xff]
        %v816 = vld [vmem:[%s1 + $0x4bc] sm:$0xff]
        %v817 = vld [vmem:[%s1 + $0x4c4] sm:$0xff]
        %v818 = vld [vmem:[%s1 + $0x4cc] sm:$0xf]
        %v819 = vld [vmem:[%s1 + $0x4d0] sm:$0xff]
        %v820 = vld [vmem:[%s1 + $0x4d8] sm:$0xff]
        %v821 = vld [vmem:[%s1 + $0x4e0] sm:$0xff]
        %v822 = vld [vmem:[%s1 + $0x4e8] sm:$0xf]
        %v823 = vld [vmem:[%s1 + $0x4ec] sm:$0xff]
        %v824 = vld [vmem:[%s1 + $0x4f4] sm:$0xff]
        %v825 = vld [vmem:[%s1 + $0x4fc] sm:$0xff]
        %v826 = vld [vmem:[%s1 + $0x504] sm:$0xf]
        %v827 = vld [vmem:[%s1 + $0x508] sm:$0xff]
        %v828 = vld [vmem:[%s1 + $0x510] sm:$0xff]
        %v829 = vld [vmem:[%s1 + $0x518] sm:$0xff]
        %v830 = vld [vmem:[%s1 + $0x520] sm:$0xf]
        %v831 = vld [vmem:[%s1 + $0x524] sm:$0xff]
        %v832 = vld [vmem:[%s1 + $0x52c] sm:$0xff]
        %v833 = vld [vmem:[%s1 + $0x534] sm:$0xff]
        %v834 = vld [vmem:[%s1 + $0x53c] sm:$0xf]
        %v835 = vld [vmem:[%s1 + $0x540] sm:$0xff]
        %v836 = vld [vmem:[%s1 + $0x548] sm:$0xff]
        %v837 = vld [vmem:[%s1 + $0x550] sm:$0xff]
        %v838 = vld [vmem:[%s1 + $0x558] sm:$0xf]
        %v839 = vld [vmem:[%s1 + $0x55c] sm:$0xff]
        %v840 = vld [vmem:[%s1 + $0x564] sm:$0xff]
        %v841 = vld [vmem:[%s1 + $0x56c] sm:$0xff]
        %v842 = vld [vmem:[%s1 + $0x574] sm:$0xf]
        %v843 = vld [vmem:[%s1 + $0x578] sm:$0xff]
        %v844 = vld [vmem:[%s1 + $0x580] sm:$0xff]
        %v845 = vld [vmem:[%s1 + $0x588] sm:$0xff]
        %v846 = vld [vmem:[%s1 + $0x590] sm:$0xf]
        %v847 = vld [vmem:[%s1 + $0x594] sm:$0xff]
        %v848 = vld [vmem:[%s1 + $0x59c] sm:$0xff]
        %v849 = vld [vmem:[%s1 + $0x5a4] sm:$0xff]
        %v850 = vld [vmem:[%s1 + $0x5ac] sm:$0xf]
        %v851 = vld [vmem:[%s1 + $0x5b0] sm:$0xff]
        %v852 = vld [vmem:[%s1 + $0x5b8] sm:$0xff]
        %v853 = vld [vmem:[%s1 + $0x5c0] sm:$0xff]
        %v854 = vld [vmem:[%s1 + $0x5c8] sm:$0xf]
        %v855 = vld [vmem:[%s1 + $0x5cc] sm:$0xff]
        %v856 = vld [vmem:[%s1 + $0x5d4] sm:$0xff]
        %v857 = vld [vmem:[%s1 + $0x5dc] sm:$0xff]
        %v858 = vld [vmem:[%s1 + $0x5e4] sm:$0xf]
        %v859 = vld [vmem:[%s1 + $0x5e8] sm:$0xff]
        %v860 = vld [vmem:[%s1 + $0x5f0] sm:$0xff]
        %v861 = vld [vmem:[%s1 + $0x5f8] sm:$0xff]
        %v862 = vld [vmem:[%s1 + $0x600] sm:$0xf]
        %v863 = vld [vmem:[%s1 + $0x604] sm:$0xff]
        %v864 = vld [vmem:[%s1 + $0x60c] sm:$0xff]
        %v865 = vld [vmem:[%s1 + $0x614] sm:$0xff]
        %v866 = vld [vmem:[%s1 + $0x61c] sm:$0xf]
        %v867 = vld [vmem:[%s1 + $0x620] sm:$0xff]
        %v868 = vld [vmem:[%s1 + $0x628] sm:$0xff]
        %v869 = vld [vmem:[%s1 + $0x630] sm:$0xff]
        %v870 = vld [vmem:[%s1 + $0x638] sm:$0xf]
        %v871 = vld [vmem:[%s1 + $0x63c] sm:$0xff]
        %v872 = vld [vmem:[%s1 + $0x644] sm:$0xff]
        %v873 = vld [vmem:[%s1 + $0x64c] sm:$0xff]
        %v874 = vld [vmem:[%s1 + $0x654] sm:$0xf]
        %v875 = vld [vmem:[%s1 + $0x658] sm:$0xff]
        %v876 = vld [vmem:[%s1 + $0x660] sm:$0xff]
        %v877 = vld [vmem:[%s1 + $0x668] sm:$0xff]
        %v878 = vld [vmem:[%s1 + $0x670] sm:$0xf]
        %v879 = vld [vmem:[%s1 + $0x674] sm:$0xff]
        %v880 = vld [vmem:[%s1 + $0x67c] sm:$0xff]
        %v881 = vld [vmem:[%s1 + $0x684] sm:$0xff]
        %v882 = vld [vmem:[%s1 + $0x68c] sm:$0xf]
        %v883 = vld [vmem:[%s1 + $0x690] sm:$0xff]
        %v884 = vld [vmem:[%s1 + $0x698] sm:$0xff]
        %v885 = vld [vmem:[%s1 + $0x6a0] sm:$0xff]
        %v886 = vld [vmem:[%s1 + $0x6a8] sm:$0xf]
        %v887 = vld [vmem:[%s1 + $0x6ac] sm:$0xff]
        %v888 = vld [vmem:[%s1 + $0x6b4] sm:$0xff]
        %v889 = vld [vmem:[%s1 + $0x6bc] sm:$0xff]
        %v890 = vld [vmem:[%s1 + $0x6c4] sm:$0xf]
        %v891 = vld [vmem:[%s1 + $0x6c8] sm:$0xff]
        %v892 = vld [vmem:[%s1 + $0x6d0] sm:$0xff]
        %v893 = vld [vmem:[%s1 + $0x6d8] sm:$0xff]
        %v894 = vld [vmem:[%s1 + $0x6e0] sm:$0xf]
        %v895 = vld [vmem:[%s1 + $0x6e4] sm:$0xff]
        %v896 = vld [vmem:[%s1 + $0x6ec] sm:$0xff]
        %v897 = vld [vmem:[%s1 + $0x6f4] sm:$0xff]
        %v898 = vld [vmem:[%s1 + $0x6fc] sm:$0xf]
        %v899 = vld [vmem:[%s1 + $0x700] sm:$0xff]
        %v900 = vld [vmem:[%s1 + $0x708] sm:$0xff]
        %v901 = vld [vmem:[%s1 + $0x710] sm:$0xff]
        %v902 = vld [vmem:[%s1 + $0x718] sm:$0xf]
        %v903 = vld [vmem:[%s1 + $0x71c] sm:$0xff]
        %v904 = vld [vmem:[%s1 + $0x724] sm:$0xff]
        %v905 = vld [vmem:[%s1 + $0x72c] sm:$0xff]
        %v906 = vld [vmem:[%s1 + $0x734] sm:$0xf]
        %v907 = vld [vmem:[%s1 + $0x738] sm:$0xff]
        %v908 = vld [vmem:[%s1 + $0x740] sm:$0xff]
        %v909 = vld [vmem:[%s1 + $0x748] sm:$0xff]
        %v910 = vld [vmem:[%s1 + $0x750] sm:$0xf]
        %v911 = vld [vmem:[%s1 + $0x754] sm:$0xff]
        %v912 = vld [vmem:[%s1 + $0x75c] sm:$0xff]
        %v913 = vld [vmem:[%s1 + $0x764] sm:$0xff]
        %v914 = vld [vmem:[%s1 + $0x76c] sm:$0xf]
        %v915 = vld [vmem:[%s1 + $0x770] sm:$0xff]
        %v916 = vld [vmem:[%s1 + $0x778] sm:$0xff]
        %v917 = vld [vmem:[%s1 + $0x780] sm:$0xff]
        %v918 = vld [vmem:[%s1 + $0x788] sm:$0xf]
        %v919 = vld [vmem:[%s1 + $0x78c] sm:$0xff]
        %v920 = vld [vmem:[%s1 + $0x794] sm:$0xff]
        %v921 = vld [vmem:[%s1 + $0x79c] sm:$0xff]
        %v922 = vld [vmem:[%s1 + $0x7a4] sm:$0xf]
        %v923 = vld [vmem:[%s1 + $0x7a8] sm:$0xff]
        %v924 = vld [vmem:[%s1 + $0x7b0] sm:$0xff]
        %v925 = vld [vmem:[%s1 + $0x7b8] sm:$0xff]
        %v926 = vld [vmem:[%s1 + $0x7c0] sm:$0xf]
        %v927 = vld [vmem:[%s1 + $0x7c4] sm:$0xff]
        %v928 = vld [vmem:[%s1 + $0x7cc] sm:$0xff]
        %v929 = vld [vmem:[%s1 + $0x7d4] sm:$0xff]
        %v930 = vld [vmem:[%s1 + $0x7dc] sm:$0xf]
        %v931 = vld [vmem:[%s1 + $0x7e0] sm:$0xff]
        %v932 = vld [vmem:[%s1 + $0x7e8] sm:$0xff]
        %v933 = vld [vmem:[%s1 + $0x7f0] sm:$0xff]
        %v934 = vld [vmem:[%s1 + $0x7f8] sm:$0xf]
        %v935 = vld [vmem:[%s1 + $0x7fc] sm:$0xff]
        %v936 = vld [vmem:[%s1 + $0x804] sm:$0xff]
        %v937 = vld [vmem:[%s1 + $0x80c] sm:$0xff]
        %v938 = vld [vmem:[%s1 + $0x814] sm:$0xf]
        %v939 = vld [vmem:[%s1 + $0x818] sm:$0xff]
        %v940 = vld [vmem:[%s1 + $0x820] sm:$0xff]
        %v941 = vld [vmem:[%s1 + $0x828] sm:$0xff]
        %v942 = vld [vmem:[%s1 + $0x830] sm:$0xf]
        %v943 = vld [vmem:[%s1 + $0x834] sm:$0xff]
        %v944 = vld [vmem:[%s1 + $0x83c] sm:$0xff]
        %v945 = vld [vmem:[%s1 + $0x844] sm:$0xff]
        %v946 = vld [vmem:[%s1 + $0x84c] sm:$0xf]
        %v947 = vld [vmem:[%s1 + $0x850] sm:$0xff]
        %v948 = vld [vmem:[%s1 + $0x858] sm:$0xff]
        %v949 = vld [vmem:[%s1 + $0x860] sm:$0xff]
        %v950 = vld [vmem:[%s1 + $0x868] sm:$0xf]
        %v951 = vld [vmem:[%s1 + $0x86c] sm:$0xff]
        %v952 = vld [vmem:[%s1 + $0x874] sm:$0xff]
        %v953 = vld [vmem:[%s1 + $0x87c] sm:$0xff]
        %v954 = vld [vmem:[%s1 + $0x884] sm:$0xf]
        %v955 = vld [vmem:[%s1 + $0x888] sm:$0xff]
        %v956 = vld [vmem:[%s1 + $0x890] sm:$0xff]
        %v957 = vld [vmem:[%s1 + $0x898] sm:$0xff]
        %v958 = vld [vmem:[%s1 + $0x8a0] sm:$0xf]
        %v959 = vld [vmem:[%s1 + $0x8a4] sm:$0xff]
        %v960 = vld [vmem:[%s1 + $0x8ac] sm:$0xff]
        %v961 = vld [vmem:[%s1 + $0x8b4] sm:$0xff]
        %v962 = vld [vmem:[%s1 + $0x8bc] sm:$0xf]
        %v963 = vld [vmem:[%s1 + $0x8c0] sm:$0xff]
        %v964 = vld [vmem:[%s1 + $0x8c8] sm:$0xff]
        %v965 = vld [vmem:[%s1 + $0x8d0] sm:$0xff]
        %v966 = vld [vmem:[%s1 + $0x8d8] sm:$0xf]
        %v967 = vld [vmem:[%s1 + $0x8dc] sm:$0xff]
        %v968 = vld [vmem:[%s1 + $0x8e4] sm:$0xff]
        %v969 = vld [vmem:[%s1 + $0x8ec] sm:$0xff]
        %v970 = vld [vmem:[%s1 + $0x8f4] sm:$0xf]
        %v971 = vld [vmem:[%s1 + $0x8f8] sm:$0xff]
        %v972 = vld [vmem:[%s1 + $0x900] sm:$0xff]
        %v973 = vld [vmem:[%s1 + $0x908] sm:$0xff]
        %v974 = vld [vmem:[%s1 + $0x910] sm:$0xf]
        %v975 = vld [vmem:[%s1 + $0x914] sm:$0xff]
        %v976 = vld [vmem:[%s1 + $0x91c] sm:$0xff]
        %v977 = vld [vmem:[%s1 + $0x924] sm:$0xff]
        %v978 = vld [vmem:[%s1 + $0x92c] sm:$0xf]
        %v979 = vld [vmem:[%s1 + $0x930] sm:$0xff]
        %v980 = vld [vmem:[%s1 + $0x938] sm:$0xff]
        %v981 = vld [vmem:[%s1 + $0x940] sm:$0xff]
        %v982 = vld [vmem:[%s1 + $0x948] sm:$0xf]
        %v983 = vld [vmem:[%s1 + $0x94c] sm:$0xff]
        %v984 = vld [vmem:[%s1 + $0x954] sm:$0xff]
        %v985 = vld [vmem:[%s1 + $0x95c] sm:$0xff]
        %v986 = vld [vmem:[%s1 + $0x964] sm:$0xf]
        %v987 = vld [vmem:[%s1 + $0x968] sm:$0xff]
        %v988 = vld [vmem:[%s1 + $0x970] sm:$0xff]
        %v989 = vld [vmem:[%s1 + $0x978] sm:$0xff]
        %v990 = vld [vmem:[%s1 + $0x980] sm:$0xf]
        %v991 = vld [vmem:[%s1 + $0x984] sm:$0xff]
        %v992 = vld [vmem:[%s1 + $0x98c] sm:$0xff]
        %v993 = vld [vmem:[%s1 + $0x994] sm:$0xff]
        %v994 = vld [vmem:[%s1 + $0x99c] sm:$0xf]
        %v995 = vld [vmem:[%s1 + $0x9a0] sm:$0xff]
        %v996 = vld [vmem:[%s1 + $0x9a8] sm:$0xff]
        %v997 = vld [vmem:[%s1 + $0x9b0] sm:$0xff]
        %v998 = vld [vmem:[%s1 + $0x9b8] sm:$0xf]
        %v999 = vld [vmem:[%s1 + $0x9bc] sm:$0xff]
        %v1000 = vld [vmem:[%s1 + $0x9c4] sm:$0xff]
        %v1001 = vld [vmem:[%s1 + $0x9cc] sm:$0xff]
        %v1002 = vld [vmem:[%s1 + $0x9d4] sm:$0xf]
        %v1003 = vld [vmem:[%s1 + $0x9d8] sm:$0xff]
        %v1004 = vld [vmem:[%s1 + $0x9e0] sm:$0xff]
        %v1005 = vld [vmem:[%s1 + $0x9e8] sm:$0xff]
        %v1006 = vld [vmem:[%s1 + $0x9f0] sm:$0xf]
        %v1007 = vld [vmem:[%s1 + $0x9f4] sm:$0x11]
        %v1008 = vld [vmem:[%s1 + $0x9fc] sm:$0x11]
        %v1009 = vld [vmem:[%s1 + $0xa04] sm:$0x11]
        %v1010 = vld [vmem:[%s1 + $0xa0c] sm:$0x1]
        %v1035 = vunpack.c.l.b16 %v619
        %v1036 = vunpack.c.h.b16 %v619
        %v1037 = vunpack.c.l.b16 %v620
        %v1038 = vunpack.c.h.b16 %v620
        %v1039 = vunpack.c.l.b16 %v621
        %v1040 = vunpack.c.h.b16 %v621
        %v1041 = vunpack.c.l.b16 %v622
        %v1042 = vunpack.c.h.b16 %v622
        %v1043 = vunpack.c.l.b16 %v623
        %v1044 = vunpack.c.h.b16 %v623
        %v1045 = vunpack.c.l.b16 %v624
        %v1046 = vunpack.c.h.b16 %v624
        %v1047 = vunpack.c.l.b16 %v625
        %v1048 = vunpack.c.h.b16 %v625
        %v1049 = vunpack.c.l.b16 %v626
        %v1050 = vunpack.c.h.b16 %v626
        %v1051 = vunpack.c.l.b16 %v627
        %v1052 = vunpack.c.h.b16 %v627
        %v1053 = vunpack.c.l.b16 %v628
        %v1054 = vunpack.c.h.b16 %v628
        %v1055 = vunpack.c.l.b16 %v629
        %v1056 = vunpack.c.h.b16 %v629
        %v1057 = vunpack.c.l.b16 %v630
        %v1058 = vunpack.c.h.b16 %v630
        %v1059 = vunpack.c.l.b16 %v631
        %v1060 = vunpack.c.h.b16 %v631
        %v1061 = vunpack.c.l.b16 %v632
        %v1062 = vunpack.c.h.b16 %v632
        %v1063 = vunpack.c.l.b16 %v633
        %v1064 = vunpack.c.h.b16 %v633
        %v1065 = vunpack.c.l.b16 %v634
        %v1066 = vunpack.c.h.b16 %v634
        %v1067 = vunpack.c.l.b16 %v635
        %v1068 = vunpack.c.h.b16 %v635
        %v1069 = vunpack.c.l.b16 %v636
        %v1070 = vunpack.c.h.b16 %v636
        %v1071 = vunpack.c.l.b16 %v637
        %v1072 = vunpack.c.h.b16 %v637
        %v1073 = vunpack.c.l.b16 %v638
        %v1074 = vunpack.c.h.b16 %v638
        %v1075 = vunpack.c.l.b16 %v639
        %v1076 = vunpack.c.h.b16 %v639
        %v1077 = vunpack.c.l.b16 %v640
        %v1078 = vunpack.c.h.b16 %v640
        %v1079 = vunpack.c.l.b16 %v641
        %v1080 = vunpack.c.h.b16 %v641
        %v1081 = vunpack.c.l.b16 %v642
        %v1082 = vunpack.c.h.b16 %v642
        %v1083 = vpack.c.b16 %v1041, %v1035
        %v1084 = vpack.c.b16 %v1042, %v1036
        %v1085 = vpack.c.b16 %v1043, %v1037
        %v1086 = vpack.c.b16 %v1044, %v1038
        %v1087 = vpack.c.b16 %v1045, %v1039
        %v1088 = vpack.c.b16 %v1046, %v1040
        %v1089 = vpack.c.b16 %v1053, %v1047
        %v1090 = vpack.c.b16 %v1054, %v1048
        %v1091 = vpack.c.b16 %v1055, %v1049
        %v1092 = vpack.c.b16 %v1056, %v1050
        %v1093 = vpack.c.b16 %v1057, %v1051
        %v1094 = vpack.c.b16 %v1058, %v1052
        %v1095 = vpack.c.b16 %v1065, %v1059
        %v1096 = vpack.c.b16 %v1066, %v1060
        %v1097 = vpack.c.b16 %v1067, %v1061
        %v1098 = vpack.c.b16 %v1068, %v1062
        %v1099 = vpack.c.b16 %v1069, %v1063
        %v1100 = vpack.c.b16 %v1070, %v1064
        %v1101 = vpack.c.b16 %v1077, %v1071
        %v1102 = vpack.c.b16 %v1078, %v1072
        %v1103 = vpack.c.b16 %v1079, %v1073
        %v1104 = vpack.c.b16 %v1080, %v1074
        %v1105 = vpack.c.b16 %v1081, %v1075
        %v1106 = vpack.c.b16 %v1082, %v1076
        %v1495 = vunpack.c.l.b16 %v643
        %v1496 = vunpack.c.h.b16 %v643
        %v1497 = vunpack.c.l.b16 %v644
        %v1498 = vunpack.c.h.b16 %v644
        %v1499 = vunpack.c.l.b16 %v645
        %v1500 = vunpack.c.h.b16 %v645
        %v1501 = vunpack.c.l.b16 %v646
        %v1502 = vunpack.c.l.b16 %v647
        %v1503 = vunpack.c.h.b16 %v647
        %v1504 = vunpack.c.l.b16 %v648
        %v1505 = vunpack.c.h.b16 %v648
        %v1506 = vunpack.c.l.b16 %v649
        %v1507 = vunpack.c.h.b16 %v649
        %v1508 = vunpack.c.l.b16 %v650
        %v1509 = vunpack.c.l.b16 %v651
        %v1510 = vunpack.c.h.b16 %v651
        %v1511 = vunpack.c.l.b16 %v652
        %v1512 = vunpack.c.h.b16 %v652
        %v1513 = vunpack.c.l.b16 %v653
        %v1514 = vunpack.c.h.b16 %v653
        %v1515 = vunpack.c.l.b16 %v654
        %v1516 = vunpack.c.l.b16 %v655
        %v1517 = vunpack.c.h.b16 %v655
        %v1518 = vunpack.c.l.b16 %v656
        %v1519 = vunpack.c.h.b16 %v656
        %v1520 = vunpack.c.l.b16 %v657
        %v1521 = vunpack.c.h.b16 %v657
        %v1522 = vunpack.c.l.b16 %v658
        %v1523 = vunpack.c.l.b16 %v659
        %v1524 = vunpack.c.h.b16 %v659
        %v1525 = vunpack.c.l.b16 %v660
        %v1526 = vunpack.c.h.b16 %v660
        %v1527 = vunpack.c.l.b16 %v661
        %v1528 = vunpack.c.h.b16 %v661
        %v1529 = vunpack.c.l.b16 %v662
        %v1530 = vunpack.c.l.b16 %v663
        %v1531 = vunpack.c.h.b16 %v663
        %v1532 = vunpack.c.l.b16 %v664
        %v1533 = vunpack.c.h.b16 %v664
        %v1534 = vunpack.c.l.b16 %v665
        %v1535 = vunpack.c.h.b16 %v665
        %v1536 = vunpack.c.l.b16 %v666
        %v1537 = vunpack.c.l.b16 %v667
        %v1538 = vunpack.c.h.b16 %v667
        %v1539 = vunpack.c.l.b16 %v668
        %v1540 = vunpack.c.h.b16 %v668
        %v1541 = vunpack.c.l.b16 %v669
        %v1542 = vunpack.c.h.b16 %v669
        %v1543 = vunpack.c.l.b16 %v670
        %v1544 = vunpack.c.l.b16 %v671
        %v1545 = vunpack.c.h.b16 %v671
        %v1546 = vunpack.c.l.b16 %v672
        %v1547 = vunpack.c.h.b16 %v672
        %v1548 = vunpack.c.l.b16 %v673
        %v1549 = vunpack.c.h.b16 %v673
        %v1550 = vunpack.c.l.b16 %v674
        %v1551 = vunpack.c.l.b16 %v675
        %v1552 = vunpack.c.h.b16 %v675
        %v1553 = vunpack.c.l.b16 %v676
        %v1554 = vunpack.c.h.b16 %v676
        %v1555 = vunpack.c.l.b16 %v677
        %v1556 = vunpack.c.h.b16 %v677
        %v1557 = vunpack.c.l.b16 %v678
        %v1558 = vunpack.c.l.b16 %v679
        %v1559 = vunpack.c.h.b16 %v679
        %v1560 = vunpack.c.l.b16 %v680
        %v1561 = vunpack.c.h.b16 %v680
        %v1562 = vunpack.c.l.b16 %v681
        %v1563 = vunpack.c.h.b16 %v681
        %v1564 = vunpack.c.l.b16 %v682
        %v1565 = vunpack.c.l.b16 %v683
        %v1566 = vunpack.c.h.b16 %v683
        %v1567 = vunpack.c.l.b16 %v684
        %v1568 = vunpack.c.h.b16 %v684
        %v1569 = vunpack.c.l.b16 %v685
        %v1570 = vunpack.c.h.b16 %v685
        %v1571 = vunpack.c.l.b16 %v686
        %v1572 = vunpack.c.l.b16 %v687
        %v1573 = vunpack.c.h.b16 %v687
        %v1574 = vunpack.c.l.b16 %v688
        %v1575 = vunpack.c.h.b16 %v688
        %v1576 = vunpack.c.l.b16 %v689
        %v1577 = vunpack.c.h.b16 %v689
        %v1578 = vunpack.c.l.b16 %v690
        %v1579 = vunpack.c.l.b16 %v691
        %v1580 = vunpack.c.h.b16 %v691
        %v1581 = vunpack.c.l.b16 %v692
        %v1582 = vunpack.c.h.b16 %v692
        %v1583 = vunpack.c.l.b16 %v693
        %v1584 = vunpack.c.h.b16 %v693
        %v1585 = vunpack.c.l.b16 %v694
        %v1586 = vunpack.c.l.b16 %v695
        %v1587 = vunpack.c.h.b16 %v695
        %v1588 = vunpack.c.l.b16 %v696
        %v1589 = vunpack.c.h.b16 %v696
        %v1590 = vunpack.c.l.b16 %v697
        %v1591 = vunpack.c.h.b16 %v697
        %v1592 = vunpack.c.l.b16 %v698
        %v1593 = vunpack.c.l.b16 %v699
        %v1594 = vunpack.c.h.b16 %v699
        %v1595 = vunpack.c.l.b16 %v700
        %v1596 = vunpack.c.h.b16 %v700
        %v1597 = vunpack.c.l.b16 %v701
        %v1598 = vunpack.c.h.b16 %v701
        %v1599 = vunpack.c.l.b16 %v702
        %v1600 = vunpack.c.l.b16 %v703
        %v1601 = vunpack.c.h.b16 %v703
        %v1602 = vunpack.c.l.b16 %v704
        %v1603 = vunpack.c.h.b16 %v704
        %v1604 = vunpack.c.l.b16 %v705
        %v1605 = vunpack.c.h.b16 %v705
        %v1606 = vunpack.c.l.b16 %v706
        %v1607 = vunpack.c.l.b16 %v707
        %v1608 = vunpack.c.h.b16 %v707
        %v1609 = vunpack.c.l.b16 %v708
        %v1610 = vunpack.c.h.b16 %v708
        %v1611 = vunpack.c.l.b16 %v709
        %v1612 = vunpack.c.h.b16 %v709
        %v1613 = vunpack.c.l.b16 %v710
        %v1614 = vunpack.c.l.b16 %v711
        %v1615 = vunpack.c.h.b16 %v711
        %v1616 = vunpack.c.l.b16 %v712
        %v1617 = vunpack.c.h.b16 %v712
        %v1618 = vunpack.c.l.b16 %v713
        %v1619 = vunpack.c.h.b16 %v713
        %v1620 = vunpack.c.l.b16 %v714
        %v1621 = vunpack.c.l.b16 %v715
        %v1622 = vunpack.c.h.b16 %v715
        %v1623 = vunpack.c.l.b16 %v716
        %v1624 = vunpack.c.h.b16 %v716
        %v1625 = vunpack.c.l.b16 %v717
        %v1626 = vunpack.c.h.b16 %v717
        %v1627 = vunpack.c.l.b16 %v718
        %v1628 = vunpack.c.l.b16 %v719
        %v1629 = vunpack.c.h.b16 %v719
        %v1630 = vunpack.c.l.b16 %v720
        %v1631 = vunpack.c.h.b16 %v720
        %v1632 = vunpack.c.l.b16 %v721
        %v1633 = vunpack.c.h.b16 %v721
        %v1634 = vunpack.c.l.b16 %v722
        %v1635 = vunpack.c.l.b16 %v723
        %v1636 = vunpack.c.h.b16 %v723
        %v1637 = vunpack.c.l.b16 %v724
        %v1638 = vunpack.c.h.b16 %v724
        %v1639 = vunpack.c.l.b16 %v725
        %v1640 = vunpack.c.h.b16 %v725
        %v1641 = vunpack.c.l.b16 %v726
        %v1642 = vunpack.c.l.b16 %v727
        %v1643 = vunpack.c.h.b16 %v727
        %v1644 = vunpack.c.l.b16 %v728
        %v1645 = vunpack.c.h.b16 %v728
        %v1646 = vunpack.c.l.b16 %v729
        %v1647 = vunpack.c.h.b16 %v729
        %v1648 = vunpack.c.l.b16 %v730
        %v1649 = vunpack.c.l.b16 %v731
        %v1650 = vunpack.c.h.b16 %v731
        %v1651 = vunpack.c.l.b16 %v732
        %v1652 = vunpack.c.h.b16 %v732
        %v1653 = vunpack.c.l.b16 %v733
        %v1654 = vunpack.c.h.b16 %v733
        %v1655 = vunpack.c.l.b16 %v734
        %v1656 = vunpack.c.l.b16 %v735
        %v1657 = vunpack.c.h.b16 %v735
        %v1658 = vunpack.c.l.b16 %v736
        %v1659 = vunpack.c.h.b16 %v736
        %v1660 = vunpack.c.l.b16 %v737
        %v1661 = vunpack.c.h.b16 %v737
        %v1662 = vunpack.c.l.b16 %v738
        %v1663 = vunpack.c.l.b16 %v739
        %v1664 = vunpack.c.h.b16 %v739
        %v1665 = vunpack.c.l.b16 %v740
        %v1666 = vunpack.c.h.b16 %v740
        %v1667 = vunpack.c.l.b16 %v741
        %v1668 = vunpack.c.h.b16 %v741
        %v1669 = vunpack.c.l.b16 %v742
        %v1670 = vunpack.c.l.b16 %v743
        %v1671 = vunpack.c.h.b16 %v743
        %v1672 = vunpack.c.l.b16 %v744
        %v1673 = vunpack.c.h.b16 %v744
        %v1674 = vunpack.c.l.b16 %v745
        %v1675 = vunpack.c.h.b16 %v745
        %v1676 = vunpack.c.l.b16 %v746
        %v1677 = vunpack.c.l.b16 %v747
        %v1678 = vunpack.c.h.b16 %v747
        %v1679 = vunpack.c.l.b16 %v748
        %v1680 = vunpack.c.h.b16 %v748
        %v1681 = vunpack.c.l.b16 %v749
        %v1682 = vunpack.c.h.b16 %v749
        %v1683 = vunpack.c.l.b16 %v750
        %v1684 = vunpack.c.l.b16 %v751
        %v1685 = vunpack.c.h.b16 %v751
        %v1686 = vunpack.c.l.b16 %v752
        %v1687 = vunpack.c.h.b16 %v752
        %v1688 = vunpack.c.l.b16 %v753
        %v1689 = vunpack.c.h.b16 %v753
        %v1690 = vunpack.c.l.b16 %v754
        %v1691 = vunpack.c.l.b16 %v755
        %v1692 = vunpack.c.h.b16 %v755
        %v1693 = vunpack.c.l.b16 %v756
        %v1694 = vunpack.c.h.b16 %v756
        %v1695 = vunpack.c.l.b16 %v757
        %v1696 = vunpack.c.h.b16 %v757
        %v1697 = vunpack.c.l.b16 %v758
        %v1698 = vunpack.c.l.b16 %v759
        %v1699 = vunpack.c.h.b16 %v759
        %v1700 = vunpack.c.l.b16 %v760
        %v1701 = vunpack.c.h.b16 %v760
        %v1702 = vunpack.c.l.b16 %v761
        %v1703 = vunpack.c.h.b16 %v761
        %v1704 = vunpack.c.l.b16 %v762
        %v1705 = vunpack.c.l.b16 %v763
        %v1706 = vunpack.c.h.b16 %v763
        %v1707 = vunpack.c.l.b16 %v764
        %v1708 = vunpack.c.h.b16 %v764
        %v1709 = vunpack.c.l.b16 %v765
        %v1710 = vunpack.c.h.b16 %v765
        %v1711 = vunpack.c.l.b16 %v766
        %v1712 = vunpack.c.l.b16 %v767
        %v1713 = vunpack.c.h.b16 %v767
        %v1714 = vunpack.c.l.b16 %v768
        %v1715 = vunpack.c.h.b16 %v768
        %v1716 = vunpack.c.l.b16 %v769
        %v1717 = vunpack.c.h.b16 %v769
        %v1718 = vunpack.c.l.b16 %v770
        %v1719 = vunpack.c.l.b16 %v771
        %v1720 = vunpack.c.h.b16 %v771
        %v1721 = vunpack.c.l.b16 %v772
        %v1722 = vunpack.c.h.b16 %v772
        %v1723 = vunpack.c.l.b16 %v773
        %v1724 = vunpack.c.h.b16 %v773
        %v1725 = vunpack.c.l.b16 %v774
        %v1726 = vunpack.c.l.b16 %v775
        %v1727 = vunpack.c.h.b16 %v775
        %v1728 = vunpack.c.l.b16 %v776
        %v1729 = vunpack.c.h.b16 %v776
        %v1730 = vunpack.c.l.b16 %v777
        %v1731 = vunpack.c.h.b16 %v777
        %v1732 = vunpack.c.l.b16 %v778
        %v1733 = vunpack.c.l.b16 %v779
        %v1734 = vunpack.c.h.b16 %v779
        %v1735 = vunpack.c.l.b16 %v780
        %v1736 = vunpack.c.h.b16 %v780
        %v1737 = vunpack.c.l.b16 %v781
        %v1738 = vunpack.c.h.b16 %v781
        %v1739 = vunpack.c.l.b16 %v782
        %v1740 = vunpack.c.l.b16 %v783
        %v1741 = vunpack.c.h.b16 %v783
        %v1742 = vunpack.c.l.b16 %v784
        %v1743 = vunpack.c.h.b16 %v784
        %v1744 = vunpack.c.l.b16 %v785
        %v1745 = vunpack.c.h.b16 %v785
        %v1746 = vunpack.c.l.b16 %v786
        %v1747 = vunpack.c.l.b16 %v787
        %v1748 = vunpack.c.h.b16 %v787
        %v1749 = vunpack.c.l.b16 %v788
        %v1750 = vunpack.c.h.b16 %v788
        %v1751 = vunpack.c.l.b16 %v789
        %v1752 = vunpack.c.h.b16 %v789
        %v1753 = vunpack.c.l.b16 %v790
        %v1754 = vunpack.c.l.b16 %v791
        %v1755 = vunpack.c.h.b16 %v791
        %v1756 = vunpack.c.l.b16 %v792
        %v1757 = vunpack.c.h.b16 %v792
        %v1758 = vunpack.c.l.b16 %v793
        %v1759 = vunpack.c.h.b16 %v793
        %v1760 = vunpack.c.l.b16 %v794
        %v1761 = vunpack.c.l.b16 %v795
        %v1762 = vunpack.c.h.b16 %v795
        %v1763 = vunpack.c.l.b16 %v796
        %v1764 = vunpack.c.h.b16 %v796
        %v1765 = vunpack.c.l.b16 %v797
        %v1766 = vunpack.c.h.b16 %v797
        %v1767 = vunpack.c.l.b16 %v798
        %v1768 = vunpack.c.l.b16 %v799
        %v1769 = vunpack.c.h.b16 %v799
        %v1770 = vunpack.c.l.b16 %v800
        %v1771 = vunpack.c.h.b16 %v800
        %v1772 = vunpack.c.l.b16 %v801
        %v1773 = vunpack.c.h.b16 %v801
        %v1774 = vunpack.c.l.b16 %v802
        %v1775 = vunpack.c.l.b16 %v803
        %v1776 = vunpack.c.h.b16 %v803
        %v1777 = vunpack.c.l.b16 %v804
        %v1778 = vunpack.c.h.b16 %v804
        %v1779 = vunpack.c.l.b16 %v805
        %v1780 = vunpack.c.h.b16 %v805
        %v1781 = vunpack.c.l.b16 %v806
        %v1782 = vunpack.c.l.b16 %v807
        %v1783 = vunpack.c.h.b16 %v807
        %v1784 = vunpack.c.l.b16 %v808
        %v1785 = vunpack.c.h.b16 %v808
        %v1786 = vunpack.c.l.b16 %v809
        %v1787 = vunpack.c.h.b16 %v809
        %v1788 = vunpack.c.l.b16 %v810
        %v1789 = vunpack.c.l.b16 %v811
        %v1790 = vunpack.c.h.b16 %v811
        %v1791 = vunpack.c.l.b16 %v812
        %v1792 = vunpack.c.h.b16 %v812
        %v1793 = vunpack.c.l.b16 %v813
        %v1794 = vunpack.c.h.b16 %v813
        %v1795 = vunpack.c.l.b16 %v814
        %v1796 = vunpack.c.l.b16 %v815
        %v1797 = vunpack.c.h.b16 %v815
        %v1798 = vunpack.c.l.b16 %v816
        %v1799 = vunpack.c.h.b16 %v816
        %v1800 = vunpack.c.l.b16 %v817
        %v1801 = vunpack.c.h.b16 %v817
        %v1802 = vunpack.c.l.b16 %v818
        %v1803 = vunpack.c.l.b16 %v819
        %v1804 = vunpack.c.h.b16 %v819
        %v1805 = vunpack.c.l.b16 %v820
        %v1806 = vunpack.c.h.b16 %v820
        %v1807 = vunpack.c.l.b16 %v821
        %v1808 = vunpack.c.h.b16 %v821
        %v1809 = vunpack.c.l.b16 %v822
        %v1810 = vunpack.c.l.b16 %v823
        %v1811 = vunpack.c.h.b16 %v823
        %v1812 = vunpack.c.l.b16 %v824
        %v1813 = vunpack.c.h.b16 %v824
        %v1814 = vunpack.c.l.b16 %v825
        %v1815 = vunpack.c.h.b16 %v825
        %v1816 = vunpack.c.l.b16 %v826
        %v1817 = vunpack.c.l.b16 %v827
        %v1818 = vunpack.c.h.b16 %v827
        %v1819 = vunpack.c.l.b16 %v828
        %v1820 = vunpack.c.h.b16 %v828
        %v1821 = vunpack.c.l.b16 %v829
        %v1822 = vunpack.c.h.b16 %v829
        %v1823 = vunpack.c.l.b16 %v830
        %v1824 = vunpack.c.l.b16 %v831
        %v1825 = vunpack.c.h.b16 %v831
        %v1826 = vunpack.c.l.b16 %v832
        %v1827 = vunpack.c.h.b16 %v832
        %v1828 = vunpack.c.l.b16 %v833
        %v1829 = vunpack.c.h.b16 %v833
        %v1830 = vunpack.c.l.b16 %v834
        %v1831 = vunpack.c.l.b16 %v835
        %v1832 = vunpack.c.h.b16 %v835
        %v1833 = vunpack.c.l.b16 %v836
        %v1834 = vunpack.c.h.b16 %v836
        %v1835 = vunpack.c.l.b16 %v837
        %v1836 = vunpack.c.h.b16 %v837
        %v1837 = vunpack.c.l.b16 %v838
        %v1838 = vunpack.c.l.b16 %v839
        %v1839 = vunpack.c.h.b16 %v839
        %v1840 = vunpack.c.l.b16 %v840
        %v1841 = vunpack.c.h.b16 %v840
        %v1842 = vunpack.c.l.b16 %v841
        %v1843 = vunpack.c.h.b16 %v841
        %v1844 = vunpack.c.l.b16 %v842
        %v1845 = vunpack.c.l.b16 %v843
        %v1846 = vunpack.c.h.b16 %v843
        %v1847 = vunpack.c.l.b16 %v844
        %v1848 = vunpack.c.h.b16 %v844
        %v1849 = vunpack.c.l.b16 %v845
        %v1850 = vunpack.c.h.b16 %v845
        %v1851 = vunpack.c.l.b16 %v846
        %v1852 = vunpack.c.l.b16 %v847
        %v1853 = vunpack.c.h.b16 %v847
        %v1854 = vunpack.c.l.b16 %v848
        %v1855 = vunpack.c.h.b16 %v848
        %v1856 = vunpack.c.l.b16 %v849
        %v1857 = vunpack.c.h.b16 %v849
        %v1858 = vunpack.c.l.b16 %v850
        %v1859 = vunpack.c.l.b16 %v851
        %v1860 = vunpack.c.h.b16 %v851
        %v1861 = vunpack.c.l.b16 %v852
        %v1862 = vunpack.c.h.b16 %v852
        %v1863 = vunpack.c.l.b16 %v853
        %v1864 = vunpack.c.h.b16 %v853
        %v1865 = vunpack.c.l.b16 %v854
        %v1866 = vunpack.c.l.b16 %v855
        %v1867 = vunpack.c.h.b16 %v855
        %v1868 = vunpack.c.l.b16 %v856
        %v1869 = vunpack.c.h.b16 %v856
        %v1870 = vunpack.c.l.b16 %v857
        %v1871 = vunpack.c.h.b16 %v857
        %v1872 = vunpack.c.l.b16 %v858
        %v1873 = vunpack.c.l.b16 %v859
        %v1874 = vunpack.c.h.b16 %v859
        %v1875 = vunpack.c.l.b16 %v860
        %v1876 = vunpack.c.h.b16 %v860
        %v1877 = vunpack.c.l.b16 %v861
        %v1878 = vunpack.c.h.b16 %v861
        %v1879 = vunpack.c.l.b16 %v862
        %v1880 = vunpack.c.l.b16 %v863
        %v1881 = vunpack.c.h.b16 %v863
        %v1882 = vunpack.c.l.b16 %v864
        %v1883 = vunpack.c.h.b16 %v864
        %v1884 = vunpack.c.l.b16 %v865
        %v1885 = vunpack.c.h.b16 %v865
        %v1886 = vunpack.c.l.b16 %v866
        %v1887 = vunpack.c.l.b16 %v867
        %v1888 = vunpack.c.h.b16 %v867
        %v1889 = vunpack.c.l.b16 %v868
        %v1890 = vunpack.c.h.b16 %v868
        %v1891 = vunpack.c.l.b16 %v869
        %v1892 = vunpack.c.h.b16 %v869
        %v1893 = vunpack.c.l.b16 %v870
        %v1894 = vunpack.c.l.b16 %v871
        %v1895 = vunpack.c.h.b16 %v871
        %v1896 = vunpack.c.l.b16 %v872
        %v1897 = vunpack.c.h.b16 %v872
        %v1898 = vunpack.c.l.b16 %v873
        %v1899 = vunpack.c.h.b16 %v873
        %v1900 = vunpack.c.l.b16 %v874
        %v1901 = vunpack.c.l.b16 %v875
        %v1902 = vunpack.c.h.b16 %v875
        %v1903 = vunpack.c.l.b16 %v876
        %v1904 = vunpack.c.h.b16 %v876
        %v1905 = vunpack.c.l.b16 %v877
        %v1906 = vunpack.c.h.b16 %v877
        %v1907 = vunpack.c.l.b16 %v878
        %v1908 = vunpack.c.l.b16 %v879
        %v1909 = vunpack.c.h.b16 %v879
        %v1910 = vunpack.c.l.b16 %v880
        %v1911 = vunpack.c.h.b16 %v880
        %v1912 = vunpack.c.l.b16 %v881
        %v1913 = vunpack.c.h.b16 %v881
        %v1914 = vunpack.c.l.b16 %v882
        %v1915 = vunpack.c.l.b16 %v883
        %v1916 = vunpack.c.h.b16 %v883
        %v1917 = vunpack.c.l.b16 %v884
        %v1918 = vunpack.c.h.b16 %v884
        %v1919 = vunpack.c.l.b16 %v885
        %v1920 = vunpack.c.h.b16 %v885
        %v1921 = vunpack.c.l.b16 %v886
        %v1922 = vunpack.c.l.b16 %v887
        %v1923 = vunpack.c.h.b16 %v887
        %v1924 = vunpack.c.l.b16 %v888
        %v1925 = vunpack.c.h.b16 %v888
        %v1926 = vunpack.c.l.b16 %v889
        %v1927 = vunpack.c.h.b16 %v889
        %v1928 = vunpack.c.l.b16 %v890
        %v1929 = vunpack.c.l.b16 %v891
        %v1930 = vunpack.c.h.b16 %v891
        %v1931 = vunpack.c.l.b16 %v892
        %v1932 = vunpack.c.h.b16 %v892
        %v1933 = vunpack.c.l.b16 %v893
        %v1934 = vunpack.c.h.b16 %v893
        %v1935 = vunpack.c.l.b16 %v894
        %v1936 = vunpack.c.l.b16 %v895
        %v1937 = vunpack.c.h.b16 %v895
        %v1938 = vunpack.c.l.b16 %v896
        %v1939 = vunpack.c.h.b16 %v896
        %v1940 = vunpack.c.l.b16 %v897
        %v1941 = vunpack.c.h.b16 %v897
        %v1942 = vunpack.c.l.b16 %v898
        %v1943 = vunpack.c.l.b16 %v899
        %v1944 = vunpack.c.h.b16 %v899
        %v1945 = vunpack.c.l.b16 %v900
        %v1946 = vunpack.c.h.b16 %v900
        %v1947 = vunpack.c.l.b16 %v901
        %v1948 = vunpack.c.h.b16 %v901
        %v1949 = vunpack.c.l.b16 %v902
        %v1950 = vunpack.c.l.b16 %v903
        %v1951 = vunpack.c.h.b16 %v903
        %v1952 = vunpack.c.l.b16 %v904
        %v1953 = vunpack.c.h.b16 %v904
        %v1954 = vunpack.c.l.b16 %v905
        %v1955 = vunpack.c.h.b16 %v905
        %v1956 = vunpack.c.l.b16 %v906
        %v1957 = vunpack.c.l.b16 %v907
        %v1958 = vunpack.c.h.b16 %v907
        %v1959 = vunpack.c.l.b16 %v908
        %v1960 = vunpack.c.h.b16 %v908
        %v1961 = vunpack.c.l.b16 %v909
        %v1962 = vunpack.c.h.b16 %v909
        %v1963 = vunpack.c.l.b16 %v910
        %v1964 = vunpack.c.l.b16 %v911
        %v1965 = vunpack.c.h.b16 %v911
        %v1966 = vunpack.c.l.b16 %v912
        %v1967 = vunpack.c.h.b16 %v912
        %v1968 = vunpack.c.l.b16 %v913
        %v1969 = vunpack.c.h.b16 %v913
        %v1970 = vunpack.c.l.b16 %v914
        %v1971 = vunpack.c.l.b16 %v915
        %v1972 = vunpack.c.h.b16 %v915
        %v1973 = vunpack.c.l.b16 %v916
        %v1974 = vunpack.c.h.b16 %v916
        %v1975 = vunpack.c.l.b16 %v917
        %v1976 = vunpack.c.h.b16 %v917
        %v1977 = vunpack.c.l.b16 %v918
        %v1978 = vunpack.c.l.b16 %v919
        %v1979 = vunpack.c.h.b16 %v919
        %v1980 = vunpack.c.l.b16 %v920
        %v1981 = vunpack.c.h.b16 %v920
        %v1982 = vunpack.c.l.b16 %v921
        %v1983 = vunpack.c.h.b16 %v921
        %v1984 = vunpack.c.l.b16 %v922
        %v1985 = vunpack.c.l.b16 %v923
        %v1986 = vunpack.c.h.b16 %v923
        %v1987 = vunpack.c.l.b16 %v924
        %v1988 = vunpack.c.h.b16 %v924
        %v1989 = vunpack.c.l.b16 %v925
        %v1990 = vunpack.c.h.b16 %v925
        %v1991 = vunpack.c.l.b16 %v926
        %v1992 = vunpack.c.l.b16 %v927
        %v1993 = vunpack.c.h.b16 %v927
        %v1994 = vunpack.c.l.b16 %v928
        %v1995 = vunpack.c.h.b16 %v928
        %v1996 = vunpack.c.l.b16 %v929
        %v1997 = vunpack.c.h.b16 %v929
        %v1998 = vunpack.c.l.b16 %v930
        %v1999 = vunpack.c.l.b16 %v931
        %v2000 = vunpack.c.h.b16 %v931
        %v2001 = vunpack.c.l.b16 %v932
        %v2002 = vunpack.c.h.b16 %v932
        %v2003 = vunpack.c.l.b16 %v933
        %v2004 = vunpack.c.h.b16 %v933
        %v2005 = vunpack.c.l.b16 %v934
        %v2006 = vunpack.c.l.b16 %v935
        %v2007 = vunpack.c.h.b16 %v935
        %v2008 = vunpack.c.l.b16 %v936
        %v2009 = vunpack.c.h.b16 %v936
        %v2010 = vunpack.c.l.b16 %v937
        %v2011 = vunpack.c.h.b16 %v937
        %v2012 = vunpack.c.l.b16 %v938
        %v2013 = vunpack.c.l.b16 %v939
        %v2014 = vunpack.c.h.b16 %v939
        %v2015 = vunpack.c.l.b16 %v940
        %v2016 = vunpack.c.h.b16 %v940
        %v2017 = vunpack.c.l.b16 %v941
        %v2018 = vunpack.c.h.b16 %v941
        %v2019 = vunpack.c.l.b16 %v942
        %v2020 = vunpack.c.l.b16 %v943
        %v2021 = vunpack.c.h.b16 %v943
        %v2022 = vunpack.c.l.b16 %v944
        %v2023 = vunpack.c.h.b16 %v944
        %v2024 = vunpack.c.l.b16 %v945
        %v2025 = vunpack.c.h.b16 %v945
        %v2026 = vunpack.c.l.b16 %v946
        %v2027 = vunpack.c.l.b16 %v947
        %v2028 = vunpack.c.h.b16 %v947
        %v2029 = vunpack.c.l.b16 %v948
        %v2030 = vunpack.c.h.b16 %v948
        %v2031 = vunpack.c.l.b16 %v949
        %v2032 = vunpack.c.h.b16 %v949
        %v2033 = vunpack.c.l.b16 %v950
        %v2034 = vunpack.c.l.b16 %v951
        %v2035 = vunpack.c.h.b16 %v951
        %v2036 = vunpack.c.l.b16 %v952
        %v2037 = vunpack.c.h.b16 %v952
        %v2038 = vunpack.c.l.b16 %v953
        %v2039 = vunpack.c.h.b16 %v953
        %v2040 = vunpack.c.l.b16 %v954
        %v2041 = vunpack.c.l.b16 %v955
        %v2042 = vunpack.c.h.b16 %v955
        %v2043 = vunpack.c.l.b16 %v956
        %v2044 = vunpack.c.h.b16 %v956
        %v2045 = vunpack.c.l.b16 %v957
        %v2046 = vunpack.c.h.b16 %v957
        %v2047 = vunpack.c.l.b16 %v958
        %v2048 = vunpack.c.l.b16 %v959
        %v2049 = vunpack.c.h.b16 %v959
        %v2050 = vunpack.c.l.b16 %v960
        %v2051 = vunpack.c.h.b16 %v960
        %v2052 = vunpack.c.l.b16 %v961
        %v2053 = vunpack.c.h.b16 %v961
        %v2054 = vunpack.c.l.b16 %v962
        %v2055 = vunpack.c.l.b16 %v963
        %v2056 = vunpack.c.h.b16 %v963
        %v2057 = vunpack.c.l.b16 %v964
        %v2058 = vunpack.c.h.b16 %v964
        %v2059 = vunpack.c.l.b16 %v965
        %v2060 = vunpack.c.h.b16 %v965
        %v2061 = vunpack.c.l.b16 %v966
        %v2062 = vunpack.c.l.b16 %v967
        %v2063 = vunpack.c.h.b16 %v967
        %v2064 = vunpack.c.l.b16 %v968
        %v2065 = vunpack.c.h.b16 %v968
        %v2066 = vunpack.c.l.b16 %v969
        %v2067 = vunpack.c.h.b16 %v969
        %v2068 = vunpack.c.l.b16 %v970
        %v2069 = vunpack.c.l.b16 %v971
        %v2070 = vunpack.c.h.b16 %v971
        %v2071 = vunpack.c.l.b16 %v972
        %v2072 = vunpack.c.h.b16 %v972
        %v2073 = vunpack.c.l.b16 %v973
        %v2074 = vunpack.c.h.b16 %v973
        %v2075 = vunpack.c.l.b16 %v974
        %v2076 = vunpack.c.l.b16 %v975
        %v2077 = vunpack.c.h.b16 %v975
        %v2078 = vunpack.c.l.b16 %v976
        %v2079 = vunpack.c.h.b16 %v976
        %v2080 = vunpack.c.l.b16 %v977
        %v2081 = vunpack.c.h.b16 %v977
        %v2082 = vunpack.c.l.b16 %v978
        %v2083 = vunpack.c.l.b16 %v979
        %v2084 = vunpack.c.h.b16 %v979
        %v2085 = vunpack.c.l.b16 %v980
        %v2086 = vunpack.c.h.b16 %v980
        %v2087 = vunpack.c.l.b16 %v981
        %v2088 = vunpack.c.h.b16 %v981
        %v2089 = vunpack.c.l.b16 %v982
        %v2090 = vunpack.c.l.b16 %v983
        %v2091 = vunpack.c.h.b16 %v983
        %v2092 = vunpack.c.l.b16 %v984
        %v2093 = vunpack.c.h.b16 %v984
        %v2094 = vunpack.c.l.b16 %v985
        %v2095 = vunpack.c.h.b16 %v985
        %v2096 = vunpack.c.l.b16 %v986
        %v2097 = vunpack.c.l.b16 %v987
        %v2098 = vunpack.c.h.b16 %v987
        %v2099 = vunpack.c.l.b16 %v988
        %v2100 = vunpack.c.h.b16 %v988
        %v2101 = vunpack.c.l.b16 %v989
        %v2102 = vunpack.c.h.b16 %v989
        %v2103 = vunpack.c.l.b16 %v990
        %v2104 = vunpack.c.l.b16 %v991
        %v2105 = vunpack.c.h.b16 %v991
        %v2106 = vunpack.c.l.b16 %v992
        %v2107 = vunpack.c.h.b16 %v992
        %v2108 = vunpack.c.l.b16 %v993
        %v2109 = vunpack.c.h.b16 %v993
        %v2110 = vunpack.c.l.b16 %v994
        %v2111 = vunpack.c.l.b16 %v995
        %v2112 = vunpack.c.h.b16 %v995
        %v2113 = vunpack.c.l.b16 %v996
        %v2114 = vunpack.c.h.b16 %v996
        %v2115 = vunpack.c.l.b16 %v997
        %v2116 = vunpack.c.h.b16 %v997
        %v2117 = vunpack.c.l.b16 %v998
        %v2118 = vunpack.c.l.b16 %v999
        %v2119 = vunpack.c.h.b16 %v999
        %v2120 = vunpack.c.l.b16 %v1000
        %v2121 = vunpack.c.h.b16 %v1000
        %v2122 = vunpack.c.l.b16 %v1001
        %v2123 = vunpack.c.h.b16 %v1001
        %v2124 = vunpack.c.l.b16 %v1002
        %v2125 = vunpack.c.l.b16 %v1003
        %v2126 = vunpack.c.h.b16 %v1003
        %v2127 = vunpack.c.l.b16 %v1004
        %v2128 = vunpack.c.h.b16 %v1004
        %v2129 = vunpack.c.l.b16 %v1005
        %v2130 = vunpack.c.h.b16 %v1005
        %v2131 = vunpack.c.l.b16 %v1006
        %v2132 = vunpack.c.l.b16 %v1007
        %v2133 = vunpack.c.h.b16 %v1007
        %v2134 = vunpack.c.l.b16 %v1008
        %v2135 = vunpack.c.h.b16 %v1008
        %v2136 = vunpack.c.l.b16 %v1009
        %v2137 = vunpack.c.h.b16 %v1009
        %v2138 = vunpack.c.l.b16 %v1010
        %v2139 = vpack.c.b16 %v1502, %v1495
        %v2140 = vpack.c.b16 %v1503, %v1496
        %v2141 = vpack.c.b16 %v1504, %v1497
        %v2142 = vpack.c.b16 %v1505, %v1498
        %v2143 = vpack.c.b16 %v1506, %v1499
        %v2144 = vpack.c.b16 %v1507, %v1500
        %v2145 = vpack.c.b16 %v1508, %v1501
        %v2146 = vpack.c.b16 %v1516, %v1509
        %v2147 = vpack.c.b16 %v1517, %v1510
        %v2148 = vpack.c.b16 %v1518, %v1511
        %v2149 = vpack.c.b16 %v1519, %v1512
        %v2150 = vpack.c.b16 %v1520, %v1513
        %v2151 = vpack.c.b16 %v1521, %v1514
        %v2152 = vpack.c.b16 %v1522, %v1515
        %v2153 = vpack.c.b16 %v1530, %v1523
        %v2154 = vpack.c.b16 %v1531, %v1524
        %v2155 = vpack.c.b16 %v1532, %v1525
        %v2156 = vpack.c.b16 %v1533, %v1526
        %v2157 = vpack.c.b16 %v1534, %v1527
        %v2158 = vpack.c.b16 %v1535, %v1528
        %v2159 = vpack.c.b16 %v1536, %v1529
        %v2160 = vpack.c.b16 %v1544, %v1537
        %v2161 = vpack.c.b16 %v1545, %v1538
        %v2162 = vpack.c.b16 %v1546, %v1539
        %v2163 = vpack.c.b16 %v1547, %v1540
        %v2164 = vpack.c.b16 %v1548, %v1541
        %v2165 = vpack.c.b16 %v1549, %v1542
        %v2166 = vpack.c.b16 %v1550, %v1543
        %v2167 = vpack.c.b16 %v1558, %v1551
        %v2168 = vpack.c.b16 %v1559, %v1552
        %v2169 = vpack.c.b16 %v1560, %v1553
        %v2170 = vpack.c.b16 %v1561, %v1554
        %v2171 = vpack.c.b16 %v1562, %v1555
        %v2172 = vpack.c.b16 %v1563, %v1556
        %v2173 = vpack.c.b16 %v1564, %v1557
        %v2174 = vpack.c.b16 %v1572, %v1565
        %v2175 = vpack.c.b16 %v1573, %v1566
        %v2176 = vpack.c.b16 %v1574, %v1567
        %v2177 = vpack.c.b16 %v1575, %v1568
        %v2178 = vpack.c.b16 %v1576, %v1569
        %v2179 = vpack.c.b16 %v1577, %v1570
        %v2180 = vpack.c.b16 %v1578, %v1571
        %v2181 = vpack.c.b16 %v1586, %v1579
        %v2182 = vpack.c.b16 %v1587, %v1580
        %v2183 = vpack.c.b16 %v1588, %v1581
        %v2184 = vpack.c.b16 %v1589, %v1582
        %v2185 = vpack.c.b16 %v1590, %v1583
        %v2186 = vpack.c.b16 %v1591, %v1584
        %v2187 = vpack.c.b16 %v1592, %v1585
        %v2188 = vpack.c.b16 %v1600, %v1593
        %v2189 = vpack.c.b16 %v1601, %v1594
        %v2190 = vpack.c.b16 %v1602, %v1595
        %v2191 = vpack.c.b16 %v1603, %v1596
        %v2192 = vpack.c.b16 %v1604, %v1597
        %v2193 = vpack.c.b16 %v1605, %v1598
        %v2194 = vpack.c.b16 %v1606, %v1599
        %v2195 = vpack.c.b16 %v1614, %v1607
        %v2196 = vpack.c.b16 %v1615, %v1608
        %v2197 = vpack.c.b16 %v1616, %v1609
        %v2198 = vpack.c.b16 %v1617, %v1610
        %v2199 = vpack.c.b16 %v1618, %v1611
        %v2200 = vpack.c.b16 %v1619, %v1612
        %v2201 = vpack.c.b16 %v1620, %v1613
        %v2202 = vpack.c.b16 %v1628, %v1621
        %v2203 = vpack.c.b16 %v1629, %v1622
        %v2204 = vpack.c.b16 %v1630, %v1623
        %v2205 = vpack.c.b16 %v1631, %v1624
        %v2206 = vpack.c.b16 %v1632, %v1625
        %v2207 = vpack.c.b16 %v1633, %v1626
        %v2208 = vpack.c.b16 %v1634, %v1627
        %v2209 = vpack.c.b16 %v1642, %v1635
        %v2210 = vpack.c.b16 %v1643, %v1636
        %v2211 = vpack.c.b16 %v1644, %v1637
        %v2212 = vpack.c.b16 %v1645, %v1638
        %v2213 = vpack.c.b16 %v1646, %v1639
        %v2214 = vpack.c.b16 %v1647, %v1640
        %v2215 = vpack.c.b16 %v1648, %v1641
        %v2216 = vpack.c.b16 %v1656, %v1649
        %v2217 = vpack.c.b16 %v1657, %v1650
        %v2218 = vpack.c.b16 %v1658, %v1651
        %v2219 = vpack.c.b16 %v1659, %v1652
        %v2220 = vpack.c.b16 %v1660, %v1653
        %v2221 = vpack.c.b16 %v1661, %v1654
        %v2222 = vpack.c.b16 %v1662, %v1655
        %v2223 = vpack.c.b16 %v1670, %v1663
        %v2224 = vpack.c.b16 %v1671, %v1664
        %v2225 = vpack.c.b16 %v1672, %v1665
        %v2226 = vpack.c.b16 %v1673, %v1666
        %v2227 = vpack.c.b16 %v1674, %v1667
        %v2228 = vpack.c.b16 %v1675, %v1668
        %v2229 = vpack.c.b16 %v1676, %v1669
        %v2230 = vpack.c.b16 %v1684, %v1677
        %v2231 = vpack.c.b16 %v1685, %v1678
        %v2232 = vpack.c.b16 %v1686, %v1679
        %v2233 = vpack.c.b16 %v1687, %v1680
        %v2234 = vpack.c.b16 %v1688, %v1681
        %v2235 = vpack.c.b16 %v1689, %v1682
        %v2236 = vpack.c.b16 %v1690, %v1683
        %v2237 = vpack.c.b16 %v1698, %v1691
        %v2238 = vpack.c.b16 %v1699, %v1692
        %v2239 = vpack.c.b16 %v1700, %v1693
        %v2240 = vpack.c.b16 %v1701, %v1694
        %v2241 = vpack.c.b16 %v1702, %v1695
        %v2242 = vpack.c.b16 %v1703, %v1696
        %v2243 = vpack.c.b16 %v1704, %v1697
        %v2244 = vpack.c.b16 %v1712, %v1705
        %v2245 = vpack.c.b16 %v1713, %v1706
        %v2246 = vpack.c.b16 %v1714, %v1707
        %v2247 = vpack.c.b16 %v1715, %v1708
        %v2248 = vpack.c.b16 %v1716, %v1709
        %v2249 = vpack.c.b16 %v1717, %v1710
        %v2250 = vpack.c.b16 %v1718, %v1711
        %v2251 = vpack.c.b16 %v1726, %v1719
        %v2252 = vpack.c.b16 %v1727, %v1720
        %v2253 = vpack.c.b16 %v1728, %v1721
        %v2254 = vpack.c.b16 %v1729, %v1722
        %v2255 = vpack.c.b16 %v1730, %v1723
        %v2256 = vpack.c.b16 %v1731, %v1724
        %v2257 = vpack.c.b16 %v1732, %v1725
        %v2258 = vpack.c.b16 %v1740, %v1733
        %v2259 = vpack.c.b16 %v1741, %v1734
        %v2260 = vpack.c.b16 %v1742, %v1735
        %v2261 = vpack.c.b16 %v1743, %v1736
        %v2262 = vpack.c.b16 %v1744, %v1737
        %v2263 = vpack.c.b16 %v1745, %v1738
        %v2264 = vpack.c.b16 %v1746, %v1739
        %v2265 = vpack.c.b16 %v1754, %v1747
        %v2266 = vpack.c.b16 %v1755, %v1748
        %v2267 = vpack.c.b16 %v1756, %v1749
        %v2268 = vpack.c.b16 %v1757, %v1750
        %v2269 = vpack.c.b16 %v1758, %v1751
        %v2270 = vpack.c.b16 %v1759, %v1752
        %v2271 = vpack.c.b16 %v1760, %v1753
        %v2272 = vpack.c.b16 %v1768, %v1761
        %v2273 = vpack.c.b16 %v1769, %v1762
        %v2274 = vpack.c.b16 %v1770, %v1763
        %v2275 = vpack.c.b16 %v1771, %v1764
        %v2276 = vpack.c.b16 %v1772, %v1765
        %v2277 = vpack.c.b16 %v1773, %v1766
        %v2278 = vpack.c.b16 %v1774, %v1767
        %v2279 = vpack.c.b16 %v1782, %v1775
        %v2280 = vpack.c.b16 %v1783, %v1776
        %v2281 = vpack.c.b16 %v1784, %v1777
        %v2282 = vpack.c.b16 %v1785, %v1778
        %v2283 = vpack.c.b16 %v1786, %v1779
        %v2284 = vpack.c.b16 %v1787, %v1780
        %v2285 = vpack.c.b16 %v1788, %v1781
        %v2286 = vpack.c.b16 %v1796, %v1789
        %v2287 = vpack.c.b16 %v1797, %v1790
        %v2288 = vpack.c.b16 %v1798, %v1791
        %v2289 = vpack.c.b16 %v1799, %v1792
        %v2290 = vpack.c.b16 %v1800, %v1793
        %v2291 = vpack.c.b16 %v1801, %v1794
        %v2292 = vpack.c.b16 %v1802, %v1795
        %v2293 = vpack.c.b16 %v1810, %v1803
        %v2294 = vpack.c.b16 %v1811, %v1804
        %v2295 = vpack.c.b16 %v1812, %v1805
        %v2296 = vpack.c.b16 %v1813, %v1806
        %v2297 = vpack.c.b16 %v1814, %v1807
        %v2298 = vpack.c.b16 %v1815, %v1808
        %v2299 = vpack.c.b16 %v1816, %v1809
        %v2300 = vpack.c.b16 %v1824, %v1817
        %v2301 = vpack.c.b16 %v1825, %v1818
        %v2302 = vpack.c.b16 %v1826, %v1819
        %v2303 = vpack.c.b16 %v1827, %v1820
        %v2304 = vpack.c.b16 %v1828, %v1821
        %v2305 = vpack.c.b16 %v1829, %v1822
        %v2306 = vpack.c.b16 %v1830, %v1823
        %v2307 = vpack.c.b16 %v1838, %v1831
        %v2308 = vpack.c.b16 %v1839, %v1832
        %v2309 = vpack.c.b16 %v1840, %v1833
        %v2310 = vpack.c.b16 %v1841, %v1834
        %v2311 = vpack.c.b16 %v1842, %v1835
        %v2312 = vpack.c.b16 %v1843, %v1836
        %v2313 = vpack.c.b16 %v1844, %v1837
        %v2314 = vpack.c.b16 %v1852, %v1845
        %v2315 = vpack.c.b16 %v1853, %v1846
        %v2316 = vpack.c.b16 %v1854, %v1847
        %v2317 = vpack.c.b16 %v1855, %v1848
        %v2318 = vpack.c.b16 %v1856, %v1849
        %v2319 = vpack.c.b16 %v1857, %v1850
        %v2320 = vpack.c.b16 %v1858, %v1851
        %v2321 = vpack.c.b16 %v1866, %v1859
        %v2322 = vpack.c.b16 %v1867, %v1860
        %v2323 = vpack.c.b16 %v1868, %v1861
        %v2324 = vpack.c.b16 %v1869, %v1862
        %v2325 = vpack.c.b16 %v1870, %v1863
        %v2326 = vpack.c.b16 %v1871, %v1864
        %v2327 = vpack.c.b16 %v1872, %v1865
        %v2328 = vpack.c.b16 %v1880, %v1873
        %v2329 = vpack.c.b16 %v1881, %v1874
        %v2330 = vpack.c.b16 %v1882, %v1875
        %v2331 = vpack.c.b16 %v1883, %v1876
        %v2332 = vpack.c.b16 %v1884, %v1877
        %v2333 = vpack.c.b16 %v1885, %v1878
        %v2334 = vpack.c.b16 %v1886, %v1879
        %v2335 = vpack.c.b16 %v1894, %v1887
        %v2336 = vpack.c.b16 %v1895, %v1888
        %v2337 = vpack.c.b16 %v1896, %v1889
        %v2338 = vpack.c.b16 %v1897, %v1890
        %v2339 = vpack.c.b16 %v1898, %v1891
        %v2340 = vpack.c.b16 %v1899, %v1892
        %v2341 = vpack.c.b16 %v1900, %v1893
        %v2342 = vpack.c.b16 %v1908, %v1901
        %v2343 = vpack.c.b16 %v1909, %v1902
        %v2344 = vpack.c.b16 %v1910, %v1903
        %v2345 = vpack.c.b16 %v1911, %v1904
        %v2346 = vpack.c.b16 %v1912, %v1905
        %v2347 = vpack.c.b16 %v1913, %v1906
        %v2348 = vpack.c.b16 %v1914, %v1907
        %v2349 = vpack.c.b16 %v1922, %v1915
        %v2350 = vpack.c.b16 %v1923, %v1916
        %v2351 = vpack.c.b16 %v1924, %v1917
        %v2352 = vpack.c.b16 %v1925, %v1918
        %v2353 = vpack.c.b16 %v1926, %v1919
        %v2354 = vpack.c.b16 %v1927, %v1920
        %v2355 = vpack.c.b16 %v1928, %v1921
        %v2356 = vpack.c.b16 %v1936, %v1929
        %v2357 = vpack.c.b16 %v1937, %v1930
        %v2358 = vpack.c.b16 %v1938, %v1931
        %v2359 = vpack.c.b16 %v1939, %v1932
        %v2360 = vpack.c.b16 %v1940, %v1933
        %v2361 = vpack.c.b16 %v1941, %v1934
        %v2362 = vpack.c.b16 %v1942, %v1935
        %v2363 = vpack.c.b16 %v1950, %v1943
        %v2364 = vpack.c.b16 %v1951, %v1944
        %v2365 = vpack.c.b16 %v1952, %v1945
        %v2366 = vpack.c.b16 %v1953, %v1946
        %v2367 = vpack.c.b16 %v1954, %v1947
        %v2368 = vpack.c.b16 %v1955, %v1948
        %v2369 = vpack.c.b16 %v1956, %v1949
        %v2370 = vpack.c.b16 %v1964, %v1957
        %v2371 = vpack.c.b16 %v1965, %v1958
        %v2372 = vpack.c.b16 %v1966, %v1959
        %v2373 = vpack.c.b16 %v1967, %v1960
        %v2374 = vpack.c.b16 %v1968, %v1961
        %v2375 = vpack.c.b16 %v1969, %v1962
        %v2376 = vpack.c.b16 %v1970, %v1963
        %v2377 = vpack.c.b16 %v1978, %v1971
        %v2378 = vpack.c.b16 %v1979, %v1972
        %v2379 = vpack.c.b16 %v1980, %v1973
        %v2380 = vpack.c.b16 %v1981, %v1974
        %v2381 = vpack.c.b16 %v1982, %v1975
        %v2382 = vpack.c.b16 %v1983, %v1976
        %v2383 = vpack.c.b16 %v1984, %v1977
        %v2384 = vpack.c.b16 %v1992, %v1985
        %v2385 = vpack.c.b16 %v1993, %v1986
        %v2386 = vpack.c.b16 %v1994, %v1987
        %v2387 = vpack.c.b16 %v1995, %v1988
        %v2388 = vpack.c.b16 %v1996, %v1989
        %v2389 = vpack.c.b16 %v1997, %v1990
        %v2390 = vpack.c.b16 %v1998, %v1991
        %v2391 = vpack.c.b16 %v2006, %v1999
        %v2392 = vpack.c.b16 %v2007, %v2000
        %v2393 = vpack.c.b16 %v2008, %v2001
        %v2394 = vpack.c.b16 %v2009, %v2002
        %v2395 = vpack.c.b16 %v2010, %v2003
        %v2396 = vpack.c.b16 %v2011, %v2004
        %v2397 = vpack.c.b16 %v2012, %v2005
        %v2398 = vpack.c.b16 %v2020, %v2013
        %v2399 = vpack.c.b16 %v2021, %v2014
        %v2400 = vpack.c.b16 %v2022, %v2015
        %v2401 = vpack.c.b16 %v2023, %v2016
        %v2402 = vpack.c.b16 %v2024, %v2017
        %v2403 = vpack.c.b16 %v2025, %v2018
        %v2404 = vpack.c.b16 %v2026, %v2019
        %v2405 = vpack.c.b16 %v2034, %v2027
        %v2406 = vpack.c.b16 %v2035, %v2028
        %v2407 = vpack.c.b16 %v2036, %v2029
        %v2408 = vpack.c.b16 %v2037, %v2030
        %v2409 = vpack.c.b16 %v2038, %v2031
        %v2410 = vpack.c.b16 %v2039, %v2032
        %v2411 = vpack.c.b16 %v2040, %v2033
        %v2412 = vpack.c.b16 %v2048, %v2041
        %v2413 = vpack.c.b16 %v2049, %v2042
        %v2414 = vpack.c.b16 %v2050, %v2043
        %v2415 = vpack.c.b16 %v2051, %v2044
        %v2416 = vpack.c.b16 %v2052, %v2045
        %v2417 = vpack.c.b16 %v2053, %v2046
        %v2418 = vpack.c.b16 %v2054, %v2047
        %v2419 = vpack.c.b16 %v2062, %v2055
        %v2420 = vpack.c.b16 %v2063, %v2056
        %v2421 = vpack.c.b16 %v2064, %v2057
        %v2422 = vpack.c.b16 %v2065, %v2058
        %v2423 = vpack.c.b16 %v2066, %v2059
        %v2424 = vpack.c.b16 %v2067, %v2060
        %v2425 = vpack.c.b16 %v2068, %v2061
        %v2426 = vpack.c.b16 %v2076, %v2069
        %v2427 = vpack.c.b16 %v2077, %v2070
        %v2428 = vpack.c.b16 %v2078, %v2071
        %v2429 = vpack.c.b16 %v2079, %v2072
        %v2430 = vpack.c.b16 %v2080, %v2073
        %v2431 = vpack.c.b16 %v2081, %v2074
        %v2432 = vpack.c.b16 %v2082, %v2075
        %v2433 = vpack.c.b16 %v2090, %v2083
        %v2434 = vpack.c.b16 %v2091, %v2084
        %v2435 = vpack.c.b16 %v2092, %v2085
        %v2436 = vpack.c.b16 %v2093, %v2086
        %v2437 = vpack.c.b16 %v2094, %v2087
        %v2438 = vpack.c.b16 %v2095, %v2088
        %v2439 = vpack.c.b16 %v2096, %v2089
        %v2440 = vpack.c.b16 %v2104, %v2097
        %v2441 = vpack.c.b16 %v2105, %v2098
        %v2442 = vpack.c.b16 %v2106, %v2099
        %v2443 = vpack.c.b16 %v2107, %v2100
        %v2444 = vpack.c.b16 %v2108, %v2101
        %v2445 = vpack.c.b16 %v2109, %v2102
        %v2446 = vpack.c.b16 %v2110, %v2103
        %v2447 = vpack.c.b16 %v2118, %v2111
        %v2448 = vpack.c.b16 %v2119, %v2112
        %v2449 = vpack.c.b16 %v2120, %v2113
        %v2450 = vpack.c.b16 %v2121, %v2114
        %v2451 = vpack.c.b16 %v2122, %v2115
        %v2452 = vpack.c.b16 %v2123, %v2116
        %v2453 = vpack.c.b16 %v2124, %v2117
        %v2454 = vpack.c.b16 %v2132, %v2125
        %v2455 = vpack.c.b16 %v2133, %v2126
        %v2456 = vpack.c.b16 %v2134, %v2127
        %v2457 = vpack.c.b16 %v2135, %v2128
        %v2458 = vpack.c.b16 %v2136, %v2129
        %v2459 = vpack.c.b16 %v2137, %v2130
        %v2460 = vpack.c.b16 %v2138, %v2131
        %vm2776 = vcmask 728064
        %v2778 = vsel %vm2776, %v1088, 0
        %v2781 = vsel %vm2776, %v1094, 0
        %v2784 = vsel %vm2776, %v1100, 0
        %v2787 = vsel %vm2776, %v1106, 0
        %vm2789 = vcmask 1043456
        %vm2790 = vcmask 1044480
        %v2791 = vsel %vm2789, 4294967295, 65535
        %v2792 = vsel %vm2790, %v2791, 0
        %v2794 = vand.u32 %v2454, %v2792
        %v2797 = vand.u32 %v2455, %v2792
        %v2800 = vand.u32 %v2456, %v2792
        %v2803 = vand.u32 %v2457, %v2792
        %v2806 = vand.u32 %v2458, %v2792
        %v2809 = vand.u32 %v2459, %v2792
        %v2812 = vand.u32 %v2460, %v2792
        %2814 = vmatprep.subr.bf16.mxu0 %v2140
        %2815 = vmatpush1.bf16.msra.mxu0 %v2139
        %2816 = vmatprep.subr.bf16.mxu0 %v2147
        %2817 = vmatpush1.bf16.msra.mxu0 %v2146
        %2818 = vmatprep.subr.bf16.mxu0 %v2154
        %2819 = vmatpush1.bf16.msra.mxu0 %v2153
        %2820 = vmatprep.subr.bf16.mxu0 %v2161
        %2821 = vmatpush1.bf16.msra.mxu0 %v2160
        %2822 = vmatprep.subr.bf16.mxu0 %v2168
        %2823 = vmatpush1.bf16.msra.mxu0 %v2167
        %2824 = vmatprep.subr.bf16.mxu0 %v2175
        %2825 = vmatpush1.bf16.msra.mxu0 %v2174
        %2826 = vmatprep.subr.bf16.mxu0 %v2182
        %2827 = vmatpush1.bf16.msra.mxu0 %v2181
        %2828 = vmatprep.subr.bf16.mxu0 %v2189
        %2829 = vmatpush1.bf16.msra.mxu0 %v2188
        %2830 = vmatprep.subr.bf16.mxu0 %v2196
        %2831 = vmatpush1.bf16.msra.mxu0 %v2195
        %2832 = vmatprep.subr.bf16.mxu0 %v2203
        %2833 = vmatpush1.bf16.msra.mxu0 %v2202
        %2834 = vmatprep.subr.bf16.mxu0 %v2210
        %2835 = vmatpush1.bf16.msra.mxu0 %v2209
        %2836 = vmatprep.subr.bf16.mxu0 %v2217
        %2837 = vmatpush1.bf16.msra.mxu0 %v2216
        %2838 = vmatprep.subr.bf16.mxu0 %v2224
        %2839 = vmatpush1.bf16.msra.mxu0 %v2223
        %2840 = vmatprep.subr.bf16.mxu0 %v2231
        %2841 = vmatpush1.bf16.msra.mxu0 %v2230
        %2842 = vmatprep.subr.bf16.mxu0 %v2238
        %2843 = vmatpush1.bf16.msra.mxu0 %v2237
        %2844 = vmatprep.subr.bf16.mxu0 %v2245
        %2845 = vmatpush1.bf16.msra.mxu0 %v2244
        %2846 = vmatprep.mubr.bf16.mxu0 %v1084
        %2847 = vmatmul.mubr.bf16.gmra.mrb[0].mxu0 %v1083
        %v2848 = vpop.f32.mrb[0].mxu0
        %v2849 = vadd.f32 0.0, %v2848
        %v2850 = vpop.f32.mrb[0].mxu0
        %v2851 = vadd.f32 0.0, %v2850
        %v2852 = vpop.f32.mrb[0].mxu0
        %v2853 = vadd.f32 0.0, %v2852
        %v2854 = vpop.f32.mrb[0].mxu0
        %v2855 = vadd.f32 0.0, %v2854
        %2856 = vmatprep.mubr.bf16.mxu0 %v1090
        %2857 = vmatmul.mubr.bf16.gmra.mrb[0].mxu0 %v1089
        %v2858 = vpop.f32.mrb[0].mxu0
        %v2859 = vadd.f32 0.0, %v2858
        %v2860 = vpop.f32.mrb[0].mxu0
        %v2861 = vadd.f32 0.0, %v2860
        %v2862 = vpop.f32.mrb[0].mxu0
        %v2863 = vadd.f32 0.0, %v2862
        %v2864 = vpop.f32.mrb[0].mxu0
        %v2865 = vadd.f32 0.0, %v2864
        %2866 = vmatprep.mubr.bf16.mxu0 %v1096
        %2867 = vmatmul.mubr.bf16.gmra.mrb[0].mxu0 %v1095
        %v2868 = vpop.f32.mrb[0].mxu0
        %v2869 = vadd.f32 0.0, %v2868
        %v2870 = vpop.f32.mrb[0].mxu0
        %v2871 = vadd.f32 0.0, %v2870
        %v2872 = vpop.f32.mrb[0].mxu0
        %v2873 = vadd.f32 0.0, %v2872
        %v2874 = vpop.f32.mrb[0].mxu0
        %v2875 = vadd.f32 0.0, %v2874
        %2876 = vmatprep.mubr.bf16.mxu0 %v1102
        %2877 = vmatmul.mubr.bf16.gmra.mrb[0].mxu0 %v1101
        %v2878 = vpop.f32.mrb[0].mxu0
        %v2879 = vadd.f32 0.0, %v2878
        %v2880 = vpop.f32.mrb[0].mxu0
        %v2881 = vadd.f32 0.0, %v2880
        %v2882 = vpop.f32.mrb[0].mxu0
        %v2883 = vadd.f32 0.0, %v2882
        %v2884 = vpop.f32.mrb[0].mxu0
        %v2885 = vadd.f32 0.0, %v2884
        %2886 = vdwg.mxu0
        %2887 = vmatprep.subr.bf16.mxu0 %v2252
        %2888 = vmatpush1.bf16.msra.mxu0 %v2251
        %2889 = vmatprep.subr.bf16.mxu0 %v2259
        %2890 = vmatpush1.bf16.msra.mxu0 %v2258
        %2891 = vmatprep.subr.bf16.mxu0 %v2266
        %2892 = vmatpush1.bf16.msra.mxu0 %v2265
        %2893 = vmatprep.subr.bf16.mxu0 %v2273
        %2894 = vmatpush1.bf16.msra.mxu0 %v2272
        %2895 = vmatprep.subr.bf16.mxu0 %v2280
        %2896 = vmatpush1.bf16.msra.mxu0 %v2279
        %2897 = vmatprep.subr.bf16.mxu0 %v2287
        %2898 = vmatpush1.bf16.msra.mxu0 %v2286
        %2899 = vmatprep.subr.bf16.mxu0 %v2294
        %2900 = vmatpush1.bf16.msra.mxu0 %v2293
        %2901 = vmatprep.subr.bf16.mxu0 %v2301
        %2902 = vmatpush1.bf16.msra.mxu0 %v2300
        %2903 = vmatprep.subr.bf16.mxu0 %v2308
        %2904 = vmatpush1.bf16.msra.mxu0 %v2307
        %2905 = vmatprep.subr.bf16.mxu0 %v2315
        %2906 = vmatpush1.bf16.msra.mxu0 %v2314
        %2907 = vmatprep.subr.bf16.mxu0 %v2322
        %2908 = vmatpush1.bf16.msra.mxu0 %v2321
        %2909 = vmatprep.subr.bf16.mxu0 %v2329
        %2910 = vmatpush1.bf16.msra.mxu0 %v2328
        %2911 = vmatprep.subr.bf16.mxu0 %v2336
        %2912 = vmatpush1.bf16.msra.mxu0 %v2335
        %2913 = vmatprep.subr.bf16.mxu0 %v2343
        %2914 = vmatpush1.bf16.msra.mxu0 %v2342
        %2915 = vmatprep.subr.bf16.mxu0 %v2350
        %2916 = vmatpush1.bf16.msra.mxu0 %v2349
        %2917 = vmatprep.subr.bf16.mxu0 %v2357
        %2918 = vmatpush1.bf16.msra.mxu0 %v2356
        %2919 = vmatprep.mubr.bf16.mxu0 %v1086
        %2920 = vmatmul.mubr.bf16.gmra.mrb[0].mxu0 %v1085
        %v2921 = vpop.f32.mrb[0].mxu0
        %v2922 = vadd.f32 %v2849, %v2921
        %v2923 = vpop.f32.mrb[0].mxu0
        %v2924 = vadd.f32 %v2851, %v2923
        %v2925 = vpop.f32.mrb[0].mxu0
        %v2926 = vadd.f32 %v2853, %v2925
        %v2927 = vpop.f32.mrb[0].mxu0
        %v2928 = vadd.f32 %v2855, %v2927
        %2929 = vmatprep.mubr.bf16.mxu0 %v1092
        %2930 = vmatmul.mubr.bf16.gmra.mrb[0].mxu0 %v1091
        %v2931 = vpop.f32.mrb[0].mxu0
        %v2932 = vadd.f32 %v2859, %v2931
        %v2933 = vpop.f32.mrb[0].mxu0
        %v2934 = vadd.f32 %v2861, %v2933
        %v2935 = vpop.f32.mrb[0].mxu0
        %v2936 = vadd.f32 %v2863, %v2935
        %v2937 = vpop.f32.mrb[0].mxu0
        %v2938 = vadd.f32 %v2865, %v2937
        %2939 = vmatprep.mubr.bf16.mxu0 %v1098
        %2940 = vmatmul.mubr.bf16.gmra.mrb[0].mxu0 %v1097
        %v2941 = vpop.f32.mrb[0].mxu0
        %v2942 = vadd.f32 %v2869, %v2941
        %v2943 = vpop.f32.mrb[0].mxu0
        %v2944 = vadd.f32 %v2871, %v2943
        %v2945 = vpop.f32.mrb[0].mxu0
        %v2946 = vadd.f32 %v2873, %v2945
        %v2947 = vpop.f32.mrb[0].mxu0
        %v2948 = vadd.f32 %v2875, %v2947
        %2949 = vmatprep.mubr.bf16.mxu0 %v1104
        %2950 = vmatmul.mubr.bf16.gmra.mrb[0].mxu0 %v1103
        %v2951 = vpop.f32.mrb[0].mxu0
        %v2952 = vadd.f32 %v2879, %v2951
        %v2953 = vpop.f32.mrb[0].mxu0
        %v2954 = vadd.f32 %v2881, %v2953
        %v2955 = vpop.f32.mrb[0].mxu0
        %v2956 = vadd.f32 %v2883, %v2955
        %v2957 = vpop.f32.mrb[0].mxu0
        %v2958 = vadd.f32 %v2885, %v2957
        %2959 = vdwg.mxu0
        %2960 = vmatprep.subr.bf16.mxu0 %v2364
        %2961 = vmatpush1.bf16.msra.mxu0 %v2363
        %2962 = vmatprep.subr.bf16.mxu0 %v2371
        %2963 = vmatpush1.bf16.msra.mxu0 %v2370
        %2964 = vmatprep.subr.bf16.mxu0 %v2378
        %2965 = vmatpush1.bf16.msra.mxu0 %v2377
        %2966 = vmatprep.subr.bf16.mxu0 %v2385
        %2967 = vmatpush1.bf16.msra.mxu0 %v2384
        %2968 = vmatprep.subr.bf16.mxu0 %v2392
        %2969 = vmatpush1.bf16.msra.mxu0 %v2391
        %2970 = vmatprep.subr.bf16.mxu0 %v2399
        %2971 = vmatpush1.bf16.msra.mxu0 %v2398
        %2972 = vmatprep.subr.bf16.mxu0 %v2406
        %2973 = vmatpush1.bf16.msra.mxu0 %v2405
        %2974 = vmatprep.subr.bf16.mxu0 %v2413
        %2975 = vmatpush1.bf16.msra.mxu0 %v2412
        %2976 = vmatprep.subr.bf16.mxu0 %v2420
        %2977 = vmatpush1.bf16.msra.mxu0 %v2419
        %2978 = vmatprep.subr.bf16.mxu0 %v2427
        %2979 = vmatpush1.bf16.msra.mxu0 %v2426
        %2980 = vmatprep.subr.bf16.mxu0 %v2434
        %2981 = vmatpush1.bf16.msra.mxu0 %v2433
        %2982 = vmatprep.subr.bf16.mxu0 %v2441
        %2983 = vmatpush1.bf16.msra.mxu0 %v2440
        %2984 = vmatprep.subr.bf16.mxu0 %v2448
        %2985 = vmatpush1.bf16.msra.mxu0 %v2447
        %2986 = vmatprep.subr.bf16.mxu0 %v2797
        %2987 = vmatpush1.bf16.msra.mxu0 %v2794
        %2988 = vmatprep.subr.bf16.mxu0 0
        %2989 = vmatpush1.bf16.msra.mxu0 0
        %2990 = vmatprep.subr.bf16.mxu0 0
        %2991 = vmatpush1.bf16.msra.mxu0 0
        %2992 = vmatprep.mubr.bf16.mxu0 %v2778
        %2993 = vmatmul.mubr.bf16.gmra.mrb[0].mxu0 %v1087
        %v2994 = vpop.f32.mrb[0].mxu0
        %v2995 = vadd.f32 %v2922, %v2994
        %v2996 = vpop.f32.mrb[0].mxu0
        %v2997 = vadd.f32 %v2924, %v2996
        %v2998 = vpop.f32.mrb[0].mxu0
        %v2999 = vadd.f32 %v2926, %v2998
        %v3000 = vpop.f32.mrb[0].mxu0
        %v3001 = vadd.f32 %v2928, %v3000
        %3002 = vmatprep.mubr.bf16.mxu0 %v2781
        %3003 = vmatmul.mubr.bf16.gmra.mrb[0].mxu0 %v1093
        %v3004 = vpop.f32.mrb[0].mxu0
        %v3005 = vadd.f32 %v2932, %v3004
        %v3006 = vpop.f32.mrb[0].mxu0
        %v3007 = vadd.f32 %v2934, %v3006
        %v3008 = vpop.f32.mrb[0].mxu0
        %v3009 = vadd.f32 %v2936, %v3008
        %v3010 = vpop.f32.mrb[0].mxu0
        %v3011 = vadd.f32 %v2938, %v3010
        %3012 = vmatprep.mubr.bf16.mxu0 %v2784
        %3013 = vmatmul.mubr.bf16.gmra.mrb[0].mxu0 %v1099
        %v3014 = vpop.f32.mrb[0].mxu0
        %v3015 = vadd.f32 %v2942, %v3014
        %v3016 = vpop.f32.mrb[0].mxu0
        %v3017 = vadd.f32 %v2944, %v3016
        %v3018 = vpop.f32.mrb[0].mxu0
        %v3019 = vadd.f32 %v2946, %v3018
        %v3020 = vpop.f32.mrb[0].mxu0
        %v3021 = vadd.f32 %v2948, %v3020
        %3022 = vmatprep.mubr.bf16.mxu0 %v2787
        %3023 = vmatmul.mubr.bf16.gmra.mrb[0].mxu0 %v1105
        %v3024 = vpop.f32.mrb[0].mxu0
        %v3025 = vadd.f32 %v2952, %v3024
        %v3026 = vpop.f32.mrb[0].mxu0
        %v3027 = vadd.f32 %v2954, %v3026
        %v3028 = vpop.f32.mrb[0].mxu0
        %v3029 = vadd.f32 %v2956, %v3028
        %v3030 = vpop.f32.mrb[0].mxu0
        %v3031 = vadd.f32 %v2958, %v3030
        %3032 = vdwg.mxu0
        %3033 = vmatprep.subr.bf16.mxu0 %v2142
        %3034 = vmatpush1.bf16.msra.mxu0 %v2141
        %3035 = vmatprep.subr.bf16.mxu0 %v2149
        %3036 = vmatpush1.bf16.msra.mxu0 %v2148
        %3037 = vmatprep.subr.bf16.mxu0 %v2156
        %3038 = vmatpush1.bf16.msra.mxu0 %v2155
        %3039 = vmatprep.subr.bf16.mxu0 %v2163
        %3040 = vmatpush1.bf16.msra.mxu0 %v2162
        %3041 = vmatprep.subr.bf16.mxu0 %v2170
        %3042 = vmatpush1.bf16.msra.mxu0 %v2169
        %3043 = vmatprep.subr.bf16.mxu0 %v2177
        %3044 = vmatpush1.bf16.msra.mxu0 %v2176
        %3045 = vmatprep.subr.bf16.mxu0 %v2184
        %3046 = vmatpush1.bf16.msra.mxu0 %v2183
        %3047 = vmatprep.subr.bf16.mxu0 %v2191
        %3048 = vmatpush1.bf16.msra.mxu0 %v2190
        %3049 = vmatprep.subr.bf16.mxu0 %v2198
        %3050 = vmatpush1.bf16.msra.mxu0 %v2197
        %3051 = vmatprep.subr.bf16.mxu0 %v2205
        %3052 = vmatpush1.bf16.msra.mxu0 %v2204
        %3053 = vmatprep.subr.bf16.mxu0 %v2212
        %3054 = vmatpush1.bf16.msra.mxu0 %v2211
        %3055 = vmatprep.subr.bf16.mxu0 %v2219
        %3056 = vmatpush1.bf16.msra.mxu0 %v2218
        %3057 = vmatprep.subr.bf16.mxu0 %v2226
        %3058 = vmatpush1.bf16.msra.mxu0 %v2225
        %3059 = vmatprep.subr.bf16.mxu0 %v2233
        %3060 = vmatpush1.bf16.msra.mxu0 %v2232
        %3061 = vmatprep.subr.bf16.mxu0 %v2240
        %3062 = vmatpush1.bf16.msra.mxu0 %v2239
        %3063 = vmatprep.subr.bf16.mxu0 %v2247
        %3064 = vmatpush1.bf16.msra.mxu0 %v2246
        %3065 = vmatprep.mubr.bf16.mxu0 %v1084
        %3066 = vmatmul.mubr.bf16.gmra.mrb[0].mxu0 %v1083
        %v3067 = vpop.f32.mrb[0].mxu0
        %v3068 = vadd.f32 0.0, %v3067
        %v3069 = vpop.f32.mrb[0].mxu0
        %v3070 = vadd.f32 0.0, %v3069
        %v3071 = vpop.f32.mrb[0].mxu0
        %v3072 = vadd.f32 0.0, %v3071
        %v3073 = vpop.f32.mrb[0].mxu0
        %v3074 = vadd.f32 0.0, %v3073
        %3075 = vmatprep.mubr.bf16.mxu0 %v1090
        %3076 = vmatmul.mubr.bf16.gmra.mrb[0].mxu0 %v1089
        %v3077 = vpop.f32.mrb[0].mxu0
        %v3078 = vadd.f32 0.0, %v3077
        %v3079 = vpop.f32.mrb[0].mxu0
        %v3080 = vadd.f32 0.0, %v3079
        %v3081 = vpop.f32.mrb[0].mxu0
        %v3082 = vadd.f32 0.0, %v3081
        %v3083 = vpop.f32.mrb[0].mxu0
        %v3084 = vadd.f32 0.0, %v3083
        %3085 = vmatprep.mubr.bf16.mxu0 %v1096
        %3086 = vmatmul.mubr.bf16.gmra.mrb[0].mxu0 %v1095
        %v3087 = vpop.f32.mrb[0].mxu0
        %v3088 = vadd.f32 0.0, %v3087
        %v3089 = vpop.f32.mrb[0].mxu0
        %v3090 = vadd.f32 0.0, %v3089
        %v3091 = vpop.f32.mrb[0].mxu0
        %v3092 = vadd.f32 0.0, %v3091
        %v3093 = vpop.f32.mrb[0].mxu0
        %v3094 = vadd.f32 0.0, %v3093
        %3095 = vmatprep.mubr.bf16.mxu0 %v1102
        %3096 = vmatmul.mubr.bf16.gmra.mrb[0].mxu0 %v1101
        %v3097 = vpop.f32.mrb[0].mxu0
        %v3098 = vadd.f32 0.0, %v3097
        %v3099 = vpop.f32.mrb[0].mxu0
        %v3100 = vadd.f32 0.0, %v3099
        %v3101 = vpop.f32.mrb[0].mxu0
        %v3102 = vadd.f32 0.0, %v3101
        %v3103 = vpop.f32.mrb[0].mxu0
        %v3104 = vadd.f32 0.0, %v3103
        %3105 = vdwg.mxu0
        %3106 = vmatprep.subr.bf16.mxu0 %v2254
        %3107 = vmatpush1.bf16.msra.mxu0 %v2253
        %3108 = vmatprep.subr.bf16.mxu0 %v2261
        %3109 = vmatpush1.bf16.msra.mxu0 %v2260
        %3110 = vmatprep.subr.bf16.mxu0 %v2268
        %3111 = vmatpush1.bf16.msra.mxu0 %v2267
        %3112 = vmatprep.subr.bf16.mxu0 %v2275
        %3113 = vmatpush1.bf16.msra.mxu0 %v2274
        %3114 = vmatprep.subr.bf16.mxu0 %v2282
        %3115 = vmatpush1.bf16.msra.mxu0 %v2281
        %3116 = vmatprep.subr.bf16.mxu0 %v2289
        %3117 = vmatpush1.bf16.msra.mxu0 %v2288
        %3118 = vmatprep.subr.bf16.mxu0 %v2296
        %3119 = vmatpush1.bf16.msra.mxu0 %v2295
        %3120 = vmatprep.subr.bf16.mxu0 %v2303
        %3121 = vmatpush1.bf16.msra.mxu0 %v2302
        %3122 = vmatprep.subr.bf16.mxu0 %v2310
        %3123 = vmatpush1.bf16.msra.mxu0 %v2309
        %3124 = vmatprep.subr.bf16.mxu0 %v2317
        %3125 = vmatpush1.bf16.msra.mxu0 %v2316
        %3126 = vmatprep.subr.bf16.mxu0 %v2324
        %3127 = vmatpush1.bf16.msra.mxu0 %v2323
        %3128 = vmatprep.subr.bf16.mxu0 %v2331
        %3129 = vmatpush1.bf16.msra.mxu0 %v2330
        %3130 = vmatprep.subr.bf16.mxu0 %v2338
        %3131 = vmatpush1.bf16.msra.mxu0 %v2337
        %3132 = vmatprep.subr.bf16.mxu0 %v2345
        %3133 = vmatpush1.bf16.msra.mxu0 %v2344
        %3134 = vmatprep.subr.bf16.mxu0 %v2352
        %3135 = vmatpush1.bf16.msra.mxu0 %v2351
        %3136 = vmatprep.subr.bf16.mxu0 %v2359
        %3137 = vmatpush1.bf16.msra.mxu0 %v2358
        %3138 = vmatprep.mubr.bf16.mxu0 %v1086
        %3139 = vmatmul.mubr.bf16.gmra.mrb[0].mxu0 %v1085
        %v3140 = vpop.f32.mrb[0].mxu0
        %v3141 = vadd.f32 %v3068, %v3140
        %v3142 = vpop.f32.mrb[0].mxu0
        %v3143 = vadd.f32 %v3070, %v3142
        %v3144 = vpop.f32.mrb[0].mxu0
        %v3145 = vadd.f32 %v3072, %v3144
        %v3146 = vpop.f32.mrb[0].mxu0
        %v3147 = vadd.f32 %v3074, %v3146
        %3148 = vmatprep.mubr.bf16.mxu0 %v1092
        %3149 = vmatmul.mubr.bf16.gmra.mrb[0].mxu0 %v1091
        %v3150 = vpop.f32.mrb[0].mxu0
        %v3151 = vadd.f32 %v3078, %v3150
        %v3152 = vpop.f32.mrb[0].mxu0
        %v3153 = vadd.f32 %v3080, %v3152
        %v3154 = vpop.f32.mrb[0].mxu0
        %v3155 = vadd.f32 %v3082, %v3154
        %v3156 = vpop.f32.mrb[0].mxu0
        %v3157 = vadd.f32 %v3084, %v3156
        %3158 = vmatprep.mubr.bf16.mxu0 %v1098
        %3159 = vmatmul.mubr.bf16.gmra.mrb[0].mxu0 %v1097
        %v3160 = vpop.f32.mrb[0].mxu0
        %v3161 = vadd.f32 %v3088, %v3160
        %v3162 = vpop.f32.mrb[0].mxu0
        %v3163 = vadd.f32 %v3090, %v3162
        %v3164 = vpop.f32.mrb[0].mxu0
        %v3165 = vadd.f32 %v3092, %v3164
        %v3166 = vpop.f32.mrb[0].mxu0
        %v3167 = vadd.f32 %v3094, %v3166
        %3168 = vmatprep.mubr.bf16.mxu0 %v1104
        %3169 = vmatmul.mubr.bf16.gmra.mrb[0].mxu0 %v1103
        %v3170 = vpop.f32.mrb[0].mxu0
        %v3171 = vadd.f32 %v3098, %v3170
        %v3172 = vpop.f32.mrb[0].mxu0
        %v3173 = vadd.f32 %v3100, %v3172
        %v3174 = vpop.f32.mrb[0].mxu0
        %v3175 = vadd.f32 %v3102, %v3174
        %v3176 = vpop.f32.mrb[0].mxu0
        %v3177 = vadd.f32 %v3104, %v3176
        %3178 = vdwg.mxu0
        %3179 = vmatprep.subr.bf16.mxu0 %v2366
        %3180 = vmatpush1.bf16.msra.mxu0 %v2365
        %3181 = vmatprep.subr.bf16.mxu0 %v2373
        %3182 = vmatpush1.bf16.msra.mxu0 %v2372
        %3183 = vmatprep.subr.bf16.mxu0 %v2380
        %3184 = vmatpush1.bf16.msra.mxu0 %v2379
        %3185 = vmatprep.subr.bf16.mxu0 %v2387
        %3186 = vmatpush1.bf16.msra.mxu0 %v2386
        %3187 = vmatprep.subr.bf16.mxu0 %v2394
        %3188 = vmatpush1.bf16.msra.mxu0 %v2393
        %3189 = vmatprep.subr.bf16.mxu0 %v2401
        %3190 = vmatpush1.bf16.msra.mxu0 %v2400
        %3191 = vmatprep.subr.bf16.mxu0 %v2408
        %3192 = vmatpush1.bf16.msra.mxu0 %v2407
        %3193 = vmatprep.subr.bf16.mxu0 %v2415
        %3194 = vmatpush1.bf16.msra.mxu0 %v2414
        %3195 = vmatprep.subr.bf16.mxu0 %v2422
        %3196 = vmatpush1.bf16.msra.mxu0 %v2421
        %3197 = vmatprep.subr.bf16.mxu0 %v2429
        %3198 = vmatpush1.bf16.msra.mxu0 %v2428
        %3199 = vmatprep.subr.bf16.mxu0 %v2436
        %3200 = vmatpush1.bf16.msra.mxu0 %v2435
        %3201 = vmatprep.subr.bf16.mxu0 %v2443
        %3202 = vmatpush1.bf16.msra.mxu0 %v2442
        %3203 = vmatprep.subr.bf16.mxu0 %v2450
        %3204 = vmatpush1.bf16.msra.mxu0 %v2449
        %3205 = vmatprep.subr.bf16.mxu0 %v2803
        %3206 = vmatpush1.bf16.msra.mxu0 %v2800
        %3207 = vmatprep.subr.bf16.mxu0 0
        %3208 = vmatpush1.bf16.msra.mxu0 0
        %3209 = vmatprep.subr.bf16.mxu0 0
        %3210 = vmatpush1.bf16.msra.mxu0 0
        %3211 = vmatprep.mubr.bf16.mxu0 %v2778
        %3212 = vmatmul.mubr.bf16.gmra.mrb[0].mxu0 %v1087
        %v3213 = vpop.f32.mrb[0].mxu0
        %v3214 = vadd.f32 %v3141, %v3213
        %v3215 = vpop.f32.mrb[0].mxu0
        %v3216 = vadd.f32 %v3143, %v3215
        %v3217 = vpop.f32.mrb[0].mxu0
        %v3218 = vadd.f32 %v3145, %v3217
        %v3219 = vpop.f32.mrb[0].mxu0
        %v3220 = vadd.f32 %v3147, %v3219
        %3221 = vmatprep.mubr.bf16.mxu0 %v2781
        %3222 = vmatmul.mubr.bf16.gmra.mrb[0].mxu0 %v1093
        %v3223 = vpop.f32.mrb[0].mxu0
        %v3224 = vadd.f32 %v3151, %v3223
        %v3225 = vpop.f32.mrb[0].mxu0
        %v3226 = vadd.f32 %v3153, %v3225
        %v3227 = vpop.f32.mrb[0].mxu0
        %v3228 = vadd.f32 %v3155, %v3227
        %v3229 = vpop.f32.mrb[0].mxu0
        %v3230 = vadd.f32 %v3157, %v3229
        %3231 = vmatprep.mubr.bf16.mxu0 %v2784
        %3232 = vmatmul.mubr.bf16.gmra.mrb[0].mxu0 %v1099
        %v3233 = vpop.f32.mrb[0].mxu0
        %v3234 = vadd.f32 %v3161, %v3233
        %v3235 = vpop.f32.mrb[0].mxu0
        %v3236 = vadd.f32 %v3163, %v3235
        %v3237 = vpop.f32.mrb[0].mxu0
        %v3238 = vadd.f32 %v3165, %v3237
        %v3239 = vpop.f32.mrb[0].mxu0
        %v3240 = vadd.f32 %v3167, %v3239
        %3241 = vmatprep.mubr.bf16.mxu0 %v2787
        %3242 = vmatmul.mubr.bf16.gmra.mrb[0].mxu0 %v1105
        %v3243 = vpop.f32.mrb[0].mxu0
        %v3244 = vadd.f32 %v3171, %v3243
        %v3245 = vpop.f32.mrb[0].mxu0
        %v3246 = vadd.f32 %v3173, %v3245
        %v3247 = vpop.f32.mrb[0].mxu0
        %v3248 = vadd.f32 %v3175, %v3247
        %v3249 = vpop.f32.mrb[0].mxu0
        %v3250 = vadd.f32 %v3177, %v3249
        %3251 = vdwg.mxu0
        %3252 = vmatprep.subr.bf16.mxu0 %v2144
        %3253 = vmatpush1.bf16.msra.mxu0 %v2143
        %3254 = vmatprep.subr.bf16.mxu0 %v2151
        %3255 = vmatpush1.bf16.msra.mxu0 %v2150
        %3256 = vmatprep.subr.bf16.mxu0 %v2158
        %3257 = vmatpush1.bf16.msra.mxu0 %v2157
        %3258 = vmatprep.subr.bf16.mxu0 %v2165
        %3259 = vmatpush1.bf16.msra.mxu0 %v2164
        %3260 = vmatprep.subr.bf16.mxu0 %v2172
        %3261 = vmatpush1.bf16.msra.mxu0 %v2171
        %3262 = vmatprep.subr.bf16.mxu0 %v2179
        %3263 = vmatpush1.bf16.msra.mxu0 %v2178
        %3264 = vmatprep.subr.bf16.mxu0 %v2186
        %3265 = vmatpush1.bf16.msra.mxu0 %v2185
        %3266 = vmatprep.subr.bf16.mxu0 %v2193
        %3267 = vmatpush1.bf16.msra.mxu0 %v2192
        %3268 = vmatprep.subr.bf16.mxu0 %v2200
        %3269 = vmatpush1.bf16.msra.mxu0 %v2199
        %3270 = vmatprep.subr.bf16.mxu0 %v2207
        %3271 = vmatpush1.bf16.msra.mxu0 %v2206
        %3272 = vmatprep.subr.bf16.mxu0 %v2214
        %3273 = vmatpush1.bf16.msra.mxu0 %v2213
        %3274 = vmatprep.subr.bf16.mxu0 %v2221
        %3275 = vmatpush1.bf16.msra.mxu0 %v2220
        %3276 = vmatprep.subr.bf16.mxu0 %v2228
        %3277 = vmatpush1.bf16.msra.mxu0 %v2227
        %3278 = vmatprep.subr.bf16.mxu0 %v2235
        %3279 = vmatpush1.bf16.msra.mxu0 %v2234
        %3280 = vmatprep.subr.bf16.mxu0 %v2242
        %3281 = vmatpush1.bf16.msra.mxu0 %v2241
        %3282 = vmatprep.subr.bf16.mxu0 %v2249
        %3283 = vmatpush1.bf16.msra.mxu0 %v2248
        %3284 = vmatprep.mubr.bf16.mxu0 %v1084
        %3285 = vmatmul.mubr.bf16.gmra.mrb[0].mxu0 %v1083
        %v3286 = vpop.f32.mrb[0].mxu0
        %v3287 = vadd.f32 0.0, %v3286
        %v3288 = vpop.f32.mrb[0].mxu0
        %v3289 = vadd.f32 0.0, %v3288
        %v3290 = vpop.f32.mrb[0].mxu0
        %v3291 = vadd.f32 0.0, %v3290
        %v3292 = vpop.f32.mrb[0].mxu0
        %v3293 = vadd.f32 0.0, %v3292
        %3294 = vmatprep.mubr.bf16.mxu0 %v1090
        %3295 = vmatmul.mubr.bf16.gmra.mrb[0].mxu0 %v1089
        %v3296 = vpop.f32.mrb[0].mxu0
        %v3297 = vadd.f32 0.0, %v3296
        %v3298 = vpop.f32.mrb[0].mxu0
        %v3299 = vadd.f32 0.0, %v3298
        %v3300 = vpop.f32.mrb[0].mxu0
        %v3301 = vadd.f32 0.0, %v3300
        %v3302 = vpop.f32.mrb[0].mxu0
        %v3303 = vadd.f32 0.0, %v3302
        %3304 = vmatprep.mubr.bf16.mxu0 %v1096
        %3305 = vmatmul.mubr.bf16.gmra.mrb[0].mxu0 %v1095
        %v3306 = vpop.f32.mrb[0].mxu0
        %v3307 = vadd.f32 0.0, %v3306
        %v3308 = vpop.f32.mrb[0].mxu0
        %v3309 = vadd.f32 0.0, %v3308
        %v3310 = vpop.f32.mrb[0].mxu0
        %v3311 = vadd.f32 0.0, %v3310
        %v3312 = vpop.f32.mrb[0].mxu0
        %v3313 = vadd.f32 0.0, %v3312
        %3314 = vmatprep.mubr.bf16.mxu0 %v1102
        %3315 = vmatmul.mubr.bf16.gmra.mrb[0].mxu0 %v1101
        %v3316 = vpop.f32.mrb[0].mxu0
        %v3317 = vadd.f32 0.0, %v3316
        %v3318 = vpop.f32.mrb[0].mxu0
        %v3319 = vadd.f32 0.0, %v3318
        %v3320 = vpop.f32.mrb[0].mxu0
        %v3321 = vadd.f32 0.0, %v3320
        %v3322 = vpop.f32.mrb[0].mxu0
        %v3323 = vadd.f32 0.0, %v3322
        %3324 = vdwg.mxu0
        %3325 = vmatprep.subr.bf16.mxu0 %v2256
        %3326 = vmatpush1.bf16.msra.mxu0 %v2255
        %3327 = vmatprep.subr.bf16.mxu0 %v2263
        %3328 = vmatpush1.bf16.msra.mxu0 %v2262
        %3329 = vmatprep.subr.bf16.mxu0 %v2270
        %3330 = vmatpush1.bf16.msra.mxu0 %v2269
        %3331 = vmatprep.subr.bf16.mxu0 %v2277
        %3332 = vmatpush1.bf16.msra.mxu0 %v2276
        %3333 = vmatprep.subr.bf16.mxu0 %v2284
        %3334 = vmatpush1.bf16.msra.mxu0 %v2283
        %3335 = vmatprep.subr.bf16.mxu0 %v2291
        %3336 = vmatpush1.bf16.msra.mxu0 %v2290
        %3337 = vmatprep.subr.bf16.mxu0 %v2298
        %3338 = vmatpush1.bf16.msra.mxu0 %v2297
        %3339 = vmatprep.subr.bf16.mxu0 %v2305
        %3340 = vmatpush1.bf16.msra.mxu0 %v2304
        %3341 = vmatprep.subr.bf16.mxu0 %v2312
        %3342 = vmatpush1.bf16.msra.mxu0 %v2311
        %3343 = vmatprep.subr.bf16.mxu0 %v2319
        %3344 = vmatpush1.bf16.msra.mxu0 %v2318
        %3345 = vmatprep.subr.bf16.mxu0 %v2326
        %3346 = vmatpush1.bf16.msra.mxu0 %v2325
        %3347 = vmatprep.subr.bf16.mxu0 %v2333
        %3348 = vmatpush1.bf16.msra.mxu0 %v2332
        %3349 = vmatprep.subr.bf16.mxu0 %v2340
        %3350 = vmatpush1.bf16.msra.mxu0 %v2339
        %3351 = vmatprep.subr.bf16.mxu0 %v2347
        %3352 = vmatpush1.bf16.msra.mxu0 %v2346
        %3353 = vmatprep.subr.bf16.mxu0 %v2354
        %3354 = vmatpush1.bf16.msra.mxu0 %v2353
        %3355 = vmatprep.subr.bf16.mxu0 %v2361
        %3356 = vmatpush1.bf16.msra.mxu0 %v2360
        %3357 = vmatprep.mubr.bf16.mxu0 %v1086
        %3358 = vmatmul.mubr.bf16.gmra.mrb[0].mxu0 %v1085
        %v3359 = vpop.f32.mrb[0].mxu0
        %v3360 = vadd.f32 %v3287, %v3359
        %v3361 = vpop.f32.mrb[0].mxu0
        %v3362 = vadd.f32 %v3289, %v3361
        %v3363 = vpop.f32.mrb[0].mxu0
        %v3364 = vadd.f32 %v3291, %v3363
        %v3365 = vpop.f32.mrb[0].mxu0
        %v3366 = vadd.f32 %v3293, %v3365
        %3367 = vmatprep.mubr.bf16.mxu0 %v1092
        %3368 = vmatmul.mubr.bf16.gmra.mrb[0].mxu0 %v1091
        %v3369 = vpop.f32.mrb[0].mxu0
        %v3370 = vadd.f32 %v3297, %v3369
        %v3371 = vpop.f32.mrb[0].mxu0
        %v3372 = vadd.f32 %v3299, %v3371
        %v3373 = vpop.f32.mrb[0].mxu0
        %v3374 = vadd.f32 %v3301, %v3373
        %v3375 = vpop.f32.mrb[0].mxu0
        %v3376 = vadd.f32 %v3303, %v3375
        %3377 = vmatprep.mubr.bf16.mxu0 %v1098
        %3378 = vmatmul.mubr.bf16.gmra.mrb[0].mxu0 %v1097
        %v3379 = vpop.f32.mrb[0].mxu0
        %v3380 = vadd.f32 %v3307, %v3379
        %v3381 = vpop.f32.mrb[0].mxu0
        %v3382 = vadd.f32 %v3309, %v3381
        %v3383 = vpop.f32.mrb[0].mxu0
        %v3384 = vadd.f32 %v3311, %v3383
        %v3385 = vpop.f32.mrb[0].mxu0
        %v3386 = vadd.f32 %v3313, %v3385
        %3387 = vmatprep.mubr.bf16.mxu0 %v1104
        %3388 = vmatmul.mubr.bf16.gmra.mrb[0].mxu0 %v1103
        %v3389 = vpop.f32.mrb[0].mxu0
        %v3390 = vadd.f32 %v3317, %v3389
        %v3391 = vpop.f32.mrb[0].mxu0
        %v3392 = vadd.f32 %v3319, %v3391
        %v3393 = vpop.f32.mrb[0].mxu0
        %v3394 = vadd.f32 %v3321, %v3393
        %v3395 = vpop.f32.mrb[0].mxu0
        %v3396 = vadd.f32 %v3323, %v3395
        %3397 = vdwg.mxu0
        %3398 = vmatprep.subr.bf16.mxu0 %v2368
        %3399 = vmatpush1.bf16.msra.mxu0 %v2367
        %3400 = vmatprep.subr.bf16.mxu0 %v2375
        %3401 = vmatpush1.bf16.msra.mxu0 %v2374
        %3402 = vmatprep.subr.bf16.mxu0 %v2382
        %3403 = vmatpush1.bf16.msra.mxu0 %v2381
        %3404 = vmatprep.subr.bf16.mxu0 %v2389
        %3405 = vmatpush1.bf16.msra.mxu0 %v2388
        %3406 = vmatprep.subr.bf16.mxu0 %v2396
        %3407 = vmatpush1.bf16.msra.mxu0 %v2395
        %3408 = vmatprep.subr.bf16.mxu0 %v2403
        %3409 = vmatpush1.bf16.msra.mxu0 %v2402
        %3410 = vmatprep.subr.bf16.mxu0 %v2410
        %3411 = vmatpush1.bf16.msra.mxu0 %v2409
        %3412 = vmatprep.subr.bf16.mxu0 %v2417
        %3413 = vmatpush1.bf16.msra.mxu0 %v2416
        %3414 = vmatprep.subr.bf16.mxu0 %v2424
        %3415 = vmatpush1.bf16.msra.mxu0 %v2423
        %3416 = vmatprep.subr.bf16.mxu0 %v2431
        %3417 = vmatpush1.bf16.msra.mxu0 %v2430
        %3418 = vmatprep.subr.bf16.mxu0 %v2438
        %3419 = vmatpush1.bf16.msra.mxu0 %v2437
        %3420 = vmatprep.subr.bf16.mxu0 %v2445
        %3421 = vmatpush1.bf16.msra.mxu0 %v2444
        %3422 = vmatprep.subr.bf16.mxu0 %v2452
        %3423 = vmatpush1.bf16.msra.mxu0 %v2451
        %3424 = vmatprep.subr.bf16.mxu0 %v2809
        %3425 = vmatpush1.bf16.msra.mxu0 %v2806
        %3426 = vmatprep.subr.bf16.mxu0 0
        %3427 = vmatpush1.bf16.msra.mxu0 0
        %3428 = vmatprep.subr.bf16.mxu0 0
        %3429 = vmatpush1.bf16.msra.mxu0 0
        %3430 = vmatprep.mubr.bf16.mxu0 %v2778
        %3431 = vmatmul.mubr.bf16.gmra.mrb[0].mxu0 %v1087
        %v3432 = vpop.f32.mrb[0].mxu0
        %v3433 = vadd.f32 %v3360, %v3432
        %v3434 = vpop.f32.mrb[0].mxu0
        %v3435 = vadd.f32 %v3362, %v3434
        %v3436 = vpop.f32.mrb[0].mxu0
        %v3437 = vadd.f32 %v3364, %v3436
        %v3438 = vpop.f32.mrb[0].mxu0
        %v3439 = vadd.f32 %v3366, %v3438
        %3440 = vmatprep.mubr.bf16.mxu0 %v2781
        %3441 = vmatmul.mubr.bf16.gmra.mrb[0].mxu0 %v1093
        %v3442 = vpop.f32.mrb[0].mxu0
        %v3443 = vadd.f32 %v3370, %v3442
        %v3444 = vpop.f32.mrb[0].mxu0
        %v3445 = vadd.f32 %v3372, %v3444
        %v3446 = vpop.f32.mrb[0].mxu0
        %v3447 = vadd.f32 %v3374, %v3446
        %v3448 = vpop.f32.mrb[0].mxu0
        %v3449 = vadd.f32 %v3376, %v3448
        %3450 = vmatprep.mubr.bf16.mxu0 %v2784
        %3451 = vmatmul.mubr.bf16.gmra.mrb[0].mxu0 %v1099
        %v3452 = vpop.f32.mrb[0].mxu0
        %v3453 = vadd.f32 %v3380, %v3452
        %v3454 = vpop.f32.mrb[0].mxu0
        %v3455 = vadd.f32 %v3382, %v3454
        %v3456 = vpop.f32.mrb[0].mxu0
        %v3457 = vadd.f32 %v3384, %v3456
        %v3458 = vpop.f32.mrb[0].mxu0
        %v3459 = vadd.f32 %v3386, %v3458
        %3460 = vmatprep.mubr.bf16.mxu0 %v2787
        %3461 = vmatmul.mubr.bf16.gmra.mrb[0].mxu0 %v1105
        %v3462 = vpop.f32.mrb[0].mxu0
        %v3463 = vadd.f32 %v3390, %v3462
        %v3464 = vpop.f32.mrb[0].mxu0
        %v3465 = vadd.f32 %v3392, %v3464
        %v3466 = vpop.f32.mrb[0].mxu0
        %v3467 = vadd.f32 %v3394, %v3466
        %v3468 = vpop.f32.mrb[0].mxu0
        %v3469 = vadd.f32 %v3396, %v3468
        %3470 = vdwg.mxu0
        %3471 = vmatprep.subr.bf16.mxu0 0
        %3472 = vmatpush1.bf16.msra.mxu0 %v2145
        %3473 = vmatprep.subr.bf16.mxu0 0
        %3474 = vmatpush1.bf16.msra.mxu0 %v2152
        %3475 = vmatprep.subr.bf16.mxu0 0
        %3476 = vmatpush1.bf16.msra.mxu0 %v2159
        %3477 = vmatprep.subr.bf16.mxu0 0
        %3478 = vmatpush1.bf16.msra.mxu0 %v2166
        %3479 = vmatprep.subr.bf16.mxu0 0
        %3480 = vmatpush1.bf16.msra.mxu0 %v2173
        %3481 = vmatprep.subr.bf16.mxu0 0
        %3482 = vmatpush1.bf16.msra.mxu0 %v2180
        %3483 = vmatprep.subr.bf16.mxu0 0
        %3484 = vmatpush1.bf16.msra.mxu0 %v2187
        %3485 = vmatprep.subr.bf16.mxu0 0
        %3486 = vmatpush1.bf16.msra.mxu0 %v2194
        %3487 = vmatprep.subr.bf16.mxu0 0
        %3488 = vmatpush1.bf16.msra.mxu0 %v2201
        %3489 = vmatprep.subr.bf16.mxu0 0
        %3490 = vmatpush1.bf16.msra.mxu0 %v2208
        %3491 = vmatprep.subr.bf16.mxu0 0
        %3492 = vmatpush1.bf16.msra.mxu0 %v2215
        %3493 = vmatprep.subr.bf16.mxu0 0
        %3494 = vmatpush1.bf16.msra.mxu0 %v2222
        %3495 = vmatprep.subr.bf16.mxu0 0
        %3496 = vmatpush1.bf16.msra.mxu0 %v2229
        %3497 = vmatprep.subr.bf16.mxu0 0
        %3498 = vmatpush1.bf16.msra.mxu0 %v2236
        %3499 = vmatprep.subr.bf16.mxu0 0
        %3500 = vmatpush1.bf16.msra.mxu0 %v2243
        %3501 = vmatprep.subr.bf16.mxu0 0
        %3502 = vmatpush1.bf16.msra.mxu0 %v2250
        %3503 = vmatprep.mubr.bf16.mxu0 %v1084
        %3504 = vmatmul.mubr.bf16.gmra.mrb[0].mxu0 %v1083
        %v3505 = vpop.f32.mrb[0].mxu0
        %v3506 = vadd.f32 0.0, %v3505
        %v3507 = vpop.f32.mrb[0].mxu0
        %v3508 = vpop.f32.mrb[0].mxu0
        %v3509 = vadd.f32 0.0, %v3508
        %v3510 = vpop.f32.mrb[0].mxu0
        %3511 = vmatprep.mubr.bf16.mxu0 %v1090
        %3512 = vmatmul.mubr.bf16.gmra.mrb[0].mxu0 %v1089
        %v3513 = vpop.f32.mrb[0].mxu0
        %v3514 = vadd.f32 0.0, %v3513
        %v3515 = vpop.f32.mrb[0].mxu0
        %v3516 = vpop.f32.mrb[0].mxu0
        %v3517 = vadd.f32 0.0, %v3516
        %v3518 = vpop.f32.mrb[0].mxu0
        %3519 = vmatprep.mubr.bf16.mxu0 %v1096
        %3520 = vmatmul.mubr.bf16.gmra.mrb[0].mxu0 %v1095
        %v3521 = vpop.f32.mrb[0].mxu0
        %v3522 = vadd.f32 0.0, %v3521
        %v3523 = vpop.f32.mrb[0].mxu0
        %v3524 = vpop.f32.mrb[0].mxu0
        %v3525 = vadd.f32 0.0, %v3524
        %v3526 = vpop.f32.mrb[0].mxu0
        %3527 = vmatprep.mubr.bf16.mxu0 %v1102
        %3528 = vmatmul.mubr.bf16.gmra.mrb[0].mxu0 %v1101
        %v3529 = vpop.f32.mrb[0].mxu0
        %v3530 = vadd.f32 0.0, %v3529
        %v3531 = vpop.f32.mrb[0].mxu0
        %v3532 = vpop.f32.mrb[0].mxu0
        %v3533 = vadd.f32 0.0, %v3532
        %v3534 = vpop.f32.mrb[0].mxu0
        %3535 = vdwg.mxu0
        %3536 = vmatprep.subr.bf16.mxu0 0
        %3537 = vmatpush1.bf16.msra.mxu0 %v2257
        %3538 = vmatprep.subr.bf16.mxu0 0
        %3539 = vmatpush1.bf16.msra.mxu0 %v2264
        %3540 = vmatprep.subr.bf16.mxu0 0
        %3541 = vmatpush1.bf16.msra.mxu0 %v2271
        %3542 = vmatprep.subr.bf16.mxu0 0
        %3543 = vmatpush1.bf16.msra.mxu0 %v2278
        %3544 = vmatprep.subr.bf16.mxu0 0
        %3545 = vmatpush1.bf16.msra.mxu0 %v2285
        %3546 = vmatprep.subr.bf16.mxu0 0
        %3547 = vmatpush1.bf16.msra.mxu0 %v2292
        %3548 = vmatprep.subr.bf16.mxu0 0
        %3549 = vmatpush1.bf16.msra.mxu0 %v2299
        %3550 = vmatprep.subr.bf16.mxu0 0
        %3551 = vmatpush1.bf16.msra.mxu0 %v2306
        %3552 = vmatprep.subr.bf16.mxu0 0
        %3553 = vmatpush1.bf16.msra.mxu0 %v2313
        %3554 = vmatprep.subr.bf16.mxu0 0
        %3555 = vmatpush1.bf16.msra.mxu0 %v2320
        %3556 = vmatprep.subr.bf16.mxu0 0
        %3557 = vmatpush1.bf16.msra.mxu0 %v2327
        %3558 = vmatprep.subr.bf16.mxu0 0
        %3559 = vmatpush1.bf16.msra.mxu0 %v2334
        %3560 = vmatprep.subr.bf16.mxu0 0
        %3561 = vmatpush1.bf16.msra.mxu0 %v2341
        %3562 = vmatprep.subr.bf16.mxu0 0
        %3563 = vmatpush1.bf16.msra.mxu0 %v2348
        %3564 = vmatprep.subr.bf16.mxu0 0
        %3565 = vmatpush1.bf16.msra.mxu0 %v2355
        %3566 = vmatprep.subr.bf16.mxu0 0
        %3567 = vmatpush1.bf16.msra.mxu0 %v2362
        %3568 = vmatprep.mubr.bf16.mxu0 %v1086
        %3569 = vmatmul.mubr.bf16.gmra.mrb[0].mxu0 %v1085
        %v3570 = vpop.f32.mrb[0].mxu0
        %v3571 = vadd.f32 %v3506, %v3570
        %v3572 = vpop.f32.mrb[0].mxu0
        %v3573 = vpop.f32.mrb[0].mxu0
        %v3574 = vadd.f32 %v3509, %v3573
        %v3575 = vpop.f32.mrb[0].mxu0
        %3576 = vmatprep.mubr.bf16.mxu0 %v1092
        %3577 = vmatmul.mubr.bf16.gmra.mrb[0].mxu0 %v1091
        %v3578 = vpop.f32.mrb[0].mxu0
        %v3579 = vadd.f32 %v3514, %v3578
        %v3580 = vpop.f32.mrb[0].mxu0
        %v3581 = vpop.f32.mrb[0].mxu0
        %v3582 = vadd.f32 %v3517, %v3581
        %v3583 = vpop.f32.mrb[0].mxu0
        %3584 = vmatprep.mubr.bf16.mxu0 %v1098
        %3585 = vmatmul.mubr.bf16.gmra.mrb[0].mxu0 %v1097
        %v3586 = vpop.f32.mrb[0].mxu0
        %v3587 = vadd.f32 %v3522, %v3586
        %v3588 = vpop.f32.mrb[0].mxu0
        %v3589 = vpop.f32.mrb[0].mxu0
        %v3590 = vadd.f32 %v3525, %v3589
        %v3591 = vpop.f32.mrb[0].mxu0
        %3592 = vmatprep.mubr.bf16.mxu0 %v1104
        %3593 = vmatmul.mubr.bf16.gmra.mrb[0].mxu0 %v1103
        %v3594 = vpop.f32.mrb[0].mxu0
        %v3595 = vadd.f32 %v3530, %v3594
        %v3596 = vpop.f32.mrb[0].mxu0
        %v3597 = vpop.f32.mrb[0].mxu0
        %v3598 = vadd.f32 %v3533, %v3597
        %v3599 = vpop.f32.mrb[0].mxu0
        %3600 = vdwg.mxu0
        %3601 = vmatprep.subr.bf16.mxu0 0
        %3602 = vmatpush1.bf16.msra.mxu0 %v2369
        %3603 = vmatprep.subr.bf16.mxu0 0
        %3604 = vmatpush1.bf16.msra.mxu0 %v2376
        %3605 = vmatprep.subr.bf16.mxu0 0
        %3606 = vmatpush1.bf16.msra.mxu0 %v2383
        %3607 = vmatprep.subr.bf16.mxu0 0
        %3608 = vmatpush1.bf16.msra.mxu0 %v2390
        %3609 = vmatprep.subr.bf16.mxu0 0
        %3610 = vmatpush1.bf16.msra.mxu0 %v2397
        %3611 = vmatprep.subr.bf16.mxu0 0
        %3612 = vmatpush1.bf16.msra.mxu0 %v2404
        %3613 = vmatprep.subr.bf16.mxu0 0
        %3614 = vmatpush1.bf16.msra.mxu0 %v2411
        %3615 = vmatprep.subr.bf16.mxu0 0
        %3616 = vmatpush1.bf16.msra.mxu0 %v2418
        %3617 = vmatprep.subr.bf16.mxu0 0
        %3618 = vmatpush1.bf16.msra.mxu0 %v2425
        %3619 = vmatprep.subr.bf16.mxu0 0
        %3620 = vmatpush1.bf16.msra.mxu0 %v2432
        %3621 = vmatprep.subr.bf16.mxu0 0
        %3622 = vmatpush1.bf16.msra.mxu0 %v2439
        %3623 = vmatprep.subr.bf16.mxu0 0
        %3624 = vmatpush1.bf16.msra.mxu0 %v2446
        %3625 = vmatprep.subr.bf16.mxu0 0
        %3626 = vmatpush1.bf16.msra.mxu0 %v2453
        %3627 = vmatprep.subr.bf16.mxu0 0
        %3628 = vmatpush1.bf16.msra.mxu0 %v2812
        %3629 = vmatprep.subr.bf16.mxu0 0
        %3630 = vmatpush1.bf16.msra.mxu0 0
        %3631 = vmatprep.subr.bf16.mxu0 0
        %3632 = vmatpush1.bf16.msra.mxu0 0
        %3633 = vmatprep.mubr.bf16.mxu0 %v2778
        %3634 = vmatmul.mubr.bf16.gmra.mrb[0].mxu0 %v1087
        %v3635 = vpop.f32.mrb[0].mxu0
        %v3636 = vadd.f32 %v3571, %v3635
        %v3637 = vpop.f32.mrb[0].mxu0
        %v3638 = vpop.f32.mrb[0].mxu0
        %v3639 = vadd.f32 %v3574, %v3638
        %v3640 = vpop.f32.mrb[0].mxu0
        %3641 = vmatprep.mubr.bf16.mxu0 %v2781
        %3642 = vmatmul.mubr.bf16.gmra.mrb[0].mxu0 %v1093
        %v3643 = vpop.f32.mrb[0].mxu0
        %v3644 = vadd.f32 %v3579, %v3643
        %v3645 = vpop.f32.mrb[0].mxu0
        %v3646 = vpop.f32.mrb[0].mxu0
        %v3647 = vadd.f32 %v3582, %v3646
        %v3648 = vpop.f32.mrb[0].mxu0
        %3649 = vmatprep.mubr.bf16.mxu0 %v2784
        %3650 = vmatmul.mubr.bf16.gmra.mrb[0].mxu0 %v1099
        %v3651 = vpop.f32.mrb[0].mxu0
        %v3652 = vadd.f32 %v3587, %v3651
        %v3653 = vpop.f32.mrb[0].mxu0
        %v3654 = vpop.f32.mrb[0].mxu0
        %v3655 = vadd.f32 %v3590, %v3654
        %v3656 = vpop.f32.mrb[0].mxu0
        %3657 = vmatprep.mubr.bf16.mxu0 %v2787
        %3658 = vmatmul.mubr.bf16.gmra.mrb[0].mxu0 %v1105
        %v3659 = vpop.f32.mrb[0].mxu0
        %v3660 = vadd.f32 %v3595, %v3659
        %v3661 = vpop.f32.mrb[0].mxu0
        %v3662 = vpop.f32.mrb[0].mxu0
        %v3663 = vadd.f32 %v3598, %v3662
        %v3664 = vpop.f32.mrb[0].mxu0
        %3665 = vdwg.mxu0
        %v3666 = vmax.f32 %v2995, %v3005
        %v3667 = vmax.f32 %v3666, %v3015
        %v3668 = vmax.f32 %v3667, %v3025
        %v3669 = vmax.f32 %v2997, %v3007
        %v3670 = vmax.f32 %v3669, %v3017
        %v3671 = vmax.f32 %v3670, %v3027
        %v3672 = vmax.f32 %v3214, %v3224
        %v3673 = vmax.f32 %v3672, %v3234
        %v3674 = vmax.f32 %v3673, %v3244
        %v3675 = vmax.f32 %v3216, %v3226
        %v3676 = vmax.f32 %v3675, %v3236
        %v3677 = vmax.f32 %v3676, %v3246
        %v3678 = vmax.f32 %v3433, %v3443
        %v3679 = vmax.f32 %v3678, %v3453
        %v3680 = vmax.f32 %v3679, %v3463
        %v3681 = vmax.f32 %v3435, %v3445
        %v3682 = vmax.f32 %v3681, %v3455
        %v3683 = vmax.f32 %v3682, %v3465
        %v3684 = vmax.f32 %v3636, %v3644
        %v3685 = vmax.f32 %v3684, %v3652
        %v3686 = vmax.f32 %v3685, %v3660
        %v3687 = vmax.f32 %v2999, %v3009
        %v3688 = vmax.f32 %v3687, %v3019
        %v3689 = vmax.f32 %v3688, %v3029
        %v3690 = vmax.f32 %v3001, %v3011
        %v3691 = vmax.f32 %v3690, %v3021
        %v3692 = vmax.f32 %v3691, %v3031
        %v3693 = vmax.f32 %v3218, %v3228
        %v3694 = vmax.f32 %v3693, %v3238
        %v3695 = vmax.f32 %v3694, %v3248
        %v3696 = vmax.f32 %v3220, %v3230
        %v3697 = vmax.f32 %v3696, %v3240
        %v3698 = vmax.f32 %v3697, %v3250
        %v3699 = vmax.f32 %v3437, %v3447
        %v3700 = vmax.f32 %v3699, %v3457
        %v3701 = vmax.f32 %v3700, %v3467
        %v3702 = vmax.f32 %v3439, %v3449
        %v3703 = vmax.f32 %v3702, %v3459
        %v3704 = vmax.f32 %v3703, %v3469
        %v3705 = vmax.f32 %v3639, %v3647
        %v3706 = vmax.f32 %v3705, %v3655
        %v3707 = vmax.f32 %v3706, %v3663
        %v3708 = vld [vmem:[%s2] sm:$0xff]
        %v3710 = vlaneseq
        %v3711 = vshrl.u32 %v3710, 7
        %v3712 = vsub.s32 0, %v3711
        %v3713 = vrot.slane %v3708, %v3712
        %v3714 = vlaneseq
        %v3715 = vshrl.u32 %v3714, 7
        %v3716 = vsub.s32 1, %v3715
        %v3717 = vrot.slane %v3708, %v3716
        %v3718 = vlaneseq
        %v3719 = vshrl.u32 %v3718, 7
        %v3720 = vsub.s32 2, %v3719
        %v3721 = vrot.slane %v3708, %v3720
        %v3722 = vlaneseq
        %v3723 = vshrl.u32 %v3722, 7
        %v3724 = vsub.s32 3, %v3723
        %v3725 = vrot.slane %v3708, %v3724
        %v3726 = vlaneseq
        %v3727 = vshrl.u32 %v3726, 7
        %v3728 = vsub.s32 4, %v3727
        %v3729 = vrot.slane %v3708, %v3728
        %v3730 = vlaneseq
        %v3731 = vshrl.u32 %v3730, 7
        %v3732 = vsub.s32 5, %v3731
        %v3733 = vrot.slane %v3708, %v3732
        %v3734 = vlaneseq
        %v3735 = vshrl.u32 %v3734, 7
        %v3736 = vsub.s32 6, %v3735
        %v3737 = vrot.slane %v3708, %v3736
        %v3745 = vadd.f32 %v3668, %v3713
        %v3746 = vadd.f32 %v3671, %v3717
        %v3747 = vadd.f32 %v3674, %v3721
        %v3748 = vadd.f32 %v3677, %v3725
        %v3749 = vadd.f32 %v3680, %v3729
        %v3750 = vadd.f32 %v3683, %v3733
        %v3751 = vadd.f32 %v3686, %v3737
        %v3752 = vadd.f32 %v3689, %v3713
        %v3753 = vadd.f32 %v3692, %v3717
        %v3754 = vadd.f32 %v3695, %v3721
        %v3755 = vadd.f32 %v3698, %v3725
        %v3756 = vadd.f32 %v3701, %v3729
        %v3757 = vadd.f32 %v3704, %v3733
        %v3758 = vadd.f32 %v3707, %v3737
        %v3759 = vmax.f32 %v3745, 0.0
        %v3760 = vmax.f32 %v3746, 0.0
        %v3761 = vmax.f32 %v3747, 0.0
        %v3762 = vmax.f32 %v3748, 0.0
        %v3763 = vmax.f32 %v3749, 0.0
        %v3764 = vmax.f32 %v3750, 0.0
        %v3765 = vmax.f32 %v3751, 0.0
        %v3766 = vmax.f32 %v3752, 0.0
        %v3767 = vmax.f32 %v3753, 0.0
        %v3768 = vmax.f32 %v3754, 0.0
        %v3769 = vmax.f32 %v3755, 0.0
        %v3770 = vmax.f32 %v3756, 0.0
        %v3771 = vmax.f32 %v3757, 0.0
        %v3772 = vmax.f32 %v3758, 0.0
        %v3773 = vpack.c.bf16 %v3766, %v3759
        %v3774 = vpack.c.bf16 %v3767, %v3760
        %v3775 = vpack.c.bf16 %v3768, %v3761
        %v3776 = vpack.c.bf16 %v3769, %v3762
        %v3777 = vpack.c.bf16 %v3770, %v3763
        %v3778 = vpack.c.bf16 %v3771, %v3764
        %v3779 = vpack.c.bf16 %v3772, %v3765
        %v3780 = vld [vmem:[%s3] sm:$0xff]
        %v3781 = vld [vmem:[%s3 + $0x8] sm:$0xff]
        %v3782 = vld [vmem:[%s3 + $0x10] sm:$0xff]
        %v3783 = vld [vmem:[%s3 + $0x18] sm:$0xff]
        %v3784 = vld [vmem:[%s3 + $0x20] sm:$0xff]
        %v3785 = vld [vmem:[%s3 + $0x28] sm:$0xff]
        %v3786 = vld [vmem:[%s3 + $0x30] sm:$0xff]
        %v3787 = vld [vmem:[%s3 + $0x38] sm:$0xff]
        %v3788 = vld [vmem:[%s3 + $0x40] sm:$0xff]
        %v3789 = vld [vmem:[%s3 + $0x48] sm:$0xff]
        %v3790 = vld [vmem:[%s3 + $0x50] sm:$0xff]
        %v3791 = vld [vmem:[%s3 + $0x58] sm:$0xff]
        %v3792 = vld [vmem:[%s3 + $0x60] sm:$0xff]
        %v3793 = vld [vmem:[%s3 + $0x68] sm:$0xff]
        %v3794 = vld [vmem:[%s3 + $0x70] sm:$0xff]
        %v3795 = vld [vmem:[%s3 + $0x78] sm:$0xff]
        %v3796 = vld [vmem:[%s3 + $0x80] sm:$0xff]
        %v3797 = vld [vmem:[%s3 + $0x88] sm:$0xff]
        %v3798 = vld [vmem:[%s3 + $0x90] sm:$0xff]
        %v3799 = vld [vmem:[%s3 + $0x98] sm:$0xff]
        %v3800 = vld [vmem:[%s3 + $0xa0] sm:$0xff]
        %v3801 = vld [vmem:[%s3 + $0xa8] sm:$0xff]
        %v3802 = vld [vmem:[%s3 + $0xb0] sm:$0xff]
        %v3803 = vld [vmem:[%s3 + $0xb8] sm:$0xff]
        %v3804 = vld [vmem:[%s3 + $0xc0] sm:$0xff]
        %v3805 = vld [vmem:[%s3 + $0xc8] sm:$0xff]
        %v3806 = vld [vmem:[%s3 + $0xd0] sm:$0xff]
        %v3807 = vld [vmem:[%s3 + $0xd8] sm:$0xff]
        %v3808 = vld [vmem:[%s3 + $0xe0] sm:$0xff]
        %v3809 = vld [vmem:[%s3 + $0xe8] sm:$0xff]
        %v3810 = vld [vmem:[%s3 + $0xf0] sm:$0xff]
        %v3811 = vld [vmem:[%s3 + $0xf8] sm:$0xff]
        %v3812 = vld [vmem:[%s3 + $0x100] sm:$0xff]
        %v3813 = vld [vmem:[%s3 + $0x108] sm:$0xff]
        %v3814 = vld [vmem:[%s3 + $0x110] sm:$0xff]
        %v3815 = vld [vmem:[%s3 + $0x118] sm:$0xff]
        %v3816 = vld [vmem:[%s3 + $0x120] sm:$0xff]
        %v3817 = vld [vmem:[%s3 + $0x128] sm:$0xff]
        %v3818 = vld [vmem:[%s3 + $0x130] sm:$0xff]
        %v3819 = vld [vmem:[%s3 + $0x138] sm:$0xff]
        %v3820 = vld [vmem:[%s3 + $0x140] sm:$0xff]
        %v3821 = vld [vmem:[%s3 + $0x148] sm:$0xff]
        %v3822 = vld [vmem:[%s3 + $0x150] sm:$0xff]
        %v3823 = vld [vmem:[%s3 + $0x158] sm:$0xff]
        %v3824 = vld [vmem:[%s3 + $0x160] sm:$0xff]
        %v3825 = vld [vmem:[%s3 + $0x168] sm:$0xff]
        %v3826 = vld [vmem:[%s3 + $0x170] sm:$0xff]
        %v3827 = vld [vmem:[%s3 + $0x178] sm:$0xff]
        %v3828 = vld [vmem:[%s3 + $0x180] sm:$0xff]
        %v3829 = vld [vmem:[%s3 + $0x188] sm:$0xff]
        %v3830 = vld [vmem:[%s3 + $0x190] sm:$0xff]
        %v3831 = vld [vmem:[%s3 + $0x198] sm:$0xff]
        %v3832 = vld [vmem:[%s3 + $0x1a0] sm:$0xff]
        %v3833 = vld [vmem:[%s3 + $0x1a8] sm:$0xff]
        %v3834 = vld [vmem:[%s3 + $0x1b0] sm:$0xff]
        %v3835 = vld [vmem:[%s3 + $0x1b8] sm:$0xff]
        %v3836 = vld [vmem:[%s3 + $0x1c0] sm:$0xff]
        %v3837 = vld [vmem:[%s3 + $0x1c8] sm:$0xff]
        %v3838 = vld [vmem:[%s3 + $0x1d0] sm:$0xff]
        %v3839 = vld [vmem:[%s3 + $0x1d8] sm:$0xff]
        %v3840 = vld [vmem:[%s3 + $0x1e0] sm:$0xff]
        %v3841 = vld [vmem:[%s3 + $0x1e8] sm:$0xff]
        %v3842 = vld [vmem:[%s3 + $0x1f0] sm:$0xff]
        %v3843 = vld [vmem:[%s3 + $0x1f8] sm:$0xff]
        %v3844 = vld [vmem:[%s3 + $0x200] sm:$0xff]
        %v3845 = vld [vmem:[%s3 + $0x208] sm:$0xff]
        %v3846 = vld [vmem:[%s3 + $0x210] sm:$0xff]
        %v3847 = vld [vmem:[%s3 + $0x218] sm:$0xff]
        %v3848 = vld [vmem:[%s3 + $0x220] sm:$0xff]
        %v3849 = vld [vmem:[%s3 + $0x228] sm:$0xff]
        %v3850 = vld [vmem:[%s3 + $0x230] sm:$0xff]
        %v3851 = vld [vmem:[%s3 + $0x238] sm:$0xff]
        %v3852 = vld [vmem:[%s3 + $0x240] sm:$0xff]
        %v3853 = vld [vmem:[%s3 + $0x248] sm:$0xff]
        %v3854 = vld [vmem:[%s3 + $0x250] sm:$0xff]
        %v3855 = vld [vmem:[%s3 + $0x258] sm:$0xff]
        %v3856 = vld [vmem:[%s3 + $0x260] sm:$0xff]
        %v3857 = vld [vmem:[%s3 + $0x268] sm:$0xff]
        %v3858 = vld [vmem:[%s3 + $0x270] sm:$0xff]
        %v3859 = vld [vmem:[%s3 + $0x278] sm:$0xff]
        %v3860 = vld [vmem:[%s3 + $0x280] sm:$0xff]
        %v3861 = vld [vmem:[%s3 + $0x288] sm:$0xff]
        %v3862 = vld [vmem:[%s3 + $0x290] sm:$0xff]
        %v3863 = vld [vmem:[%s3 + $0x298] sm:$0xff]
        %v3864 = vld [vmem:[%s3 + $0x2a0] sm:$0xff]
        %v3865 = vld [vmem:[%s3 + $0x2a8] sm:$0xff]
        %v3866 = vld [vmem:[%s3 + $0x2b0] sm:$0xff]
        %v3867 = vld [vmem:[%s3 + $0x2b8] sm:$0xff]
        %v3868 = vld [vmem:[%s3 + $0x2c0] sm:$0xff]
        %v3869 = vld [vmem:[%s3 + $0x2c8] sm:$0xff]
        %v3870 = vld [vmem:[%s3 + $0x2d0] sm:$0xff]
        %v3871 = vld [vmem:[%s3 + $0x2d8] sm:$0xff]
        %v3872 = vld [vmem:[%s3 + $0x2e0] sm:$0xff]
        %v3873 = vld [vmem:[%s3 + $0x2e8] sm:$0xff]
        %v3874 = vld [vmem:[%s3 + $0x2f0] sm:$0xff]
        %v3875 = vld [vmem:[%s3 + $0x2f8] sm:$0xff]
        %v3876 = vld [vmem:[%s3 + $0x300] sm:$0xff]
        %v3877 = vld [vmem:[%s3 + $0x308] sm:$0xff]
        %v3878 = vld [vmem:[%s3 + $0x310] sm:$0xff]
        %v3879 = vld [vmem:[%s3 + $0x318] sm:$0xff]
        %v3880 = vld [vmem:[%s3 + $0x320] sm:$0xff]
        %v3881 = vld [vmem:[%s3 + $0x328] sm:$0xff]
        %v3882 = vld [vmem:[%s3 + $0x330] sm:$0xff]
        %v3883 = vld [vmem:[%s3 + $0x338] sm:$0xff]
        %v3884 = vld [vmem:[%s3 + $0x340] sm:$0xff]
        %v3885 = vld [vmem:[%s3 + $0x348] sm:$0xff]
        %v3886 = vld [vmem:[%s3 + $0x350] sm:$0xff]
        %v3887 = vld [vmem:[%s3 + $0x358] sm:$0xff]
        %v3888 = vld [vmem:[%s3 + $0x360] sm:$0xff]
        %v3889 = vld [vmem:[%s3 + $0x368] sm:$0xff]
        %v3890 = vld [vmem:[%s3 + $0x370] sm:$0xff]
        %v3891 = vld [vmem:[%s3 + $0x378] sm:$0xff]
        %v3892 = vld [vmem:[%s3 + $0x380] sm:$0xff]
        %v3893 = vld [vmem:[%s3 + $0x388] sm:$0xff]
        %v3894 = vld [vmem:[%s3 + $0x390] sm:$0xff]
        %v3895 = vld [vmem:[%s3 + $0x398] sm:$0xff]
        %v3896 = vld [vmem:[%s3 + $0x3a0] sm:$0xff]
        %v3897 = vld [vmem:[%s3 + $0x3a8] sm:$0xff]
        %v3898 = vld [vmem:[%s3 + $0x3b0] sm:$0xff]
        %v3899 = vld [vmem:[%s3 + $0x3b8] sm:$0xff]
        %v3900 = vld [vmem:[%s3 + $0x3c0] sm:$0xff]
        %v3901 = vld [vmem:[%s3 + $0x3c8] sm:$0xff]
        %v3902 = vld [vmem:[%s3 + $0x3d0] sm:$0xff]
        %v3903 = vld [vmem:[%s3 + $0x3d8] sm:$0xff]
        %v3904 = vld [vmem:[%s3 + $0x3e0] sm:$0xff]
        %v3905 = vld [vmem:[%s3 + $0x3e8] sm:$0xff]
        %v3906 = vld [vmem:[%s3 + $0x3f0] sm:$0xff]
        %v3907 = vld [vmem:[%s3 + $0x3f8] sm:$0xff]
        %v3908 = vld [vmem:[%s3 + $0x400] sm:$0xff]
        %v3909 = vld [vmem:[%s3 + $0x408] sm:$0xff]
        %v3910 = vld [vmem:[%s3 + $0x410] sm:$0xff]
        %v3911 = vld [vmem:[%s3 + $0x418] sm:$0xff]
        %v3912 = vld [vmem:[%s3 + $0x420] sm:$0xff]
        %v3913 = vld [vmem:[%s3 + $0x428] sm:$0xff]
        %v3914 = vld [vmem:[%s3 + $0x430] sm:$0xff]
        %v3915 = vld [vmem:[%s3 + $0x438] sm:$0xff]
        %v3916 = vld [vmem:[%s3 + $0x440] sm:$0xff]
        %v3917 = vld [vmem:[%s3 + $0x448] sm:$0xff]
        %v3918 = vld [vmem:[%s3 + $0x450] sm:$0xff]
        %v3919 = vld [vmem:[%s3 + $0x458] sm:$0xff]
        %v3920 = vld [vmem:[%s3 + $0x460] sm:$0xff]
        %v3921 = vld [vmem:[%s3 + $0x468] sm:$0xff]
        %v3922 = vld [vmem:[%s3 + $0x470] sm:$0xff]
        %v3923 = vld [vmem:[%s3 + $0x478] sm:$0xff]
        %v3924 = vld [vmem:[%s3 + $0x480] sm:$0xff]
        %v3925 = vld [vmem:[%s3 + $0x488] sm:$0xff]
        %v3926 = vld [vmem:[%s3 + $0x490] sm:$0xff]
        %v3927 = vld [vmem:[%s3 + $0x498] sm:$0xff]
        %v3928 = vld [vmem:[%s3 + $0x4a0] sm:$0xff]
        %v3929 = vld [vmem:[%s3 + $0x4a8] sm:$0xff]
        %v3930 = vld [vmem:[%s3 + $0x4b0] sm:$0xff]
        %v3931 = vld [vmem:[%s3 + $0x4b8] sm:$0xff]
        %v3932 = vld [vmem:[%s3 + $0x4c0] sm:$0xff]
        %v3933 = vld [vmem:[%s3 + $0x4c8] sm:$0xff]
        %v3934 = vld [vmem:[%s3 + $0x4d0] sm:$0xff]
        %v3935 = vld [vmem:[%s3 + $0x4d8] sm:$0xff]
        %v3936 = vld [vmem:[%s3 + $0x4e0] sm:$0xff]
        %v3937 = vld [vmem:[%s3 + $0x4e8] sm:$0xff]
        %v3938 = vld [vmem:[%s3 + $0x4f0] sm:$0xff]
        %v3939 = vld [vmem:[%s3 + $0x4f8] sm:$0xff]
        %v3940 = vld [vmem:[%s3 + $0x500] sm:$0xff]
        %v3941 = vld [vmem:[%s3 + $0x508] sm:$0xff]
        %v3942 = vld [vmem:[%s3 + $0x510] sm:$0xff]
        %v3943 = vld [vmem:[%s3 + $0x518] sm:$0xff]
        %v3944 = vld [vmem:[%s3 + $0x520] sm:$0xff]
        %v3945 = vld [vmem:[%s3 + $0x528] sm:$0xff]
        %v3946 = vld [vmem:[%s3 + $0x530] sm:$0xff]
        %v3947 = vld [vmem:[%s3 + $0x538] sm:$0xff]
        %v3948 = vld [vmem:[%s3 + $0x540] sm:$0xff]
        %v3949 = vld [vmem:[%s3 + $0x548] sm:$0xff]
        %v3950 = vld [vmem:[%s3 + $0x550] sm:$0xff]
        %v3951 = vld [vmem:[%s3 + $0x558] sm:$0xff]
        %v3952 = vld [vmem:[%s3 + $0x560] sm:$0xff]
        %v3953 = vld [vmem:[%s3 + $0x568] sm:$0xff]
        %v3954 = vld [vmem:[%s3 + $0x570] sm:$0xff]
        %v3955 = vld [vmem:[%s3 + $0x578] sm:$0xff]
        %v3956 = vld [vmem:[%s3 + $0x580] sm:$0xff]
        %v3957 = vld [vmem:[%s3 + $0x588] sm:$0xff]
        %v3958 = vld [vmem:[%s3 + $0x590] sm:$0xff]
        %v3959 = vld [vmem:[%s3 + $0x598] sm:$0xff]
        %v3960 = vld [vmem:[%s3 + $0x5a0] sm:$0xff]
        %v3961 = vld [vmem:[%s3 + $0x5a8] sm:$0xff]
        %v3962 = vld [vmem:[%s3 + $0x5b0] sm:$0xff]
        %v3963 = vld [vmem:[%s3 + $0x5b8] sm:$0xff]
        %v3964 = vld [vmem:[%s3 + $0x5c0] sm:$0xff]
        %v3965 = vld [vmem:[%s3 + $0x5c8] sm:$0xff]
        %v3966 = vld [vmem:[%s3 + $0x5d0] sm:$0xff]
        %v3967 = vld [vmem:[%s3 + $0x5d8] sm:$0xff]
        %v3968 = vld [vmem:[%s3 + $0x5e0] sm:$0xff]
        %v3969 = vld [vmem:[%s3 + $0x5e8] sm:$0xff]
        %v3970 = vld [vmem:[%s3 + $0x5f0] sm:$0xff]
        %v3971 = vld [vmem:[%s3 + $0x5f8] sm:$0xff]
        %v3972 = vld [vmem:[%s3 + $0x600] sm:$0xff]
        %v3973 = vld [vmem:[%s3 + $0x608] sm:$0xff]
        %v3974 = vld [vmem:[%s3 + $0x610] sm:$0xff]
        %v3975 = vld [vmem:[%s3 + $0x618] sm:$0xff]
        %v3976 = vld [vmem:[%s3 + $0x620] sm:$0xff]
        %v3977 = vld [vmem:[%s3 + $0x628] sm:$0xff]
        %v3978 = vld [vmem:[%s3 + $0x630] sm:$0xff]
        %v3979 = vld [vmem:[%s3 + $0x638] sm:$0xff]
        %v3980 = vld [vmem:[%s3 + $0x640] sm:$0xff]
        %v3981 = vld [vmem:[%s3 + $0x648] sm:$0xff]
        %v3982 = vld [vmem:[%s3 + $0x650] sm:$0xff]
        %v3983 = vld [vmem:[%s3 + $0x658] sm:$0xff]
        %v3984 = vld [vmem:[%s3 + $0x660] sm:$0xff]
        %v3985 = vld [vmem:[%s3 + $0x668] sm:$0xff]
        %v3986 = vld [vmem:[%s3 + $0x670] sm:$0xff]
        %v3987 = vld [vmem:[%s3 + $0x678] sm:$0xff]
        %v3988 = vld [vmem:[%s3 + $0x680] sm:$0xff]
        %v3989 = vld [vmem:[%s3 + $0x688] sm:$0xff]
        %v3990 = vld [vmem:[%s3 + $0x690] sm:$0xff]
        %v3991 = vld [vmem:[%s3 + $0x698] sm:$0xff]
        %v3992 = vld [vmem:[%s3 + $0x6a0] sm:$0xff]
        %v3993 = vld [vmem:[%s3 + $0x6a8] sm:$0xff]
        %v3994 = vld [vmem:[%s3 + $0x6b0] sm:$0xff]
        %v3995 = vld [vmem:[%s3 + $0x6b8] sm:$0xff]
        %v3996 = vld [vmem:[%s3 + $0x6c0] sm:$0xff]
        %v3997 = vld [vmem:[%s3 + $0x6c8] sm:$0xff]
        %v3998 = vld [vmem:[%s3 + $0x6d0] sm:$0xff]
        %v3999 = vld [vmem:[%s3 + $0x6d8] sm:$0xff]
        %v4000 = vld [vmem:[%s3 + $0x6e0] sm:$0xff]
        %v4001 = vld [vmem:[%s3 + $0x6e8] sm:$0xff]
        %v4002 = vld [vmem:[%s3 + $0x6f0] sm:$0xff]
        %v4003 = vld [vmem:[%s3 + $0x6f8] sm:$0xff]
        %v4004 = vld [vmem:[%s3 + $0x700] sm:$0xff]
        %v4005 = vld [vmem:[%s3 + $0x708] sm:$0xff]
        %v4006 = vld [vmem:[%s3 + $0x710] sm:$0xff]
        %v4007 = vld [vmem:[%s3 + $0x718] sm:$0xff]
        %v4008 = vld [vmem:[%s3 + $0x720] sm:$0xff]
        %v4009 = vld [vmem:[%s3 + $0x728] sm:$0xff]
        %v4010 = vld [vmem:[%s3 + $0x730] sm:$0xff]
        %v4011 = vld [vmem:[%s3 + $0x738] sm:$0xff]
        %v4012 = vld [vmem:[%s3 + $0x740] sm:$0xff]
        %v4013 = vld [vmem:[%s3 + $0x748] sm:$0xff]
        %v4014 = vld [vmem:[%s3 + $0x750] sm:$0xff]
        %v4015 = vld [vmem:[%s3 + $0x758] sm:$0xff]
        %v4016 = vld [vmem:[%s3 + $0x760] sm:$0xff]
        %v4017 = vld [vmem:[%s3 + $0x768] sm:$0xff]
        %v4018 = vld [vmem:[%s3 + $0x770] sm:$0xff]
        %v4019 = vld [vmem:[%s3 + $0x778] sm:$0xff]
        %v4020 = vld [vmem:[%s3 + $0x780] sm:$0xff]
        %v4021 = vld [vmem:[%s3 + $0x788] sm:$0xff]
        %v4022 = vld [vmem:[%s3 + $0x790] sm:$0xff]
        %v4023 = vld [vmem:[%s3 + $0x798] sm:$0xff]
        %v4024 = vld [vmem:[%s3 + $0x7a0] sm:$0xff]
        %v4025 = vld [vmem:[%s3 + $0x7a8] sm:$0xff]
        %v4026 = vld [vmem:[%s3 + $0x7b0] sm:$0xff]
        %v4027 = vld [vmem:[%s3 + $0x7b8] sm:$0xff]
        %v4028 = vld [vmem:[%s3 + $0x7c0] sm:$0xff]
        %v4029 = vld [vmem:[%s3 + $0x7c8] sm:$0xff]
        %v4030 = vld [vmem:[%s3 + $0x7d0] sm:$0xff]
        %v4031 = vld [vmem:[%s3 + $0x7d8] sm:$0xff]
        %v4032 = vld [vmem:[%s3 + $0x7e0] sm:$0xff]
        %v4033 = vld [vmem:[%s3 + $0x7e8] sm:$0xff]
        %v4034 = vld [vmem:[%s3 + $0x7f0] sm:$0xff]
        %v4035 = vld [vmem:[%s3 + $0x7f8] sm:$0xff]
        %v4036 = vld [vmem:[%s3 + $0x800] sm:$0xff]
        %v4037 = vld [vmem:[%s3 + $0x808] sm:$0xff]
        %v4038 = vld [vmem:[%s3 + $0x810] sm:$0xff]
        %v4039 = vld [vmem:[%s3 + $0x818] sm:$0xff]
        %v4040 = vld [vmem:[%s3 + $0x820] sm:$0xff]
        %v4041 = vld [vmem:[%s3 + $0x828] sm:$0xff]
        %v4042 = vld [vmem:[%s3 + $0x830] sm:$0xff]
        %v4043 = vld [vmem:[%s3 + $0x838] sm:$0xff]
        %v4044 = vld [vmem:[%s3 + $0x840] sm:$0xff]
        %v4045 = vld [vmem:[%s3 + $0x848] sm:$0xff]
        %v4046 = vld [vmem:[%s3 + $0x850] sm:$0xff]
        %v4047 = vld [vmem:[%s3 + $0x858] sm:$0xff]
        %v4048 = vld [vmem:[%s3 + $0x860] sm:$0xff]
        %v4049 = vld [vmem:[%s3 + $0x868] sm:$0xff]
        %v4050 = vld [vmem:[%s3 + $0x870] sm:$0xff]
        %v4051 = vld [vmem:[%s3 + $0x878] sm:$0xff]
        %v4052 = vld [vmem:[%s3 + $0x880] sm:$0xff]
        %v4053 = vld [vmem:[%s3 + $0x888] sm:$0xff]
        %v4054 = vld [vmem:[%s3 + $0x890] sm:$0xff]
        %v4055 = vld [vmem:[%s3 + $0x898] sm:$0xff]
        %v4056 = vld [vmem:[%s3 + $0x8a0] sm:$0xff]
        %v4057 = vld [vmem:[%s3 + $0x8a8] sm:$0xff]
        %v4058 = vld [vmem:[%s3 + $0x8b0] sm:$0xff]
        %v4059 = vld [vmem:[%s3 + $0x8b8] sm:$0xff]
        %v4060 = vld [vmem:[%s3 + $0x8c0] sm:$0xff]
        %v4061 = vld [vmem:[%s3 + $0x8c8] sm:$0xff]
        %v4062 = vld [vmem:[%s3 + $0x8d0] sm:$0xff]
        %v4063 = vld [vmem:[%s3 + $0x8d8] sm:$0xff]
        %v4064 = vld [vmem:[%s3 + $0x8e0] sm:$0xff]
        %v4065 = vld [vmem:[%s3 + $0x8e8] sm:$0xff]
        %v4066 = vld [vmem:[%s3 + $0x8f0] sm:$0xff]
        %v4067 = vld [vmem:[%s3 + $0x8f8] sm:$0xff]
        %v4068 = vld [vmem:[%s3 + $0x900] sm:$0xff]
        %v4069 = vld [vmem:[%s3 + $0x908] sm:$0xff]
        %v4070 = vld [vmem:[%s3 + $0x910] sm:$0xff]
        %v4071 = vld [vmem:[%s3 + $0x918] sm:$0xff]
        %v4072 = vld [vmem:[%s3 + $0x920] sm:$0xff]
        %v4073 = vld [vmem:[%s3 + $0x928] sm:$0xff]
        %v4074 = vld [vmem:[%s3 + $0x930] sm:$0xff]
        %v4075 = vld [vmem:[%s3 + $0x938] sm:$0xff]
        %v4076 = vld [vmem:[%s3 + $0x940] sm:$0xff]
        %v4077 = vld [vmem:[%s3 + $0x948] sm:$0xff]
        %v4078 = vld [vmem:[%s3 + $0x950] sm:$0xff]
        %v4079 = vld [vmem:[%s3 + $0x958] sm:$0xff]
        %v4080 = vld [vmem:[%s3 + $0x960] sm:$0xff]
        %v4081 = vld [vmem:[%s3 + $0x968] sm:$0xff]
        %v4082 = vld [vmem:[%s3 + $0x970] sm:$0xff]
        %v4083 = vld [vmem:[%s3 + $0x978] sm:$0xff]
        %v4084 = vld [vmem:[%s3 + $0x980] sm:$0xff]
        %v4085 = vld [vmem:[%s3 + $0x988] sm:$0xff]
        %v4086 = vld [vmem:[%s3 + $0x990] sm:$0xff]
        %v4087 = vld [vmem:[%s3 + $0x998] sm:$0xff]
        %v4088 = vld [vmem:[%s3 + $0x9a0] sm:$0xff]
        %v4089 = vld [vmem:[%s3 + $0x9a8] sm:$0xff]
        %v4090 = vld [vmem:[%s3 + $0x9b0] sm:$0xff]
        %v4091 = vld [vmem:[%s3 + $0x9b8] sm:$0xff]
        %v4092 = vld [vmem:[%s3 + $0x9c0] sm:$0xff]
        %v4093 = vld [vmem:[%s3 + $0x9c8] sm:$0xff]
        %v4094 = vld [vmem:[%s3 + $0x9d0] sm:$0xff]
        %v4095 = vld [vmem:[%s3 + $0x9d8] sm:$0xff]
        %v4096 = vld [vmem:[%s3 + $0x9e0] sm:$0xff]
        %v4097 = vld [vmem:[%s3 + $0x9e8] sm:$0xff]
        %v4098 = vld [vmem:[%s3 + $0x9f0] sm:$0xff]
        %v4099 = vld [vmem:[%s3 + $0x9f8] sm:$0xff]
        %v4100 = vld [vmem:[%s3 + $0xa00] sm:$0xff]
        %v4101 = vld [vmem:[%s3 + $0xa08] sm:$0xff]
        %v4102 = vld [vmem:[%s3 + $0xa10] sm:$0xff]
        %v4103 = vld [vmem:[%s3 + $0xa18] sm:$0xff]
        %v4104 = vld [vmem:[%s3 + $0xa20] sm:$0xff]
        %v4105 = vld [vmem:[%s3 + $0xa28] sm:$0xff]
        %v4106 = vld [vmem:[%s3 + $0xa30] sm:$0xff]
        %v4107 = vld [vmem:[%s3 + $0xa38] sm:$0xff]
        %v4108 = vld [vmem:[%s3 + $0xa40] sm:$0xff]
        %v4109 = vld [vmem:[%s3 + $0xa48] sm:$0xff]
        %v4110 = vld [vmem:[%s3 + $0xa50] sm:$0xff]
        %v4111 = vld [vmem:[%s3 + $0xa58] sm:$0xff]
        %v4112 = vld [vmem:[%s3 + $0xa60] sm:$0xff]
        %v4113 = vld [vmem:[%s3 + $0xa68] sm:$0xff]
        %v4114 = vld [vmem:[%s3 + $0xa70] sm:$0xff]
        %v4115 = vld [vmem:[%s3 + $0xa78] sm:$0xff]
        %v4116 = vld [vmem:[%s3 + $0xa80] sm:$0xff]
        %v4117 = vld [vmem:[%s3 + $0xa88] sm:$0xff]
        %v4118 = vld [vmem:[%s3 + $0xa90] sm:$0xff]
        %v4119 = vld [vmem:[%s3 + $0xa98] sm:$0xff]
        %v4120 = vld [vmem:[%s3 + $0xaa0] sm:$0xff]
        %v4121 = vld [vmem:[%s3 + $0xaa8] sm:$0xff]
        %v4122 = vld [vmem:[%s3 + $0xab0] sm:$0xff]
        %v4123 = vld [vmem:[%s3 + $0xab8] sm:$0xff]
        %v4124 = vld [vmem:[%s3 + $0xac0] sm:$0xff]
        %v4125 = vld [vmem:[%s3 + $0xac8] sm:$0xff]
        %v4126 = vld [vmem:[%s3 + $0xad0] sm:$0xff]
        %v4127 = vld [vmem:[%s3 + $0xad8] sm:$0xff]
        %v4128 = vld [vmem:[%s3 + $0xae0] sm:$0xff]
        %v4129 = vld [vmem:[%s3 + $0xae8] sm:$0xff]
        %v4130 = vld [vmem:[%s3 + $0xaf0] sm:$0xff]
        %v4131 = vld [vmem:[%s3 + $0xaf8] sm:$0xff]
        %v4132 = vld [vmem:[%s3 + $0xb00] sm:$0xff]
        %v4133 = vld [vmem:[%s3 + $0xb08] sm:$0xff]
        %v4134 = vld [vmem:[%s3 + $0xb10] sm:$0xff]
        %v4135 = vld [vmem:[%s3 + $0xb18] sm:$0xff]
        %v4136 = vld [vmem:[%s3 + $0xb20] sm:$0xff]
        %v4137 = vld [vmem:[%s3 + $0xb28] sm:$0xff]
        %v4138 = vld [vmem:[%s3 + $0xb30] sm:$0xff]
        %v4139 = vld [vmem:[%s3 + $0xb38] sm:$0xff]
        %v4140 = vld [vmem:[%s3 + $0xb40] sm:$0xff]
        %v4141 = vld [vmem:[%s3 + $0xb48] sm:$0xff]
        %v4142 = vld [vmem:[%s3 + $0xb50] sm:$0xff]
        %v4143 = vld [vmem:[%s3 + $0xb58] sm:$0xff]
        %v4144 = vld [vmem:[%s3 + $0xb60] sm:$0xff]
        %v4145 = vld [vmem:[%s3 + $0xb68] sm:$0xff]
        %v4146 = vld [vmem:[%s3 + $0xb70] sm:$0xff]
        %v4147 = vld [vmem:[%s3 + $0xb78] sm:$0xff]
        %v4148 = vld [vmem:[%s3 + $0xb80] sm:$0xff]
        %v4149 = vld [vmem:[%s3 + $0xb88] sm:$0xff]
        %v4150 = vld [vmem:[%s3 + $0xb90] sm:$0xff]
        %v4151 = vld [vmem:[%s3 + $0xb98] sm:$0xff]
        %v4152 = vld [vmem:[%s3 + $0xba0] sm:$0xff]
        %v4153 = vld [vmem:[%s3 + $0xba8] sm:$0xff]
        %v4154 = vld [vmem:[%s3 + $0xbb0] sm:$0xff]
        %v4155 = vld [vmem:[%s3 + $0xbb8] sm:$0xff]
        %v4156 = vld [vmem:[%s3 + $0xbc0] sm:$0xff]
        %v4157 = vld [vmem:[%s3 + $0xbc8] sm:$0xff]
        %v4158 = vld [vmem:[%s3 + $0xbd0] sm:$0xff]
        %v4159 = vld [vmem:[%s3 + $0xbd8] sm:$0xff]
        %v4160 = vld [vmem:[%s3 + $0xbe0] sm:$0xff]
        %v4161 = vld [vmem:[%s3 + $0xbe8] sm:$0xff]
        %v4162 = vld [vmem:[%s3 + $0xbf0] sm:$0xff]
        %v4163 = vld [vmem:[%s3 + $0xbf8] sm:$0xff]
        %v4164 = vld [vmem:[%s3 + $0xc00] sm:$0xff]
        %v4165 = vld [vmem:[%s3 + $0xc08] sm:$0xff]
        %v4166 = vld [vmem:[%s3 + $0xc10] sm:$0xff]
        %v4167 = vld [vmem:[%s3 + $0xc18] sm:$0xff]
        %v4168 = vld [vmem:[%s3 + $0xc20] sm:$0xff]
        %v4169 = vld [vmem:[%s3 + $0xc28] sm:$0xff]
        %v4170 = vld [vmem:[%s3 + $0xc30] sm:$0xff]
        %v4171 = vld [vmem:[%s3 + $0xc38] sm:$0xff]
        %v4172 = vld [vmem:[%s3 + $0xc40] sm:$0xff]
        %v4173 = vld [vmem:[%s3 + $0xc48] sm:$0xff]
        %v4174 = vld [vmem:[%s3 + $0xc50] sm:$0xff]
        %v4175 = vld [vmem:[%s3 + $0xc58] sm:$0xff]
        %v4176 = vld [vmem:[%s3 + $0xc60] sm:$0xff]
        %v4177 = vld [vmem:[%s3 + $0xc68] sm:$0xff]
        %v4178 = vld [vmem:[%s3 + $0xc70] sm:$0xff]
        %v4179 = vld [vmem:[%s3 + $0xc78] sm:$0xff]
        %v4180 = vld [vmem:[%s3 + $0xc80] sm:$0xff]
        %v4181 = vld [vmem:[%s3 + $0xc88] sm:$0xff]
        %v4182 = vld [vmem:[%s3 + $0xc90] sm:$0xff]
        %v4183 = vld [vmem:[%s3 + $0xc98] sm:$0xff]
        %v4184 = vld [vmem:[%s3 + $0xca0] sm:$0xff]
        %v4185 = vld [vmem:[%s3 + $0xca8] sm:$0xff]
        %v4186 = vld [vmem:[%s3 + $0xcb0] sm:$0xff]
        %v4187 = vld [vmem:[%s3 + $0xcb8] sm:$0xff]
        %v4188 = vld [vmem:[%s3 + $0xcc0] sm:$0xff]
        %v4189 = vld [vmem:[%s3 + $0xcc8] sm:$0xff]
        %v4190 = vld [vmem:[%s3 + $0xcd0] sm:$0xff]
        %v4191 = vld [vmem:[%s3 + $0xcd8] sm:$0xff]
        %v4192 = vld [vmem:[%s3 + $0xce0] sm:$0xff]
        %v4193 = vld [vmem:[%s3 + $0xce8] sm:$0xff]
        %v4194 = vld [vmem:[%s3 + $0xcf0] sm:$0xff]
        %v4195 = vld [vmem:[%s3 + $0xcf8] sm:$0xff]
        %v4196 = vld [vmem:[%s3 + $0xd00] sm:$0xff]
        %v4197 = vld [vmem:[%s3 + $0xd08] sm:$0xff]
        %v4198 = vld [vmem:[%s3 + $0xd10] sm:$0xff]
        %v4199 = vld [vmem:[%s3 + $0xd18] sm:$0xff]
        %v4200 = vld [vmem:[%s3 + $0xd20] sm:$0xff]
        %v4201 = vld [vmem:[%s3 + $0xd28] sm:$0xff]
        %v4202 = vld [vmem:[%s3 + $0xd30] sm:$0xff]
        %v4203 = vld [vmem:[%s3 + $0xd38] sm:$0xff]
        %v4204 = vld [vmem:[%s3 + $0xd40] sm:$0xff]
        %v4205 = vld [vmem:[%s3 + $0xd48] sm:$0xff]
        %v4206 = vld [vmem:[%s3 + $0xd50] sm:$0xff]
        %v4207 = vld [vmem:[%s3 + $0xd58] sm:$0xff]
        %v4208 = vld [vmem:[%s3 + $0xd60] sm:$0xff]
        %v4209 = vld [vmem:[%s3 + $0xd68] sm:$0xff]
        %v4210 = vld [vmem:[%s3 + $0xd70] sm:$0xff]
        %v4211 = vld [vmem:[%s3 + $0xd78] sm:$0xff]
        %v4212 = vld [vmem:[%s3 + $0xd80] sm:$0xff]
        %v4213 = vld [vmem:[%s3 + $0xd88] sm:$0xff]
        %v4214 = vld [vmem:[%s3 + $0xd90] sm:$0xff]
        %v4215 = vld [vmem:[%s3 + $0xd98] sm:$0xff]
        %v4216 = vld [vmem:[%s3 + $0xda0] sm:$0xff]
        %v4217 = vld [vmem:[%s3 + $0xda8] sm:$0xff]
        %v4218 = vld [vmem:[%s3 + $0xdb0] sm:$0xff]
        %v4219 = vld [vmem:[%s3 + $0xdb8] sm:$0xff]
        %v4220 = vld [vmem:[%s3 + $0xdc0] sm:$0xff]
        %v4221 = vld [vmem:[%s3 + $0xdc8] sm:$0xff]
        %v4222 = vld [vmem:[%s3 + $0xdd0] sm:$0xff]
        %v4223 = vld [vmem:[%s3 + $0xdd8] sm:$0xff]
        %v4224 = vld [vmem:[%s3 + $0xde0] sm:$0xff]
        %v4225 = vld [vmem:[%s3 + $0xde8] sm:$0xff]
        %v4226 = vld [vmem:[%s3 + $0xdf0] sm:$0xff]
        %v4227 = vld [vmem:[%s3 + $0xdf8] sm:$0xff]
        %v4676 = vunpack.c.l.b16 %v3780
        %v4677 = vunpack.c.h.b16 %v3780
        %v4678 = vunpack.c.l.b16 %v3781
        %v4679 = vunpack.c.h.b16 %v3781
        %v4680 = vunpack.c.l.b16 %v3782
        %v4681 = vunpack.c.h.b16 %v3782
        %v4682 = vunpack.c.l.b16 %v3783
        %v4683 = vunpack.c.h.b16 %v3783
        %v4684 = vunpack.c.l.b16 %v3784
        %v4685 = vunpack.c.h.b16 %v3784
        %v4686 = vunpack.c.l.b16 %v3785
        %v4687 = vunpack.c.h.b16 %v3785
        %v4688 = vunpack.c.l.b16 %v3786
        %v4689 = vunpack.c.h.b16 %v3786
        %v4690 = vunpack.c.l.b16 %v3787
        %v4691 = vunpack.c.h.b16 %v3787
        %v4692 = vunpack.c.l.b16 %v3788
        %v4693 = vunpack.c.h.b16 %v3788
        %v4694 = vunpack.c.l.b16 %v3789
        %v4695 = vunpack.c.h.b16 %v3789
        %v4696 = vunpack.c.l.b16 %v3790
        %v4697 = vunpack.c.h.b16 %v3790
        %v4698 = vunpack.c.l.b16 %v3791
        %v4699 = vunpack.c.h.b16 %v3791
        %v4700 = vunpack.c.l.b16 %v3792
        %v4701 = vunpack.c.h.b16 %v3792
        %v4702 = vunpack.c.l.b16 %v3793
        %v4703 = vunpack.c.h.b16 %v3793
        %v4704 = vunpack.c.l.b16 %v3794
        %v4705 = vunpack.c.h.b16 %v3794
        %v4706 = vunpack.c.l.b16 %v3795
        %v4707 = vunpack.c.h.b16 %v3795
        %v4708 = vunpack.c.l.b16 %v3796
        %v4709 = vunpack.c.h.b16 %v3796
        %v4710 = vunpack.c.l.b16 %v3797
        %v4711 = vunpack.c.h.b16 %v3797
        %v4712 = vunpack.c.l.b16 %v3798
        %v4713 = vunpack.c.h.b16 %v3798
        %v4714 = vunpack.c.l.b16 %v3799
        %v4715 = vunpack.c.h.b16 %v3799
        %v4716 = vunpack.c.l.b16 %v3800
        %v4717 = vunpack.c.h.b16 %v3800
        %v4718 = vunpack.c.l.b16 %v3801
        %v4719 = vunpack.c.h.b16 %v3801
        %v4720 = vunpack.c.l.b16 %v3802
        %v4721 = vunpack.c.h.b16 %v3802
        %v4722 = vunpack.c.l.b16 %v3803
        %v4723 = vunpack.c.h.b16 %v3803
        %v4724 = vunpack.c.l.b16 %v3804
        %v4725 = vunpack.c.h.b16 %v3804
        %v4726 = vunpack.c.l.b16 %v3805
        %v4727 = vunpack.c.h.b16 %v3805
        %v4728 = vunpack.c.l.b16 %v3806
        %v4729 = vunpack.c.h.b16 %v3806
        %v4730 = vunpack.c.l.b16 %v3807
        %v4731 = vunpack.c.h.b16 %v3807
        %v4732 = vunpack.c.l.b16 %v3808
        %v4733 = vunpack.c.h.b16 %v3808
        %v4734 = vunpack.c.l.b16 %v3809
        %v4735 = vunpack.c.h.b16 %v3809
        %v4736 = vunpack.c.l.b16 %v3810
        %v4737 = vunpack.c.h.b16 %v3810
        %v4738 = vunpack.c.l.b16 %v3811
        %v4739 = vunpack.c.h.b16 %v3811
        %v4740 = vunpack.c.l.b16 %v3812
        %v4741 = vunpack.c.h.b16 %v3812
        %v4742 = vunpack.c.l.b16 %v3813
        %v4743 = vunpack.c.h.b16 %v3813
        %v4744 = vunpack.c.l.b16 %v3814
        %v4745 = vunpack.c.h.b16 %v3814
        %v4746 = vunpack.c.l.b16 %v3815
        %v4747 = vunpack.c.h.b16 %v3815
        %v4748 = vunpack.c.l.b16 %v3816
        %v4749 = vunpack.c.h.b16 %v3816
        %v4750 = vunpack.c.l.b16 %v3817
        %v4751 = vunpack.c.h.b16 %v3817
        %v4752 = vunpack.c.l.b16 %v3818
        %v4753 = vunpack.c.h.b16 %v3818
        %v4754 = vunpack.c.l.b16 %v3819
        %v4755 = vunpack.c.h.b16 %v3819
        %v4756 = vunpack.c.l.b16 %v3820
        %v4757 = vunpack.c.h.b16 %v3820
        %v4758 = vunpack.c.l.b16 %v3821
        %v4759 = vunpack.c.h.b16 %v3821
        %v4760 = vunpack.c.l.b16 %v3822
        %v4761 = vunpack.c.h.b16 %v3822
        %v4762 = vunpack.c.l.b16 %v3823
        %v4763 = vunpack.c.h.b16 %v3823
        %v4764 = vunpack.c.l.b16 %v3824
        %v4765 = vunpack.c.h.b16 %v3824
        %v4766 = vunpack.c.l.b16 %v3825
        %v4767 = vunpack.c.h.b16 %v3825
        %v4768 = vunpack.c.l.b16 %v3826
        %v4769 = vunpack.c.h.b16 %v3826
        %v4770 = vunpack.c.l.b16 %v3827
        %v4771 = vunpack.c.h.b16 %v3827
        %v4772 = vunpack.c.l.b16 %v3828
        %v4773 = vunpack.c.h.b16 %v3828
        %v4774 = vunpack.c.l.b16 %v3829
        %v4775 = vunpack.c.h.b16 %v3829
        %v4776 = vunpack.c.l.b16 %v3830
        %v4777 = vunpack.c.h.b16 %v3830
        %v4778 = vunpack.c.l.b16 %v3831
        %v4779 = vunpack.c.h.b16 %v3831
        %v4780 = vunpack.c.l.b16 %v3832
        %v4781 = vunpack.c.h.b16 %v3832
        %v4782 = vunpack.c.l.b16 %v3833
        %v4783 = vunpack.c.h.b16 %v3833
        %v4784 = vunpack.c.l.b16 %v3834
        %v4785 = vunpack.c.h.b16 %v3834
        %v4786 = vunpack.c.l.b16 %v3835
        %v4787 = vunpack.c.h.b16 %v3835
        %v4788 = vunpack.c.l.b16 %v3836
        %v4789 = vunpack.c.h.b16 %v3836
        %v4790 = vunpack.c.l.b16 %v3837
        %v4791 = vunpack.c.h.b16 %v3837
        %v4792 = vunpack.c.l.b16 %v3838
        %v4793 = vunpack.c.h.b16 %v3838
        %v4794 = vunpack.c.l.b16 %v3839
        %v4795 = vunpack.c.h.b16 %v3839
        %v4796 = vunpack.c.l.b16 %v3840
        %v4797 = vunpack.c.h.b16 %v3840
        %v4798 = vunpack.c.l.b16 %v3841
        %v4799 = vunpack.c.h.b16 %v3841
        %v4800 = vunpack.c.l.b16 %v3842
        %v4801 = vunpack.c.h.b16 %v3842
        %v4802 = vunpack.c.l.b16 %v3843
        %v4803 = vunpack.c.h.b16 %v3843
        %v4804 = vunpack.c.l.b16 %v3844
        %v4805 = vunpack.c.h.b16 %v3844
        %v4806 = vunpack.c.l.b16 %v3845
        %v4807 = vunpack.c.h.b16 %v3845
        %v4808 = vunpack.c.l.b16 %v3846
        %v4809 = vunpack.c.h.b16 %v3846
        %v4810 = vunpack.c.l.b16 %v3847
        %v4811 = vunpack.c.h.b16 %v3847
        %v4812 = vunpack.c.l.b16 %v3848
        %v4813 = vunpack.c.h.b16 %v3848
        %v4814 = vunpack.c.l.b16 %v3849
        %v4815 = vunpack.c.h.b16 %v3849
        %v4816 = vunpack.c.l.b16 %v3850
        %v4817 = vunpack.c.h.b16 %v3850
        %v4818 = vunpack.c.l.b16 %v3851
        %v4819 = vunpack.c.h.b16 %v3851
        %v4820 = vunpack.c.l.b16 %v3852
        %v4821 = vunpack.c.h.b16 %v3852
        %v4822 = vunpack.c.l.b16 %v3853
        %v4823 = vunpack.c.h.b16 %v3853
        %v4824 = vunpack.c.l.b16 %v3854
        %v4825 = vunpack.c.h.b16 %v3854
        %v4826 = vunpack.c.l.b16 %v3855
        %v4827 = vunpack.c.h.b16 %v3855
        %v4828 = vunpack.c.l.b16 %v3856
        %v4829 = vunpack.c.h.b16 %v3856
        %v4830 = vunpack.c.l.b16 %v3857
        %v4831 = vunpack.c.h.b16 %v3857
        %v4832 = vunpack.c.l.b16 %v3858
        %v4833 = vunpack.c.h.b16 %v3858
        %v4834 = vunpack.c.l.b16 %v3859
        %v4835 = vunpack.c.h.b16 %v3859
        %v4836 = vunpack.c.l.b16 %v3860
        %v4837 = vunpack.c.h.b16 %v3860
        %v4838 = vunpack.c.l.b16 %v3861
        %v4839 = vunpack.c.h.b16 %v3861
        %v4840 = vunpack.c.l.b16 %v3862
        %v4841 = vunpack.c.h.b16 %v3862
        %v4842 = vunpack.c.l.b16 %v3863
        %v4843 = vunpack.c.h.b16 %v3863
        %v4844 = vunpack.c.l.b16 %v3864
        %v4845 = vunpack.c.h.b16 %v3864
        %v4846 = vunpack.c.l.b16 %v3865
        %v4847 = vunpack.c.h.b16 %v3865
        %v4848 = vunpack.c.l.b16 %v3866
        %v4849 = vunpack.c.h.b16 %v3866
        %v4850 = vunpack.c.l.b16 %v3867
        %v4851 = vunpack.c.h.b16 %v3867
        %v4852 = vunpack.c.l.b16 %v3868
        %v4853 = vunpack.c.h.b16 %v3868
        %v4854 = vunpack.c.l.b16 %v3869
        %v4855 = vunpack.c.h.b16 %v3869
        %v4856 = vunpack.c.l.b16 %v3870
        %v4857 = vunpack.c.h.b16 %v3870
        %v4858 = vunpack.c.l.b16 %v3871
        %v4859 = vunpack.c.h.b16 %v3871
        %v4860 = vunpack.c.l.b16 %v3872
        %v4861 = vunpack.c.h.b16 %v3872
        %v4862 = vunpack.c.l.b16 %v3873
        %v4863 = vunpack.c.h.b16 %v3873
        %v4864 = vunpack.c.l.b16 %v3874
        %v4865 = vunpack.c.h.b16 %v3874
        %v4866 = vunpack.c.l.b16 %v3875
        %v4867 = vunpack.c.h.b16 %v3875
        %v4868 = vunpack.c.l.b16 %v3876
        %v4869 = vunpack.c.h.b16 %v3876
        %v4870 = vunpack.c.l.b16 %v3877
        %v4871 = vunpack.c.h.b16 %v3877
        %v4872 = vunpack.c.l.b16 %v3878
        %v4873 = vunpack.c.h.b16 %v3878
        %v4874 = vunpack.c.l.b16 %v3879
        %v4875 = vunpack.c.h.b16 %v3879
        %v4876 = vunpack.c.l.b16 %v3880
        %v4877 = vunpack.c.h.b16 %v3880
        %v4878 = vunpack.c.l.b16 %v3881
        %v4879 = vunpack.c.h.b16 %v3881
        %v4880 = vunpack.c.l.b16 %v3882
        %v4881 = vunpack.c.h.b16 %v3882
        %v4882 = vunpack.c.l.b16 %v3883
        %v4883 = vunpack.c.h.b16 %v3883
        %v4884 = vunpack.c.l.b16 %v3884
        %v4885 = vunpack.c.h.b16 %v3884
        %v4886 = vunpack.c.l.b16 %v3885
        %v4887 = vunpack.c.h.b16 %v3885
        %v4888 = vunpack.c.l.b16 %v3886
        %v4889 = vunpack.c.h.b16 %v3886
        %v4890 = vunpack.c.l.b16 %v3887
        %v4891 = vunpack.c.h.b16 %v3887
        %v4892 = vunpack.c.l.b16 %v3888
        %v4893 = vunpack.c.h.b16 %v3888
        %v4894 = vunpack.c.l.b16 %v3889
        %v4895 = vunpack.c.h.b16 %v3889
        %v4896 = vunpack.c.l.b16 %v3890
        %v4897 = vunpack.c.h.b16 %v3890
        %v4898 = vunpack.c.l.b16 %v3891
        %v4899 = vunpack.c.h.b16 %v3891
        %v4900 = vunpack.c.l.b16 %v3892
        %v4901 = vunpack.c.h.b16 %v3892
        %v4902 = vunpack.c.l.b16 %v3893
        %v4903 = vunpack.c.h.b16 %v3893
        %v4904 = vunpack.c.l.b16 %v3894
        %v4905 = vunpack.c.h.b16 %v3894
        %v4906 = vunpack.c.l.b16 %v3895
        %v4907 = vunpack.c.h.b16 %v3895
        %v4908 = vunpack.c.l.b16 %v3896
        %v4909 = vunpack.c.h.b16 %v3896
        %v4910 = vunpack.c.l.b16 %v3897
        %v4911 = vunpack.c.h.b16 %v3897
        %v4912 = vunpack.c.l.b16 %v3898
        %v4913 = vunpack.c.h.b16 %v3898
        %v4914 = vunpack.c.l.b16 %v3899
        %v4915 = vunpack.c.h.b16 %v3899
        %v4916 = vunpack.c.l.b16 %v3900
        %v4917 = vunpack.c.h.b16 %v3900
        %v4918 = vunpack.c.l.b16 %v3901
        %v4919 = vunpack.c.h.b16 %v3901
        %v4920 = vunpack.c.l.b16 %v3902
        %v4921 = vunpack.c.h.b16 %v3902
        %v4922 = vunpack.c.l.b16 %v3903
        %v4923 = vunpack.c.h.b16 %v3903
        %v4924 = vunpack.c.l.b16 %v3904
        %v4925 = vunpack.c.h.b16 %v3904
        %v4926 = vunpack.c.l.b16 %v3905
        %v4927 = vunpack.c.h.b16 %v3905
        %v4928 = vunpack.c.l.b16 %v3906
        %v4929 = vunpack.c.h.b16 %v3906
        %v4930 = vunpack.c.l.b16 %v3907
        %v4931 = vunpack.c.h.b16 %v3907
        %v4932 = vunpack.c.l.b16 %v3908
        %v4933 = vunpack.c.h.b16 %v3908
        %v4934 = vunpack.c.l.b16 %v3909
        %v4935 = vunpack.c.h.b16 %v3909
        %v4936 = vunpack.c.l.b16 %v3910
        %v4937 = vunpack.c.h.b16 %v3910
        %v4938 = vunpack.c.l.b16 %v3911
        %v4939 = vunpack.c.h.b16 %v3911
        %v4940 = vunpack.c.l.b16 %v3912
        %v4941 = vunpack.c.h.b16 %v3912
        %v4942 = vunpack.c.l.b16 %v3913
        %v4943 = vunpack.c.h.b16 %v3913
        %v4944 = vunpack.c.l.b16 %v3914
        %v4945 = vunpack.c.h.b16 %v3914
        %v4946 = vunpack.c.l.b16 %v3915
        %v4947 = vunpack.c.h.b16 %v3915
        %v4948 = vunpack.c.l.b16 %v3916
        %v4949 = vunpack.c.h.b16 %v3916
        %v4950 = vunpack.c.l.b16 %v3917
        %v4951 = vunpack.c.h.b16 %v3917
        %v4952 = vunpack.c.l.b16 %v3918
        %v4953 = vunpack.c.h.b16 %v3918
        %v4954 = vunpack.c.l.b16 %v3919
        %v4955 = vunpack.c.h.b16 %v3919
        %v4956 = vunpack.c.l.b16 %v3920
        %v4957 = vunpack.c.h.b16 %v3920
        %v4958 = vunpack.c.l.b16 %v3921
        %v4959 = vunpack.c.h.b16 %v3921
        %v4960 = vunpack.c.l.b16 %v3922
        %v4961 = vunpack.c.h.b16 %v3922
        %v4962 = vunpack.c.l.b16 %v3923
        %v4963 = vunpack.c.h.b16 %v3923
        %v4964 = vunpack.c.l.b16 %v3924
        %v4965 = vunpack.c.h.b16 %v3924
        %v4966 = vunpack.c.l.b16 %v3925
        %v4967 = vunpack.c.h.b16 %v3925
        %v4968 = vunpack.c.l.b16 %v3926
        %v4969 = vunpack.c.h.b16 %v3926
        %v4970 = vunpack.c.l.b16 %v3927
        %v4971 = vunpack.c.h.b16 %v3927
        %v4972 = vunpack.c.l.b16 %v3928
        %v4973 = vunpack.c.h.b16 %v3928
        %v4974 = vunpack.c.l.b16 %v3929
        %v4975 = vunpack.c.h.b16 %v3929
        %v4976 = vunpack.c.l.b16 %v3930
        %v4977 = vunpack.c.h.b16 %v3930
        %v4978 = vunpack.c.l.b16 %v3931
        %v4979 = vunpack.c.h.b16 %v3931
        %v4980 = vunpack.c.l.b16 %v3932
        %v4981 = vunpack.c.h.b16 %v3932
        %v4982 = vunpack.c.l.b16 %v3933
        %v4983 = vunpack.c.h.b16 %v3933
        %v4984 = vunpack.c.l.b16 %v3934
        %v4985 = vunpack.c.h.b16 %v3934
        %v4986 = vunpack.c.l.b16 %v3935
        %v4987 = vunpack.c.h.b16 %v3935
        %v4988 = vunpack.c.l.b16 %v3936
        %v4989 = vunpack.c.h.b16 %v3936
        %v4990 = vunpack.c.l.b16 %v3937
        %v4991 = vunpack.c.h.b16 %v3937
        %v4992 = vunpack.c.l.b16 %v3938
        %v4993 = vunpack.c.h.b16 %v3938
        %v4994 = vunpack.c.l.b16 %v3939
        %v4995 = vunpack.c.h.b16 %v3939
        %v4996 = vunpack.c.l.b16 %v3940
        %v4997 = vunpack.c.h.b16 %v3940
        %v4998 = vunpack.c.l.b16 %v3941
        %v4999 = vunpack.c.h.b16 %v3941
        %v5000 = vunpack.c.l.b16 %v3942
        %v5001 = vunpack.c.h.b16 %v3942
        %v5002 = vunpack.c.l.b16 %v3943
        %v5003 = vunpack.c.h.b16 %v3943
        %v5004 = vunpack.c.l.b16 %v3944
        %v5005 = vunpack.c.h.b16 %v3944
        %v5006 = vunpack.c.l.b16 %v3945
        %v5007 = vunpack.c.h.b16 %v3945
        %v5008 = vunpack.c.l.b16 %v3946
        %v5009 = vunpack.c.h.b16 %v3946
        %v5010 = vunpack.c.l.b16 %v3947
        %v5011 = vunpack.c.h.b16 %v3947
        %v5012 = vunpack.c.l.b16 %v3948
        %v5013 = vunpack.c.h.b16 %v3948
        %v5014 = vunpack.c.l.b16 %v3949
        %v5015 = vunpack.c.h.b16 %v3949
        %v5016 = vunpack.c.l.b16 %v3950
        %v5017 = vunpack.c.h.b16 %v3950
        %v5018 = vunpack.c.l.b16 %v3951
        %v5019 = vunpack.c.h.b16 %v3951
        %v5020 = vunpack.c.l.b16 %v3952
        %v5021 = vunpack.c.h.b16 %v3952
        %v5022 = vunpack.c.l.b16 %v3953
        %v5023 = vunpack.c.h.b16 %v3953
        %v5024 = vunpack.c.l.b16 %v3954
        %v5025 = vunpack.c.h.b16 %v3954
        %v5026 = vunpack.c.l.b16 %v3955
        %v5027 = vunpack.c.h.b16 %v3955
        %v5028 = vunpack.c.l.b16 %v3956
        %v5029 = vunpack.c.h.b16 %v3956
        %v5030 = vunpack.c.l.b16 %v3957
        %v5031 = vunpack.c.h.b16 %v3957
        %v5032 = vunpack.c.l.b16 %v3958
        %v5033 = vunpack.c.h.b16 %v3958
        %v5034 = vunpack.c.l.b16 %v3959
        %v5035 = vunpack.c.h.b16 %v3959
        %v5036 = vunpack.c.l.b16 %v3960
        %v5037 = vunpack.c.h.b16 %v3960
        %v5038 = vunpack.c.l.b16 %v3961
        %v5039 = vunpack.c.h.b16 %v3961
        %v5040 = vunpack.c.l.b16 %v3962
        %v5041 = vunpack.c.h.b16 %v3962
        %v5042 = vunpack.c.l.b16 %v3963
        %v5043 = vunpack.c.h.b16 %v3963
        %v5044 = vunpack.c.l.b16 %v3964
        %v5045 = vunpack.c.h.b16 %v3964
        %v5046 = vunpack.c.l.b16 %v3965
        %v5047 = vunpack.c.h.b16 %v3965
        %v5048 = vunpack.c.l.b16 %v3966
        %v5049 = vunpack.c.h.b16 %v3966
        %v5050 = vunpack.c.l.b16 %v3967
        %v5051 = vunpack.c.h.b16 %v3967
        %v5052 = vunpack.c.l.b16 %v3968
        %v5053 = vunpack.c.h.b16 %v3968
        %v5054 = vunpack.c.l.b16 %v3969
        %v5055 = vunpack.c.h.b16 %v3969
        %v5056 = vunpack.c.l.b16 %v3970
        %v5057 = vunpack.c.h.b16 %v3970
        %v5058 = vunpack.c.l.b16 %v3971
        %v5059 = vunpack.c.h.b16 %v3971
        %v5060 = vunpack.c.l.b16 %v3972
        %v5061 = vunpack.c.h.b16 %v3972
        %v5062 = vunpack.c.l.b16 %v3973
        %v5063 = vunpack.c.h.b16 %v3973
        %v5064 = vunpack.c.l.b16 %v3974
        %v5065 = vunpack.c.h.b16 %v3974
        %v5066 = vunpack.c.l.b16 %v3975
        %v5067 = vunpack.c.h.b16 %v3975
        %v5068 = vunpack.c.l.b16 %v3976
        %v5069 = vunpack.c.h.b16 %v3976
        %v5070 = vunpack.c.l.b16 %v3977
        %v5071 = vunpack.c.h.b16 %v3977
        %v5072 = vunpack.c.l.b16 %v3978
        %v5073 = vunpack.c.h.b16 %v3978
        %v5074 = vunpack.c.l.b16 %v3979
        %v5075 = vunpack.c.h.b16 %v3979
        %v5076 = vunpack.c.l.b16 %v3980
        %v5077 = vunpack.c.h.b16 %v3980
        %v5078 = vunpack.c.l.b16 %v3981
        %v5079 = vunpack.c.h.b16 %v3981
        %v5080 = vunpack.c.l.b16 %v3982
        %v5081 = vunpack.c.h.b16 %v3982
        %v5082 = vunpack.c.l.b16 %v3983
        %v5083 = vunpack.c.h.b16 %v3983
        %v5084 = vunpack.c.l.b16 %v3984
        %v5085 = vunpack.c.h.b16 %v3984
        %v5086 = vunpack.c.l.b16 %v3985
        %v5087 = vunpack.c.h.b16 %v3985
        %v5088 = vunpack.c.l.b16 %v3986
        %v5089 = vunpack.c.h.b16 %v3986
        %v5090 = vunpack.c.l.b16 %v3987
        %v5091 = vunpack.c.h.b16 %v3987
        %v5092 = vunpack.c.l.b16 %v3988
        %v5093 = vunpack.c.h.b16 %v3988
        %v5094 = vunpack.c.l.b16 %v3989
        %v5095 = vunpack.c.h.b16 %v3989
        %v5096 = vunpack.c.l.b16 %v3990
        %v5097 = vunpack.c.h.b16 %v3990
        %v5098 = vunpack.c.l.b16 %v3991
        %v5099 = vunpack.c.h.b16 %v3991
        %v5100 = vunpack.c.l.b16 %v3992
        %v5101 = vunpack.c.h.b16 %v3992
        %v5102 = vunpack.c.l.b16 %v3993
        %v5103 = vunpack.c.h.b16 %v3993
        %v5104 = vunpack.c.l.b16 %v3994
        %v5105 = vunpack.c.h.b16 %v3994
        %v5106 = vunpack.c.l.b16 %v3995
        %v5107 = vunpack.c.h.b16 %v3995
        %v5108 = vunpack.c.l.b16 %v3996
        %v5109 = vunpack.c.h.b16 %v3996
        %v5110 = vunpack.c.l.b16 %v3997
        %v5111 = vunpack.c.h.b16 %v3997
        %v5112 = vunpack.c.l.b16 %v3998
        %v5113 = vunpack.c.h.b16 %v3998
        %v5114 = vunpack.c.l.b16 %v3999
        %v5115 = vunpack.c.h.b16 %v3999
        %v5116 = vunpack.c.l.b16 %v4000
        %v5117 = vunpack.c.h.b16 %v4000
        %v5118 = vunpack.c.l.b16 %v4001
        %v5119 = vunpack.c.h.b16 %v4001
        %v5120 = vunpack.c.l.b16 %v4002
        %v5121 = vunpack.c.h.b16 %v4002
        %v5122 = vunpack.c.l.b16 %v4003
        %v5123 = vunpack.c.h.b16 %v4003
        %v5124 = vunpack.c.l.b16 %v4004
        %v5125 = vunpack.c.h.b16 %v4004
        %v5126 = vunpack.c.l.b16 %v4005
        %v5127 = vunpack.c.h.b16 %v4005
        %v5128 = vunpack.c.l.b16 %v4006
        %v5129 = vunpack.c.h.b16 %v4006
        %v5130 = vunpack.c.l.b16 %v4007
        %v5131 = vunpack.c.h.b16 %v4007
        %v5132 = vunpack.c.l.b16 %v4008
        %v5133 = vunpack.c.h.b16 %v4008
        %v5134 = vunpack.c.l.b16 %v4009
        %v5135 = vunpack.c.h.b16 %v4009
        %v5136 = vunpack.c.l.b16 %v4010
        %v5137 = vunpack.c.h.b16 %v4010
        %v5138 = vunpack.c.l.b16 %v4011
        %v5139 = vunpack.c.h.b16 %v4011
        %v5140 = vunpack.c.l.b16 %v4012
        %v5141 = vunpack.c.h.b16 %v4012
        %v5142 = vunpack.c.l.b16 %v4013
        %v5143 = vunpack.c.h.b16 %v4013
        %v5144 = vunpack.c.l.b16 %v4014
        %v5145 = vunpack.c.h.b16 %v4014
        %v5146 = vunpack.c.l.b16 %v4015
        %v5147 = vunpack.c.h.b16 %v4015
        %v5148 = vunpack.c.l.b16 %v4016
        %v5149 = vunpack.c.h.b16 %v4016
        %v5150 = vunpack.c.l.b16 %v4017
        %v5151 = vunpack.c.h.b16 %v4017
        %v5152 = vunpack.c.l.b16 %v4018
        %v5153 = vunpack.c.h.b16 %v4018
        %v5154 = vunpack.c.l.b16 %v4019
        %v5155 = vunpack.c.h.b16 %v4019
        %v5156 = vunpack.c.l.b16 %v4020
        %v5157 = vunpack.c.h.b16 %v4020
        %v5158 = vunpack.c.l.b16 %v4021
        %v5159 = vunpack.c.h.b16 %v4021
        %v5160 = vunpack.c.l.b16 %v4022
        %v5161 = vunpack.c.h.b16 %v4022
        %v5162 = vunpack.c.l.b16 %v4023
        %v5163 = vunpack.c.h.b16 %v4023
        %v5164 = vunpack.c.l.b16 %v4024
        %v5165 = vunpack.c.h.b16 %v4024
        %v5166 = vunpack.c.l.b16 %v4025
        %v5167 = vunpack.c.h.b16 %v4025
        %v5168 = vunpack.c.l.b16 %v4026
        %v5169 = vunpack.c.h.b16 %v4026
        %v5170 = vunpack.c.l.b16 %v4027
        %v5171 = vunpack.c.h.b16 %v4027
        %v5172 = vunpack.c.l.b16 %v4028
        %v5173 = vunpack.c.h.b16 %v4028
        %v5174 = vunpack.c.l.b16 %v4029
        %v5175 = vunpack.c.h.b16 %v4029
        %v5176 = vunpack.c.l.b16 %v4030
        %v5177 = vunpack.c.h.b16 %v4030
        %v5178 = vunpack.c.l.b16 %v4031
        %v5179 = vunpack.c.h.b16 %v4031
        %v5180 = vunpack.c.l.b16 %v4032
        %v5181 = vunpack.c.h.b16 %v4032
        %v5182 = vunpack.c.l.b16 %v4033
        %v5183 = vunpack.c.h.b16 %v4033
        %v5184 = vunpack.c.l.b16 %v4034
        %v5185 = vunpack.c.h.b16 %v4034
        %v5186 = vunpack.c.l.b16 %v4035
        %v5187 = vunpack.c.h.b16 %v4035
        %v5188 = vunpack.c.l.b16 %v4036
        %v5189 = vunpack.c.h.b16 %v4036
        %v5190 = vunpack.c.l.b16 %v4037
        %v5191 = vunpack.c.h.b16 %v4037
        %v5192 = vunpack.c.l.b16 %v4038
        %v5193 = vunpack.c.h.b16 %v4038
        %v5194 = vunpack.c.l.b16 %v4039
        %v5195 = vunpack.c.h.b16 %v4039
        %v5196 = vunpack.c.l.b16 %v4040
        %v5197 = vunpack.c.h.b16 %v4040
        %v5198 = vunpack.c.l.b16 %v4041
        %v5199 = vunpack.c.h.b16 %v4041
        %v5200 = vunpack.c.l.b16 %v4042
        %v5201 = vunpack.c.h.b16 %v4042
        %v5202 = vunpack.c.l.b16 %v4043
        %v5203 = vunpack.c.h.b16 %v4043
        %v5204 = vunpack.c.l.b16 %v4044
        %v5205 = vunpack.c.h.b16 %v4044
        %v5206 = vunpack.c.l.b16 %v4045
        %v5207 = vunpack.c.h.b16 %v4045
        %v5208 = vunpack.c.l.b16 %v4046
        %v5209 = vunpack.c.h.b16 %v4046
        %v5210 = vunpack.c.l.b16 %v4047
        %v5211 = vunpack.c.h.b16 %v4047
        %v5212 = vunpack.c.l.b16 %v4048
        %v5213 = vunpack.c.h.b16 %v4048
        %v5214 = vunpack.c.l.b16 %v4049
        %v5215 = vunpack.c.h.b16 %v4049
        %v5216 = vunpack.c.l.b16 %v4050
        %v5217 = vunpack.c.h.b16 %v4050
        %v5218 = vunpack.c.l.b16 %v4051
        %v5219 = vunpack.c.h.b16 %v4051
        %v5220 = vunpack.c.l.b16 %v4052
        %v5221 = vunpack.c.h.b16 %v4052
        %v5222 = vunpack.c.l.b16 %v4053
        %v5223 = vunpack.c.h.b16 %v4053
        %v5224 = vunpack.c.l.b16 %v4054
        %v5225 = vunpack.c.h.b16 %v4054
        %v5226 = vunpack.c.l.b16 %v4055
        %v5227 = vunpack.c.h.b16 %v4055
        %v5228 = vunpack.c.l.b16 %v4056
        %v5229 = vunpack.c.h.b16 %v4056
        %v5230 = vunpack.c.l.b16 %v4057
        %v5231 = vunpack.c.h.b16 %v4057
        %v5232 = vunpack.c.l.b16 %v4058
        %v5233 = vunpack.c.h.b16 %v4058
        %v5234 = vunpack.c.l.b16 %v4059
        %v5235 = vunpack.c.h.b16 %v4059
        %v5236 = vunpack.c.l.b16 %v4060
        %v5237 = vunpack.c.h.b16 %v4060
        %v5238 = vunpack.c.l.b16 %v4061
        %v5239 = vunpack.c.h.b16 %v4061
        %v5240 = vunpack.c.l.b16 %v4062
        %v5241 = vunpack.c.h.b16 %v4062
        %v5242 = vunpack.c.l.b16 %v4063
        %v5243 = vunpack.c.h.b16 %v4063
        %v5244 = vunpack.c.l.b16 %v4064
        %v5245 = vunpack.c.h.b16 %v4064
        %v5246 = vunpack.c.l.b16 %v4065
        %v5247 = vunpack.c.h.b16 %v4065
        %v5248 = vunpack.c.l.b16 %v4066
        %v5249 = vunpack.c.h.b16 %v4066
        %v5250 = vunpack.c.l.b16 %v4067
        %v5251 = vunpack.c.h.b16 %v4067
        %v5252 = vunpack.c.l.b16 %v4068
        %v5253 = vunpack.c.h.b16 %v4068
        %v5254 = vunpack.c.l.b16 %v4069
        %v5255 = vunpack.c.h.b16 %v4069
        %v5256 = vunpack.c.l.b16 %v4070
        %v5257 = vunpack.c.h.b16 %v4070
        %v5258 = vunpack.c.l.b16 %v4071
        %v5259 = vunpack.c.h.b16 %v4071
        %v5260 = vunpack.c.l.b16 %v4072
        %v5261 = vunpack.c.h.b16 %v4072
        %v5262 = vunpack.c.l.b16 %v4073
        %v5263 = vunpack.c.h.b16 %v4073
        %v5264 = vunpack.c.l.b16 %v4074
        %v5265 = vunpack.c.h.b16 %v4074
        %v5266 = vunpack.c.l.b16 %v4075
        %v5267 = vunpack.c.h.b16 %v4075
        %v5268 = vunpack.c.l.b16 %v4076
        %v5269 = vunpack.c.h.b16 %v4076
        %v5270 = vunpack.c.l.b16 %v4077
        %v5271 = vunpack.c.h.b16 %v4077
        %v5272 = vunpack.c.l.b16 %v4078
        %v5273 = vunpack.c.h.b16 %v4078
        %v5274 = vunpack.c.l.b16 %v4079
        %v5275 = vunpack.c.h.b16 %v4079
        %v5276 = vunpack.c.l.b16 %v4080
        %v5277 = vunpack.c.h.b16 %v4080
        %v5278 = vunpack.c.l.b16 %v4081
        %v5279 = vunpack.c.h.b16 %v4081
        %v5280 = vunpack.c.l.b16 %v4082
        %v5281 = vunpack.c.h.b16 %v4082
        %v5282 = vunpack.c.l.b16 %v4083
        %v5283 = vunpack.c.h.b16 %v4083
        %v5284 = vunpack.c.l.b16 %v4084
        %v5285 = vunpack.c.h.b16 %v4084
        %v5286 = vunpack.c.l.b16 %v4085
        %v5287 = vunpack.c.h.b16 %v4085
        %v5288 = vunpack.c.l.b16 %v4086
        %v5289 = vunpack.c.h.b16 %v4086
        %v5290 = vunpack.c.l.b16 %v4087
        %v5291 = vunpack.c.h.b16 %v4087
        %v5292 = vunpack.c.l.b16 %v4088
        %v5293 = vunpack.c.h.b16 %v4088
        %v5294 = vunpack.c.l.b16 %v4089
        %v5295 = vunpack.c.h.b16 %v4089
        %v5296 = vunpack.c.l.b16 %v4090
        %v5297 = vunpack.c.h.b16 %v4090
        %v5298 = vunpack.c.l.b16 %v4091
        %v5299 = vunpack.c.h.b16 %v4091
        %v5300 = vunpack.c.l.b16 %v4092
        %v5301 = vunpack.c.h.b16 %v4092
        %v5302 = vunpack.c.l.b16 %v4093
        %v5303 = vunpack.c.h.b16 %v4093
        %v5304 = vunpack.c.l.b16 %v4094
        %v5305 = vunpack.c.h.b16 %v4094
        %v5306 = vunpack.c.l.b16 %v4095
        %v5307 = vunpack.c.h.b16 %v4095
        %v5308 = vunpack.c.l.b16 %v4096
        %v5309 = vunpack.c.h.b16 %v4096
        %v5310 = vunpack.c.l.b16 %v4097
        %v5311 = vunpack.c.h.b16 %v4097
        %v5312 = vunpack.c.l.b16 %v4098
        %v5313 = vunpack.c.h.b16 %v4098
        %v5314 = vunpack.c.l.b16 %v4099
        %v5315 = vunpack.c.h.b16 %v4099
        %v5316 = vunpack.c.l.b16 %v4100
        %v5317 = vunpack.c.h.b16 %v4100
        %v5318 = vunpack.c.l.b16 %v4101
        %v5319 = vunpack.c.h.b16 %v4101
        %v5320 = vunpack.c.l.b16 %v4102
        %v5321 = vunpack.c.h.b16 %v4102
        %v5322 = vunpack.c.l.b16 %v4103
        %v5323 = vunpack.c.h.b16 %v4103
        %v5324 = vunpack.c.l.b16 %v4104
        %v5325 = vunpack.c.h.b16 %v4104
        %v5326 = vunpack.c.l.b16 %v4105
        %v5327 = vunpack.c.h.b16 %v4105
        %v5328 = vunpack.c.l.b16 %v4106
        %v5329 = vunpack.c.h.b16 %v4106
        %v5330 = vunpack.c.l.b16 %v4107
        %v5331 = vunpack.c.h.b16 %v4107
        %v5332 = vunpack.c.l.b16 %v4108
        %v5333 = vunpack.c.h.b16 %v4108
        %v5334 = vunpack.c.l.b16 %v4109
        %v5335 = vunpack.c.h.b16 %v4109
        %v5336 = vunpack.c.l.b16 %v4110
        %v5337 = vunpack.c.h.b16 %v4110
        %v5338 = vunpack.c.l.b16 %v4111
        %v5339 = vunpack.c.h.b16 %v4111
        %v5340 = vunpack.c.l.b16 %v4112
        %v5341 = vunpack.c.h.b16 %v4112
        %v5342 = vunpack.c.l.b16 %v4113
        %v5343 = vunpack.c.h.b16 %v4113
        %v5344 = vunpack.c.l.b16 %v4114
        %v5345 = vunpack.c.h.b16 %v4114
        %v5346 = vunpack.c.l.b16 %v4115
        %v5347 = vunpack.c.h.b16 %v4115
        %v5348 = vunpack.c.l.b16 %v4116
        %v5349 = vunpack.c.h.b16 %v4116
        %v5350 = vunpack.c.l.b16 %v4117
        %v5351 = vunpack.c.h.b16 %v4117
        %v5352 = vunpack.c.l.b16 %v4118
        %v5353 = vunpack.c.h.b16 %v4118
        %v5354 = vunpack.c.l.b16 %v4119
        %v5355 = vunpack.c.h.b16 %v4119
        %v5356 = vunpack.c.l.b16 %v4120
        %v5357 = vunpack.c.h.b16 %v4120
        %v5358 = vunpack.c.l.b16 %v4121
        %v5359 = vunpack.c.h.b16 %v4121
        %v5360 = vunpack.c.l.b16 %v4122
        %v5361 = vunpack.c.h.b16 %v4122
        %v5362 = vunpack.c.l.b16 %v4123
        %v5363 = vunpack.c.h.b16 %v4123
        %v5364 = vunpack.c.l.b16 %v4124
        %v5365 = vunpack.c.h.b16 %v4124
        %v5366 = vunpack.c.l.b16 %v4125
        %v5367 = vunpack.c.h.b16 %v4125
        %v5368 = vunpack.c.l.b16 %v4126
        %v5369 = vunpack.c.h.b16 %v4126
        %v5370 = vunpack.c.l.b16 %v4127
        %v5371 = vunpack.c.h.b16 %v4127
        %v5372 = vunpack.c.l.b16 %v4128
        %v5373 = vunpack.c.h.b16 %v4128
        %v5374 = vunpack.c.l.b16 %v4129
        %v5375 = vunpack.c.h.b16 %v4129
        %v5376 = vunpack.c.l.b16 %v4130
        %v5377 = vunpack.c.h.b16 %v4130
        %v5378 = vunpack.c.l.b16 %v4131
        %v5379 = vunpack.c.h.b16 %v4131
        %v5380 = vunpack.c.l.b16 %v4132
        %v5381 = vunpack.c.h.b16 %v4132
        %v5382 = vunpack.c.l.b16 %v4133
        %v5383 = vunpack.c.h.b16 %v4133
        %v5384 = vunpack.c.l.b16 %v4134
        %v5385 = vunpack.c.h.b16 %v4134
        %v5386 = vunpack.c.l.b16 %v4135
        %v5387 = vunpack.c.h.b16 %v4135
        %v5388 = vunpack.c.l.b16 %v4136
        %v5389 = vunpack.c.h.b16 %v4136
        %v5390 = vunpack.c.l.b16 %v4137
        %v5391 = vunpack.c.h.b16 %v4137
        %v5392 = vunpack.c.l.b16 %v4138
        %v5393 = vunpack.c.h.b16 %v4138
        %v5394 = vunpack.c.l.b16 %v4139
        %v5395 = vunpack.c.h.b16 %v4139
        %v5396 = vunpack.c.l.b16 %v4140
        %v5397 = vunpack.c.h.b16 %v4140
        %v5398 = vunpack.c.l.b16 %v4141
        %v5399 = vunpack.c.h.b16 %v4141
        %v5400 = vunpack.c.l.b16 %v4142
        %v5401 = vunpack.c.h.b16 %v4142
        %v5402 = vunpack.c.l.b16 %v4143
        %v5403 = vunpack.c.h.b16 %v4143
        %v5404 = vunpack.c.l.b16 %v4144
        %v5405 = vunpack.c.h.b16 %v4144
        %v5406 = vunpack.c.l.b16 %v4145
        %v5407 = vunpack.c.h.b16 %v4145
        %v5408 = vunpack.c.l.b16 %v4146
        %v5409 = vunpack.c.h.b16 %v4146
        %v5410 = vunpack.c.l.b16 %v4147
        %v5411 = vunpack.c.h.b16 %v4147
        %v5412 = vunpack.c.l.b16 %v4148
        %v5413 = vunpack.c.h.b16 %v4148
        %v5414 = vunpack.c.l.b16 %v4149
        %v5415 = vunpack.c.h.b16 %v4149
        %v5416 = vunpack.c.l.b16 %v4150
        %v5417 = vunpack.c.h.b16 %v4150
        %v5418 = vunpack.c.l.b16 %v4151
        %v5419 = vunpack.c.h.b16 %v4151
        %v5420 = vunpack.c.l.b16 %v4152
        %v5421 = vunpack.c.h.b16 %v4152
        %v5422 = vunpack.c.l.b16 %v4153
        %v5423 = vunpack.c.h.b16 %v4153
        %v5424 = vunpack.c.l.b16 %v4154
        %v5425 = vunpack.c.h.b16 %v4154
        %v5426 = vunpack.c.l.b16 %v4155
        %v5427 = vunpack.c.h.b16 %v4155
        %v5428 = vunpack.c.l.b16 %v4156
        %v5429 = vunpack.c.h.b16 %v4156
        %v5430 = vunpack.c.l.b16 %v4157
        %v5431 = vunpack.c.h.b16 %v4157
        %v5432 = vunpack.c.l.b16 %v4158
        %v5433 = vunpack.c.h.b16 %v4158
        %v5434 = vunpack.c.l.b16 %v4159
        %v5435 = vunpack.c.h.b16 %v4159
        %v5436 = vunpack.c.l.b16 %v4160
        %v5437 = vunpack.c.h.b16 %v4160
        %v5438 = vunpack.c.l.b16 %v4161
        %v5439 = vunpack.c.h.b16 %v4161
        %v5440 = vunpack.c.l.b16 %v4162
        %v5441 = vunpack.c.h.b16 %v4162
        %v5442 = vunpack.c.l.b16 %v4163
        %v5443 = vunpack.c.h.b16 %v4163
        %v5444 = vunpack.c.l.b16 %v4164
        %v5445 = vunpack.c.h.b16 %v4164
        %v5446 = vunpack.c.l.b16 %v4165
        %v5447 = vunpack.c.h.b16 %v4165
        %v5448 = vunpack.c.l.b16 %v4166
        %v5449 = vunpack.c.h.b16 %v4166
        %v5450 = vunpack.c.l.b16 %v4167
        %v5451 = vunpack.c.h.b16 %v4167
        %v5452 = vunpack.c.l.b16 %v4168
        %v5453 = vunpack.c.h.b16 %v4168
        %v5454 = vunpack.c.l.b16 %v4169
        %v5455 = vunpack.c.h.b16 %v4169
        %v5456 = vunpack.c.l.b16 %v4170
        %v5457 = vunpack.c.h.b16 %v4170
        %v5458 = vunpack.c.l.b16 %v4171
        %v5459 = vunpack.c.h.b16 %v4171
        %v5460 = vunpack.c.l.b16 %v4172
        %v5461 = vunpack.c.h.b16 %v4172
        %v5462 = vunpack.c.l.b16 %v4173
        %v5463 = vunpack.c.h.b16 %v4173
        %v5464 = vunpack.c.l.b16 %v4174
        %v5465 = vunpack.c.h.b16 %v4174
        %v5466 = vunpack.c.l.b16 %v4175
        %v5467 = vunpack.c.h.b16 %v4175
        %v5468 = vunpack.c.l.b16 %v4176
        %v5469 = vunpack.c.h.b16 %v4176
        %v5470 = vunpack.c.l.b16 %v4177
        %v5471 = vunpack.c.h.b16 %v4177
        %v5472 = vunpack.c.l.b16 %v4178
        %v5473 = vunpack.c.h.b16 %v4178
        %v5474 = vunpack.c.l.b16 %v4179
        %v5475 = vunpack.c.h.b16 %v4179
        %v5476 = vunpack.c.l.b16 %v4180
        %v5477 = vunpack.c.h.b16 %v4180
        %v5478 = vunpack.c.l.b16 %v4181
        %v5479 = vunpack.c.h.b16 %v4181
        %v5480 = vunpack.c.l.b16 %v4182
        %v5481 = vunpack.c.h.b16 %v4182
        %v5482 = vunpack.c.l.b16 %v4183
        %v5483 = vunpack.c.h.b16 %v4183
        %v5484 = vunpack.c.l.b16 %v4184
        %v5485 = vunpack.c.h.b16 %v4184
        %v5486 = vunpack.c.l.b16 %v4185
        %v5487 = vunpack.c.h.b16 %v4185
        %v5488 = vunpack.c.l.b16 %v4186
        %v5489 = vunpack.c.h.b16 %v4186
        %v5490 = vunpack.c.l.b16 %v4187
        %v5491 = vunpack.c.h.b16 %v4187
        %v5492 = vunpack.c.l.b16 %v4188
        %v5493 = vunpack.c.h.b16 %v4188
        %v5494 = vunpack.c.l.b16 %v4189
        %v5495 = vunpack.c.h.b16 %v4189
        %v5496 = vunpack.c.l.b16 %v4190
        %v5497 = vunpack.c.h.b16 %v4190
        %v5498 = vunpack.c.l.b16 %v4191
        %v5499 = vunpack.c.h.b16 %v4191
        %v5500 = vunpack.c.l.b16 %v4192
        %v5501 = vunpack.c.h.b16 %v4192
        %v5502 = vunpack.c.l.b16 %v4193
        %v5503 = vunpack.c.h.b16 %v4193
        %v5504 = vunpack.c.l.b16 %v4194
        %v5505 = vunpack.c.h.b16 %v4194
        %v5506 = vunpack.c.l.b16 %v4195
        %v5507 = vunpack.c.h.b16 %v4195
        %v5508 = vunpack.c.l.b16 %v4196
        %v5509 = vunpack.c.h.b16 %v4196
        %v5510 = vunpack.c.l.b16 %v4197
        %v5511 = vunpack.c.h.b16 %v4197
        %v5512 = vunpack.c.l.b16 %v4198
        %v5513 = vunpack.c.h.b16 %v4198
        %v5514 = vunpack.c.l.b16 %v4199
        %v5515 = vunpack.c.h.b16 %v4199
        %v5516 = vunpack.c.l.b16 %v4200
        %v5517 = vunpack.c.h.b16 %v4200
        %v5518 = vunpack.c.l.b16 %v4201
        %v5519 = vunpack.c.h.b16 %v4201
        %v5520 = vunpack.c.l.b16 %v4202
        %v5521 = vunpack.c.h.b16 %v4202
        %v5522 = vunpack.c.l.b16 %v4203
        %v5523 = vunpack.c.h.b16 %v4203
        %v5524 = vunpack.c.l.b16 %v4204
        %v5525 = vunpack.c.h.b16 %v4204
        %v5526 = vunpack.c.l.b16 %v4205
        %v5527 = vunpack.c.h.b16 %v4205
        %v5528 = vunpack.c.l.b16 %v4206
        %v5529 = vunpack.c.h.b16 %v4206
        %v5530 = vunpack.c.l.b16 %v4207
        %v5531 = vunpack.c.h.b16 %v4207
        %v5532 = vunpack.c.l.b16 %v4208
        %v5533 = vunpack.c.h.b16 %v4208
        %v5534 = vunpack.c.l.b16 %v4209
        %v5535 = vunpack.c.h.b16 %v4209
        %v5536 = vunpack.c.l.b16 %v4210
        %v5537 = vunpack.c.h.b16 %v4210
        %v5538 = vunpack.c.l.b16 %v4211
        %v5539 = vunpack.c.h.b16 %v4211
        %v5540 = vunpack.c.l.b16 %v4212
        %v5541 = vunpack.c.h.b16 %v4212
        %v5542 = vunpack.c.l.b16 %v4213
        %v5543 = vunpack.c.h.b16 %v4213
        %v5544 = vunpack.c.l.b16 %v4214
        %v5545 = vunpack.c.h.b16 %v4214
        %v5546 = vunpack.c.l.b16 %v4215
        %v5547 = vunpack.c.h.b16 %v4215
        %v5548 = vunpack.c.l.b16 %v4216
        %v5549 = vunpack.c.h.b16 %v4216
        %v5550 = vunpack.c.l.b16 %v4217
        %v5551 = vunpack.c.h.b16 %v4217
        %v5552 = vunpack.c.l.b16 %v4218
        %v5553 = vunpack.c.h.b16 %v4218
        %v5554 = vunpack.c.l.b16 %v4219
        %v5555 = vunpack.c.h.b16 %v4219
        %v5556 = vunpack.c.l.b16 %v4220
        %v5557 = vunpack.c.h.b16 %v4220
        %v5558 = vunpack.c.l.b16 %v4221
        %v5559 = vunpack.c.h.b16 %v4221
        %v5560 = vunpack.c.l.b16 %v4222
        %v5561 = vunpack.c.h.b16 %v4222
        %v5562 = vunpack.c.l.b16 %v4223
        %v5563 = vunpack.c.h.b16 %v4223
        %v5564 = vunpack.c.l.b16 %v4224
        %v5565 = vunpack.c.h.b16 %v4224
        %v5566 = vunpack.c.l.b16 %v4225
        %v5567 = vunpack.c.h.b16 %v4225
        %v5568 = vunpack.c.l.b16 %v4226
        %v5569 = vunpack.c.h.b16 %v4226
        %v5570 = vunpack.c.l.b16 %v4227
        %v5571 = vunpack.c.h.b16 %v4227
        %v5572 = vpack.c.b16 %v4684, %v4676
        %v5573 = vpack.c.b16 %v4685, %v4677
        %v5574 = vpack.c.b16 %v4686, %v4678
        %v5575 = vpack.c.b16 %v4687, %v4679
        %v5576 = vpack.c.b16 %v4688, %v4680
        %v5577 = vpack.c.b16 %v4689, %v4681
        %v5578 = vpack.c.b16 %v4690, %v4682
        %v5579 = vpack.c.b16 %v4691, %v4683
        %v5580 = vpack.c.b16 %v4700, %v4692
        %v5581 = vpack.c.b16 %v4701, %v4693
        %v5582 = vpack.c.b16 %v4702, %v4694
        %v5583 = vpack.c.b16 %v4703, %v4695
        %v5584 = vpack.c.b16 %v4704, %v4696
        %v5585 = vpack.c.b16 %v4705, %v4697
        %v5586 = vpack.c.b16 %v4706, %v4698
        %v5587 = vpack.c.b16 %v4707, %v4699
        %v5588 = vpack.c.b16 %v4716, %v4708
        %v5589 = vpack.c.b16 %v4717, %v4709
        %v5590 = vpack.c.b16 %v4718, %v4710
        %v5591 = vpack.c.b16 %v4719, %v4711
        %v5592 = vpack.c.b16 %v4720, %v4712
        %v5593 = vpack.c.b16 %v4721, %v4713
        %v5594 = vpack.c.b16 %v4722, %v4714
        %v5595 = vpack.c.b16 %v4723, %v4715
        %v5596 = vpack.c.b16 %v4732, %v4724
        %v5597 = vpack.c.b16 %v4733, %v4725
        %v5598 = vpack.c.b16 %v4734, %v4726
        %v5599 = vpack.c.b16 %v4735, %v4727
        %v5600 = vpack.c.b16 %v4736, %v4728
        %v5601 = vpack.c.b16 %v4737, %v4729
        %v5602 = vpack.c.b16 %v4738, %v4730
        %v5603 = vpack.c.b16 %v4739, %v4731
        %v5604 = vpack.c.b16 %v4748, %v4740
        %v5605 = vpack.c.b16 %v4749, %v4741
        %v5606 = vpack.c.b16 %v4750, %v4742
        %v5607 = vpack.c.b16 %v4751, %v4743
        %v5608 = vpack.c.b16 %v4752, %v4744
        %v5609 = vpack.c.b16 %v4753, %v4745
        %v5610 = vpack.c.b16 %v4754, %v4746
        %v5611 = vpack.c.b16 %v4755, %v4747
        %v5612 = vpack.c.b16 %v4764, %v4756
        %v5613 = vpack.c.b16 %v4765, %v4757
        %v5614 = vpack.c.b16 %v4766, %v4758
        %v5615 = vpack.c.b16 %v4767, %v4759
        %v5616 = vpack.c.b16 %v4768, %v4760
        %v5617 = vpack.c.b16 %v4769, %v4761
        %v5618 = vpack.c.b16 %v4770, %v4762
        %v5619 = vpack.c.b16 %v4771, %v4763
        %v5620 = vpack.c.b16 %v4780, %v4772
        %v5621 = vpack.c.b16 %v4781, %v4773
        %v5622 = vpack.c.b16 %v4782, %v4774
        %v5623 = vpack.c.b16 %v4783, %v4775
        %v5624 = vpack.c.b16 %v4784, %v4776
        %v5625 = vpack.c.b16 %v4785, %v4777
        %v5626 = vpack.c.b16 %v4786, %v4778
        %v5627 = vpack.c.b16 %v4787, %v4779
        %v5628 = vpack.c.b16 %v4796, %v4788
        %v5629 = vpack.c.b16 %v4797, %v4789
        %v5630 = vpack.c.b16 %v4798, %v4790
        %v5631 = vpack.c.b16 %v4799, %v4791
        %v5632 = vpack.c.b16 %v4800, %v4792
        %v5633 = vpack.c.b16 %v4801, %v4793
        %v5634 = vpack.c.b16 %v4802, %v4794
        %v5635 = vpack.c.b16 %v4803, %v4795
        %v5636 = vpack.c.b16 %v4812, %v4804
        %v5637 = vpack.c.b16 %v4813, %v4805
        %v5638 = vpack.c.b16 %v4814, %v4806
        %v5639 = vpack.c.b16 %v4815, %v4807
        %v5640 = vpack.c.b16 %v4816, %v4808
        %v5641 = vpack.c.b16 %v4817, %v4809
        %v5642 = vpack.c.b16 %v4818, %v4810
        %v5643 = vpack.c.b16 %v4819, %v4811
        %v5644 = vpack.c.b16 %v4828, %v4820
        %v5645 = vpack.c.b16 %v4829, %v4821
        %v5646 = vpack.c.b16 %v4830, %v4822
        %v5647 = vpack.c.b16 %v4831, %v4823
        %v5648 = vpack.c.b16 %v4832, %v4824
        %v5649 = vpack.c.b16 %v4833, %v4825
        %v5650 = vpack.c.b16 %v4834, %v4826
        %v5651 = vpack.c.b16 %v4835, %v4827
        %v5652 = vpack.c.b16 %v4844, %v4836
        %v5653 = vpack.c.b16 %v4845, %v4837
        %v5654 = vpack.c.b16 %v4846, %v4838
        %v5655 = vpack.c.b16 %v4847, %v4839
        %v5656 = vpack.c.b16 %v4848, %v4840
        %v5657 = vpack.c.b16 %v4849, %v4841
        %v5658 = vpack.c.b16 %v4850, %v4842
        %v5659 = vpack.c.b16 %v4851, %v4843
        %v5660 = vpack.c.b16 %v4860, %v4852
        %v5661 = vpack.c.b16 %v4861, %v4853
        %v5662 = vpack.c.b16 %v4862, %v4854
        %v5663 = vpack.c.b16 %v4863, %v4855
        %v5664 = vpack.c.b16 %v4864, %v4856
        %v5665 = vpack.c.b16 %v4865, %v4857
        %v5666 = vpack.c.b16 %v4866, %v4858
        %v5667 = vpack.c.b16 %v4867, %v4859
        %v5668 = vpack.c.b16 %v4876, %v4868
        %v5669 = vpack.c.b16 %v4877, %v4869
        %v5670 = vpack.c.b16 %v4878, %v4870
        %v5671 = vpack.c.b16 %v4879, %v4871
        %v5672 = vpack.c.b16 %v4880, %v4872
        %v5673 = vpack.c.b16 %v4881, %v4873
        %v5674 = vpack.c.b16 %v4882, %v4874
        %v5675 = vpack.c.b16 %v4883, %v4875
        %v5676 = vpack.c.b16 %v4892, %v4884
        %v5677 = vpack.c.b16 %v4893, %v4885
        %v5678 = vpack.c.b16 %v4894, %v4886
        %v5679 = vpack.c.b16 %v4895, %v4887
        %v5680 = vpack.c.b16 %v4896, %v4888
        %v5681 = vpack.c.b16 %v4897, %v4889
        %v5682 = vpack.c.b16 %v4898, %v4890
        %v5683 = vpack.c.b16 %v4899, %v4891
        %v5684 = vpack.c.b16 %v4908, %v4900
        %v5685 = vpack.c.b16 %v4909, %v4901
        %v5686 = vpack.c.b16 %v4910, %v4902
        %v5687 = vpack.c.b16 %v4911, %v4903
        %v5688 = vpack.c.b16 %v4912, %v4904
        %v5689 = vpack.c.b16 %v4913, %v4905
        %v5690 = vpack.c.b16 %v4914, %v4906
        %v5691 = vpack.c.b16 %v4915, %v4907
        %v5692 = vpack.c.b16 %v4924, %v4916
        %v5693 = vpack.c.b16 %v4925, %v4917
        %v5694 = vpack.c.b16 %v4926, %v4918
        %v5695 = vpack.c.b16 %v4927, %v4919
        %v5696 = vpack.c.b16 %v4928, %v4920
        %v5697 = vpack.c.b16 %v4929, %v4921
        %v5698 = vpack.c.b16 %v4930, %v4922
        %v5699 = vpack.c.b16 %v4931, %v4923
        %v5700 = vpack.c.b16 %v4940, %v4932
        %v5701 = vpack.c.b16 %v4941, %v4933
        %v5702 = vpack.c.b16 %v4942, %v4934
        %v5703 = vpack.c.b16 %v4943, %v4935
        %v5704 = vpack.c.b16 %v4944, %v4936
        %v5705 = vpack.c.b16 %v4945, %v4937
        %v5706 = vpack.c.b16 %v4946, %v4938
        %v5707 = vpack.c.b16 %v4947, %v4939
        %v5708 = vpack.c.b16 %v4956, %v4948
        %v5709 = vpack.c.b16 %v4957, %v4949
        %v5710 = vpack.c.b16 %v4958, %v4950
        %v5711 = vpack.c.b16 %v4959, %v4951
        %v5712 = vpack.c.b16 %v4960, %v4952
        %v5713 = vpack.c.b16 %v4961, %v4953
        %v5714 = vpack.c.b16 %v4962, %v4954
        %v5715 = vpack.c.b16 %v4963, %v4955
        %v5716 = vpack.c.b16 %v4972, %v4964
        %v5717 = vpack.c.b16 %v4973, %v4965
        %v5718 = vpack.c.b16 %v4974, %v4966
        %v5719 = vpack.c.b16 %v4975, %v4967
        %v5720 = vpack.c.b16 %v4976, %v4968
        %v5721 = vpack.c.b16 %v4977, %v4969
        %v5722 = vpack.c.b16 %v4978, %v4970
        %v5723 = vpack.c.b16 %v4979, %v4971
        %v5724 = vpack.c.b16 %v4988, %v4980
        %v5725 = vpack.c.b16 %v4989, %v4981
        %v5726 = vpack.c.b16 %v4990, %v4982
        %v5727 = vpack.c.b16 %v4991, %v4983
        %v5728 = vpack.c.b16 %v4992, %v4984
        %v5729 = vpack.c.b16 %v4993, %v4985
        %v5730 = vpack.c.b16 %v4994, %v4986
        %v5731 = vpack.c.b16 %v4995, %v4987
        %v5732 = vpack.c.b16 %v5004, %v4996
        %v5733 = vpack.c.b16 %v5005, %v4997
        %v5734 = vpack.c.b16 %v5006, %v4998
        %v5735 = vpack.c.b16 %v5007, %v4999
        %v5736 = vpack.c.b16 %v5008, %v5000
        %v5737 = vpack.c.b16 %v5009, %v5001
        %v5738 = vpack.c.b16 %v5010, %v5002
        %v5739 = vpack.c.b16 %v5011, %v5003
        %v5740 = vpack.c.b16 %v5020, %v5012
        %v5741 = vpack.c.b16 %v5021, %v5013
        %v5742 = vpack.c.b16 %v5022, %v5014
        %v5743 = vpack.c.b16 %v5023, %v5015
        %v5744 = vpack.c.b16 %v5024, %v5016
        %v5745 = vpack.c.b16 %v5025, %v5017
        %v5746 = vpack.c.b16 %v5026, %v5018
        %v5747 = vpack.c.b16 %v5027, %v5019
        %v5748 = vpack.c.b16 %v5036, %v5028
        %v5749 = vpack.c.b16 %v5037, %v5029
        %v5750 = vpack.c.b16 %v5038, %v5030
        %v5751 = vpack.c.b16 %v5039, %v5031
        %v5752 = vpack.c.b16 %v5040, %v5032
        %v5753 = vpack.c.b16 %v5041, %v5033
        %v5754 = vpack.c.b16 %v5042, %v5034
        %v5755 = vpack.c.b16 %v5043, %v5035
        %v5756 = vpack.c.b16 %v5052, %v5044
        %v5757 = vpack.c.b16 %v5053, %v5045
        %v5758 = vpack.c.b16 %v5054, %v5046
        %v5759 = vpack.c.b16 %v5055, %v5047
        %v5760 = vpack.c.b16 %v5056, %v5048
        %v5761 = vpack.c.b16 %v5057, %v5049
        %v5762 = vpack.c.b16 %v5058, %v5050
        %v5763 = vpack.c.b16 %v5059, %v5051
        %v5764 = vpack.c.b16 %v5068, %v5060
        %v5765 = vpack.c.b16 %v5069, %v5061
        %v5766 = vpack.c.b16 %v5070, %v5062
        %v5767 = vpack.c.b16 %v5071, %v5063
        %v5768 = vpack.c.b16 %v5072, %v5064
        %v5769 = vpack.c.b16 %v5073, %v5065
        %v5770 = vpack.c.b16 %v5074, %v5066
        %v5771 = vpack.c.b16 %v5075, %v5067
        %v5772 = vpack.c.b16 %v5084, %v5076
        %v5773 = vpack.c.b16 %v5085, %v5077
        %v5774 = vpack.c.b16 %v5086, %v5078
        %v5775 = vpack.c.b16 %v5087, %v5079
        %v5776 = vpack.c.b16 %v5088, %v5080
        %v5777 = vpack.c.b16 %v5089, %v5081
        %v5778 = vpack.c.b16 %v5090, %v5082
        %v5779 = vpack.c.b16 %v5091, %v5083
        %v5780 = vpack.c.b16 %v5100, %v5092
        %v5781 = vpack.c.b16 %v5101, %v5093
        %v5782 = vpack.c.b16 %v5102, %v5094
        %v5783 = vpack.c.b16 %v5103, %v5095
        %v5784 = vpack.c.b16 %v5104, %v5096
        %v5785 = vpack.c.b16 %v5105, %v5097
        %v5786 = vpack.c.b16 %v5106, %v5098
        %v5787 = vpack.c.b16 %v5107, %v5099
        %v5788 = vpack.c.b16 %v5116, %v5108
        %v5789 = vpack.c.b16 %v5117, %v5109
        %v5790 = vpack.c.b16 %v5118, %v5110
        %v5791 = vpack.c.b16 %v5119, %v5111
        %v5792 = vpack.c.b16 %v5120, %v5112
        %v5793 = vpack.c.b16 %v5121, %v5113
        %v5794 = vpack.c.b16 %v5122, %v5114
        %v5795 = vpack.c.b16 %v5123, %v5115
        %v5796 = vpack.c.b16 %v5132, %v5124
        %v5797 = vpack.c.b16 %v5133, %v5125
        %v5798 = vpack.c.b16 %v5134, %v5126
        %v5799 = vpack.c.b16 %v5135, %v5127
        %v5800 = vpack.c.b16 %v5136, %v5128
        %v5801 = vpack.c.b16 %v5137, %v5129
        %v5802 = vpack.c.b16 %v5138, %v5130
        %v5803 = vpack.c.b16 %v5139, %v5131
        %v5804 = vpack.c.b16 %v5148, %v5140
        %v5805 = vpack.c.b16 %v5149, %v5141
        %v5806 = vpack.c.b16 %v5150, %v5142
        %v5807 = vpack.c.b16 %v5151, %v5143
        %v5808 = vpack.c.b16 %v5152, %v5144
        %v5809 = vpack.c.b16 %v5153, %v5145
        %v5810 = vpack.c.b16 %v5154, %v5146
        %v5811 = vpack.c.b16 %v5155, %v5147
        %v5812 = vpack.c.b16 %v5164, %v5156
        %v5813 = vpack.c.b16 %v5165, %v5157
        %v5814 = vpack.c.b16 %v5166, %v5158
        %v5815 = vpack.c.b16 %v5167, %v5159
        %v5816 = vpack.c.b16 %v5168, %v5160
        %v5817 = vpack.c.b16 %v5169, %v5161
        %v5818 = vpack.c.b16 %v5170, %v5162
        %v5819 = vpack.c.b16 %v5171, %v5163
        %v5820 = vpack.c.b16 %v5180, %v5172
        %v5821 = vpack.c.b16 %v5181, %v5173
        %v5822 = vpack.c.b16 %v5182, %v5174
        %v5823 = vpack.c.b16 %v5183, %v5175
        %v5824 = vpack.c.b16 %v5184, %v5176
        %v5825 = vpack.c.b16 %v5185, %v5177
        %v5826 = vpack.c.b16 %v5186, %v5178
        %v5827 = vpack.c.b16 %v5187, %v5179
        %v5828 = vpack.c.b16 %v5196, %v5188
        %v5829 = vpack.c.b16 %v5197, %v5189
        %v5830 = vpack.c.b16 %v5198, %v5190
        %v5831 = vpack.c.b16 %v5199, %v5191
        %v5832 = vpack.c.b16 %v5200, %v5192
        %v5833 = vpack.c.b16 %v5201, %v5193
        %v5834 = vpack.c.b16 %v5202, %v5194
        %v5835 = vpack.c.b16 %v5203, %v5195
        %v5836 = vpack.c.b16 %v5212, %v5204
        %v5837 = vpack.c.b16 %v5213, %v5205
        %v5838 = vpack.c.b16 %v5214, %v5206
        %v5839 = vpack.c.b16 %v5215, %v5207
        %v5840 = vpack.c.b16 %v5216, %v5208
        %v5841 = vpack.c.b16 %v5217, %v5209
        %v5842 = vpack.c.b16 %v5218, %v5210
        %v5843 = vpack.c.b16 %v5219, %v5211
        %v5844 = vpack.c.b16 %v5228, %v5220
        %v5845 = vpack.c.b16 %v5229, %v5221
        %v5846 = vpack.c.b16 %v5230, %v5222
        %v5847 = vpack.c.b16 %v5231, %v5223
        %v5848 = vpack.c.b16 %v5232, %v5224
        %v5849 = vpack.c.b16 %v5233, %v5225
        %v5850 = vpack.c.b16 %v5234, %v5226
        %v5851 = vpack.c.b16 %v5235, %v5227
        %v5852 = vpack.c.b16 %v5244, %v5236
        %v5853 = vpack.c.b16 %v5245, %v5237
        %v5854 = vpack.c.b16 %v5246, %v5238
        %v5855 = vpack.c.b16 %v5247, %v5239
        %v5856 = vpack.c.b16 %v5248, %v5240
        %v5857 = vpack.c.b16 %v5249, %v5241
        %v5858 = vpack.c.b16 %v5250, %v5242
        %v5859 = vpack.c.b16 %v5251, %v5243
        %v5860 = vpack.c.b16 %v5260, %v5252
        %v5861 = vpack.c.b16 %v5261, %v5253
        %v5862 = vpack.c.b16 %v5262, %v5254
        %v5863 = vpack.c.b16 %v5263, %v5255
        %v5864 = vpack.c.b16 %v5264, %v5256
        %v5865 = vpack.c.b16 %v5265, %v5257
        %v5866 = vpack.c.b16 %v5266, %v5258
        %v5867 = vpack.c.b16 %v5267, %v5259
        %v5868 = vpack.c.b16 %v5276, %v5268
        %v5869 = vpack.c.b16 %v5277, %v5269
        %v5870 = vpack.c.b16 %v5278, %v5270
        %v5871 = vpack.c.b16 %v5279, %v5271
        %v5872 = vpack.c.b16 %v5280, %v5272
        %v5873 = vpack.c.b16 %v5281, %v5273
        %v5874 = vpack.c.b16 %v5282, %v5274
        %v5875 = vpack.c.b16 %v5283, %v5275
        %v5876 = vpack.c.b16 %v5292, %v5284
        %v5877 = vpack.c.b16 %v5293, %v5285
        %v5878 = vpack.c.b16 %v5294, %v5286
        %v5879 = vpack.c.b16 %v5295, %v5287
        %v5880 = vpack.c.b16 %v5296, %v5288
        %v5881 = vpack.c.b16 %v5297, %v5289
        %v5882 = vpack.c.b16 %v5298, %v5290
        %v5883 = vpack.c.b16 %v5299, %v5291
        %v5884 = vpack.c.b16 %v5308, %v5300
        %v5885 = vpack.c.b16 %v5309, %v5301
        %v5886 = vpack.c.b16 %v5310, %v5302
        %v5887 = vpack.c.b16 %v5311, %v5303
        %v5888 = vpack.c.b16 %v5312, %v5304
        %v5889 = vpack.c.b16 %v5313, %v5305
        %v5890 = vpack.c.b16 %v5314, %v5306
        %v5891 = vpack.c.b16 %v5315, %v5307
        %v5892 = vpack.c.b16 %v5324, %v5316
        %v5893 = vpack.c.b16 %v5325, %v5317
        %v5894 = vpack.c.b16 %v5326, %v5318
        %v5895 = vpack.c.b16 %v5327, %v5319
        %v5896 = vpack.c.b16 %v5328, %v5320
        %v5897 = vpack.c.b16 %v5329, %v5321
        %v5898 = vpack.c.b16 %v5330, %v5322
        %v5899 = vpack.c.b16 %v5331, %v5323
        %v5900 = vpack.c.b16 %v5340, %v5332
        %v5901 = vpack.c.b16 %v5341, %v5333
        %v5902 = vpack.c.b16 %v5342, %v5334
        %v5903 = vpack.c.b16 %v5343, %v5335
        %v5904 = vpack.c.b16 %v5344, %v5336
        %v5905 = vpack.c.b16 %v5345, %v5337
        %v5906 = vpack.c.b16 %v5346, %v5338
        %v5907 = vpack.c.b16 %v5347, %v5339
        %v5908 = vpack.c.b16 %v5356, %v5348
        %v5909 = vpack.c.b16 %v5357, %v5349
        %v5910 = vpack.c.b16 %v5358, %v5350
        %v5911 = vpack.c.b16 %v5359, %v5351
        %v5912 = vpack.c.b16 %v5360, %v5352
        %v5913 = vpack.c.b16 %v5361, %v5353
        %v5914 = vpack.c.b16 %v5362, %v5354
        %v5915 = vpack.c.b16 %v5363, %v5355
        %v5916 = vpack.c.b16 %v5372, %v5364
        %v5917 = vpack.c.b16 %v5373, %v5365
        %v5918 = vpack.c.b16 %v5374, %v5366
        %v5919 = vpack.c.b16 %v5375, %v5367
        %v5920 = vpack.c.b16 %v5376, %v5368
        %v5921 = vpack.c.b16 %v5377, %v5369
        %v5922 = vpack.c.b16 %v5378, %v5370
        %v5923 = vpack.c.b16 %v5379, %v5371
        %v5924 = vpack.c.b16 %v5388, %v5380
        %v5925 = vpack.c.b16 %v5389, %v5381
        %v5926 = vpack.c.b16 %v5390, %v5382
        %v5927 = vpack.c.b16 %v5391, %v5383
        %v5928 = vpack.c.b16 %v5392, %v5384
        %v5929 = vpack.c.b16 %v5393, %v5385
        %v5930 = vpack.c.b16 %v5394, %v5386
        %v5931 = vpack.c.b16 %v5395, %v5387
        %v5932 = vpack.c.b16 %v5404, %v5396
        %v5933 = vpack.c.b16 %v5405, %v5397
        %v5934 = vpack.c.b16 %v5406, %v5398
        %v5935 = vpack.c.b16 %v5407, %v5399
        %v5936 = vpack.c.b16 %v5408, %v5400
        %v5937 = vpack.c.b16 %v5409, %v5401
        %v5938 = vpack.c.b16 %v5410, %v5402
        %v5939 = vpack.c.b16 %v5411, %v5403
        %v5940 = vpack.c.b16 %v5420, %v5412
        %v5941 = vpack.c.b16 %v5421, %v5413
        %v5942 = vpack.c.b16 %v5422, %v5414
        %v5943 = vpack.c.b16 %v5423, %v5415
        %v5944 = vpack.c.b16 %v5424, %v5416
        %v5945 = vpack.c.b16 %v5425, %v5417
        %v5946 = vpack.c.b16 %v5426, %v5418
        %v5947 = vpack.c.b16 %v5427, %v5419
        %v5948 = vpack.c.b16 %v5436, %v5428
        %v5949 = vpack.c.b16 %v5437, %v5429
        %v5950 = vpack.c.b16 %v5438, %v5430
        %v5951 = vpack.c.b16 %v5439, %v5431
        %v5952 = vpack.c.b16 %v5440, %v5432
        %v5953 = vpack.c.b16 %v5441, %v5433
        %v5954 = vpack.c.b16 %v5442, %v5434
        %v5955 = vpack.c.b16 %v5443, %v5435
        %v5956 = vpack.c.b16 %v5452, %v5444
        %v5957 = vpack.c.b16 %v5453, %v5445
        %v5958 = vpack.c.b16 %v5454, %v5446
        %v5959 = vpack.c.b16 %v5455, %v5447
        %v5960 = vpack.c.b16 %v5456, %v5448
        %v5961 = vpack.c.b16 %v5457, %v5449
        %v5962 = vpack.c.b16 %v5458, %v5450
        %v5963 = vpack.c.b16 %v5459, %v5451
        %v5964 = vpack.c.b16 %v5468, %v5460
        %v5965 = vpack.c.b16 %v5469, %v5461
        %v5966 = vpack.c.b16 %v5470, %v5462
        %v5967 = vpack.c.b16 %v5471, %v5463
        %v5968 = vpack.c.b16 %v5472, %v5464
        %v5969 = vpack.c.b16 %v5473, %v5465
        %v5970 = vpack.c.b16 %v5474, %v5466
        %v5971 = vpack.c.b16 %v5475, %v5467
        %v5972 = vpack.c.b16 %v5484, %v5476
        %v5973 = vpack.c.b16 %v5485, %v5477
        %v5974 = vpack.c.b16 %v5486, %v5478
        %v5975 = vpack.c.b16 %v5487, %v5479
        %v5976 = vpack.c.b16 %v5488, %v5480
        %v5977 = vpack.c.b16 %v5489, %v5481
        %v5978 = vpack.c.b16 %v5490, %v5482
        %v5979 = vpack.c.b16 %v5491, %v5483
        %v5980 = vpack.c.b16 %v5500, %v5492
        %v5981 = vpack.c.b16 %v5501, %v5493
        %v5982 = vpack.c.b16 %v5502, %v5494
        %v5983 = vpack.c.b16 %v5503, %v5495
        %v5984 = vpack.c.b16 %v5504, %v5496
        %v5985 = vpack.c.b16 %v5505, %v5497
        %v5986 = vpack.c.b16 %v5506, %v5498
        %v5987 = vpack.c.b16 %v5507, %v5499
        %v5988 = vpack.c.b16 %v5516, %v5508
        %v5989 = vpack.c.b16 %v5517, %v5509
        %v5990 = vpack.c.b16 %v5518, %v5510
        %v5991 = vpack.c.b16 %v5519, %v5511
        %v5992 = vpack.c.b16 %v5520, %v5512
        %v5993 = vpack.c.b16 %v5521, %v5513
        %v5994 = vpack.c.b16 %v5522, %v5514
        %v5995 = vpack.c.b16 %v5523, %v5515
        %v5996 = vpack.c.b16 %v5532, %v5524
        %v5997 = vpack.c.b16 %v5533, %v5525
        %v5998 = vpack.c.b16 %v5534, %v5526
        %v5999 = vpack.c.b16 %v5535, %v5527
        %v6000 = vpack.c.b16 %v5536, %v5528
        %v6001 = vpack.c.b16 %v5537, %v5529
        %v6002 = vpack.c.b16 %v5538, %v5530
        %v6003 = vpack.c.b16 %v5539, %v5531
        %v6004 = vpack.c.b16 %v5548, %v5540
        %v6005 = vpack.c.b16 %v5549, %v5541
        %v6006 = vpack.c.b16 %v5550, %v5542
        %v6007 = vpack.c.b16 %v5551, %v5543
        %v6008 = vpack.c.b16 %v5552, %v5544
        %v6009 = vpack.c.b16 %v5553, %v5545
        %v6010 = vpack.c.b16 %v5554, %v5546
        %v6011 = vpack.c.b16 %v5555, %v5547
        %v6012 = vpack.c.b16 %v5564, %v5556
        %v6013 = vpack.c.b16 %v5565, %v5557
        %v6014 = vpack.c.b16 %v5566, %v5558
        %v6015 = vpack.c.b16 %v5567, %v5559
        %v6016 = vpack.c.b16 %v5568, %v5560
        %v6017 = vpack.c.b16 %v5569, %v5561
        %v6018 = vpack.c.b16 %v5570, %v5562
        %v6019 = vpack.c.b16 %v5571, %v5563
        %6468 = vmatprep.subr.bf16.mxu0 %v5573
        %6469 = vmatpush1.bf16.msra.mxu0 %v5572
        %6470 = vmatprep.subr.bf16.mxu0 %v5581
        %6471 = vmatpush1.bf16.msra.mxu0 %v5580
        %6472 = vmatprep.subr.bf16.mxu0 %v5589
        %6473 = vmatpush1.bf16.msra.mxu0 %v5588
        %6474 = vmatprep.subr.bf16.mxu0 %v5597
        %6475 = vmatpush1.bf16.msra.mxu0 %v5596
        %6476 = vmatprep.subr.bf16.mxu0 %v5605
        %6477 = vmatpush1.bf16.msra.mxu0 %v5604
        %6478 = vmatprep.subr.bf16.mxu0 %v5613
        %6479 = vmatpush1.bf16.msra.mxu0 %v5612
        %6480 = vmatprep.subr.bf16.mxu0 %v5621
        %6481 = vmatpush1.bf16.msra.mxu0 %v5620
        %6482 = vmatprep.subr.bf16.mxu0 %v5629
        %6483 = vmatpush1.bf16.msra.mxu0 %v5628
        %6484 = vmatprep.subr.bf16.mxu0 %v5637
        %6485 = vmatpush1.bf16.msra.mxu0 %v5636
        %6486 = vmatprep.subr.bf16.mxu0 %v5645
        %6487 = vmatpush1.bf16.msra.mxu0 %v5644
        %6488 = vmatprep.subr.bf16.mxu0 %v5653
        %6489 = vmatpush1.bf16.msra.mxu0 %v5652
        %6490 = vmatprep.subr.bf16.mxu0 %v5661
        %6491 = vmatpush1.bf16.msra.mxu0 %v5660
        %6492 = vmatprep.subr.bf16.mxu0 %v5669
        %6493 = vmatpush1.bf16.msra.mxu0 %v5668
        %6494 = vmatprep.subr.bf16.mxu0 %v5677
        %6495 = vmatpush1.bf16.msra.mxu0 %v5676
        %6496 = vmatprep.subr.bf16.mxu0 %v5685
        %6497 = vmatpush1.bf16.msra.mxu0 %v5684
        %6498 = vmatprep.subr.bf16.mxu0 %v5693
        %6499 = vmatpush1.bf16.msra.mxu0 %v5692
        %6500 = vmatprep.mubr.bf16.mxu0 %v3774
        %6501 = vmatmul.mubr.bf16.gmra.mrb[0].mxu0 %v3773
        %v6502 = vpop.f32.mrb[0].mxu0
        %v6503 = vadd.f32 0.0, %v6502
        %v6504 = vpop.f32.mrb[0].mxu0
        %v6505 = vadd.f32 0.0, %v6504
        %v6506 = vpop.f32.mrb[0].mxu0
        %v6507 = vadd.f32 0.0, %v6506
        %v6508 = vpop.f32.mrb[0].mxu0
        %v6509 = vadd.f32 0.0, %v6508
        %6510 = vdwg.mxu0
        %6511 = vmatprep.subr.bf16.mxu0 %v5701
        %6512 = vmatpush1.bf16.msra.mxu0 %v5700
        %6513 = vmatprep.subr.bf16.mxu0 %v5709
        %6514 = vmatpush1.bf16.msra.mxu0 %v5708
        %6515 = vmatprep.subr.bf16.mxu0 %v5717
        %6516 = vmatpush1.bf16.msra.mxu0 %v5716
        %6517 = vmatprep.subr.bf16.mxu0 %v5725
        %6518 = vmatpush1.bf16.msra.mxu0 %v5724
        %6519 = vmatprep.subr.bf16.mxu0 %v5733
        %6520 = vmatpush1.bf16.msra.mxu0 %v5732
        %6521 = vmatprep.subr.bf16.mxu0 %v5741
        %6522 = vmatpush1.bf16.msra.mxu0 %v5740
        %6523 = vmatprep.subr.bf16.mxu0 %v5749
        %6524 = vmatpush1.bf16.msra.mxu0 %v5748
        %6525 = vmatprep.subr.bf16.mxu0 %v5757
        %6526 = vmatpush1.bf16.msra.mxu0 %v5756
        %6527 = vmatprep.subr.bf16.mxu0 %v5765
        %6528 = vmatpush1.bf16.msra.mxu0 %v5764
        %6529 = vmatprep.subr.bf16.mxu0 %v5773
        %6530 = vmatpush1.bf16.msra.mxu0 %v5772
        %6531 = vmatprep.subr.bf16.mxu0 %v5781
        %6532 = vmatpush1.bf16.msra.mxu0 %v5780
        %6533 = vmatprep.subr.bf16.mxu0 %v5789
        %6534 = vmatpush1.bf16.msra.mxu0 %v5788
        %6535 = vmatprep.subr.bf16.mxu0 %v5797
        %6536 = vmatpush1.bf16.msra.mxu0 %v5796
        %6537 = vmatprep.subr.bf16.mxu0 %v5805
        %6538 = vmatpush1.bf16.msra.mxu0 %v5804
        %6539 = vmatprep.subr.bf16.mxu0 %v5813
        %6540 = vmatpush1.bf16.msra.mxu0 %v5812
        %6541 = vmatprep.subr.bf16.mxu0 %v5821
        %6542 = vmatpush1.bf16.msra.mxu0 %v5820
        %6543 = vmatprep.mubr.bf16.mxu0 %v3776
        %6544 = vmatmul.mubr.bf16.gmra.mrb[0].mxu0 %v3775
        %v6545 = vpop.f32.mrb[0].mxu0
        %v6546 = vadd.f32 %v6503, %v6545
        %v6547 = vpop.f32.mrb[0].mxu0
        %v6548 = vadd.f32 %v6505, %v6547
        %v6549 = vpop.f32.mrb[0].mxu0
        %v6550 = vadd.f32 %v6507, %v6549
        %v6551 = vpop.f32.mrb[0].mxu0
        %v6552 = vadd.f32 %v6509, %v6551
        %6553 = vdwg.mxu0
        %6554 = vmatprep.subr.bf16.mxu0 %v5829
        %6555 = vmatpush1.bf16.msra.mxu0 %v5828
        %6556 = vmatprep.subr.bf16.mxu0 %v5837
        %6557 = vmatpush1.bf16.msra.mxu0 %v5836
        %6558 = vmatprep.subr.bf16.mxu0 %v5845
        %6559 = vmatpush1.bf16.msra.mxu0 %v5844
        %6560 = vmatprep.subr.bf16.mxu0 %v5853
        %6561 = vmatpush1.bf16.msra.mxu0 %v5852
        %6562 = vmatprep.subr.bf16.mxu0 %v5861
        %6563 = vmatpush1.bf16.msra.mxu0 %v5860
        %6564 = vmatprep.subr.bf16.mxu0 %v5869
        %6565 = vmatpush1.bf16.msra.mxu0 %v5868
        %6566 = vmatprep.subr.bf16.mxu0 %v5877
        %6567 = vmatpush1.bf16.msra.mxu0 %v5876
        %6568 = vmatprep.subr.bf16.mxu0 %v5885
        %6569 = vmatpush1.bf16.msra.mxu0 %v5884
        %6570 = vmatprep.subr.bf16.mxu0 %v5893
        %6571 = vmatpush1.bf16.msra.mxu0 %v5892
        %6572 = vmatprep.subr.bf16.mxu0 %v5901
        %6573 = vmatpush1.bf16.msra.mxu0 %v5900
        %6574 = vmatprep.subr.bf16.mxu0 %v5909
        %6575 = vmatpush1.bf16.msra.mxu0 %v5908
        %6576 = vmatprep.subr.bf16.mxu0 %v5917
        %6577 = vmatpush1.bf16.msra.mxu0 %v5916
        %6578 = vmatprep.subr.bf16.mxu0 %v5925
        %6579 = vmatpush1.bf16.msra.mxu0 %v5924
        %6580 = vmatprep.subr.bf16.mxu0 %v5933
        %6581 = vmatpush1.bf16.msra.mxu0 %v5932
        %6582 = vmatprep.subr.bf16.mxu0 %v5941
        %6583 = vmatpush1.bf16.msra.mxu0 %v5940
        %6584 = vmatprep.subr.bf16.mxu0 %v5949
        %6585 = vmatpush1.bf16.msra.mxu0 %v5948
        %6586 = vmatprep.mubr.bf16.mxu0 %v3778
        %6587 = vmatmul.mubr.bf16.gmra.mrb[0].mxu0 %v3777
        %v6588 = vpop.f32.mrb[0].mxu0
        %v6589 = vadd.f32 %v6546, %v6588
        %v6590 = vpop.f32.mrb[0].mxu0
        %v6591 = vadd.f32 %v6548, %v6590
        %v6592 = vpop.f32.mrb[0].mxu0
        %v6593 = vadd.f32 %v6550, %v6592
        %v6594 = vpop.f32.mrb[0].mxu0
        %v6595 = vadd.f32 %v6552, %v6594
        %6596 = vdwg.mxu0
        %6597 = vmatprep.subr.bf16.mxu0 %v5957
        %6598 = vmatpush1.bf16.msra.mxu0 %v5956
        %6599 = vmatprep.subr.bf16.mxu0 %v5965
        %6600 = vmatpush1.bf16.msra.mxu0 %v5964
        %6601 = vmatprep.subr.bf16.mxu0 %v5973
        %6602 = vmatpush1.bf16.msra.mxu0 %v5972
        %6603 = vmatprep.subr.bf16.mxu0 %v5981
        %6604 = vmatpush1.bf16.msra.mxu0 %v5980
        %6605 = vmatprep.subr.bf16.mxu0 %v5989
        %6606 = vmatpush1.bf16.msra.mxu0 %v5988
        %6607 = vmatprep.subr.bf16.mxu0 %v5997
        %6608 = vmatpush1.bf16.msra.mxu0 %v5996
        %6609 = vmatprep.subr.bf16.mxu0 %v6005
        %6610 = vmatpush1.bf16.msra.mxu0 %v6004
        %6611 = vmatprep.subr.bf16.mxu0 %v6013
        %6612 = vmatpush1.bf16.msra.mxu0 %v6012
        %6613 = vmatprep.subr.bf16.mxu0 0
        %6614 = vmatpush1.bf16.msra.mxu0 0
        %6615 = vmatprep.subr.bf16.mxu0 0
        %6616 = vmatpush1.bf16.msra.mxu0 0
        %6617 = vmatprep.subr.bf16.mxu0 0
        %6618 = vmatpush1.bf16.msra.mxu0 0
        %6619 = vmatprep.subr.bf16.mxu0 0
        %6620 = vmatpush1.bf16.msra.mxu0 0
        %6621 = vmatprep.subr.bf16.mxu0 0
        %6622 = vmatpush1.bf16.msra.mxu0 0
        %6623 = vmatprep.subr.bf16.mxu0 0
        %6624 = vmatpush1.bf16.msra.mxu0 0
        %6625 = vmatprep.subr.bf16.mxu0 0
        %6626 = vmatpush1.bf16.msra.mxu0 0
        %6627 = vmatprep.subr.bf16.mxu0 0
        %6628 = vmatpush1.bf16.msra.mxu0 0
        %6629 = vmatprep.mubr.bf16.mxu0 0
        %6630 = vmatmul.mubr.bf16.gmra.mrb[0].mxu0 %v3779
        %v6631 = vpop.f32.mrb[0].mxu0
        %v6632 = vadd.f32 %v6589, %v6631
        %v6633 = vpop.f32.mrb[0].mxu0
        %v6634 = vadd.f32 %v6591, %v6633
        %v6635 = vpop.f32.mrb[0].mxu0
        %v6636 = vadd.f32 %v6593, %v6635
        %v6637 = vpop.f32.mrb[0].mxu0
        %v6638 = vadd.f32 %v6595, %v6637
        %6639 = vdwg.mxu0
        %6640 = vmatprep.subr.bf16.mxu0 %v5575
        %6641 = vmatpush1.bf16.msra.mxu0 %v5574
        %6642 = vmatprep.subr.bf16.mxu0 %v5583
        %6643 = vmatpush1.bf16.msra.mxu0 %v5582
        %6644 = vmatprep.subr.bf16.mxu0 %v5591
        %6645 = vmatpush1.bf16.msra.mxu0 %v5590
        %6646 = vmatprep.subr.bf16.mxu0 %v5599
        %6647 = vmatpush1.bf16.msra.mxu0 %v5598
        %6648 = vmatprep.subr.bf16.mxu0 %v5607
        %6649 = vmatpush1.bf16.msra.mxu0 %v5606
        %6650 = vmatprep.subr.bf16.mxu0 %v5615
        %6651 = vmatpush1.bf16.msra.mxu0 %v5614
        %6652 = vmatprep.subr.bf16.mxu0 %v5623
        %6653 = vmatpush1.bf16.msra.mxu0 %v5622
        %6654 = vmatprep.subr.bf16.mxu0 %v5631
        %6655 = vmatpush1.bf16.msra.mxu0 %v5630
        %6656 = vmatprep.subr.bf16.mxu0 %v5639
        %6657 = vmatpush1.bf16.msra.mxu0 %v5638
        %6658 = vmatprep.subr.bf16.mxu0 %v5647
        %6659 = vmatpush1.bf16.msra.mxu0 %v5646
        %6660 = vmatprep.subr.bf16.mxu0 %v5655
        %6661 = vmatpush1.bf16.msra.mxu0 %v5654
        %6662 = vmatprep.subr.bf16.mxu0 %v5663
        %6663 = vmatpush1.bf16.msra.mxu0 %v5662
        %6664 = vmatprep.subr.bf16.mxu0 %v5671
        %6665 = vmatpush1.bf16.msra.mxu0 %v5670
        %6666 = vmatprep.subr.bf16.mxu0 %v5679
        %6667 = vmatpush1.bf16.msra.mxu0 %v5678
        %6668 = vmatprep.subr.bf16.mxu0 %v5687
        %6669 = vmatpush1.bf16.msra.mxu0 %v5686
        %6670 = vmatprep.subr.bf16.mxu0 %v5695
        %6671 = vmatpush1.bf16.msra.mxu0 %v5694
        %6672 = vmatprep.mubr.bf16.mxu0 %v3774
        %6673 = vmatmul.mubr.bf16.gmra.mrb[0].mxu0 %v3773
        %v6674 = vpop.f32.mrb[0].mxu0
        %v6675 = vadd.f32 0.0, %v6674
        %v6676 = vpop.f32.mrb[0].mxu0
        %v6677 = vadd.f32 0.0, %v6676
        %v6678 = vpop.f32.mrb[0].mxu0
        %v6679 = vadd.f32 0.0, %v6678
        %v6680 = vpop.f32.mrb[0].mxu0
        %v6681 = vadd.f32 0.0, %v6680
        %6682 = vdwg.mxu0
        %6683 = vmatprep.subr.bf16.mxu0 %v5703
        %6684 = vmatpush1.bf16.msra.mxu0 %v5702
        %6685 = vmatprep.subr.bf16.mxu0 %v5711
        %6686 = vmatpush1.bf16.msra.mxu0 %v5710
        %6687 = vmatprep.subr.bf16.mxu0 %v5719
        %6688 = vmatpush1.bf16.msra.mxu0 %v5718
        %6689 = vmatprep.subr.bf16.mxu0 %v5727
        %6690 = vmatpush1.bf16.msra.mxu0 %v5726
        %6691 = vmatprep.subr.bf16.mxu0 %v5735
        %6692 = vmatpush1.bf16.msra.mxu0 %v5734
        %6693 = vmatprep.subr.bf16.mxu0 %v5743
        %6694 = vmatpush1.bf16.msra.mxu0 %v5742
        %6695 = vmatprep.subr.bf16.mxu0 %v5751
        %6696 = vmatpush1.bf16.msra.mxu0 %v5750
        %6697 = vmatprep.subr.bf16.mxu0 %v5759
        %6698 = vmatpush1.bf16.msra.mxu0 %v5758
        %6699 = vmatprep.subr.bf16.mxu0 %v5767
        %6700 = vmatpush1.bf16.msra.mxu0 %v5766
        %6701 = vmatprep.subr.bf16.mxu0 %v5775
        %6702 = vmatpush1.bf16.msra.mxu0 %v5774
        %6703 = vmatprep.subr.bf16.mxu0 %v5783
        %6704 = vmatpush1.bf16.msra.mxu0 %v5782
        %6705 = vmatprep.subr.bf16.mxu0 %v5791
        %6706 = vmatpush1.bf16.msra.mxu0 %v5790
        %6707 = vmatprep.subr.bf16.mxu0 %v5799
        %6708 = vmatpush1.bf16.msra.mxu0 %v5798
        %6709 = vmatprep.subr.bf16.mxu0 %v5807
        %6710 = vmatpush1.bf16.msra.mxu0 %v5806
        %6711 = vmatprep.subr.bf16.mxu0 %v5815
        %6712 = vmatpush1.bf16.msra.mxu0 %v5814
        %6713 = vmatprep.subr.bf16.mxu0 %v5823
        %6714 = vmatpush1.bf16.msra.mxu0 %v5822
        %6715 = vmatprep.mubr.bf16.mxu0 %v3776
        %6716 = vmatmul.mubr.bf16.gmra.mrb[0].mxu0 %v3775
        %v6717 = vpop.f32.mrb[0].mxu0
        %v6718 = vadd.f32 %v6675, %v6717
        %v6719 = vpop.f32.mrb[0].mxu0
        %v6720 = vadd.f32 %v6677, %v6719
        %v6721 = vpop.f32.mrb[0].mxu0
        %v6722 = vadd.f32 %v6679, %v6721
        %v6723 = vpop.f32.mrb[0].mxu0
        %v6724 = vadd.f32 %v6681, %v6723
        %6725 = vdwg.mxu0
        %6726 = vmatprep.subr.bf16.mxu0 %v5831
        %6727 = vmatpush1.bf16.msra.mxu0 %v5830
        %6728 = vmatprep.subr.bf16.mxu0 %v5839
        %6729 = vmatpush1.bf16.msra.mxu0 %v5838
        %6730 = vmatprep.subr.bf16.mxu0 %v5847
        %6731 = vmatpush1.bf16.msra.mxu0 %v5846
        %6732 = vmatprep.subr.bf16.mxu0 %v5855
        %6733 = vmatpush1.bf16.msra.mxu0 %v5854
        %6734 = vmatprep.subr.bf16.mxu0 %v5863
        %6735 = vmatpush1.bf16.msra.mxu0 %v5862
        %6736 = vmatprep.subr.bf16.mxu0 %v5871
        %6737 = vmatpush1.bf16.msra.mxu0 %v5870
        %6738 = vmatprep.subr.bf16.mxu0 %v5879
        %6739 = vmatpush1.bf16.msra.mxu0 %v5878
        %6740 = vmatprep.subr.bf16.mxu0 %v5887
        %6741 = vmatpush1.bf16.msra.mxu0 %v5886
        %6742 = vmatprep.subr.bf16.mxu0 %v5895
        %6743 = vmatpush1.bf16.msra.mxu0 %v5894
        %6744 = vmatprep.subr.bf16.mxu0 %v5903
        %6745 = vmatpush1.bf16.msra.mxu0 %v5902
        %6746 = vmatprep.subr.bf16.mxu0 %v5911
        %6747 = vmatpush1.bf16.msra.mxu0 %v5910
        %6748 = vmatprep.subr.bf16.mxu0 %v5919
        %6749 = vmatpush1.bf16.msra.mxu0 %v5918
        %6750 = vmatprep.subr.bf16.mxu0 %v5927
        %6751 = vmatpush1.bf16.msra.mxu0 %v5926
        %6752 = vmatprep.subr.bf16.mxu0 %v5935
        %6753 = vmatpush1.bf16.msra.mxu0 %v5934
        %6754 = vmatprep.subr.bf16.mxu0 %v5943
        %6755 = vmatpush1.bf16.msra.mxu0 %v5942
        %6756 = vmatprep.subr.bf16.mxu0 %v5951
        %6757 = vmatpush1.bf16.msra.mxu0 %v5950
        %6758 = vmatprep.mubr.bf16.mxu0 %v3778
        %6759 = vmatmul.mubr.bf16.gmra.mrb[0].mxu0 %v3777
        %v6760 = vpop.f32.mrb[0].mxu0
        %v6761 = vadd.f32 %v6718, %v6760
        %v6762 = vpop.f32.mrb[0].mxu0
        %v6763 = vadd.f32 %v6720, %v6762
        %v6764 = vpop.f32.mrb[0].mxu0
        %v6765 = vadd.f32 %v6722, %v6764
        %v6766 = vpop.f32.mrb[0].mxu0
        %v6767 = vadd.f32 %v6724, %v6766
        %6768 = vdwg.mxu0
        %6769 = vmatprep.subr.bf16.mxu0 %v5959
        %6770 = vmatpush1.bf16.msra.mxu0 %v5958
        %6771 = vmatprep.subr.bf16.mxu0 %v5967
        %6772 = vmatpush1.bf16.msra.mxu0 %v5966
        %6773 = vmatprep.subr.bf16.mxu0 %v5975
        %6774 = vmatpush1.bf16.msra.mxu0 %v5974
        %6775 = vmatprep.subr.bf16.mxu0 %v5983
        %6776 = vmatpush1.bf16.msra.mxu0 %v5982
        %6777 = vmatprep.subr.bf16.mxu0 %v5991
        %6778 = vmatpush1.bf16.msra.mxu0 %v5990
        %6779 = vmatprep.subr.bf16.mxu0 %v5999
        %6780 = vmatpush1.bf16.msra.mxu0 %v5998
        %6781 = vmatprep.subr.bf16.mxu0 %v6007
        %6782 = vmatpush1.bf16.msra.mxu0 %v6006
        %6783 = vmatprep.subr.bf16.mxu0 %v6015
        %6784 = vmatpush1.bf16.msra.mxu0 %v6014
        %6785 = vmatprep.subr.bf16.mxu0 0
        %6786 = vmatpush1.bf16.msra.mxu0 0
        %6787 = vmatprep.subr.bf16.mxu0 0
        %6788 = vmatpush1.bf16.msra.mxu0 0
        %6789 = vmatprep.subr.bf16.mxu0 0
        %6790 = vmatpush1.bf16.msra.mxu0 0
        %6791 = vmatprep.subr.bf16.mxu0 0
        %6792 = vmatpush1.bf16.msra.mxu0 0
        %6793 = vmatprep.subr.bf16.mxu0 0
        %6794 = vmatpush1.bf16.msra.mxu0 0
        %6795 = vmatprep.subr.bf16.mxu0 0
        %6796 = vmatpush1.bf16.msra.mxu0 0
        %6797 = vmatprep.subr.bf16.mxu0 0
        %6798 = vmatpush1.bf16.msra.mxu0 0
        %6799 = vmatprep.subr.bf16.mxu0 0
        %6800 = vmatpush1.bf16.msra.mxu0 0
        %6801 = vmatprep.mubr.bf16.mxu0 0
        %6802 = vmatmul.mubr.bf16.gmra.mrb[0].mxu0 %v3779
        %v6803 = vpop.f32.mrb[0].mxu0
        %v6804 = vadd.f32 %v6761, %v6803
        %v6805 = vpop.f32.mrb[0].mxu0
        %v6806 = vadd.f32 %v6763, %v6805
        %v6807 = vpop.f32.mrb[0].mxu0
        %v6808 = vadd.f32 %v6765, %v6807
        %v6809 = vpop.f32.mrb[0].mxu0
        %v6810 = vadd.f32 %v6767, %v6809
        %6811 = vdwg.mxu0
        %6812 = vmatprep.subr.bf16.mxu0 %v5577
        %6813 = vmatpush1.bf16.msra.mxu0 %v5576
        %6814 = vmatprep.subr.bf16.mxu0 %v5585
        %6815 = vmatpush1.bf16.msra.mxu0 %v5584
        %6816 = vmatprep.subr.bf16.mxu0 %v5593
        %6817 = vmatpush1.bf16.msra.mxu0 %v5592
        %6818 = vmatprep.subr.bf16.mxu0 %v5601
        %6819 = vmatpush1.bf16.msra.mxu0 %v5600
        %6820 = vmatprep.subr.bf16.mxu0 %v5609
        %6821 = vmatpush1.bf16.msra.mxu0 %v5608
        %6822 = vmatprep.subr.bf16.mxu0 %v5617
        %6823 = vmatpush1.bf16.msra.mxu0 %v5616
        %6824 = vmatprep.subr.bf16.mxu0 %v5625
        %6825 = vmatpush1.bf16.msra.mxu0 %v5624
        %6826 = vmatprep.subr.bf16.mxu0 %v5633
        %6827 = vmatpush1.bf16.msra.mxu0 %v5632
        %6828 = vmatprep.subr.bf16.mxu0 %v5641
        %6829 = vmatpush1.bf16.msra.mxu0 %v5640
        %6830 = vmatprep.subr.bf16.mxu0 %v5649
        %6831 = vmatpush1.bf16.msra.mxu0 %v5648
        %6832 = vmatprep.subr.bf16.mxu0 %v5657
        %6833 = vmatpush1.bf16.msra.mxu0 %v5656
        %6834 = vmatprep.subr.bf16.mxu0 %v5665
        %6835 = vmatpush1.bf16.msra.mxu0 %v5664
        %6836 = vmatprep.subr.bf16.mxu0 %v5673
        %6837 = vmatpush1.bf16.msra.mxu0 %v5672
        %6838 = vmatprep.subr.bf16.mxu0 %v5681
        %6839 = vmatpush1.bf16.msra.mxu0 %v5680
        %6840 = vmatprep.subr.bf16.mxu0 %v5689
        %6841 = vmatpush1.bf16.msra.mxu0 %v5688
        %6842 = vmatprep.subr.bf16.mxu0 %v5697
        %6843 = vmatpush1.bf16.msra.mxu0 %v5696
        %6844 = vmatprep.mubr.bf16.mxu0 %v3774
        %6845 = vmatmul.mubr.bf16.gmra.mrb[0].mxu0 %v3773
        %v6846 = vpop.f32.mrb[0].mxu0
        %v6847 = vadd.f32 0.0, %v6846
        %v6848 = vpop.f32.mrb[0].mxu0
        %v6849 = vadd.f32 0.0, %v6848
        %v6850 = vpop.f32.mrb[0].mxu0
        %v6851 = vadd.f32 0.0, %v6850
        %v6852 = vpop.f32.mrb[0].mxu0
        %v6853 = vadd.f32 0.0, %v6852
        %6854 = vdwg.mxu0
        %6855 = vmatprep.subr.bf16.mxu0 %v5705
        %6856 = vmatpush1.bf16.msra.mxu0 %v5704
        %6857 = vmatprep.subr.bf16.mxu0 %v5713
        %6858 = vmatpush1.bf16.msra.mxu0 %v5712
        %6859 = vmatprep.subr.bf16.mxu0 %v5721
        %6860 = vmatpush1.bf16.msra.mxu0 %v5720
        %6861 = vmatprep.subr.bf16.mxu0 %v5729
        %6862 = vmatpush1.bf16.msra.mxu0 %v5728
        %6863 = vmatprep.subr.bf16.mxu0 %v5737
        %6864 = vmatpush1.bf16.msra.mxu0 %v5736
        %6865 = vmatprep.subr.bf16.mxu0 %v5745
        %6866 = vmatpush1.bf16.msra.mxu0 %v5744
        %6867 = vmatprep.subr.bf16.mxu0 %v5753
        %6868 = vmatpush1.bf16.msra.mxu0 %v5752
        %6869 = vmatprep.subr.bf16.mxu0 %v5761
        %6870 = vmatpush1.bf16.msra.mxu0 %v5760
        %6871 = vmatprep.subr.bf16.mxu0 %v5769
        %6872 = vmatpush1.bf16.msra.mxu0 %v5768
        %6873 = vmatprep.subr.bf16.mxu0 %v5777
        %6874 = vmatpush1.bf16.msra.mxu0 %v5776
        %6875 = vmatprep.subr.bf16.mxu0 %v5785
        %6876 = vmatpush1.bf16.msra.mxu0 %v5784
        %6877 = vmatprep.subr.bf16.mxu0 %v5793
        %6878 = vmatpush1.bf16.msra.mxu0 %v5792
        %6879 = vmatprep.subr.bf16.mxu0 %v5801
        %6880 = vmatpush1.bf16.msra.mxu0 %v5800
        %6881 = vmatprep.subr.bf16.mxu0 %v5809
        %6882 = vmatpush1.bf16.msra.mxu0 %v5808
        %6883 = vmatprep.subr.bf16.mxu0 %v5817
        %6884 = vmatpush1.bf16.msra.mxu0 %v5816
        %6885 = vmatprep.subr.bf16.mxu0 %v5825
        %6886 = vmatpush1.bf16.msra.mxu0 %v5824
        %6887 = vmatprep.mubr.bf16.mxu0 %v3776
        %6888 = vmatmul.mubr.bf16.gmra.mrb[0].mxu0 %v3775
        %v6889 = vpop.f32.mrb[0].mxu0
        %v6890 = vadd.f32 %v6847, %v6889
        %v6891 = vpop.f32.mrb[0].mxu0
        %v6892 = vadd.f32 %v6849, %v6891
        %v6893 = vpop.f32.mrb[0].mxu0
        %v6894 = vadd.f32 %v6851, %v6893
        %v6895 = vpop.f32.mrb[0].mxu0
        %v6896 = vadd.f32 %v6853, %v6895
        %6897 = vdwg.mxu0
        %6898 = vmatprep.subr.bf16.mxu0 %v5833
        %6899 = vmatpush1.bf16.msra.mxu0 %v5832
        %6900 = vmatprep.subr.bf16.mxu0 %v5841
        %6901 = vmatpush1.bf16.msra.mxu0 %v5840
        %6902 = vmatprep.subr.bf16.mxu0 %v5849
        %6903 = vmatpush1.bf16.msra.mxu0 %v5848
        %6904 = vmatprep.subr.bf16.mxu0 %v5857
        %6905 = vmatpush1.bf16.msra.mxu0 %v5856
        %6906 = vmatprep.subr.bf16.mxu0 %v5865
        %6907 = vmatpush1.bf16.msra.mxu0 %v5864
        %6908 = vmatprep.subr.bf16.mxu0 %v5873
        %6909 = vmatpush1.bf16.msra.mxu0 %v5872
        %6910 = vmatprep.subr.bf16.mxu0 %v5881
        %6911 = vmatpush1.bf16.msra.mxu0 %v5880
        %6912 = vmatprep.subr.bf16.mxu0 %v5889
        %6913 = vmatpush1.bf16.msra.mxu0 %v5888
        %6914 = vmatprep.subr.bf16.mxu0 %v5897
        %6915 = vmatpush1.bf16.msra.mxu0 %v5896
        %6916 = vmatprep.subr.bf16.mxu0 %v5905
        %6917 = vmatpush1.bf16.msra.mxu0 %v5904
        %6918 = vmatprep.subr.bf16.mxu0 %v5913
        %6919 = vmatpush1.bf16.msra.mxu0 %v5912
        %6920 = vmatprep.subr.bf16.mxu0 %v5921
        %6921 = vmatpush1.bf16.msra.mxu0 %v5920
        %6922 = vmatprep.subr.bf16.mxu0 %v5929
        %6923 = vmatpush1.bf16.msra.mxu0 %v5928
        %6924 = vmatprep.subr.bf16.mxu0 %v5937
        %6925 = vmatpush1.bf16.msra.mxu0 %v5936
        %6926 = vmatprep.subr.bf16.mxu0 %v5945
        %6927 = vmatpush1.bf16.msra.mxu0 %v5944
        %6928 = vmatprep.subr.bf16.mxu0 %v5953
        %6929 = vmatpush1.bf16.msra.mxu0 %v5952
        %6930 = vmatprep.mubr.bf16.mxu0 %v3778
        %6931 = vmatmul.mubr.bf16.gmra.mrb[0].mxu0 %v3777
        %v6932 = vpop.f32.mrb[0].mxu0
        %v6933 = vadd.f32 %v6890, %v6932
        %v6934 = vpop.f32.mrb[0].mxu0
        %v6935 = vadd.f32 %v6892, %v6934
        %v6936 = vpop.f32.mrb[0].mxu0
        %v6937 = vadd.f32 %v6894, %v6936
        %v6938 = vpop.f32.mrb[0].mxu0
        %v6939 = vadd.f32 %v6896, %v6938
        %6940 = vdwg.mxu0
        %6941 = vmatprep.subr.bf16.mxu0 %v5961
        %6942 = vmatpush1.bf16.msra.mxu0 %v5960
        %6943 = vmatprep.subr.bf16.mxu0 %v5969
        %6944 = vmatpush1.bf16.msra.mxu0 %v5968
        %6945 = vmatprep.subr.bf16.mxu0 %v5977
        %6946 = vmatpush1.bf16.msra.mxu0 %v5976
        %6947 = vmatprep.subr.bf16.mxu0 %v5985
        %6948 = vmatpush1.bf16.msra.mxu0 %v5984
        %6949 = vmatprep.subr.bf16.mxu0 %v5993
        %6950 = vmatpush1.bf16.msra.mxu0 %v5992
        %6951 = vmatprep.subr.bf16.mxu0 %v6001
        %6952 = vmatpush1.bf16.msra.mxu0 %v6000
        %6953 = vmatprep.subr.bf16.mxu0 %v6009
        %6954 = vmatpush1.bf16.msra.mxu0 %v6008
        %6955 = vmatprep.subr.bf16.mxu0 %v6017
        %6956 = vmatpush1.bf16.msra.mxu0 %v6016
        %6957 = vmatprep.subr.bf16.mxu0 0
        %6958 = vmatpush1.bf16.msra.mxu0 0
        %6959 = vmatprep.subr.bf16.mxu0 0
        %6960 = vmatpush1.bf16.msra.mxu0 0
        %6961 = vmatprep.subr.bf16.mxu0 0
        %6962 = vmatpush1.bf16.msra.mxu0 0
        %6963 = vmatprep.subr.bf16.mxu0 0
        %6964 = vmatpush1.bf16.msra.mxu0 0
        %6965 = vmatprep.subr.bf16.mxu0 0
        %6966 = vmatpush1.bf16.msra.mxu0 0
        %6967 = vmatprep.subr.bf16.mxu0 0
        %6968 = vmatpush1.bf16.msra.mxu0 0
        %6969 = vmatprep.subr.bf16.mxu0 0
        %6970 = vmatpush1.bf16.msra.mxu0 0
        %6971 = vmatprep.subr.bf16.mxu0 0
        %6972 = vmatpush1.bf16.msra.mxu0 0
        %6973 = vmatprep.mubr.bf16.mxu0 0
        %6974 = vmatmul.mubr.bf16.gmra.mrb[0].mxu0 %v3779
        %v6975 = vpop.f32.mrb[0].mxu0
        %v6976 = vadd.f32 %v6933, %v6975
        %v6977 = vpop.f32.mrb[0].mxu0
        %v6978 = vadd.f32 %v6935, %v6977
        %v6979 = vpop.f32.mrb[0].mxu0
        %v6980 = vadd.f32 %v6937, %v6979
        %v6981 = vpop.f32.mrb[0].mxu0
        %v6982 = vadd.f32 %v6939, %v6981
        %6983 = vdwg.mxu0
        %6984 = vmatprep.subr.bf16.mxu0 %v5579
        %6985 = vmatpush1.bf16.msra.mxu0 %v5578
        %6986 = vmatprep.subr.bf16.mxu0 %v5587
        %6987 = vmatpush1.bf16.msra.mxu0 %v5586
        %6988 = vmatprep.subr.bf16.mxu0 %v5595
        %6989 = vmatpush1.bf16.msra.mxu0 %v5594
        %6990 = vmatprep.subr.bf16.mxu0 %v5603
        %6991 = vmatpush1.bf16.msra.mxu0 %v5602
        %6992 = vmatprep.subr.bf16.mxu0 %v5611
        %6993 = vmatpush1.bf16.msra.mxu0 %v5610
        %6994 = vmatprep.subr.bf16.mxu0 %v5619
        %6995 = vmatpush1.bf16.msra.mxu0 %v5618
        %6996 = vmatprep.subr.bf16.mxu0 %v5627
        %6997 = vmatpush1.bf16.msra.mxu0 %v5626
        %6998 = vmatprep.subr.bf16.mxu0 %v5635
        %6999 = vmatpush1.bf16.msra.mxu0 %v5634
        %7000 = vmatprep.subr.bf16.mxu0 %v5643
        %7001 = vmatpush1.bf16.msra.mxu0 %v5642
        %7002 = vmatprep.subr.bf16.mxu0 %v5651
        %7003 = vmatpush1.bf16.msra.mxu0 %v5650
        %7004 = vmatprep.subr.bf16.mxu0 %v5659
        %7005 = vmatpush1.bf16.msra.mxu0 %v5658
        %7006 = vmatprep.subr.bf16.mxu0 %v5667
        %7007 = vmatpush1.bf16.msra.mxu0 %v5666
        %7008 = vmatprep.subr.bf16.mxu0 %v5675
        %7009 = vmatpush1.bf16.msra.mxu0 %v5674
        %7010 = vmatprep.subr.bf16.mxu0 %v5683
        %7011 = vmatpush1.bf16.msra.mxu0 %v5682
        %7012 = vmatprep.subr.bf16.mxu0 %v5691
        %7013 = vmatpush1.bf16.msra.mxu0 %v5690
        %7014 = vmatprep.subr.bf16.mxu0 %v5699
        %7015 = vmatpush1.bf16.msra.mxu0 %v5698
        %7016 = vmatprep.mubr.bf16.mxu0 %v3774
        %7017 = vmatmul.mubr.bf16.gmra.mrb[0].mxu0 %v3773
        %v7018 = vpop.f32.mrb[0].mxu0
        %v7019 = vadd.f32 0.0, %v7018
        %v7020 = vpop.f32.mrb[0].mxu0
        %v7021 = vadd.f32 0.0, %v7020
        %v7022 = vpop.f32.mrb[0].mxu0
        %v7023 = vadd.f32 0.0, %v7022
        %v7024 = vpop.f32.mrb[0].mxu0
        %v7025 = vadd.f32 0.0, %v7024
        %7026 = vdwg.mxu0
        %7027 = vmatprep.subr.bf16.mxu0 %v5707
        %7028 = vmatpush1.bf16.msra.mxu0 %v5706
        %7029 = vmatprep.subr.bf16.mxu0 %v5715
        %7030 = vmatpush1.bf16.msra.mxu0 %v5714
        %7031 = vmatprep.subr.bf16.mxu0 %v5723
        %7032 = vmatpush1.bf16.msra.mxu0 %v5722
        %7033 = vmatprep.subr.bf16.mxu0 %v5731
        %7034 = vmatpush1.bf16.msra.mxu0 %v5730
        %7035 = vmatprep.subr.bf16.mxu0 %v5739
        %7036 = vmatpush1.bf16.msra.mxu0 %v5738
        %7037 = vmatprep.subr.bf16.mxu0 %v5747
        %7038 = vmatpush1.bf16.msra.mxu0 %v5746
        %7039 = vmatprep.subr.bf16.mxu0 %v5755
        %7040 = vmatpush1.bf16.msra.mxu0 %v5754
        %7041 = vmatprep.subr.bf16.mxu0 %v5763
        %7042 = vmatpush1.bf16.msra.mxu0 %v5762
        %7043 = vmatprep.subr.bf16.mxu0 %v5771
        %7044 = vmatpush1.bf16.msra.mxu0 %v5770
        %7045 = vmatprep.subr.bf16.mxu0 %v5779
        %7046 = vmatpush1.bf16.msra.mxu0 %v5778
        %7047 = vmatprep.subr.bf16.mxu0 %v5787
        %7048 = vmatpush1.bf16.msra.mxu0 %v5786
        %7049 = vmatprep.subr.bf16.mxu0 %v5795
        %7050 = vmatpush1.bf16.msra.mxu0 %v5794
        %7051 = vmatprep.subr.bf16.mxu0 %v5803
        %7052 = vmatpush1.bf16.msra.mxu0 %v5802
        %7053 = vmatprep.subr.bf16.mxu0 %v5811
        %7054 = vmatpush1.bf16.msra.mxu0 %v5810
        %7055 = vmatprep.subr.bf16.mxu0 %v5819
        %7056 = vmatpush1.bf16.msra.mxu0 %v5818
        %7057 = vmatprep.subr.bf16.mxu0 %v5827
        %7058 = vmatpush1.bf16.msra.mxu0 %v5826
        %7059 = vmatprep.mubr.bf16.mxu0 %v3776
        %7060 = vmatmul.mubr.bf16.gmra.mrb[0].mxu0 %v3775
        %v7061 = vpop.f32.mrb[0].mxu0
        %v7062 = vadd.f32 %v7019, %v7061
        %v7063 = vpop.f32.mrb[0].mxu0
        %v7064 = vadd.f32 %v7021, %v7063
        %v7065 = vpop.f32.mrb[0].mxu0
        %v7066 = vadd.f32 %v7023, %v7065
        %v7067 = vpop.f32.mrb[0].mxu0
        %v7068 = vadd.f32 %v7025, %v7067
        %7069 = vdwg.mxu0
        %7070 = vmatprep.subr.bf16.mxu0 %v5835
        %7071 = vmatpush1.bf16.msra.mxu0 %v5834
        %7072 = vmatprep.subr.bf16.mxu0 %v5843
        %7073 = vmatpush1.bf16.msra.mxu0 %v5842
        %7074 = vmatprep.subr.bf16.mxu0 %v5851
        %7075 = vmatpush1.bf16.msra.mxu0 %v5850
        %7076 = vmatprep.subr.bf16.mxu0 %v5859
        %7077 = vmatpush1.bf16.msra.mxu0 %v5858
        %7078 = vmatprep.subr.bf16.mxu0 %v5867
        %7079 = vmatpush1.bf16.msra.mxu0 %v5866
        %7080 = vmatprep.subr.bf16.mxu0 %v5875
        %7081 = vmatpush1.bf16.msra.mxu0 %v5874
        %7082 = vmatprep.subr.bf16.mxu0 %v5883
        %7083 = vmatpush1.bf16.msra.mxu0 %v5882
        %7084 = vmatprep.subr.bf16.mxu0 %v5891
        %7085 = vmatpush1.bf16.msra.mxu0 %v5890
        %7086 = vmatprep.subr.bf16.mxu0 %v5899
        %7087 = vmatpush1.bf16.msra.mxu0 %v5898
        %7088 = vmatprep.subr.bf16.mxu0 %v5907
        %7089 = vmatpush1.bf16.msra.mxu0 %v5906
        %7090 = vmatprep.subr.bf16.mxu0 %v5915
        %7091 = vmatpush1.bf16.msra.mxu0 %v5914
        %7092 = vmatprep.subr.bf16.mxu0 %v5923
        %7093 = vmatpush1.bf16.msra.mxu0 %v5922
        %7094 = vmatprep.subr.bf16.mxu0 %v5931
        %7095 = vmatpush1.bf16.msra.mxu0 %v5930
        %7096 = vmatprep.subr.bf16.mxu0 %v5939
        %7097 = vmatpush1.bf16.msra.mxu0 %v5938
        %7098 = vmatprep.subr.bf16.mxu0 %v5947
        %7099 = vmatpush1.bf16.msra.mxu0 %v5946
        %7100 = vmatprep.subr.bf16.mxu0 %v5955
        %7101 = vmatpush1.bf16.msra.mxu0 %v5954
        %7102 = vmatprep.mubr.bf16.mxu0 %v3778
        %7103 = vmatmul.mubr.bf16.gmra.mrb[0].mxu0 %v3777
        %v7104 = vpop.f32.mrb[0].mxu0
        %v7105 = vadd.f32 %v7062, %v7104
        %v7106 = vpop.f32.mrb[0].mxu0
        %v7107 = vadd.f32 %v7064, %v7106
        %v7108 = vpop.f32.mrb[0].mxu0
        %v7109 = vadd.f32 %v7066, %v7108
        %v7110 = vpop.f32.mrb[0].mxu0
        %v7111 = vadd.f32 %v7068, %v7110
        %7112 = vdwg.mxu0
        %7113 = vmatprep.subr.bf16.mxu0 %v5963
        %7114 = vmatpush1.bf16.msra.mxu0 %v5962
        %7115 = vmatprep.subr.bf16.mxu0 %v5971
        %7116 = vmatpush1.bf16.msra.mxu0 %v5970
        %7117 = vmatprep.subr.bf16.mxu0 %v5979
        %7118 = vmatpush1.bf16.msra.mxu0 %v5978
        %7119 = vmatprep.subr.bf16.mxu0 %v5987
        %7120 = vmatpush1.bf16.msra.mxu0 %v5986
        %7121 = vmatprep.subr.bf16.mxu0 %v5995
        %7122 = vmatpush1.bf16.msra.mxu0 %v5994
        %7123 = vmatprep.subr.bf16.mxu0 %v6003
        %7124 = vmatpush1.bf16.msra.mxu0 %v6002
        %7125 = vmatprep.subr.bf16.mxu0 %v6011
        %7126 = vmatpush1.bf16.msra.mxu0 %v6010
        %7127 = vmatprep.subr.bf16.mxu0 %v6019
        %7128 = vmatpush1.bf16.msra.mxu0 %v6018
        %7129 = vmatprep.subr.bf16.mxu0 0
        %7130 = vmatpush1.bf16.msra.mxu0 0
        %7131 = vmatprep.subr.bf16.mxu0 0
        %7132 = vmatpush1.bf16.msra.mxu0 0
        %7133 = vmatprep.subr.bf16.mxu0 0
        %7134 = vmatpush1.bf16.msra.mxu0 0
        %7135 = vmatprep.subr.bf16.mxu0 0
        %7136 = vmatpush1.bf16.msra.mxu0 0
        %7137 = vmatprep.subr.bf16.mxu0 0
        %7138 = vmatpush1.bf16.msra.mxu0 0
        %7139 = vmatprep.subr.bf16.mxu0 0
        %7140 = vmatpush1.bf16.msra.mxu0 0
        %7141 = vmatprep.subr.bf16.mxu0 0
        %7142 = vmatpush1.bf16.msra.mxu0 0
        %7143 = vmatprep.subr.bf16.mxu0 0
        %7144 = vmatpush1.bf16.msra.mxu0 0
        %7145 = vmatprep.mubr.bf16.mxu0 0
        %7146 = vmatmul.mubr.bf16.gmra.mrb[0].mxu0 %v3779
        %v7147 = vpop.f32.mrb[0].mxu0
        %v7148 = vadd.f32 %v7105, %v7147
        %v7149 = vpop.f32.mrb[0].mxu0
        %v7150 = vadd.f32 %v7107, %v7149
        %v7151 = vpop.f32.mrb[0].mxu0
        %v7152 = vadd.f32 %v7109, %v7151
        %v7153 = vpop.f32.mrb[0].mxu0
        %v7154 = vadd.f32 %v7111, %v7153
        %7155 = vdwg.mxu0
        %v7156 = vmax.f32 %v6632, %v6804
        %v7157 = vmax.f32 %v6634, %v6806
        %v7158 = vmax.f32 %v6636, %v6808
        %v7159 = vmax.f32 %v6638, %v6810
        %v7160 = vmax.f32 %v6976, %v7148
        %v7161 = vmax.f32 %v6978, %v7150
        %v7162 = vmax.f32 %v6980, %v7152
        %v7163 = vmax.f32 %v6982, %v7154
        %v7164 = vmax.f32 %v7156, %v7160
        %v7165 = vmax.f32 %v7157, %v7161
        %v7166 = vmax.f32 %v7158, %v7162
        %v7167 = vmax.f32 %v7159, %v7163
        %v7168 = vld [vmem:[%s4] sm:$0x3]
        %v7170 = vlaneseq
        %v7171 = vshrl.u32 %v7170, 7
        %v7172 = vsub.s32 0, %v7171
        %v7173 = vrot.slane %v7168, %v7172
        %v7174 = vlaneseq
        %v7175 = vshrl.u32 %v7174, 7
        %v7176 = vsub.s32 1, %v7175
        %v7177 = vrot.slane %v7168, %v7176
        %v7180 = vadd.f32 %v7164, %v7173
        %v7181 = vadd.f32 %v7165, %v7177
        %v7182 = vadd.f32 %v7166, %v7173
        %v7183 = vadd.f32 %v7167, %v7177
        %v7184 = vmax.f32 %v7180, 0.0
        %v7185 = vmax.f32 %v7181, 0.0
        %v7186 = vmax.f32 %v7182, 0.0
        %v7187 = vmax.f32 %v7183, 0.0
        %v7188 = vld [vmem:[%s5] sm:$0xff]
        %v7189 = vld [vmem:[%s5 + $0x8] sm:$0xff]
        %v7190 = vld [vmem:[%s5 + $0x10] sm:$0xff]
        %v7191 = vld [vmem:[%s5 + $0x18] sm:$0xff]
        %v7192 = vld [vmem:[%s5 + $0x20] sm:$0xff]
        %v7193 = vld [vmem:[%s5 + $0x28] sm:$0xff]
        %v7194 = vld [vmem:[%s5 + $0x30] sm:$0xff]
        %v7195 = vld [vmem:[%s5 + $0x38] sm:$0xff]
        %v7196 = vld [vmem:[%s5 + $0x40] sm:$0xff]
        %v7197 = vld [vmem:[%s5 + $0x48] sm:$0xff]
        %v7198 = vld [vmem:[%s5 + $0x50] sm:$0xff]
        %v7199 = vld [vmem:[%s5 + $0x58] sm:$0xff]
        %v7200 = vld [vmem:[%s5 + $0x60] sm:$0xff]
        %v7201 = vld [vmem:[%s5 + $0x68] sm:$0xff]
        %v7202 = vld [vmem:[%s5 + $0x70] sm:$0xff]
        %v7203 = vld [vmem:[%s5 + $0x78] sm:$0xff]
        %v7204 = vld [vmem:[%s5 + $0x80] sm:$0xff]
        %v7205 = vld [vmem:[%s5 + $0x88] sm:$0xff]
        %v7206 = vld [vmem:[%s5 + $0x90] sm:$0xff]
        %v7207 = vld [vmem:[%s5 + $0x98] sm:$0xff]
        %v7208 = vld [vmem:[%s5 + $0xa0] sm:$0xff]
        %v7209 = vld [vmem:[%s5 + $0xa8] sm:$0xff]
        %v7210 = vld [vmem:[%s5 + $0xb0] sm:$0xff]
        %v7211 = vld [vmem:[%s5 + $0xb8] sm:$0xff]
        %v7212 = vld [vmem:[%s5 + $0xc0] sm:$0xff]
        %v7213 = vld [vmem:[%s5 + $0xc8] sm:$0xff]
        %v7214 = vld [vmem:[%s5 + $0xd0] sm:$0xff]
        %v7215 = vld [vmem:[%s5 + $0xd8] sm:$0xff]
        %v7216 = vld [vmem:[%s5 + $0xe0] sm:$0xff]
        %v7217 = vld [vmem:[%s5 + $0xe8] sm:$0xff]
        %v7218 = vld [vmem:[%s5 + $0xf0] sm:$0xff]
        %v7219 = vld [vmem:[%s5 + $0xf8] sm:$0xff]
        %v7220 = vld [vmem:[%s6] sm:$0x1]
        %v7222 = vlaneseq
        %v7223 = vshrl.u32 %v7222, 7
        %v7224 = vsub.s32 0, %v7223
        %v7225 = vrot.slane %v7220, %v7224
        %7227 = vmatprep.subr.mxu0 0.0
        %7228 = vmatpush1.msra.mxu0 %v7188
        %7229 = vmatprep.subr.mxu0 0.0
        %7230 = vmatpush1.msra.mxu0 %v7189
        %7231 = vmatprep.subr.mxu0 0.0
        %7232 = vmatpush1.msra.mxu0 %v7190
        %7233 = vmatprep.subr.mxu0 0.0
        %7234 = vmatpush1.msra.mxu0 %v7191
        %7235 = vmatprep.subr.mxu0 0.0
        %7236 = vmatpush1.msra.mxu0 %v7192
        %7237 = vmatprep.subr.mxu0 0.0
        %7238 = vmatpush1.msra.mxu0 %v7193
        %7239 = vmatprep.subr.mxu0 0.0
        %7240 = vmatpush1.msra.mxu0 %v7194
        %7241 = vmatprep.subr.mxu0 0.0
        %7242 = vmatpush1.msra.mxu0 %v7195
        %7243 = vmatprep.subr.mxu0 0.0
        %7244 = vmatpush1.msra.mxu0 %v7196
        %7245 = vmatprep.subr.mxu0 0.0
        %7246 = vmatpush1.msra.mxu0 %v7197
        %7247 = vmatprep.subr.mxu0 0.0
        %7248 = vmatpush1.msra.mxu0 %v7198
        %7249 = vmatprep.subr.mxu0 0.0
        %7250 = vmatpush1.msra.mxu0 %v7199
        %7251 = vmatprep.subr.mxu0 0.0
        %7252 = vmatpush1.msra.mxu0 %v7200
        %7253 = vmatprep.subr.mxu0 0.0
        %7254 = vmatpush1.msra.mxu0 %v7201
        %7255 = vmatprep.subr.mxu0 0.0
        %7256 = vmatpush1.msra.mxu0 %v7202
        %7257 = vmatprep.subr.mxu0 0.0
        %7258 = vmatpush1.msra.mxu0 %v7203
        %7259 = vmatprep.subr.mxu0 0.0
        %7260 = vmatpush1.msra.mxu0 %v7204
        %7261 = vmatprep.subr.mxu0 0.0
        %7262 = vmatpush1.msra.mxu0 %v7205
        %7263 = vmatprep.subr.mxu0 0.0
        %7264 = vmatpush1.msra.mxu0 %v7206
        %7265 = vmatprep.subr.mxu0 0.0
        %7266 = vmatpush1.msra.mxu0 %v7207
        %7267 = vmatprep.subr.mxu0 0.0
        %7268 = vmatpush1.msra.mxu0 %v7208
        %7269 = vmatprep.subr.mxu0 0.0
        %7270 = vmatpush1.msra.mxu0 %v7209
        %7271 = vmatprep.subr.mxu0 0.0
        %7272 = vmatpush1.msra.mxu0 %v7210
        %7273 = vmatprep.subr.mxu0 0.0
        %7274 = vmatpush1.msra.mxu0 %v7211
        %7275 = vmatprep.subr.mxu0 0.0
        %7276 = vmatpush1.msra.mxu0 %v7212
        %7277 = vmatprep.subr.mxu0 0.0
        %7278 = vmatpush1.msra.mxu0 %v7213
        %7279 = vmatprep.subr.mxu0 0.0
        %7280 = vmatpush1.msra.mxu0 %v7214
        %7281 = vmatprep.subr.mxu0 0.0
        %7282 = vmatpush1.msra.mxu0 %v7215
        %7283 = vmatprep.subr.mxu0 0.0
        %7284 = vmatpush1.msra.mxu0 %v7216
        %7285 = vmatprep.subr.mxu0 0.0
        %7286 = vmatpush1.msra.mxu0 %v7217
        %7287 = vmatprep.subr.mxu0 0.0
        %7288 = vmatpush1.msra.mxu0 %v7218
        %7289 = vmatprep.subr.mxu0 0.0
        %7290 = vmatpush1.msra.mxu0 %v7219
        %7291 = vmatprep.mubr.f32.mxu0 %v7185
        %7292 = vmatmul.mubr.f32.gmra.mrb[0].mxu0 %v7184
        %v7293 = vpop.f32.mrb[0].mxu0
        %v7294 = vadd.f32 %v7225, %v7293
        %v7295 = vpop.f32.mrb[0].mxu0
        %7296 = vmatprep.mubr.f32.mxu0 %v7187
        %7297 = vmatmul.mubr.f32.gmra.mrb[0].mxu0 %v7186
        %v7298 = vpop.f32.mrb[0].mxu0
        %v7299 = vadd.f32 %v7225, %v7298
        %v7300 = vpop.f32.mrb[0].mxu0
        %7301 = vdwg.mxu0
        %v7302 = vmax.f32 %v7294, 0.0
        %v7303 = vmax.f32 %v7299, 0.0
        %v7304 = vld [vmem:[%s7] sm:$0xff]
        %v7305 = vld [vmem:[%s7 + $0x8] sm:$0xff]
        %v7306 = vld [vmem:[%s7 + $0x10] sm:$0xff]
        %v7307 = vld [vmem:[%s7 + $0x18] sm:$0xff]
        %v7308 = vld [vmem:[%s7 + $0x20] sm:$0xff]
        %v7309 = vld [vmem:[%s7 + $0x28] sm:$0xff]
        %v7310 = vld [vmem:[%s7 + $0x30] sm:$0xff]
        %v7311 = vld [vmem:[%s7 + $0x38] sm:$0xff]
        %v7312 = vld [vmem:[%s7 + $0x40] sm:$0xff]
        %v7313 = vld [vmem:[%s7 + $0x48] sm:$0xff]
        %v7314 = vld [vmem:[%s7 + $0x50] sm:$0xff]
        %v7315 = vld [vmem:[%s7 + $0x58] sm:$0xff]
        %v7316 = vld [vmem:[%s7 + $0x60] sm:$0xff]
        %v7317 = vld [vmem:[%s7 + $0x68] sm:$0xff]
        %v7318 = vld [vmem:[%s7 + $0x70] sm:$0xff]
        %v7319 = vld [vmem:[%s8] sm:$0x1]
        %v7321 = vlaneseq
        %v7322 = vshrl.u32 %v7321, 7
        %v7323 = vsub.s32 0, %v7322
        %v7324 = vrot.slane %v7319, %v7323
        %vm7326 = vcmask 982016
        %v7328 = vsel %vm7326, %v7302, 0
        %v7331 = vsel %vm7326, %v7303, 0
        %7333 = vmatprep.subr.mxu0 0.0
        %7334 = vmatpush1.msra.mxu0 %v7304
        %7335 = vmatprep.subr.mxu0 0.0
        %7336 = vmatpush1.msra.mxu0 %v7305
        %7337 = vmatprep.subr.mxu0 0.0
        %7338 = vmatpush1.msra.mxu0 %v7306
        %7339 = vmatprep.subr.mxu0 0.0
        %7340 = vmatpush1.msra.mxu0 %v7307
        %7341 = vmatprep.subr.mxu0 0.0
        %7342 = vmatpush1.msra.mxu0 %v7308
        %7343 = vmatprep.subr.mxu0 0.0
        %7344 = vmatpush1.msra.mxu0 %v7309
        %7345 = vmatprep.subr.mxu0 0.0
        %7346 = vmatpush1.msra.mxu0 %v7310
        %7347 = vmatprep.subr.mxu0 0.0
        %7348 = vmatpush1.msra.mxu0 %v7311
        %7349 = vmatprep.subr.mxu0 0.0
        %7350 = vmatpush1.msra.mxu0 %v7312
        %7351 = vmatprep.subr.mxu0 0.0
        %7352 = vmatpush1.msra.mxu0 %v7313
        %7353 = vmatprep.subr.mxu0 0.0
        %7354 = vmatpush1.msra.mxu0 %v7314
        %7355 = vmatprep.subr.mxu0 0.0
        %7356 = vmatpush1.msra.mxu0 %v7315
        %7357 = vmatprep.subr.mxu0 0.0
        %7358 = vmatpush1.msra.mxu0 %v7316
        %7359 = vmatprep.subr.mxu0 0.0
        %7360 = vmatpush1.msra.mxu0 %v7317
        %7361 = vmatprep.subr.mxu0 0.0
        %7362 = vmatpush1.msra.mxu0 %v7318
        %7363 = vmatprep.subr.mxu0 0.0
        %7364 = vmatpush1.msra.mxu0 0.0
        %7365 = vmatprep.subr.mxu0 0.0
        %7366 = vmatpush1.msra.mxu0 0.0
        %7367 = vmatprep.subr.mxu0 0.0
        %7368 = vmatpush1.msra.mxu0 0.0
        %7369 = vmatprep.subr.mxu0 0.0
        %7370 = vmatpush1.msra.mxu0 0.0
        %7371 = vmatprep.subr.mxu0 0.0
        %7372 = vmatpush1.msra.mxu0 0.0
        %7373 = vmatprep.subr.mxu0 0.0
        %7374 = vmatpush1.msra.mxu0 0.0
        %7375 = vmatprep.subr.mxu0 0.0
        %7376 = vmatpush1.msra.mxu0 0.0
        %7377 = vmatprep.subr.mxu0 0.0
        %7378 = vmatpush1.msra.mxu0 0.0
        %7379 = vmatprep.subr.mxu0 0.0
        %7380 = vmatpush1.msra.mxu0 0.0
        %7381 = vmatprep.subr.mxu0 0.0
        %7382 = vmatpush1.msra.mxu0 0.0
        %7383 = vmatprep.subr.mxu0 0.0
        %7384 = vmatpush1.msra.mxu0 0.0
        %7385 = vmatprep.subr.mxu0 0.0
        %7386 = vmatpush1.msra.mxu0 0.0
        %7387 = vmatprep.subr.mxu0 0.0
        %7388 = vmatpush1.msra.mxu0 0.0
        %7389 = vmatprep.subr.mxu0 0.0
        %7390 = vmatpush1.msra.mxu0 0.0
        %7391 = vmatprep.subr.mxu0 0.0
        %7392 = vmatpush1.msra.mxu0 0.0
        %7393 = vmatprep.subr.mxu0 0.0
        %7394 = vmatpush1.msra.mxu0 0.0
        %7395 = vmatprep.subr.mxu0 0.0
        %7396 = vmatpush1.msra.mxu0 0.0
        %7397 = vmatprep.mubr.f32.mxu0 0.0
        %7398 = vmatmul.mubr.f32.gmra.mrb[0].mxu0 %v7328
        %v7399 = vpop.f32.mrb[0].mxu0
        %v7400 = vadd.f32 %v7324, %v7399
        %v7401 = vpop.f32.mrb[0].mxu0
        %7402 = vmatprep.mubr.f32.mxu0 0.0
        %7403 = vmatmul.mubr.f32.gmra.mrb[0].mxu0 %v7331
        %v7404 = vpop.f32.mrb[0].mxu0
        %v7405 = vadd.f32 %v7324, %v7404
        %v7406 = vpop.f32.mrb[0].mxu0
        %7407 = vdwg.mxu0
        %v7408 = vmax.f32 %v7400, 0.0
        %v7409 = vmax.f32 %v7405, 0.0
        %v7410 = vld [vmem:[%s9] sm:$0xff]
        %v7411 = vld [vmem:[%s9 + $0x8] sm:$0xff]
        %v7412 = vld [vmem:[%s9 + $0x10] sm:$0xff]
        %v7413 = vld [vmem:[%s9 + $0x18] sm:$0xff]
        %v7414 = vld [vmem:[%s9 + $0x20] sm:$0xff]
        %v7415 = vld [vmem:[%s9 + $0x28] sm:$0xff]
        %v7416 = vld [vmem:[%s9 + $0x30] sm:$0xff]
        %v7417 = vld [vmem:[%s9 + $0x38] sm:$0xff]
        %v7418 = vld [vmem:[%s9 + $0x40] sm:$0xff]
        %v7419 = vld [vmem:[%s9 + $0x48] sm:$0xff]
        %v7420 = vld [vmem:[%s9 + $0x50] sm:$0xf]
        %v7421 = vld [vmem:[%s10] sm:$0x1]
        %v7423 = vlaneseq
        %v7424 = vshrl.u32 %v7423, 7
        %v7425 = vsub.s32 0, %v7424
        %v7426 = vrot.slane %v7421, %v7425
        %vm7428 = vcmask 687104
        %v7430 = vsel %vm7428, %v7408, 0
        %v7433 = vsel %vm7428, %v7409, 0
        %v7436 = vsel %vm2789, %v7420, 0
        %7438 = vmatprep.subr.mxu0 0.0
        %7439 = vmatpush1.msra.mxu0 %v7410
        %7440 = vmatprep.subr.mxu0 0.0
        %7441 = vmatpush1.msra.mxu0 %v7411
        %7442 = vmatprep.subr.mxu0 0.0
        %7443 = vmatpush1.msra.mxu0 %v7412
        %7444 = vmatprep.subr.mxu0 0.0
        %7445 = vmatpush1.msra.mxu0 %v7413
        %7446 = vmatprep.subr.mxu0 0.0
        %7447 = vmatpush1.msra.mxu0 %v7414
        %7448 = vmatprep.subr.mxu0 0.0
        %7449 = vmatpush1.msra.mxu0 %v7415
        %7450 = vmatprep.subr.mxu0 0.0
        %7451 = vmatpush1.msra.mxu0 %v7416
        %7452 = vmatprep.subr.mxu0 0.0
        %7453 = vmatpush1.msra.mxu0 %v7417
        %7454 = vmatprep.subr.mxu0 0.0
        %7455 = vmatpush1.msra.mxu0 %v7418
        %7456 = vmatprep.subr.mxu0 0.0
        %7457 = vmatpush1.msra.mxu0 %v7419
        %7458 = vmatprep.subr.mxu0 0.0
        %7459 = vmatpush1.msra.mxu0 %v7436
        %7460 = vmatprep.subr.mxu0 0.0
        %7461 = vmatpush1.msra.mxu0 0.0
        %7462 = vmatprep.subr.mxu0 0.0
        %7463 = vmatpush1.msra.mxu0 0.0
        %7464 = vmatprep.subr.mxu0 0.0
        %7465 = vmatpush1.msra.mxu0 0.0
        %7466 = vmatprep.subr.mxu0 0.0
        %7467 = vmatpush1.msra.mxu0 0.0
        %7468 = vmatprep.subr.mxu0 0.0
        %7469 = vmatpush1.msra.mxu0 0.0
        %7470 = vmatprep.subr.mxu0 0.0
        %7471 = vmatpush1.msra.mxu0 0.0
        %7472 = vmatprep.subr.mxu0 0.0
        %7473 = vmatpush1.msra.mxu0 0.0
        %7474 = vmatprep.subr.mxu0 0.0
        %7475 = vmatpush1.msra.mxu0 0.0
        %7476 = vmatprep.subr.mxu0 0.0
        %7477 = vmatpush1.msra.mxu0 0.0
        %7478 = vmatprep.subr.mxu0 0.0
        %7479 = vmatpush1.msra.mxu0 0.0
        %7480 = vmatprep.subr.mxu0 0.0
        %7481 = vmatpush1.msra.mxu0 0.0
        %7482 = vmatprep.subr.mxu0 0.0
        %7483 = vmatpush1.msra.mxu0 0.0
        %7484 = vmatprep.subr.mxu0 0.0
        %7485 = vmatpush1.msra.mxu0 0.0
        %7486 = vmatprep.subr.mxu0 0.0
        %7487 = vmatpush1.msra.mxu0 0.0
        %7488 = vmatprep.subr.mxu0 0.0
        %7489 = vmatpush1.msra.mxu0 0.0
        %7490 = vmatprep.subr.mxu0 0.0
        %7491 = vmatpush1.msra.mxu0 0.0
        %7492 = vmatprep.subr.mxu0 0.0
        %7493 = vmatpush1.msra.mxu0 0.0
        %7494 = vmatprep.subr.mxu0 0.0
        %7495 = vmatpush1.msra.mxu0 0.0
        %7496 = vmatprep.subr.mxu0 0.0
        %7497 = vmatpush1.msra.mxu0 0.0
        %7498 = vmatprep.subr.mxu0 0.0
        %7499 = vmatpush1.msra.mxu0 0.0
        %7500 = vmatprep.subr.mxu0 0.0
        %7501 = vmatpush1.msra.mxu0 0.0
        %7502 = vmatprep.mubr.f32.mxu0 0.0
        %7503 = vmatmul.mubr.f32.gmra.mrb[0].mxu0 %v7430
        %v7504 = vpop.f32.mrb[0].mxu0
        %v7505 = vadd.f32 %v7426, %v7504
        %v7506 = vpop.f32.mrb[0].mxu0
        %7507 = vmatprep.mubr.f32.mxu0 0.0
        %7508 = vmatmul.mubr.f32.gmra.mrb[0].mxu0 %v7433
        %v7509 = vpop.f32.mrb[0].mxu0
        %v7510 = vadd.f32 %v7426, %v7509
        %v7511 = vpop.f32.mrb[0].mxu0
        %7512 = vdwg.mxu0
        %v7513 = vld [vmem:[%s11] sm:$0xff]
        %v7514 = vld [vmem:[%s11 + $0x8] sm:$0x3]
        %v7515 = vld [vmem:[%s12] sm:$0x1]
        %v7517 = vlaneseq
        %v7518 = vshrl.u32 %v7517, 7
        %v7519 = vsub.s32 0, %v7518
        %v7520 = vrot.slane %v7515, %v7519
        %vm7522 = vcmask 80896
        %v7524 = vsel %vm7522, %v7505, 0
        %v7527 = vsel %vm7522, %v7510, 0
        %vm7529 = vcmask 1041408
        %v7531 = vsel %vm7529, %v7514, 0
        %7533 = vmatprep.subr.mxu0 0.0
        %7534 = vmatpush1.msra.mxu0 %v7513
        %7535 = vmatprep.subr.mxu0 0.0
        %7536 = vmatpush1.msra.mxu0 %v7531
        %7537 = vmatprep.subr.mxu0 0.0
        %7538 = vmatpush1.msra.mxu0 0.0
        %7539 = vmatprep.subr.mxu0 0.0
        %7540 = vmatpush1.msra.mxu0 0.0
        %7541 = vmatprep.subr.mxu0 0.0
        %7542 = vmatpush1.msra.mxu0 0.0
        %7543 = vmatprep.subr.mxu0 0.0
        %7544 = vmatpush1.msra.mxu0 0.0
        %7545 = vmatprep.subr.mxu0 0.0
        %7546 = vmatpush1.msra.mxu0 0.0
        %7547 = vmatprep.subr.mxu0 0.0
        %7548 = vmatpush1.msra.mxu0 0.0
        %7549 = vmatprep.subr.mxu0 0.0
        %7550 = vmatpush1.msra.mxu0 0.0
        %7551 = vmatprep.subr.mxu0 0.0
        %7552 = vmatpush1.msra.mxu0 0.0
        %7553 = vmatprep.subr.mxu0 0.0
        %7554 = vmatpush1.msra.mxu0 0.0
        %7555 = vmatprep.subr.mxu0 0.0
        %7556 = vmatpush1.msra.mxu0 0.0
        %7557 = vmatprep.subr.mxu0 0.0
        %7558 = vmatpush1.msra.mxu0 0.0
        %7559 = vmatprep.subr.mxu0 0.0
        %7560 = vmatpush1.msra.mxu0 0.0
        %7561 = vmatprep.subr.mxu0 0.0
        %7562 = vmatpush1.msra.mxu0 0.0
        %7563 = vmatprep.subr.mxu0 0.0
        %7564 = vmatpush1.msra.mxu0 0.0
        %7565 = vmatprep.subr.mxu0 0.0
        %7566 = vmatpush1.msra.mxu0 0.0
        %7567 = vmatprep.subr.mxu0 0.0
        %7568 = vmatpush1.msra.mxu0 0.0
        %7569 = vmatprep.subr.mxu0 0.0
        %7570 = vmatpush1.msra.mxu0 0.0
        %7571 = vmatprep.subr.mxu0 0.0
        %7572 = vmatpush1.msra.mxu0 0.0
        %7573 = vmatprep.subr.mxu0 0.0
        %7574 = vmatpush1.msra.mxu0 0.0
        %7575 = vmatprep.subr.mxu0 0.0
        %7576 = vmatpush1.msra.mxu0 0.0
        %7577 = vmatprep.subr.mxu0 0.0
        %7578 = vmatpush1.msra.mxu0 0.0
        %7579 = vmatprep.subr.mxu0 0.0
        %7580 = vmatpush1.msra.mxu0 0.0
        %7581 = vmatprep.subr.mxu0 0.0
        %7582 = vmatpush1.msra.mxu0 0.0
        %7583 = vmatprep.subr.mxu0 0.0
        %7584 = vmatpush1.msra.mxu0 0.0
        %7585 = vmatprep.subr.mxu0 0.0
        %7586 = vmatpush1.msra.mxu0 0.0
        %7587 = vmatprep.subr.mxu0 0.0
        %7588 = vmatpush1.msra.mxu0 0.0
        %7589 = vmatprep.subr.mxu0 0.0
        %7590 = vmatpush1.msra.mxu0 0.0
        %7591 = vmatprep.subr.mxu0 0.0
        %7592 = vmatpush1.msra.mxu0 0.0
        %7593 = vmatprep.subr.mxu0 0.0
        %7594 = vmatpush1.msra.mxu0 0.0
        %7595 = vmatprep.subr.mxu0 0.0
        %7596 = vmatpush1.msra.mxu0 0.0
        %7597 = vmatprep.mubr.f32.mxu0 0.0
        %7598 = vmatmul.mubr.f32.gmra.mrb[0].mxu0 %v7524
        %v7599 = vpop.f32.mrb[0].mxu0
        %v7600 = vadd.f32 %v7520, %v7599
        %v7601 = vpop.f32.mrb[0].mxu0
        %7602 = vmatprep.mubr.f32.mxu0 0.0
        %7603 = vmatmul.mubr.f32.gmra.mrb[0].mxu0 %v7527
        %v7604 = vpop.f32.mrb[0].mxu0
        %v7605 = vadd.f32 %v7520, %v7604
        %v7606 = vpop.f32.mrb[0].mxu0
        %7607 = vdwg.mxu0
        %v7608 = vmax.f32 %v7600, 0.0
        %v7609 = vmax.f32 %v7605, 0.0
        %v7610 = vld [vmem:[%s13] sm:$0xff]
        %v7611 = vld [vmem:[%s13 + $0x8] sm:$0xff]
        %v7612 = vld [vmem:[%s13 + $0x10] sm:$0xff]
        %v7613 = vld [vmem:[%s13 + $0x18] sm:$0xff]
        %v7614 = vld [vmem:[%s13 + $0x20] sm:$0xff]
        %v7615 = vld [vmem:[%s13 + $0x28] sm:$0xff]
        %v7616 = vld [vmem:[%s13 + $0x30] sm:$0xff]
        %v7617 = vld [vmem:[%s13 + $0x38] sm:$0xff]
        %v7618 = vld [vmem:[%s14] sm:$0x1]
        %v7620 = vlaneseq
        %v7621 = vshrl.u32 %v7620, 7
        %v7622 = vsub.s32 0, %v7621
        %v7623 = vrot.slane %v7618, %v7622
        %vm7625 = vcmask 523264
        %v7627 = vsel %vm7625, %v7608, 0
        %v7630 = vsel %vm7625, %v7609, 0
        %7632 = vmatprep.subr.mxu0 0.0
        %7633 = vmatpush1.msra.mxu0 %v7610
        %7634 = vmatprep.subr.mxu0 0.0
        %7635 = vmatpush1.msra.mxu0 %v7611
        %7636 = vmatprep.subr.mxu0 0.0
        %7637 = vmatpush1.msra.mxu0 %v7612
        %7638 = vmatprep.subr.mxu0 0.0
        %7639 = vmatpush1.msra.mxu0 %v7613
        %7640 = vmatprep.subr.mxu0 0.0
        %7641 = vmatpush1.msra.mxu0 %v7614
        %7642 = vmatprep.subr.mxu0 0.0
        %7643 = vmatpush1.msra.mxu0 %v7615
        %7644 = vmatprep.subr.mxu0 0.0
        %7645 = vmatpush1.msra.mxu0 %v7616
        %7646 = vmatprep.subr.mxu0 0.0
        %7647 = vmatpush1.msra.mxu0 %v7617
        %7648 = vmatprep.subr.mxu0 0.0
        %7649 = vmatpush1.msra.mxu0 0.0
        %7650 = vmatprep.subr.mxu0 0.0
        %7651 = vmatpush1.msra.mxu0 0.0
        %7652 = vmatprep.subr.mxu0 0.0
        %7653 = vmatpush1.msra.mxu0 0.0
        %7654 = vmatprep.subr.mxu0 0.0
        %7655 = vmatpush1.msra.mxu0 0.0
        %7656 = vmatprep.subr.mxu0 0.0
        %7657 = vmatpush1.msra.mxu0 0.0
        %7658 = vmatprep.subr.mxu0 0.0
        %7659 = vmatpush1.msra.mxu0 0.0
        %7660 = vmatprep.subr.mxu0 0.0
        %7661 = vmatpush1.msra.mxu0 0.0
        %7662 = vmatprep.subr.mxu0 0.0
        %7663 = vmatpush1.msra.mxu0 0.0
        %7664 = vmatprep.subr.mxu0 0.0
        %7665 = vmatpush1.msra.mxu0 0.0
        %7666 = vmatprep.subr.mxu0 0.0
        %7667 = vmatpush1.msra.mxu0 0.0
        %7668 = vmatprep.subr.mxu0 0.0
        %7669 = vmatpush1.msra.mxu0 0.0
        %7670 = vmatprep.subr.mxu0 0.0
        %7671 = vmatpush1.msra.mxu0 0.0
        %7672 = vmatprep.subr.mxu0 0.0
        %7673 = vmatpush1.msra.mxu0 0.0
        %7674 = vmatprep.subr.mxu0 0.0
        %7675 = vmatpush1.msra.mxu0 0.0
        %7676 = vmatprep.subr.mxu0 0.0
        %7677 = vmatpush1.msra.mxu0 0.0
        %7678 = vmatprep.subr.mxu0 0.0
        %7679 = vmatpush1.msra.mxu0 0.0
        %7680 = vmatprep.subr.mxu0 0.0
        %7681 = vmatpush1.msra.mxu0 0.0
        %7682 = vmatprep.subr.mxu0 0.0
        %7683 = vmatpush1.msra.mxu0 0.0
        %7684 = vmatprep.subr.mxu0 0.0
        %7685 = vmatpush1.msra.mxu0 0.0
        %7686 = vmatprep.subr.mxu0 0.0
        %7687 = vmatpush1.msra.mxu0 0.0
        %7688 = vmatprep.subr.mxu0 0.0
        %7689 = vmatpush1.msra.mxu0 0.0
        %7690 = vmatprep.subr.mxu0 0.0
        %7691 = vmatpush1.msra.mxu0 0.0
        %7692 = vmatprep.subr.mxu0 0.0
        %7693 = vmatpush1.msra.mxu0 0.0
        %7694 = vmatprep.subr.mxu0 0.0
        %7695 = vmatpush1.msra.mxu0 0.0
        %7696 = vmatprep.mubr.f32.mxu0 0.0
        %7697 = vmatmul.mubr.f32.gmra.mrb[0].mxu0 %v7627
        %v7698 = vpop.f32.mrb[0].mxu0
        %v7699 = vadd.f32 %v7623, %v7698
        %v7700 = vpop.f32.mrb[0].mxu0
        %7701 = vmatprep.mubr.f32.mxu0 0.0
        %7702 = vmatmul.mubr.f32.gmra.mrb[0].mxu0 %v7630
        %v7703 = vpop.f32.mrb[0].mxu0
        %v7704 = vadd.f32 %v7623, %v7703
        %v7705 = vpop.f32.mrb[0].mxu0
        %7706 = vdwg.mxu0
        %v7707 = vmax.f32 %v7699, 0.0
        %v7708 = vmax.f32 %v7704, 0.0
        %v7709 = vld [vmem:[%s15] sm:$0xff]
        %v7710 = vld [vmem:[%s15 + $0x8] sm:$0xff]
        %v7711 = vld [vmem:[%s15 + $0x10] sm:$0xff]
        %v7712 = vld [vmem:[%s15 + $0x18] sm:$0xff]
        %v7713 = vld [vmem:[%s16] sm:$0x1]
        %v7715 = vlaneseq
        %v7716 = vshrl.u32 %v7715, 7
        %v7717 = vsub.s32 0, %v7716
        %v7718 = vrot.slane %v7713, %v7717
        %vm7720 = vcmask 261120
        %v7722 = vsel %vm7720, %v7707, 0
        %v7725 = vsel %vm7720, %v7708, 0
        %7727 = vmatprep.subr.mxu0 0.0
        %7728 = vmatpush1.msra.mxu0 %v7709
        %7729 = vmatprep.subr.mxu0 0.0
        %7730 = vmatpush1.msra.mxu0 %v7710
        %7731 = vmatprep.subr.mxu0 0.0
        %7732 = vmatpush1.msra.mxu0 %v7711
        %7733 = vmatprep.subr.mxu0 0.0
        %7734 = vmatpush1.msra.mxu0 %v7712
        %7735 = vmatprep.subr.mxu0 0.0
        %7736 = vmatpush1.msra.mxu0 0.0
        %7737 = vmatprep.subr.mxu0 0.0
        %7738 = vmatpush1.msra.mxu0 0.0
        %7739 = vmatprep.subr.mxu0 0.0
        %7740 = vmatpush1.msra.mxu0 0.0
        %7741 = vmatprep.subr.mxu0 0.0
        %7742 = vmatpush1.msra.mxu0 0.0
        %7743 = vmatprep.subr.mxu0 0.0
        %7744 = vmatpush1.msra.mxu0 0.0
        %7745 = vmatprep.subr.mxu0 0.0
        %7746 = vmatpush1.msra.mxu0 0.0
        %7747 = vmatprep.subr.mxu0 0.0
        %7748 = vmatpush1.msra.mxu0 0.0
        %7749 = vmatprep.subr.mxu0 0.0
        %7750 = vmatpush1.msra.mxu0 0.0
        %7751 = vmatprep.subr.mxu0 0.0
        %7752 = vmatpush1.msra.mxu0 0.0
        %7753 = vmatprep.subr.mxu0 0.0
        %7754 = vmatpush1.msra.mxu0 0.0
        %7755 = vmatprep.subr.mxu0 0.0
        %7756 = vmatpush1.msra.mxu0 0.0
        %7757 = vmatprep.subr.mxu0 0.0
        %7758 = vmatpush1.msra.mxu0 0.0
        %7759 = vmatprep.subr.mxu0 0.0
        %7760 = vmatpush1.msra.mxu0 0.0
        %7761 = vmatprep.subr.mxu0 0.0
        %7762 = vmatpush1.msra.mxu0 0.0
        %7763 = vmatprep.subr.mxu0 0.0
        %7764 = vmatpush1.msra.mxu0 0.0
        %7765 = vmatprep.subr.mxu0 0.0
        %7766 = vmatpush1.msra.mxu0 0.0
        %7767 = vmatprep.subr.mxu0 0.0
        %7768 = vmatpush1.msra.mxu0 0.0
        %7769 = vmatprep.subr.mxu0 0.0
        %7770 = vmatpush1.msra.mxu0 0.0
        %7771 = vmatprep.subr.mxu0 0.0
        %7772 = vmatpush1.msra.mxu0 0.0
        %7773 = vmatprep.subr.mxu0 0.0
        %7774 = vmatpush1.msra.mxu0 0.0
        %7775 = vmatprep.subr.mxu0 0.0
        %7776 = vmatpush1.msra.mxu0 0.0
        %7777 = vmatprep.subr.mxu0 0.0
        %7778 = vmatpush1.msra.mxu0 0.0
        %7779 = vmatprep.subr.mxu0 0.0
        %7780 = vmatpush1.msra.mxu0 0.0
        %7781 = vmatprep.subr.mxu0 0.0
        %7782 = vmatpush1.msra.mxu0 0.0
        %7783 = vmatprep.subr.mxu0 0.0
        %7784 = vmatpush1.msra.mxu0 0.0
        %7785 = vmatprep.subr.mxu0 0.0
        %7786 = vmatpush1.msra.mxu0 0.0
        %7787 = vmatprep.subr.mxu0 0.0
        %7788 = vmatpush1.msra.mxu0 0.0
        %7789 = vmatprep.subr.mxu0 0.0
        %7790 = vmatpush1.msra.mxu0 0.0
        %7791 = vmatprep.mubr.f32.mxu0 0.0
        %7792 = vmatmul.mubr.f32.gmra.mrb[0].mxu0 %v7722
        %v7793 = vpop.f32.mrb[0].mxu0
        %v7794 = vadd.f32 %v7718, %v7793
        %v7795 = vpop.f32.mrb[0].mxu0
        %7796 = vmatprep.mubr.f32.mxu0 0.0
        %7797 = vmatmul.mubr.f32.gmra.mrb[0].mxu0 %v7725
        %v7798 = vpop.f32.mrb[0].mxu0
        %v7799 = vadd.f32 %v7718, %v7798
        %v7800 = vpop.f32.mrb[0].mxu0
        %7801 = vdwg.mxu0
        %7802 = vst.msk [vmem:[%s616] sm:$0xff] %vm7522, %v7794
        %7803 = vst.msk [vmem:[%s616 + $0x8] sm:$0xff] %vm7522, %v7799
        %s7804 = smul.u32 2, %s28
        %p7805 = scmp.lt.s32.totalorder %s7804, 3
        %s7806 = scalar_select %p7805, %s7804, 3
        %s7807 = smul.addr %s7806, 8
        %s7808 = scalar_lea.vmem %s17, %s7807
        // Predicated region
        $region112: #{lenet_forward.1} parent=106 // pred_check
          %p7809 = pneg %p408
        $region113: #{lenet_forward.1} parent=106 // pred_check_branch
          %7811 = sbr.rel (%p7809) target = $region115
        $region114: #{lenet_forward.1} parent=106 // pred_region
          %s7812 = smul.u32 2, %s28
        $region115: #{lenet_forward.1} parent=106 // pred_fallthru
          _
      $region107: #{lenet_forward.1} parent=5 // pred_fallthru
        _
      %p7813 = scmp.le.s32.totalorder 2, %s23
      // Predicated region
      $region116: #{lenet_forward.1} parent=5 // pred_check
        %p7814 = pneg %p7813
      $region117: #{lenet_forward.1} parent=5 // pred_check_branch
        %7816 = sbr.rel (%p7814) target = $region119
      $region118: #{lenet_forward.1} parent=5 // pred_region
        %s7817 = ssub.s32 %s23, 2
        // Predicated region
        $region120: #{lenet_forward.1} parent=118 // pred_check
          %p7818 = pneg %p414
        $region121: #{lenet_forward.1} parent=118 // pred_check_branch
          %7820 = sbr.rel (%p7818) target = $region123
        $region122: #{lenet_forward.1} parent=118 // pred_region
          %s7821 = smul.u32 2, %s29
          %p7822 = scmp.lt.s32.totalorder %s7821, 3
          %s7823 = scalar_select %p7822, %s7821, 3
          %s7824 = smul.addr %s7823, 8
          %s7825 = scalar_lea.vmem %s17, %s7824
        $region123: #{lenet_forward.1} parent=118 // pred_fallthru
          _
      $region119: #{lenet_forward.1} parent=5 // pred_fallthru
        _
    $region6: #{lenet_forward.1} parent=1 // loop_footer
      %s27 = sadd.s32 1, %s23
    $region7: #{lenet_forward.1} parent=1 // loop_footer_branch
      %22 = sbr.rel target = $region3
    $region8: #{lenet_forward.1} parent=1 // loop_exit
      _

</llo_original>
